<compile_context>
chip_gen: v7x
topology: tpu7x:2x2x1
jax: 0.10.0
libtpu: 0.0.40
codegen_flags: <defaults>
</compile_context>

<pallas_src>
import functools
import math

import jax
import jax.numpy as jnp
from jax.experimental import pallas as pl
from jax.experimental.pallas import tpu as pltpu


LANE = 128                      # lane-dense channel / output width


def _round_up(x, m):
    return (x + m - 1) // m * m


def _compiler_params(dims, est_bytes):
    # Generous-but-bounded scoped-VMEM request: >= footprint with 4x margin,
    # floor 8 MiB, cap 32 MiB (safe on v5e/v6e/v7x).
    limit = int(min(max(4 * est_bytes, 8 << 20), 32 << 20))
    return pltpu.CompilerParams(dimension_semantics=dims, vmem_limit_bytes=limit)


# ----------------------------------------------------------------------------
# Pallas kernel: (TM, K) x (K, 128) matmul + bias + optional ReLU (f32 accum).
# ----------------------------------------------------------------------------
def _matmul_bias_act_kernel(x_ref, w_ref, b_ref, o_ref, *, relu):
    acc = jnp.dot(x_ref[...], w_ref[...], preferred_element_type=jnp.float32)
    acc = acc + b_ref[...]                       # (1, 128) broadcasts over rows
    if relu:
        acc = jnp.maximum(acc, 0.0)
    o_ref[...] = acc.astype(o_ref.dtype)


def pallas_linear(x, w, b, *, relu, out_dtype):
    """y = act(x @ w + b).  x:(M,K) bf16, w:(K,N) bf16 (N % 128 == 0), b:(N,) f32."""
    M, K = x.shape
    Kw, N = w.shape
    assert K == Kw and N % LANE == 0

    itemsize = x.dtype.itemsize
    if M < 64:
        # Whole-M single block (legal: full-extent dim); too small to split.
        tm, mp, xp = M, M, x
    else:
        # ~1 MiB activation blocks, at least 2 M-blocks (keeps v7x's second
        # TensorCore busy and restores DMA/compute pipelining), rows % 8 == 0.
        tm_budget = max(8, ((1 << 20) // max(1, K * itemsize)) // 8 * 8)
        tm = max(8, min(tm_budget, _round_up(pl.cdiv(M, 2), 8)))
        mp = _round_up(M, tm)
        xp = jnp.pad(x, ((0, mp - M), (0, 0))) if mp != M else x

    b2 = b.reshape(1, N).astype(jnp.float32)
    est = (2 * (tm * K + K * LANE) * itemsize
           + 2 * tm * LANE * jnp.dtype(out_dtype).itemsize + N * 4)

    out = pl.pallas_call(
        functools.partial(_matmul_bias_act_kernel, relu=relu),
        out_shape=jax.ShapeDtypeStruct((mp, N), out_dtype),
        grid_spec=pltpu.PrefetchScalarGridSpec(
            num_scalar_prefetch=0,
            grid=(mp // tm, N // LANE),
            in_specs=[
                pl.BlockSpec((tm, K), lambda i, j: (i, 0)),    # activation rows
                pl.BlockSpec((K, LANE), lambda i, j: (0, j)),  # weight column tile
                pl.BlockSpec((1, LANE), lambda i, j: (0, j)),  # bias slice
            ],
            out_specs=pl.BlockSpec((tm, LANE), lambda i, j: (i, j)),
        ),
        compiler_params=_compiler_params(("parallel", "parallel"), est),
    )(xp, w, b2)
    return out if mp == M else out[:M]


# ----------------------------------------------------------------------------
# Fused tail: conv3 -> conv4 -> flatten -> Linear+ReLU -> policy/value heads,
# one pallas_call, grid over batch.  Used when conv4 consumes exactly the whole
# conv3 output (final 1x1 feature map), which holds for the Atari-style stack.
# ----------------------------------------------------------------------------
def _fused_tail_kernel(p3_ref, w3_ref, b3_ref, w4_ref, b4_ref,
                       wl_ref, bl_ref, wh_ref, bh_ref, o_ref, *, taps):
    # One batch sample per grid step.  conv3 is evaluated per output position q
    # and immediately folded into conv4's tap accumulation (no reshape needed).
    acc4 = b4_ref[...]                                     # (1, 128) f32
    for q in range(taps):                                  # static tap loop
        row = p3_ref[:, q, :]                              # (1, K3) bf16
        y3 = jnp.dot(row, w3_ref[...], preferred_element_type=jnp.float32)
        y3 = jnp.maximum(y3 + b3_ref[...], 0.0).astype(jnp.bfloat16)     # (1,128)
        acc4 = acc4 + jnp.dot(y3, w4_ref[q], preferred_element_type=jnp.float32)
    feat = jnp.maximum(acc4, 0.0).astype(jnp.bfloat16)     # conv4 + ReLU, (1,128)
    h = jnp.dot(feat, wl_ref[...], preferred_element_type=jnp.float32)
    h = jnp.maximum(h + bl_ref[...], 0.0).astype(jnp.bfloat16)           # (1,512)
    out = jnp.dot(h, wh_ref[...], preferred_element_type=jnp.float32)
    o_ref[0] = (out + bh_ref[...]).astype(o_ref.dtype)


def pallas_fused_tail(patches3, conv3, conv4, linear_p, heads_p):
    n, taps, k3 = patches3.shape
    wl, bl = linear_p                       # (128, 512) bf16, (512,) f32
    wh, bh = heads_p                        # (512, 128) bf16, (128,) f32
    hdim = wl.shape[1]
    nh = wh.shape[1]
    assert wl.shape[0] == LANE and hdim % LANE == 0 and nh % LANE == 0

    w3 = conv3["w"]                                          # (k3, 128) bf16
    b3 = conv3["b"].reshape(1, LANE).astype(jnp.float32)
    w4 = conv4["w_taps"]                                     # (taps, 128, 128) bf16
    b4 = conv4["b"].reshape(1, LANE).astype(jnp.float32)
    bl2 = bl.reshape(1, hdim).astype(jnp.float32)
    bh2 = bh.reshape(1, nh).astype(jnp.float32)

    est = (2 * taps * k3 * 2 + k3 * LANE * 2 + taps * LANE * LANE * 2
           + LANE * hdim * 2 + hdim * nh * 2 + (hdim + 4 * LANE + 2 * nh) * 4)

    out = pl.pallas_call(
        functools.partial(_fused_tail_kernel, taps=taps),
        out_shape=jax.ShapeDtypeStruct((n, 1, nh), jnp.float32),
        grid_spec=pltpu.PrefetchScalarGridSpec(
            num_scalar_prefetch=0,
            grid=(n,),
            in_specs=[
                pl.BlockSpec((1, taps, k3), lambda i: (i, 0, 0)),   # conv3 patches
                pl.BlockSpec((k3, LANE), lambda i: (0, 0)),         # W3
                pl.BlockSpec((1, LANE), lambda i: (0, 0)),          # b3
                pl.BlockSpec((taps, LANE, LANE), lambda i: (0, 0, 0)),  # W4 per tap
                pl.BlockSpec((1, LANE), lambda i: (0, 0)),          # b4
                pl.BlockSpec((LANE, hdim), lambda i: (0, 0)),       # W_linear
                pl.BlockSpec((1, hdim), lambda i: (0, 0)),          # b_linear
                pl.BlockSpec((hdim, nh), lambda i: (0, 0)),         # W_heads
                pl.BlockSpec((1, nh), lambda i: (0, 0)),            # b_heads
            ],
            out_specs=pl.BlockSpec((1, 1, nh), lambda i: (i, 0, 0)),
        ),
        compiler_params=_compiler_params(("parallel",), est),
    )(patches3, w3, b3, w4, b4, wl, bl2, wh, bh2)
    return out.reshape(n, nh)


# ----------------------------------------------------------------------------
# Fallback fused MLP/heads kernel (only used when the final map is not 1x1).
# ----------------------------------------------------------------------------
def _mlp_heads_kernel(x_ref, w1_ref, b1_ref, w2_ref, b2_ref, o_ref):
    h = jnp.dot(x_ref[...], w1_ref[...], preferred_element_type=jnp.float32)
    h = jnp.maximum(h + b1_ref[...], 0.0)
    out = jnp.dot(h.astype(w2_ref.dtype), w2_ref[...],
                  preferred_element_type=jnp.float32)
    o_ref[...] = (out + b2_ref[...]).astype(o_ref.dtype)


def pallas_mlp_heads(feat, w1, b1, w2, b2):
    M, K1 = feat.shape
    H = w1.shape[1]
    N2 = w2.shape[1]
    assert H % LANE == 0 and N2 % LANE == 0

    if M < 64:
        tm, mp, xp = M, M, feat
    else:
        tm = max(8, min(512, _round_up(pl.cdiv(M, 2), 8)))
        mp = _round_up(M, tm)
        xp = jnp.pad(feat, ((0, mp - M), (0, 0))) if mp != M else feat

    est = (2 * tm * K1 * 2 + K1 * H * 2 + H * N2 * 2
           + 2 * tm * N2 * 4 + tm * H * 4 + (H + N2) * 4)

    out = pl.pallas_call(
        _mlp_heads_kernel,
        out_shape=jax.ShapeDtypeStruct((mp, N2), jnp.float32),
        grid_spec=pltpu.PrefetchScalarGridSpec(
            num_scalar_prefetch=0,
            grid=(mp // tm,),
            in_specs=[
                pl.BlockSpec((tm, K1), lambda i: (i, 0)),
                pl.BlockSpec((K1, H), lambda i: (0, 0)),
                pl.BlockSpec((1, H), lambda i: (0, 0)),
                pl.BlockSpec((H, N2), lambda i: (0, 0)),
                pl.BlockSpec((1, N2), lambda i: (0, 0)),
            ],
            out_specs=pl.BlockSpec((tm, N2), lambda i: (i, 0)),
        ),
        compiler_params=_compiler_params(("parallel",), est),
    )(xp, w1, b1.reshape(1, H).astype(jnp.float32),
      w2, b2.reshape(1, N2).astype(jnp.float32))
    return out if mp == M else out[:M]


# ----------------------------------------------------------------------------
# Plain-JAX glue: im2col patch extraction (data rearrangement only, no FLOPs).
# ----------------------------------------------------------------------------
def im2col(x, kh, kw, sh, sw):
    """x: (N, H, W, C) -> patches (N*Hout*Wout, kh*kw*C), plus Hout, Wout."""
    n, h, w, c = x.shape
    hout = (h - kh) // sh + 1
    wout = (w - kw) // sw + 1
    cols = []
    for ky in range(kh):
        for kx in range(kw):
            cols.append(
                x[:, ky:ky + sh * (hout - 1) + 1:sh,
                     kx:kx + sw * (wout - 1) + 1:sw, :])
    patches = jnp.stack(cols, axis=-2)                 # (N, Hout, Wout, kh*kw, C)
    return patches.reshape(n * hout * wout, kh * kw * c), hout, wout


# ----------------------------------------------------------------------------
# Parameter construction (deterministic, PyTorch-default-style uniform init).
# Logical conv layout is (kh, kw, cin, cout).
# ----------------------------------------------------------------------------
CONV_CFG = [  # (cin, cout, kernel, stride) — matches AtariCNN
    (None, 32, 5, 2),
    (32, 64, 5, 2),
    (64, 64, 3, 2),
    (64, 64, 3, 1),
]


def conv_out_hw(h, w):
    for (_, _, k, s) in CONV_CFG:
        h = (h - k) // s + 1
        w = (w - k) // s + 1
    return h, w


def init_params(key, state_dim, action_dim, hidden_dim=512):
    c, h, w = state_dim
    cfg = [(c if cin is None else cin, cout, k, s) for (cin, cout, k, s) in CONV_CFG]

    params = {"convs": [], "action_dim": action_dim}
    for (cin, cout, k, s) in cfg:
        key, k1, k2 = jax.random.split(key, 3)
        bound = 1.0 / math.sqrt(cin * k * k)
        W = jax.random.uniform(k1, (k, k, cin, cout), jnp.float32, -bound, bound)
        b = jax.random.uniform(k2, (cout,), jnp.float32, -bound, bound)
        params["convs"].append((W, b, k, s))

    hf, wf = conv_out_hw(h, w)
    params["final_hw"] = (hf, wf)
    n_flatten = cfg[-1][1] * hf * wf

    key, k1, k2 = jax.random.split(key, 3)
    bound = 1.0 / math.sqrt(n_flatten)
    params["linear"] = (
        jax.random.uniform(k1, (n_flatten, hidden_dim), jnp.float32, -bound, bound),
        jax.random.uniform(k2, (hidden_dim,), jnp.float32, -bound, bound),
    )

    # Policy head (action_dim) and value head (1) fused into one matmul.
    key, k1, k2, k3, k4 = jax.random.split(key, 5)
    bound = 1.0 / math.sqrt(hidden_dim)
    w_pi = jax.random.uniform(k1, (hidden_dim, action_dim), jnp.float32, -bound, bound)
    b_pi = jax.random.uniform(k2, (action_dim,), jnp.float32, -bound, bound)
    w_v = jax.random.uniform(k3, (hidden_dim, 1), jnp.float32, -bound, bound)
    b_v = jax.random.uniform(k4, (1,), jnp.float32, -bound, bound)
    params["heads"] = (jnp.concatenate([w_pi, w_v], axis=1),
                       jnp.concatenate([b_pi, b_v], axis=0))
    return params


def prepare_params(params):
    """Pad / permute weights for 128-lane-dense kernels; cast matmul operands to
    bf16.  Runs once, outside the jitted forward.  Padded channels carry zeros
    (zero bias, zero rows downstream), so semantics are unchanged."""
    dev = {"action_dim": params["action_dim"], "final_hw": params["final_hw"]}

    convs = []
    n_conv = len(params["convs"])
    for li, (W, b, k, s) in enumerate(params["convs"]):
        kh, kw, cin, cout = W.shape
        cin_p = cin if li == 0 else LANE            # previous layer's padded cout
        Wp = jnp.zeros((kh, kw, cin_p, LANE), jnp.float32)
        Wp = Wp.at[:, :, :cin, :cout].set(W)
        entry = {
            "w": Wp.reshape(kh * kw * cin_p, LANE).astype(jnp.bfloat16),
            "b": jnp.zeros((LANE,), jnp.float32).at[:cout].set(b),
            "k": k, "s": s, "cout": cout,
        }
        if li == n_conv - 1:                        # per-tap view for fused tail
            entry["w_taps"] = Wp.reshape(kh * kw, cin_p, LANE).astype(jnp.bfloat16)
        convs.append(entry)
    dev["convs"] = convs

    # Linear(n_flatten, hidden): permute + zero-pad rows so it consumes the
    # lane-padded NHWC flatten of the last conv directly (no runtime transpose
    # or channel slice).  PyTorch flatten order is (c, y, x); ours is (y, x, c).
    w_lin, b_lin = params["linear"]                 # (cout*hf*wf, hidden), (hidden,)
    hf, wf = params["final_hw"]
    cout = convs[-1]["cout"]
    hidden = w_lin.shape[1]
    w_lin_p = w_lin.reshape(cout, hf, wf, hidden).transpose(1, 2, 0, 3)
    w_lin_p = jnp.pad(w_lin_p, ((0, 0), (0, 0), (0, LANE - cout), (0, 0)))
    dev["linear"] = (w_lin_p.reshape(hf * wf * LANE, hidden).astype(jnp.bfloat16),
                     b_lin.astype(jnp.float32))

    w_h, b_h = params["heads"]                      # (hidden, action_dim + 1)
    nh = w_h.shape[1]
    nh_p = _round_up(nh, LANE)
    dev["heads"] = (jnp.pad(w_h, ((0, 0), (0, nh_p - nh))).astype(jnp.bfloat16),
                    jnp.pad(b_h, ((0, nh_p - nh),)).astype(jnp.float32))
    return dev


# ----------------------------------------------------------------------------
# Forward pass == ActorCritic.forward
# ----------------------------------------------------------------------------
def actor_critic_forward(x_nchw, dev):
    n = x_nchw.shape[0]
    x = jnp.transpose(x_nchw, (0, 2, 3, 1)).astype(jnp.bfloat16)   # NCHW -> NHWC

    convs = dev["convs"]
    # conv1 / conv2 (largest activations): XLA im2col + Pallas matmul+bias+ReLU.
    # Channels stay 128-lane dense between layers (padded channels are inert).
    # TODO(synk): fold this im2col into the kernel (strided tap-loop DMA) to
    # remove duplicated-patch HBM traffic at large batch sizes.
    for conv in convs[:-2]:
        k, s = conv["k"], conv["s"]
        patches, hout, wout = im2col(x, k, k, s, s)
        y = pallas_linear(patches, conv["w"], conv["b"], relu=True,
                          out_dtype=jnp.bfloat16)
        x = y.reshape(n, hout, wout, LANE)

    c3, c4 = convs[-2], convs[-1]
    patches3, h3, w3 = im2col(x, c3["k"], c3["k"], c3["s"], c3["s"])
    w_lin, b_lin = dev["linear"]
    w_heads, b_heads = dev["heads"]

    if h3 == c4["k"] and w3 == c4["k"]:
        # conv4 consumes exactly the whole conv3 output (final 1x1 map): fuse
        # conv3 + conv4 + flatten + Linear+ReLU + heads into one launch.
        patches3 = patches3.reshape(n, h3 * w3, patches3.shape[1])
        heads = pallas_fused_tail(patches3, c3, c4,
                                  (w_lin, b_lin), (w_heads, b_heads))
    else:
        # General fallback: separate conv3 / conv4 matmuls + fused MLP/heads.
        y3 = pallas_linear(patches3, c3["w"], c3["b"], relu=True,
                           out_dtype=jnp.bfloat16)
        x3 = y3.reshape(n, h3, w3, LANE)
        patches4, h4, w4 = im2col(x3, c4["k"], c4["k"], c4["s"], c4["s"])
        y4 = pallas_linear(patches4, c4["w"], c4["b"], relu=True,
                           out_dtype=jnp.bfloat16)
        feat = y4.reshape(n, h4 * w4 * LANE)        # lane-padded NHWC flatten
        heads = pallas_mlp_heads(feat, w_lin, b_lin, w_heads, b_heads)

    action_dim = dev["action_dim"]
    return heads[:, :action_dim], heads[:, action_dim:action_dim + 1]


# Pure-f32 XLA reference (for the tolerance check below).
def reference_forward(x_nchw, params):
    x = jnp.transpose(x_nchw, (0, 2, 3, 1)).astype(jnp.float32)    # NHWC
    for (W, b, _, s) in params["convs"]:
        x = jax.lax.conv_general_dilated(
            x, W, window_strides=(s, s), padding="VALID",
            dimension_numbers=("NHWC", "HWIO", "NHWC"))
        x = jnp.maximum(x + b.reshape(1, 1, 1, -1), 0.0)
    feat = jnp.transpose(x, (0, 3, 1, 2)).reshape(x.shape[0], -1)  # NCHW flatten
    w_lin, b_lin = params["linear"]
    h = jnp.maximum(feat @ w_lin + b_lin, 0.0)
    w_h, b_h = params["heads"]
    out = h @ w_h + b_h
    a = params["action_dim"]
    return out[:, :a], out[:, a:a + 1]


if __name__ == "__main__":
    key = jax.random.PRNGKey(0)
    pkey, xkey = jax.random.split(key)

    # 40x40 spatial is the smallest round size that survives the 4-conv stack
    # (final feature map 1x1x64 -> n_flatten = 64); batch stays small.
    state_dim = (4, 40, 40)
    action_dim = 6
    batch = 2

    params = init_params(pkey, state_dim, action_dim, hidden_dim=512)
    dev_params = prepare_params(params)
    x = jax.random.normal(xkey, (batch,) + state_dim, jnp.float32)

    fwd = jax.jit(lambda inp: actor_critic_forward(inp, dev_params))
    logits, value = fwd(x)
    jax.block_until_ready((logits, value))

    assert logits.shape == (batch, action_dim), logits.shape
    assert value.shape == (batch, 1), value.shape
    assert jnp.all(jnp.isfinite(logits)) and jnp.all(jnp.isfinite(value))

    # bf16-operand / f32-accumulation kernels vs pure-f32 reference: agreement is
    # to a tolerance, not bit-exact (documented numeric contract).
    ref_logits, ref_value = reference_forward(x, params)
    tol = 5e-2
    assert float(jnp.max(jnp.abs(logits - ref_logits))) < (
        tol + tol * float(jnp.max(jnp.abs(ref_logits))))
    assert float(jnp.max(jnp.abs(value - ref_value))) < (
        tol + tol * float(jnp.max(jnp.abs(ref_value))))

    print("KERNEL_OK")
</pallas_src>

<mosaic_0001>
module attributes {stable_mosaic.version = 11 : i64} {
  func.func @_matmul_bias_act_kernel(%arg0: i32, %arg1: i32, %arg2: memref<328x100xbf16, #tpu.memory_space<vmem>>, %arg3: memref<100x128xbf16, #tpu.memory_space<vmem>>, %arg4: memref<1x128xf32, #tpu.memory_space<vmem>>, %arg5: memref<328x128xbf16, #tpu.memory_space<vmem>>) attributes {dimension_semantics = [#tpu.dimension_semantics<parallel>, #tpu.dimension_semantics<parallel>], iteration_bounds = array<i64: 2, 1>, scalar_prefetch = 0 : i64, scratch_operands = 0 : i64, tpu.core_type = #tpu.core_type<tc>, window_params = [{transform_indices = @transform_0, window_bounds = array<i64: 328, 100>}, {transform_indices = @transform_1, window_bounds = array<i64: 100, 128>}, {transform_indices = @transform_2, window_bounds = array<i64: 1, 128>}, {transform_indices = @transform_3, window_bounds = array<i64: 328, 128>}]} {
    %c0 = arith.constant 0 : index
    %c0_0 = arith.constant 0 : index
    %0 = vector.load %arg2[%c0, %c0_0] : memref<328x100xbf16, #tpu.memory_space<vmem>>, vector<328x100xbf16>
    %c0_1 = arith.constant 0 : index
    %c0_2 = arith.constant 0 : index
    %1 = vector.load %arg3[%c0_1, %c0_2] : memref<100x128xbf16, #tpu.memory_space<vmem>>, vector<100x128xbf16>
    %cst = arith.constant dense<0.000000e+00> : vector<328x128xf32>
    %2 = tpu.matmul %0, %1, %cst {dimension_numbers = #tpu.dot_dimension_numbers<[1], [0], [0], [1], [0, 0, 1, 1], [], []>} : vector<328x100xbf16>, vector<100x128xbf16>, vector<328x128xf32> -> vector<328x128xf32>
    %c0_3 = arith.constant 0 : index
    %c0_4 = arith.constant 0 : index
    %3 = vector.load %arg4[%c0_3, %c0_4] : memref<1x128xf32, #tpu.memory_space<vmem>>, vector<1x128xf32>
    %4 = vector.broadcast %3 : vector<1x128xf32> to vector<328x128xf32>
    %5 = arith.addf %2, %4 : vector<328x128xf32>
    %cst_5 = arith.constant 0.000000e+00 : f32
    %6 = vector.broadcast %cst_5 : f32 to vector<328x128xf32>
    %7 = arith.maximumf %5, %6 : vector<328x128xf32>
    %8 = arith.truncf %7 : vector<328x128xf32> to vector<328x128xbf16>
    %c0_6 = arith.constant 0 : index
    %c0_7 = arith.constant 0 : index
    %9 = vector.load %arg5[%c0_6, %c0_7] : memref<328x128xbf16, #tpu.memory_space<vmem>>, vector<328x128xbf16>
    tpu.vector_store %arg5[%c0_6, %c0_7], %8 {strides = array<i32>} : memref<328x128xbf16, #tpu.memory_space<vmem>>, vector<328x128xbf16>,
    return
  }
  func.func @transform_0(%arg0: i32, %arg1: i32) -> (i32, i32) {
    %c0_i32 = arith.constant 0 : i32
    %c0_i32_0 = arith.constant 0 : i32
    return %arg0, %c0_i32 : i32, i32
  }
  func.func @transform_1(%arg0: i32, %arg1: i32) -> (i32, i32) {
    %c0_i32 = arith.constant 0 : i32
    %c0_i32_0 = arith.constant 0 : i32
    return %c0_i32, %arg1 : i32, i32
  }
  func.func @transform_2(%arg0: i32, %arg1: i32) -> (i32, i32) {
    %c0_i32 = arith.constant 0 : i32
    %c0_i32_0 = arith.constant 0 : i32
    return %c0_i32, %arg1 : i32, i32
  }
  func.func @transform_3(%arg0: i32, %arg1: i32) -> (i32, i32) {
    %c0_i32 = arith.constant 0 : i32
    return %arg0, %arg1 : i32, i32
  }
}

module attributes {stable_mosaic.version = 11 : i64} {
  func.func @_matmul_bias_act_kernel(%arg0: i32, %arg1: i32, %arg2: memref<56x3200xbf16, #tpu.memory_space<vmem>>, %arg3: memref<3200x128xbf16, #tpu.memory_space<vmem>>, %arg4: memref<1x128xf32, #tpu.memory_space<vmem>>, %arg5: memref<56x128xbf16, #tpu.memory_space<vmem>>) attributes {dimension_semantics = [#tpu.dimension_semantics<parallel>, #tpu.dimension_semantics<parallel>], iteration_bounds = array<i64: 2, 1>, scalar_prefetch = 0 : i64, scratch_operands = 0 : i64, tpu.core_type = #tpu.core_type<tc>, window_params = [{transform_indices = @transform_0, window_bounds = array<i64: 56, 3200>}, {transform_indices = @transform_1, window_bounds = array<i64: 3200, 128>}, {transform_indices = @transform_2, window_bounds = array<i64: 1, 128>}, {transform_indices = @transform_3, window_bounds = array<i64: 56, 128>}]} {
    %c0 = arith.constant 0 : index
    %c0_0 = arith.constant 0 : index
    %0 = vector.load %arg2[%c0, %c0_0] : memref<56x3200xbf16, #tpu.memory_space<vmem>>, vector<56x3200xbf16>
    %c0_1 = arith.constant 0 : index
    %c0_2 = arith.constant 0 : index
    %1 = vector.load %arg3[%c0_1, %c0_2] : memref<3200x128xbf16, #tpu.memory_space<vmem>>, vector<3200x128xbf16>
    %cst = arith.constant dense<0.000000e+00> : vector<56x128xf32>
    %2 = tpu.matmul %0, %1, %cst {dimension_numbers = #tpu.dot_dimension_numbers<[1], [0], [0], [1], [0, 0, 1, 1], [], []>} : vector<56x3200xbf16>, vector<3200x128xbf16>, vector<56x128xf32> -> vector<56x128xf32>
    %c0_3 = arith.constant 0 : index
    %c0_4 = arith.constant 0 : index
    %3 = vector.load %arg4[%c0_3, %c0_4] : memref<1x128xf32, #tpu.memory_space<vmem>>, vector<1x128xf32>
    %4 = vector.broadcast %3 : vector<1x128xf32> to vector<56x128xf32>
    %5 = arith.addf %2, %4 : vector<56x128xf32>
    %cst_5 = arith.constant 0.000000e+00 : f32
    %6 = vector.broadcast %cst_5 : f32 to vector<56x128xf32>
    %7 = arith.maximumf %5, %6 : vector<56x128xf32>
    %8 = arith.truncf %7 : vector<56x128xf32> to vector<56x128xbf16>
    %c0_6 = arith.constant 0 : index
    %c0_7 = arith.constant 0 : index
    %9 = vector.load %arg5[%c0_6, %c0_7] : memref<56x128xbf16, #tpu.memory_space<vmem>>, vector<56x128xbf16>
    tpu.vector_store %arg5[%c0_6, %c0_7], %8 {strides = array<i32>} : memref<56x128xbf16, #tpu.memory_space<vmem>>, vector<56x128xbf16>,
    return
  }
  func.func @transform_0(%arg0: i32, %arg1: i32) -> (i32, i32) {
    %c0_i32 = arith.constant 0 : i32
    %c0_i32_0 = arith.constant 0 : i32
    return %arg0, %c0_i32 : i32, i32
  }
  func.func @transform_1(%arg0: i32, %arg1: i32) -> (i32, i32) {
    %c0_i32 = arith.constant 0 : i32
    %c0_i32_0 = arith.constant 0 : i32
    return %c0_i32, %arg1 : i32, i32
  }
  func.func @transform_2(%arg0: i32, %arg1: i32) -> (i32, i32) {
    %c0_i32 = arith.constant 0 : i32
    %c0_i32_0 = arith.constant 0 : i32
    return %c0_i32, %arg1 : i32, i32
  }
  func.func @transform_3(%arg0: i32, %arg1: i32) -> (i32, i32) {
    %c0_i32 = arith.constant 0 : i32
    return %arg0, %arg1 : i32, i32
  }
}

module attributes {stable_mosaic.version = 11 : i64} {
  func.func @_fused_tail_kernel(%arg0: i32, %arg1: memref<1x9x1152xbf16, #tpu.memory_space<vmem>>, %arg2: memref<1152x128xbf16, #tpu.memory_space<vmem>>, %arg3: memref<1x128xf32, #tpu.memory_space<vmem>>, %arg4: memref<9x128x128xbf16, #tpu.memory_space<vmem>>, %arg5: memref<1x128xf32, #tpu.memory_space<vmem>>, %arg6: memref<128x512xbf16, #tpu.memory_space<vmem>>, %arg7: memref<1x512xf32, #tpu.memory_space<vmem>>, %arg8: memref<512x128xbf16, #tpu.memory_space<vmem>>, %arg9: memref<1x128xf32, #tpu.memory_space<vmem>>, %arg10: memref<1x1x128xf32, #tpu.memory_space<vmem>>) attributes {dimension_semantics = [#tpu.dimension_semantics<parallel>], iteration_bounds = array<i64: 2>, scalar_prefetch = 0 : i64, scratch_operands = 0 : i64, tpu.core_type = #tpu.core_type<tc>, window_params = [{transform_indices = @transform_0, window_bounds = array<i64: 1, 9, 1152>}, {pipeline_mode = #tpu.pipeline_mode<synchronous>, transform_indices = @transform_1, window_bounds = array<i64: 1152, 128>}, {pipeline_mode = #tpu.pipeline_mode<synchronous>, transform_indices = @transform_2, window_bounds = array<i64: 1, 128>}, {pipeline_mode = #tpu.pipeline_mode<synchronous>, transform_indices = @transform_3, window_bounds = array<i64: 9, 128, 128>}, {pipeline_mode = #tpu.pipeline_mode<synchronous>, transform_indices = @transform_4, window_bounds = array<i64: 1, 128>}, {pipeline_mode = #tpu.pipeline_mode<synchronous>, transform_indices = @transform_5, window_bounds = array<i64: 128, 512>}, {pipeline_mode = #tpu.pipeline_mode<synchronous>, transform_indices = @transform_6, window_bounds = array<i64: 1, 512>}, {pipeline_mode = #tpu.pipeline_mode<synchronous>, transform_indices = @transform_7, window_bounds = array<i64: 512, 128>}, {pipeline_mode = #tpu.pipeline_mode<synchronous>, transform_indices = @transform_8, window_bounds = array<i64: 1, 128>}, {transform_indices = @transform_9, window_bounds = array<i64: 1, 1, 128>}]} {
    %c0 = arith.constant 0 : index
    %c0_0 = arith.constant 0 : index
    %0 = vector.load %arg5[%c0, %c0_0] : memref<1x128xf32, #tpu.memory_space<vmem>>, vector<1x128xf32>
    %c0_1 = arith.constant 0 : index
    %c0_2 = arith.constant 0 : index
    %c0_3 = arith.constant 0 : index
    %1 = vector.load %arg1[%c0_1, %c0_2, %c0_3] : memref<1x9x1152xbf16, #tpu.memory_space<vmem>>, vector<1x1x1152xbf16>
    %2 = vector.shape_cast %1 : vector<1x1x1152xbf16> to vector<1x1152xbf16>
    %c0_4 = arith.constant 0 : index
    %c0_5 = arith.constant 0 : index
    %3 = vector.load %arg2[%c0_4, %c0_5] : memref<1152x128xbf16, #tpu.memory_space<vmem>>, vector<1152x128xbf16>
    %cst = arith.constant dense<0.000000e+00> : vector<1x128xf32>
    %4 = tpu.matmul %2, %3, %cst {dimension_numbers = #tpu.dot_dimension_numbers<[1], [0], [0], [1], [0, 0, 1, 1], [], []>} : vector<1x1152xbf16>, vector<1152x128xbf16>, vector<1x128xf32> -> vector<1x128xf32>
    %c0_6 = arith.constant 0 : index
    %c0_7 = arith.constant 0 : index
    %5 = vector.load %arg3[%c0_6, %c0_7] : memref<1x128xf32, #tpu.memory_space<vmem>>, vector<1x128xf32>
    %6 = arith.addf %4, %5 : vector<1x128xf32>
    %cst_8 = arith.constant 0.000000e+00 : f32
    %7 = vector.broadcast %cst_8 : f32 to vector<1x128xf32>
    %8 = arith.maximumf %6, %7 : vector<1x128xf32>
    %9 = arith.truncf %8 : vector<1x128xf32> to vector<1x128xbf16>
    %c0_9 = arith.constant 0 : index
    %c0_10 = arith.constant 0 : index
    %c0_11 = arith.constant 0 : index
    %10 = vector.load %arg4[%c0_9, %c0_10, %c0_11] : memref<9x128x128xbf16, #tpu.memory_space<vmem>>, vector<1x128x128xbf16>
    %11 = vector.shape_cast %10 : vector<1x128x128xbf16> to vector<128x128xbf16>
    %cst_12 = arith.constant dense<0.000000e+00> : vector<1x128xf32>
    %12 = tpu.matmul %9, %11, %cst_12 {dimension_numbers = #tpu.dot_dimension_numbers<[1], [0], [0], [1], [0, 0, 1, 1], [], []>} : vector<1x128xbf16>, vector<128x128xbf16>, vector<1x128xf32> -> vector<1x128xf32>
    %13 = arith.addf %0, %12 : vector<1x128xf32>
    %c0_13 = arith.constant 0 : index
    %c1 = arith.constant 1 : index
    %c0_14 = arith.constant 0 : index
    %14 = vector.load %arg1[%c0_13, %c1, %c0_14] : memref<1x9x1152xbf16, #tpu.memory_space<vmem>>, vector<1x1x1152xbf16>
    %15 = vector.shape_cast %14 : vector<1x1x1152xbf16> to vector<1x1152xbf16>
    %c0_15 = arith.constant 0 : index
    %c0_16 = arith.constant 0 : index
    %16 = vector.load %arg2[%c0_15, %c0_16] : memref<1152x128xbf16, #tpu.memory_space<vmem>>, vector<1152x128xbf16>
    %cst_17 = arith.constant dense<0.000000e+00> : vector<1x128xf32>
    %17 = tpu.matmul %15, %16, %cst_17 {dimension_numbers = #tpu.dot_dimension_numbers<[1], [0], [0], [1], [0, 0, 1, 1], [], []>} : vector<1x1152xbf16>, vector<1152x128xbf16>, vector<1x128xf32> -> vector<1x128xf32>
    %c0_18 = arith.constant 0 : index
    %c0_19 = arith.constant 0 : index
    %18 = vector.load %arg3[%c0_18, %c0_19] : memref<1x128xf32, #tpu.memory_space<vmem>>, vector<1x128xf32>
    %19 = arith.addf %17, %18 : vector<1x128xf32>
    %cst_20 = arith.constant 0.000000e+00 : f32
    %20 = vector.broadcast %cst_20 : f32 to vector<1x128xf32>
    %21 = arith.maximumf %19, %20 : vector<1x128xf32>
    %22 = arith.truncf %21 : vector<1x128xf32> to vector<1x128xbf16>
    %c1_21 = arith.constant 1 : index
    %c0_22 = arith.constant 0 : index
    %c0_23 = arith.constant 0 : index
    %23 = vector.load %arg4[%c1_21, %c0_22, %c0_23] : memref<9x128x128xbf16, #tpu.memory_space<vmem>>, vector<1x128x128xbf16>
    %24 = vector.shape_cast %23 : vector<1x128x128xbf16> to vector<128x128xbf16>
    %cst_24 = arith.constant dense<0.000000e+00> : vector<1x128xf32>
    %25 = tpu.matmul %22, %24, %cst_24 {dimension_numbers = #tpu.dot_dimension_numbers<[1], [0], [0], [1], [0, 0, 1, 1], [], []>} : vector<1x128xbf16>, vector<128x128xbf16>, vector<1x128xf32> -> vector<1x128xf32>
    %26 = arith.addf %13, %25 : vector<1x128xf32>
    %c0_25 = arith.constant 0 : index
    %c2 = arith.constant 2 : index
    %c0_26 = arith.constant 0 : index
    %27 = vector.load %arg1[%c0_25, %c2, %c0_26] : memref<1x9x1152xbf16, #tpu.memory_space<vmem>>, vector<1x1x1152xbf16>
    %28 = vector.shape_cast %27 : vector<1x1x1152xbf16> to vector<1x1152xbf16>
    %c0_27 = arith.constant 0 : index
    %c0_28 = arith.constant 0 : index
    %29 = vector.load %arg2[%c0_27, %c0_28] : memref<1152x128xbf16, #tpu.memory_space<vmem>>, vector<1152x128xbf16>
    %cst_29 = arith.constant dense<0.000000e+00> : vector<1x128xf32>
    %30 = tpu.matmul %28, %29, %cst_29 {dimension_numbers = #tpu.dot_dimension_numbers<[1], [0], [0], [1], [0, 0, 1, 1], [], []>} : vector<1x1152xbf16>, vector<1152x128xbf16>, vector<1x128xf32> -> vector<1x128xf32>
    %c0_30 = arith.constant 0 : index
    %c0_31 = arith.constant 0 : index
    %31 = vector.load %arg3[%c0_30, %c0_31] : memref<1x128xf32, #tpu.memory_space<vmem>>, vector<1x128xf32>
    %32 = arith.addf %30, %31 : vector<1x128xf32>
    %cst_32 = arith.constant 0.000000e+00 : f32
    %33 = vector.broadcast %cst_32 : f32 to vector<1x128xf32>
    %34 = arith.maximumf %32, %33 : vector<1x128xf32>
    %35 = arith.truncf %34 : vector<1x128xf32> to vector<1x128xbf16>
    %c2_33 = arith.constant 2 : index
    %c0_34 = arith.constant 0 : index
    %c0_35 = arith.constant 0 : index
    %36 = vector.load %arg4[%c2_33, %c0_34, %c0_35] : memref<9x128x128xbf16, #tpu.memory_space<vmem>>, vector<1x128x128xbf16>
    %37 = vector.shape_cast %36 : vector<1x128x128xbf16> to vector<128x128xbf16>
    %cst_36 = arith.constant dense<0.000000e+00> : vector<1x128xf32>
    %38 = tpu.matmul %35, %37, %cst_36 {dimension_numbers = #tpu.dot_dimension_numbers<[1], [0], [0], [1], [0, 0, 1, 1], [], []>} : vector<1x128xbf16>, vector<128x128xbf16>, vector<1x128xf32> -> vector<1x128xf32>
    %39 = arith.addf %26, %38 : vector<1x128xf32>
    %c0_37 = arith.constant 0 : index
    %c3 = arith.constant 3 : index
    %c0_38 = arith.constant 0 : index
    %40 = vector.load %arg1[%c0_37, %c3, %c0_38] : memref<1x9x1152xbf16, #tpu.memory_space<vmem>>, vector<1x1x1152xbf16>
    %41 = vector.shape_cast %40 : vector<1x1x1152xbf16> to vector<1x1152xbf16>
    %c0_39 = arith.constant 0 : index
    %c0_40 = arith.constant 0 : index
    %42 = vector.load %arg2[%c0_39, %c0_40] : memref<1152x128xbf16, #tpu.memory_space<vmem>>, vector<1152x128xbf16>
    %cst_41 = arith.constant dense<0.000000e+00> : vector<1x128xf32>
    %43 = tpu.matmul %41, %42, %cst_41 {dimension_numbers = #tpu.dot_dimension_numbers<[1], [0], [0], [1], [0, 0, 1, 1], [], []>} : vector<1x1152xbf16>, vector<1152x128xbf16>, vector<1x128xf32> -> vector<1x128xf32>
    %c0_42 = arith.constant 0 : index
    %c0_43 = arith.constant 0 : index
    %44 = vector.load %arg3[%c0_42, %c0_43] : memref<1x128xf32, #tpu.memory_space<vmem>>, vector<1x128xf32>
    %45 = arith.addf %43, %44 : vector<1x128xf32>
    %cst_44 = arith.constant 0.000000e+00 : f32
    %46 = vector.broadcast %cst_44 : f32 to vector<1x128xf32>
    %47 = arith.maximumf %45, %46 : vector<1x128xf32>
    %48 = arith.truncf %47 : vector<1x128xf32> to vector<1x128xbf16>
    %c3_45 = arith.constant 3 : index
    %c0_46 = arith.constant 0 : index
    %c0_47 = arith.constant 0 : index
    %49 = vector.load %arg4[%c3_45, %c0_46, %c0_47] : memref<9x128x128xbf16, #tpu.memory_space<vmem>>, vector<1x128x128xbf16>
    %50 = vector.shape_cast %49 : vector<1x128x128xbf16> to vector<128x128xbf16>
    %cst_48 = arith.constant dense<0.000000e+00> : vector<1x128xf32>
    %51 = tpu.matmul %48, %50, %cst_48 {dimension_numbers = #tpu.dot_dimension_numbers<[1], [0], [0], [1], [0, 0, 1, 1], [], []>} : vector<1x128xbf16>, vector<128x128xbf16>, vector<1x128xf32> -> vector<1x128xf32>
    %52 = arith.addf %39, %51 : vector<1x128xf32>
    %c0_49 = arith.constant 0 : index
    %c4 = arith.constant 4 : index
    %c0_50 = arith.constant 0 : index
    %53 = vector.load %arg1[%c0_49, %c4, %c0_50] : memref<1x9x1152xbf16, #tpu.memory_space<vmem>>, vector<1x1x1152xbf16>
    %54 = vector.shape_cast %53 : vector<1x1x1152xbf16> to vector<1x1152xbf16>
    %c0_51 = arith.constant 0 : index
    %c0_52 = arith.constant 0 : index
    %55 = vector.load %arg2[%c0_51, %c0_52] : memref<1152x128xbf16, #tpu.memory_space<vmem>>, vector<1152x128xbf16>
    %cst_53 = arith.constant dense<0.000000e+00> : vector<1x128xf32>
    %56 = tpu.matmul %54, %55, %cst_53 {dimension_numbers = #tpu.dot_dimension_numbers<[1], [0], [0], [1], [0, 0, 1, 1], [], []>} : vector<1x1152xbf16>, vector<1152x128xbf16>, vector<1x128xf32> -> vector<1x128xf32>
    %c0_54 = arith.constant 0 : index
    %c0_55 = arith.constant 0 : index
    %57 = vector.load %arg3[%c0_54, %c0_55] : memref<1x128xf32, #tpu.memory_space<vmem>>, vector<1x128xf32>
    %58 = arith.addf %56, %57 : vector<1x128xf32>
    %cst_56 = arith.constant 0.000000e+00 : f32
    %59 = vector.broadcast %cst_56 : f32 to vector<1x128xf32>
    %60 = arith.maximumf %58, %59 : vector<1x128xf32>
    %61 = arith.truncf %60 : vector<1x128xf32> to vector<1x128xbf16>
    %c4_57 = arith.constant 4 : index
    %c0_58 = arith.constant 0 : index
    %c0_59 = arith.constant 0 : index
    %62 = vector.load %arg4[%c4_57, %c0_58, %c0_59] : memref<9x128x128xbf16, #tpu.memory_space<vmem>>, vector<1x128x128xbf16>
    %63 = vector.shape_cast %62 : vector<1x128x128xbf16> to vector<128x128xbf16>
    %cst_60 = arith.constant dense<0.000000e+00> : vector<1x128xf32>
    %64 = tpu.matmul %61, %63, %cst_60 {dimension_numbers = #tpu.dot_dimension_numbers<[1], [0], [0], [1], [0, 0, 1, 1], [], []>} : vector<1x128xbf16>, vector<128x128xbf16>, vector<1x128xf32> -> vector<1x128xf32>
    %65 = arith.addf %52, %64 : vector<1x128xf32>
    %c0_61 = arith.constant 0 : index
    %c5 = arith.constant 5 : index
    %c0_62 = arith.constant 0 : index
    %66 = vector.load %arg1[%c0_61, %c5, %c0_62] : memref<1x9x1152xbf16, #tpu.memory_space<vmem>>, vector<1x1x1152xbf16>
    %67 = vector.shape_cast %66 : vector<1x1x1152xbf16> to vector<1x1152xbf16>
    %c0_63 = arith.constant 0 : index
    %c0_64 = arith.constant 0 : index
    %68 = vector.load %arg2[%c0_63, %c0_64] : memref<1152x128xbf16, #tpu.memory_space<vmem>>, vector<1152x128xbf16>
    %cst_65 = arith.constant dense<0.000000e+00> : vector<1x128xf32>
    %69 = tpu.matmul %67, %68, %cst_65 {dimension_numbers = #tpu.dot_dimension_numbers<[1], [0], [0], [1], [0, 0, 1, 1], [], []>} : vector<1x1152xbf16>, vector<1152x128xbf16>, vector<1x128xf32> -> vector<1x128xf32>
    %c0_66 = arith.constant 0 : index
    %c0_67 = arith.constant 0 : index
    %70 = vector.load %arg3[%c0_66, %c0_67] : memref<1x128xf32, #tpu.memory_space<vmem>>, vector<1x128xf32>
    %71 = arith.addf %69, %70 : vector<1x128xf32>
    %cst_68 = arith.constant 0.000000e+00 : f32
    %72 = vector.broadcast %cst_68 : f32 to vector<1x128xf32>
    %73 = arith.maximumf %71, %72 : vector<1x128xf32>
    %74 = arith.truncf %73 : vector<1x128xf32> to vector<1x128xbf16>
    %c5_69 = arith.constant 5 : index
    %c0_70 = arith.constant 0 : index
    %c0_71 = arith.constant 0 : index
    %75 = vector.load %arg4[%c5_69, %c0_70, %c0_71] : memref<9x128x128xbf16, #tpu.memory_space<vmem>>, vector<1x128x128xbf16>
    %76 = vector.shape_cast %75 : vector<1x128x128xbf16> to vector<128x128xbf16>
    %cst_72 = arith.constant dense<0.000000e+00> : vector<1x128xf32>
    %77 = tpu.matmul %74, %76, %cst_72 {dimension_numbers = #tpu.dot_dimension_numbers<[1], [0], [0], [1], [0, 0, 1, 1], [], []>} : vector<1x128xbf16>, vector<128x128xbf16>, vector<1x128xf32> -> vector<1x128xf32>
    %78 = arith.addf %65, %77 : vector<1x128xf32>
    %c0_73 = arith.constant 0 : index
    %c6 = arith.constant 6 : index
    %c0_74 = arith.constant 0 : index
    %79 = vector.load %arg1[%c0_73, %c6, %c0_74] : memref<1x9x1152xbf16, #tpu.memory_space<vmem>>, vector<1x1x1152xbf16>
    %80 = vector.shape_cast %79 : vector<1x1x1152xbf16> to vector<1x1152xbf16>
    %c0_75 = arith.constant 0 : index
    %c0_76 = arith.constant 0 : index
    %81 = vector.load %arg2[%c0_75, %c0_76] : memref<1152x128xbf16, #tpu.memory_space<vmem>>, vector<1152x128xbf16>
    %cst_77 = arith.constant dense<0.000000e+00> : vector<1x128xf32>
    %82 = tpu.matmul %80, %81, %cst_77 {dimension_numbers = #tpu.dot_dimension_numbers<[1], [0], [0], [1], [0, 0, 1, 1], [], []>} : vector<1x1152xbf16>, vector<1152x128xbf16>, vector<1x128xf32> -> vector<1x128xf32>
    %c0_78 = arith.constant 0 : index
    %c0_79 = arith.constant 0 : index
    %83 = vector.load %arg3[%c0_78, %c0_79] : memref<1x128xf32, #tpu.memory_space<vmem>>, vector<1x128xf32>
    %84 = arith.addf %82, %83 : vector<1x128xf32>
    %cst_80 = arith.constant 0.000000e+00 : f32
    %85 = vector.broadcast %cst_80 : f32 to vector<1x128xf32>
    %86 = arith.maximumf %84, %85 : vector<1x128xf32>
    %87 = arith.truncf %86 : vector<1x128xf32> to vector<1x128xbf16>
    %c6_81 = arith.constant 6 : index
    %c0_82 = arith.constant 0 : index
    %c0_83 = arith.constant 0 : index
    %88 = vector.load %arg4[%c6_81, %c0_82, %c0_83] : memref<9x128x128xbf16, #tpu.memory_space<vmem>>, vector<1x128x128xbf16>
    %89 = vector.shape_cast %88 : vector<1x128x128xbf16> to vector<128x128xbf16>
    %cst_84 = arith.constant dense<0.000000e+00> : vector<1x128xf32>
    %90 = tpu.matmul %87, %89, %cst_84 {dimension_numbers = #tpu.dot_dimension_numbers<[1], [0], [0], [1], [0, 0, 1, 1], [], []>} : vector<1x128xbf16>, vector<128x128xbf16>, vector<1x128xf32> -> vector<1x128xf32>
    %91 = arith.addf %78, %90 : vector<1x128xf32>
    %c0_85 = arith.constant 0 : index
    %c7 = arith.constant 7 : index
    %c0_86 = arith.constant 0 : index
    %92 = vector.load %arg1[%c0_85, %c7, %c0_86] : memref<1x9x1152xbf16, #tpu.memory_space<vmem>>, vector<1x1x1152xbf16>
    %93 = vector.shape_cast %92 : vector<1x1x1152xbf16> to vector<1x1152xbf16>
    %c0_87 = arith.constant 0 : index
    %c0_88 = arith.constant 0 : index
    %94 = vector.load %arg2[%c0_87, %c0_88] : memref<1152x128xbf16, #tpu.memory_space<vmem>>, vector<1152x128xbf16>
    %cst_89 = arith.constant dense<0.000000e+00> : vector<1x128xf32>
    %95 = tpu.matmul %93, %94, %cst_89 {dimension_numbers = #tpu.dot_dimension_numbers<[1], [0], [0], [1], [0, 0, 1, 1], [], []>} : vector<1x1152xbf16>, vector<1152x128xbf16>, vector<1x128xf32> -> vector<1x128xf32>
    %c0_90 = arith.constant 0 : index
    %c0_91 = arith.constant 0 : index
    %96 = vector.load %arg3[%c0_90, %c0_91] : memref<1x128xf32, #tpu.memory_space<vmem>>, vector<1x128xf32>
    %97 = arith.addf %95, %96 : vector<1x128xf32>
    %cst_92 = arith.constant 0.000000e+00 : f32
    %98 = vector.broadcast %cst_92 : f32 to vector<1x128xf32>
    %99 = arith.maximumf %97, %98 : vector<1x128xf32>
    %100 = arith.truncf %99 : vector<1x128xf32> to vector<1x128xbf16>
    %c7_93 = arith.constant 7 : index
    %c0_94 = arith.constant 0 : index
    %c0_95 = arith.constant 0 : index
    %101 = vector.load %arg4[%c7_93, %c0_94, %c0_95] : memref<9x128x128xbf16, #tpu.memory_space<vmem>>, vector<1x128x128xbf16>
    %102 = vector.shape_cast %101 : vector<1x128x128xbf16> to vector<128x128xbf16>
    %cst_96 = arith.constant dense<0.000000e+00> : vector<1x128xf32>
    %103 = tpu.matmul %100, %102, %cst_96 {dimension_numbers = #tpu.dot_dimension_numbers<[1], [0], [0], [1], [0, 0, 1, 1], [], []>} : vector<1x128xbf16>, vector<128x128xbf16>, vector<1x128xf32> -> vector<1x128xf32>
    %104 = arith.addf %91, %103 : vector<1x128xf32>
    %c0_97 = arith.constant 0 : index
    %c8 = arith.constant 8 : index
    %c0_98 = arith.constant 0 : index
    %105 = vector.load %arg1[%c0_97, %c8, %c0_98] : memref<1x9x1152xbf16, #tpu.memory_space<vmem>>, vector<1x1x1152xbf16>
    %106 = vector.shape_cast %105 : vector<1x1x1152xbf16> to vector<1x1152xbf16>
    %c0_99 = arith.constant 0 : index
    %c0_100 = arith.constant 0 : index
    %107 = vector.load %arg2[%c0_99, %c0_100] : memref<1152x128xbf16, #tpu.memory_space<vmem>>, vector<1152x128xbf16>
    %cst_101 = arith.constant dense<0.000000e+00> : vector<1x128xf32>
    %108 = tpu.matmul %106, %107, %cst_101 {dimension_numbers = #tpu.dot_dimension_numbers<[1], [0], [0], [1], [0, 0, 1, 1], [], []>} : vector<1x1152xbf16>, vector<1152x128xbf16>, vector<1x128xf32> -> vector<1x128xf32>
    %c0_102 = arith.constant 0 : index
    %c0_103 = arith.constant 0 : index
    %109 = vector.load %arg3[%c0_102, %c0_103] : memref<1x128xf32, #tpu.memory_space<vmem>>, vector<1x128xf32>
    %110 = arith.addf %108, %109 : vector<1x128xf32>
    %cst_104 = arith.constant 0.000000e+00 : f32
    %111 = vector.broadcast %cst_104 : f32 to vector<1x128xf32>
    %112 = arith.maximumf %110, %111 : vector<1x128xf32>
    %113 = arith.truncf %112 : vector<1x128xf32> to vector<1x128xbf16>
    %c8_105 = arith.constant 8 : index
    %c0_106 = arith.constant 0 : index
    %c0_107 = arith.constant 0 : index
    %114 = vector.load %arg4[%c8_105, %c0_106, %c0_107] : memref<9x128x128xbf16, #tpu.memory_space<vmem>>, vector<1x128x128xbf16>
    %115 = vector.shape_cast %114 : vector<1x128x128xbf16> to vector<128x128xbf16>
    %cst_108 = arith.constant dense<0.000000e+00> : vector<1x128xf32>
    %116 = tpu.matmul %113, %115, %cst_108 {dimension_numbers = #tpu.dot_dimension_numbers<[1], [0], [0], [1], [0, 0, 1, 1], [], []>} : vector<1x128xbf16>, vector<128x128xbf16>, vector<1x128xf32> -> vector<1x128xf32>
    %117 = arith.addf %104, %116 : vector<1x128xf32>
    %cst_109 = arith.constant 0.000000e+00 : f32
    %118 = vector.broadcast %cst_109 : f32 to vector<1x128xf32>
    %119 = arith.maximumf %117, %118 : vector<1x128xf32>
    %120 = arith.truncf %119 : vector<1x128xf32> to vector<1x128xbf16>
    %c0_110 = arith.constant 0 : index
    %c0_111 = arith.constant 0 : index
    %121 = vector.load %arg6[%c0_110, %c0_111] : memref<128x512xbf16, #tpu.memory_space<vmem>>, vector<128x512xbf16>
    %cst_112 = arith.constant dense<0.000000e+00> : vector<1x512xf32>
    %122 = tpu.matmul %120, %121, %cst_112 {dimension_numbers = #tpu.dot_dimension_numbers<[1], [0], [0], [1], [0, 0, 1, 1], [], []>} : vector<1x128xbf16>, vector<128x512xbf16>, vector<1x512xf32> -> vector<1x512xf32>
    %c0_113 = arith.constant 0 : index
    %c0_114 = arith.constant 0 : index
    %123 = vector.load %arg7[%c0_113, %c0_114] : memref<1x512xf32, #tpu.memory_space<vmem>>, vector<1x512xf32>
    %124 = arith.addf %122, %123 : vector<1x512xf32>
    %cst_115 = arith.constant 0.000000e+00 : f32
    %125 = vector.broadcast %cst_115 : f32 to vector<1x512xf32>
    %126 = arith.maximumf %124, %125 : vector<1x512xf32>
    %127 = arith.truncf %126 : vector<1x512xf32> to vector<1x512xbf16>
    %c0_116 = arith.constant 0 : index
    %c0_117 = arith.constant 0 : index
    %128 = vector.load %arg8[%c0_116, %c0_117] : memref<512x128xbf16, #tpu.memory_space<vmem>>, vector<512x128xbf16>
    %cst_118 = arith.constant dense<0.000000e+00> : vector<1x128xf32>
    %129 = tpu.matmul %127, %128, %cst_118 {dimension_numbers = #tpu.dot_dimension_numbers<[1], [0], [0], [1], [0, 0, 1, 1], [], []>} : vector<1x512xbf16>, vector<512x128xbf16>, vector<1x128xf32> -> vector<1x128xf32>
    %c0_119 = arith.constant 0 : index
    %c0_120 = arith.constant 0 : index
    %130 = vector.load %arg9[%c0_119, %c0_120] : memref<1x128xf32, #tpu.memory_space<vmem>>, vector<1x128xf32>
    %131 = arith.addf %129, %130 : vector<1x128xf32>
    %c0_121 = arith.constant 0 : index
    %c0_122 = arith.constant 0 : index
    %c0_123 = arith.constant 0 : index
    %132 = vector.load %arg10[%c0_121, %c0_122, %c0_123] : memref<1x1x128xf32, #tpu.memory_space<vmem>>, vector<1x1x128xf32>
    %133 = vector.shape_cast %132 : vector<1x1x128xf32> to vector<1x128xf32>
    %134 = vector.shape_cast %131 : vector<1x128xf32> to vector<1x1x128xf32>
    tpu.vector_store %arg10[%c0_121, %c0_122, %c0_123], %134 {strides = array<i32>} : memref<1x1x128xf32, #tpu.memory_space<vmem>>, vector<1x1x128xf32>,
    return
  }
  func.func @transform_0(%arg0: i32) -> (i32, i32, i32) {
    %c0_i32 = arith.constant 0 : i32
    %c0_i32_0 = arith.constant 0 : i32
    %c0_i32_1 = arith.constant 0 : i32
    return %arg0, %c0_i32, %c0_i32_0 : i32, i32, i32
  }
  func.func @transform_1(%arg0: i32) -> (i32, i32) {
    %c0_i32 = arith.constant 0 : i32
    %c0_i32_0 = arith.constant 0 : i32
    %c0_i32_1 = arith.constant 0 : i32
    return %c0_i32, %c0_i32_0 : i32, i32
  }
  func.func @transform_2(%arg0: i32) -> (i32, i32) {
    %c0_i32 = arith.constant 0 : i32
    %c0_i32_0 = arith.constant 0 : i32
    %c0_i32_1 = arith.constant 0 : i32
    return %c0_i32, %c0_i32_0 : i32, i32
  }
  func.func @transform_3(%arg0: i32) -> (i32, i32, i32) {
    %c0_i32 = arith.constant 0 : i32
    %c0_i32_0 = arith.constant 0 : i32
    %c0_i32_1 = arith.constant 0 : i32
    %c0_i32_2 = arith.constant 0 : i32
    return %c0_i32, %c0_i32_0, %c0_i32_1 : i32, i32, i32
  }
  func.func @transform_4(%arg0: i32) -> (i32, i32) {
    %c0_i32 = arith.constant 0 : i32
    %c0_i32_0 = arith.constant 0 : i32
    %c0_i32_1 = arith.constant 0 : i32
    return %c0_i32, %c0_i32_0 : i32, i32
  }
  func.func @transform_5(%arg0: i32) -> (i32, i32) {
    %c0_i32 = arith.constant 0 : i32
    %c0_i32_0 = arith.constant 0 : i32
    %c0_i32_1 = arith.constant 0 : i32
    return %c0_i32, %c0_i32_0 : i32, i32
  }
  func.func @transform_6(%arg0: i32) -> (i32, i32) {
    %c0_i32 = arith.constant 0 : i32
    %c0_i32_0 = arith.constant 0 : i32
    %c0_i32_1 = arith.constant 0 : i32
    return %c0_i32, %c0_i32_0 : i32, i32
  }
  func.func @transform_7(%arg0: i32) -> (i32, i32) {
    %c0_i32 = arith.constant 0 : i32
    %c0_i32_0 = arith.constant 0 : i32
    %c0_i32_1 = arith.constant 0 : i32
    return %c0_i32, %c0_i32_0 : i32, i32
  }
  func.func @transform_8(%arg0: i32) -> (i32, i32) {
    %c0_i32 = arith.constant 0 : i32
    %c0_i32_0 = arith.constant 0 : i32
    %c0_i32_1 = arith.constant 0 : i32
    return %c0_i32, %c0_i32_0 : i32, i32
  }
  func.func @transform_9(%arg0: i32) -> (i32, i32, i32) {
    %c0_i32 = arith.constant 0 : i32
    %c0_i32_0 = arith.constant 0 : i32
    %c0_i32_1 = arith.constant 0 : i32
    return %arg0, %c0_i32, %c0_i32_0 : i32, i32, i32
  }
}

</mosaic_0001>

<llo_original>
// kernel: _lambda_.3
$region0: #{_lambda_.3}
  #allocation0 [shape = 'u32[]', space=smem, size = 0x4, offset = 0x4, fixed_abs, tag = 'smem constant byte address 0x4 - core index']
  #allocation1 [shape = 'u32[144,128]{1,0:T(1,128)}', space=vmem, size = 0x12000, scoped, tag = 'internal scratch']
  %s0 = inlined_call_operand.vmem [shape: bf16[656,100], index: 0, kind: input, shape index: {}]
  %s1 = inlined_call_operand.vmem [shape: bf16[100,128], index: 1, kind: input, shape index: {}]
  %s2 = inlined_call_operand.vmem [shape: f32[1,128], index: 2, kind: input, shape index: {}]
  %s3 = inlined_call_operand.vmem [shape: bf16[656,128], index: 3, kind: output, shape index: {}]
  %s4 = sld [smem:[#allocation0]]
  $region45: #{_lambda_.3} parent=0
    _
  %s6 = ssub.s32 1, %s4
  %s7 = scalar_select 0, %s6, %s4
  loop: start=0, step=1, limit=4
  $region2: #{_lambda_.3} parent=0 // loop_pre_header
    _
  $region3: #{_lambda_.3} parent=0 // loop_header
    %s9 = sphi 0, %s13
    %p10 = scmp.ge.s32.totalorder %s9, 4
    %s16 = sphi 0, %s28
    %s17 = sphi 0, %s24
    %s18 = sphi 0, %s16
    %s19 = sphi 0, %s17
    %s20 = sphi 0, %s18
    %s21 = sphi 0, %s19
    %s31 = sphi 0, %s33
    %s34 = sphi 0, %s31
    %s35 = sphi 0, %s34
    %s51 = sphi 0, %s35
    %s57 = sphi 0, %s59
    %s60 = sphi 0, %s57
    %s61 = sphi 0, %s60
    %s77 = sphi 0, %s61
    %s83 = sphi 0, %s85
    %s86 = sphi 0, %s83
    %s87 = sphi 0, %s86
    %s103 = sphi 0, %s87
    %s111 = sphi 0, %s113
    %s114 = sphi 0, %s111
    %s115 = sphi 0, %s114
    %s131 = sphi 0, %s115
  $region4: #{_lambda_.3} parent=0 // loop_header_branch
    %12 = sbr.rel (%p10) target = $region8
  $region5: #{_lambda_.3} parent=0 // loop_body
    %s14 = ssub.s32 %s9, 1
    %s15 = ssub.s32 %s9, 2
    %s22 = sadd.s32 1, %s17
    %p23 = scmp.ge.s32.totalorder %s22, 1
    %s24 = scalar_select %p23, 0, %s22
    %s25 = sadd.s32 1, %s16
    %s26 = scalar_select %p23, %s25, %s16
    %p27 = scmp.ge.s32.totalorder %s26, 2
    %s28 = scalar_select %p27, 0, %s26
    %s29 = ssub.s32 %s16, %s28
    %p30 = scmp.eq.s32.totalorder %s29, 0
    %s32 = sadd.s32 %s31, 1
    %s33 = scalar_select %p30, %s31, %s32
    %p36 = pneg %p30
    %p37 = scmp.eq.s32.totalorder %s9, 1
    %p38 = por %p36, %p37
    %p39 = scmp.ne.s32.totalorder %s31, %s34
    %p40 = scmp.eq.s32.totalorder %s9, 0
    %p41 = por %p39, %p40
    %p42 = scmp.ne.s32.totalorder %s31, %s34
    %p43 = scmp.eq.s32.totalorder %s14, 1
    %p44 = por %p42, %p43
    %p45 = scmp.ne.s32.totalorder %s34, %s35
    %p46 = scmp.eq.s32.totalorder %s14, 0
    %p47 = por %p45, %p46
    %p48 = scmp.ne.s32.totalorder %s34, %s35
    %p49 = scmp.eq.s32.totalorder %s15, 1
    %p50 = por %p48, %p49
    %p52 = scmp.ne.s32.totalorder %s35, %s51
    %p53 = scmp.eq.s32.totalorder %s15, 0
    %p54 = por %p52, %p53
    %s55 = ssub.s32 %s17, %s24
    %p56 = scmp.eq.s32.totalorder %s55, 0
    %s58 = sadd.s32 %s57, 1
    %s59 = scalar_select %p56, %s57, %s58
    %p62 = pneg %p56
    %p63 = scmp.eq.s32.totalorder %s9, 1
    %p64 = por %p62, %p63
    %p65 = scmp.ne.s32.totalorder %s57, %s60
    %p66 = scmp.eq.s32.totalorder %s9, 0
    %p67 = por %p65, %p66
    %p68 = scmp.ne.s32.totalorder %s57, %s60
    %p69 = scmp.eq.s32.totalorder %s14, 1
    %p70 = por %p68, %p69
    %p71 = scmp.ne.s32.totalorder %s60, %s61
    %p72 = scmp.eq.s32.totalorder %s14, 0
    %p73 = por %p71, %p72
    %p74 = scmp.ne.s32.totalorder %s60, %s61
    %p75 = scmp.eq.s32.totalorder %s15, 1
    %p76 = por %p74, %p75
    %p78 = scmp.ne.s32.totalorder %s61, %s77
    %p79 = scmp.eq.s32.totalorder %s15, 0
    %p80 = por %p78, %p79
    %s81 = ssub.s32 %s17, %s24
    %p82 = scmp.eq.s32.totalorder %s81, 0
    %s84 = sadd.s32 %s83, 1
    %s85 = scalar_select %p82, %s83, %s84
    %p88 = pneg %p82
    %p89 = scmp.eq.s32.totalorder %s9, 1
    %p90 = por %p88, %p89
    %p91 = scmp.ne.s32.totalorder %s83, %s86
    %p92 = scmp.eq.s32.totalorder %s9, 0
    %p93 = por %p91, %p92
    %p94 = scmp.ne.s32.totalorder %s83, %s86
    %p95 = scmp.eq.s32.totalorder %s14, 1
    %p96 = por %p94, %p95
    %p97 = scmp.ne.s32.totalorder %s86, %s87
    %p98 = scmp.eq.s32.totalorder %s14, 0
    %p99 = por %p97, %p98
    %p100 = scmp.ne.s32.totalorder %s86, %s87
    %p101 = scmp.eq.s32.totalorder %s15, 1
    %p102 = por %p100, %p101
    %p104 = scmp.ne.s32.totalorder %s87, %s103
    %p105 = scmp.eq.s32.totalorder %s15, 0
    %p106 = por %p104, %p105
    %s107 = ssub.s32 %s16, %s28
    %s108 = ssub.s32 %s17, %s24
    %s109 = sor.u32 %s107, %s108
    %p110 = scmp.eq.s32.totalorder %s109, 0
    %s112 = sadd.s32 %s111, 1
    %s113 = scalar_select %p110, %s111, %s112
    %p116 = pneg %p110
    %p117 = scmp.eq.s32.totalorder %s9, 1
    %p118 = por %p116, %p117
    %p119 = scmp.ne.s32.totalorder %s111, %s114
    %p120 = scmp.eq.s32.totalorder %s9, 0
    %p121 = por %p119, %p120
    %p122 = scmp.ne.s32.totalorder %s111, %s114
    %p123 = scmp.eq.s32.totalorder %s14, 1
    %p124 = por %p122, %p123
    %p125 = scmp.ne.s32.totalorder %s114, %s115
    %p126 = scmp.eq.s32.totalorder %s14, 0
    %p127 = por %p125, %p126
    %p128 = scmp.ne.s32.totalorder %s114, %s115
    %p129 = scmp.eq.s32.totalorder %s15, 1
    %p130 = por %p128, %p129
    %p132 = scmp.ne.s32.totalorder %s115, %s131
    %p133 = scmp.eq.s32.totalorder %s15, 0
    %p134 = por %p132, %p133
    %p135 = scmp.le.s32.totalorder 1, %s9
    %p136 = scmp.lt.s32.totalorder %s9, 3
    %p137 = pnand %p135, %p136
    %p138 = pneg %p137
    // Predicated region
    $region9: #{_lambda_.3} parent=5 // pred_check
      _
    $region10: #{_lambda_.3} parent=5 // pred_check_branch
      %140 = sbr.rel (%p137) target = $region12
    $region11: #{_lambda_.3} parent=5 // pred_region
      %s141 = ssub.s32 %s9, 1
      // Predicated region
      $region13: #{_lambda_.3} parent=11 // pred_check
        %p142 = pneg %p73
      $region14: #{_lambda_.3} parent=11 // pred_check_branch
        %144 = sbr.rel (%p142) target = $region16
      $region15: #{_lambda_.3} parent=11 // pred_region
        %p145 = scmp.lt.s32.totalorder %s19, 0
        %s146 = scalar_select %p145, %s19, 0
        %s147 = smul.addr %s146, 4
        %s148 = scalar_lea.vmem %s1, %s147
      $region16: #{_lambda_.3} parent=11 // pred_fallthru
        _
      // Predicated region
      $region17: #{_lambda_.3} parent=11 // pred_check
        %p149 = pneg %p99
      $region18: #{_lambda_.3} parent=11 // pred_check_branch
        %151 = sbr.rel (%p149) target = $region20
      $region19: #{_lambda_.3} parent=11 // pred_region
        %p152 = scmp.lt.s32.totalorder %s19, 0
        %s153 = scalar_select %p152, %s19, 0
        %s154 = scalar_lea.vmem %s2, %s153
      $region20: #{_lambda_.3} parent=11 // pred_fallthru
        _
    $region12: #{_lambda_.3} parent=5 // pred_fallthru
      _
    %p155 = scmp.lt.s32.totalorder %s9, 2
    // Predicated region
    $region21: #{_lambda_.3} parent=5 // pred_check
      %p156 = pneg %p155
    $region22: #{_lambda_.3} parent=5 // pred_check_branch
      %158 = sbr.rel (%p156) target = $region24
    $region23: #{_lambda_.3} parent=5 // pred_region
      // Predicated region
      $region25: #{_lambda_.3} parent=23 // pred_check
        %p159 = pneg %p41
      $region26: #{_lambda_.3} parent=23 // pred_check_branch
        %161 = sbr.rel (%p159) target = $region28
      $region27: #{_lambda_.3} parent=23 // pred_region
        %s162 = smul.u32 41, %s16
        %p163 = scmp.lt.s32.totalorder %s162, 81
        %s164 = scalar_select %p163, %s162, 81
        %s165 = smul.addr %s164, 4
        %s166 = scalar_lea.vmem %s0, %s165
        %s167 = smul.u32 41, %s16
      $region28: #{_lambda_.3} parent=23 // pred_fallthru
        _
    $region24: #{_lambda_.3} parent=5 // pred_fallthru
      _
    %p168 = scmp.le.s32.totalorder 1, %s9
    %p169 = scmp.lt.s32.totalorder %s9, 3
    %p170 = pnand %p168, %p169
    %p171 = pneg %p170
    // Predicated region
    $region29: #{_lambda_.3} parent=5 // pred_check
      _
    $region30: #{_lambda_.3} parent=5 // pred_check_branch
      %173 = sbr.rel (%p170) target = $region32
    $region31: #{_lambda_.3} parent=5 // pred_region
      %s174 = ssub.s32 %s9, 1
      %s175 = smul.u32 41, %s18
      %p176 = scmp.lt.s32.totalorder %s175, 81
      %s177 = scalar_select %p176, %s175, 81
      %s178 = smul.addr %s177, 4
      %s179 = scalar_lea.vmem %s0, %s178
      %p180 = pneg %p47
      %p181 = pneg %p44
      %p182 = scmp.lt.s32.totalorder %s19, 0
      %s183 = scalar_select %p182, %s19, 0
      %s184 = smul.addr %s183, 4
      %s185 = scalar_lea.vmem %s1, %s184
      %p186 = pneg %p73
      %p187 = pneg %p70
      %p188 = scmp.lt.s32.totalorder %s19, 0
      %s189 = scalar_select %p188, %s19, 0
      %s190 = scalar_lea.vmem %s2, %s189
      %p191 = pneg %p99
      %p192 = pneg %p96
      %p193 = pneg %p127
      %p194 = pneg %p124
      %s195 = smul.u32 41, %s18
      %p196 = scmp.lt.s32.totalorder %s195, 81
      %s197 = scalar_select %p196, %s195, 81
      %p198 = scmp.lt.s32.totalorder %s19, 0
      %s199 = scalar_select %p198, %s19, 0
      %s200 = sadd.s32 %s199, %s197
      %s201 = smul.addr %s200, 4
      %s202 = scalar_lea.vmem %s3, %s201
      %s203 = smul.u32 41, %s18
      %p204 = scmp.lt.s32.totalorder %s203, 81
      %s205 = scalar_select %p204, %s203, 81
      %s206 = smul.addr %s205, 4
      %s207 = scalar_lea.vmem %s0, %s206
      %s208 = smul.u32 41, %s18
      %p209 = scmp.lt.s32.totalorder %s19, 0
      %s210 = scalar_select %p209, %s19, 0
      %s211 = smul.addr %s210, 4
      %s212 = scalar_lea.vmem %s1, %s211
      %p213 = scmp.lt.s32.totalorder %s19, 0
      %s214 = scalar_select %p213, %s19, 0
      %s215 = scalar_lea.vmem %s2, %s214
      %s216 = smul.u32 41, %s18
      %p217 = scmp.lt.s32.totalorder %s216, 81
      %s218 = scalar_select %p217, %s216, 81
      %p219 = scmp.lt.s32.totalorder %s19, 0
      %s220 = scalar_select %p219, %s19, 0
      %s221 = sadd.s32 %s220, %s218
      %s222 = smul.addr %s221, 4
      %s223 = scalar_lea.vmem %s3, %s222
      %s224 = smul.u32 41, %s18
      %v226 = vld [vmem:[%s207] sm:$0xf]
      %v227 = vld [vmem:[%s207 + $0x4] sm:$0xf]
      %v228 = vld [vmem:[%s207 + $0x8] sm:$0xf]
      %v229 = vld [vmem:[%s207 + $0xc] sm:$0xf]
      %v230 = vld [vmem:[%s207 + $0x10] sm:$0xf]
      %v231 = vld [vmem:[%s207 + $0x14] sm:$0xf]
      %v232 = vld [vmem:[%s207 + $0x18] sm:$0xf]
      %v233 = vld [vmem:[%s207 + $0x1c] sm:$0xf]
      %v234 = vld [vmem:[%s207 + $0x20] sm:$0xf]
      %v235 = vld [vmem:[%s207 + $0x24] sm:$0xf]
      %v236 = vld [vmem:[%s207 + $0x28] sm:$0xf]
      %v237 = vld [vmem:[%s207 + $0x2c] sm:$0xf]
      %v238 = vld [vmem:[%s207 + $0x30] sm:$0xf]
      %v239 = vld [vmem:[%s207 + $0x34] sm:$0xf]
      %v240 = vld [vmem:[%s207 + $0x38] sm:$0xf]
      %v241 = vld [vmem:[%s207 + $0x3c] sm:$0xf]
      %v242 = vld [vmem:[%s207 + $0x40] sm:$0xf]
      %v243 = vld [vmem:[%s207 + $0x44] sm:$0xf]
      %v244 = vld [vmem:[%s207 + $0x48] sm:$0xf]
      %v245 = vld [vmem:[%s207 + $0x4c] sm:$0xf]
      %v246 = vld [vmem:[%s207 + $0x50] sm:$0xf]
      %v247 = vld [vmem:[%s207 + $0x54] sm:$0xf]
      %v248 = vld [vmem:[%s207 + $0x58] sm:$0xf]
      %v249 = vld [vmem:[%s207 + $0x5c] sm:$0xf]
      %v250 = vld [vmem:[%s207 + $0x60] sm:$0xf]
      %v251 = vld [vmem:[%s207 + $0x64] sm:$0xf]
      %v252 = vld [vmem:[%s207 + $0x68] sm:$0xf]
      %v253 = vld [vmem:[%s207 + $0x6c] sm:$0xf]
      %v254 = vld [vmem:[%s207 + $0x70] sm:$0xf]
      %v255 = vld [vmem:[%s207 + $0x74] sm:$0xf]
      %v256 = vld [vmem:[%s207 + $0x78] sm:$0xf]
      %v257 = vld [vmem:[%s207 + $0x7c] sm:$0xf]
      %v258 = vld [vmem:[%s207 + $0x80] sm:$0xf]
      %v259 = vld [vmem:[%s207 + $0x84] sm:$0xf]
      %v260 = vld [vmem:[%s207 + $0x88] sm:$0xf]
      %v261 = vld [vmem:[%s207 + $0x8c] sm:$0xf]
      %v262 = vld [vmem:[%s207 + $0x90] sm:$0xf]
      %v263 = vld [vmem:[%s207 + $0x94] sm:$0xf]
      %v264 = vld [vmem:[%s207 + $0x98] sm:$0xf]
      %v265 = vld [vmem:[%s207 + $0x9c] sm:$0xf]
      %v266 = vld [vmem:[%s207 + $0xa0] sm:$0xf]
      %v267 = vld [vmem:[%s212] sm:$0xf]
      %v268 = vld [vmem:[%s212 + $0x4] sm:$0xf]
      %v269 = vld [vmem:[%s212 + $0x8] sm:$0xf]
      %v270 = vld [vmem:[%s212 + $0xc] sm:$0xf]
      %v271 = vld [vmem:[%s212 + $0x10] sm:$0xf]
      %v272 = vld [vmem:[%s212 + $0x14] sm:$0xf]
      %v273 = vld [vmem:[%s212 + $0x18] sm:$0xf]
      %v274 = vld [vmem:[%s212 + $0x1c] sm:$0xf]
      %v275 = vld [vmem:[%s212 + $0x20] sm:$0xf]
      %v276 = vld [vmem:[%s212 + $0x24] sm:$0xf]
      %v277 = vld [vmem:[%s212 + $0x28] sm:$0xf]
      %v278 = vld [vmem:[%s212 + $0x2c] sm:$0xf]
      %v279 = vld [vmem:[%s212 + $0x30] sm:$0x3]
      %v280 = vld [vmem:[%s215] sm:$0x1]
      %v282 = vlaneseq
      %v283 = vshrl.u32 %v282, 7
      %v284 = vsub.s32 0, %v283
      %v285 = vrot.slane %v280, %v284
      %v328 = vunpack.c.l.b16 %v226
      %v329 = vunpack.c.l.b16 %v227
      %v330 = vunpack.c.l.b16 %v228
      %v331 = vunpack.c.l.b16 %v229
      %v332 = vunpack.c.l.b16 %v230
      %v333 = vunpack.c.l.b16 %v231
      %v334 = vunpack.c.l.b16 %v232
      %v335 = vunpack.c.l.b16 %v233
      %v336 = vunpack.c.l.b16 %v234
      %v337 = vunpack.c.l.b16 %v235
      %v338 = vunpack.c.l.b16 %v236
      %v339 = vunpack.c.l.b16 %v237
      %v340 = vunpack.c.l.b16 %v238
      %v341 = vunpack.c.l.b16 %v239
      %v342 = vunpack.c.l.b16 %v240
      %v343 = vunpack.c.l.b16 %v241
      %v344 = vunpack.c.l.b16 %v242
      %v345 = vunpack.c.l.b16 %v243
      %v346 = vunpack.c.l.b16 %v244
      %v347 = vunpack.c.l.b16 %v245
      %v348 = vunpack.c.l.b16 %v246
      %v349 = vunpack.c.l.b16 %v247
      %v350 = vunpack.c.l.b16 %v248
      %v351 = vunpack.c.l.b16 %v249
      %v352 = vunpack.c.l.b16 %v250
      %v353 = vunpack.c.l.b16 %v251
      %v354 = vunpack.c.l.b16 %v252
      %v355 = vunpack.c.l.b16 %v253
      %v356 = vunpack.c.l.b16 %v254
      %v357 = vunpack.c.l.b16 %v255
      %v358 = vunpack.c.l.b16 %v256
      %v359 = vunpack.c.l.b16 %v257
      %v360 = vunpack.c.l.b16 %v258
      %v361 = vunpack.c.l.b16 %v259
      %v362 = vunpack.c.l.b16 %v260
      %v363 = vunpack.c.l.b16 %v261
      %v364 = vunpack.c.l.b16 %v262
      %v365 = vunpack.c.l.b16 %v263
      %v366 = vunpack.c.l.b16 %v264
      %v367 = vunpack.c.l.b16 %v265
      %v368 = vunpack.c.l.b16 %v266
      %v369 = vpack.c.b16 %v329, %v328
      %v370 = vpack.c.b16 %v331, %v330
      %v371 = vpack.c.b16 %v333, %v332
      %v372 = vpack.c.b16 %v335, %v334
      %v373 = vpack.c.b16 %v337, %v336
      %v374 = vpack.c.b16 %v339, %v338
      %v375 = vpack.c.b16 %v341, %v340
      %v376 = vpack.c.b16 %v343, %v342
      %v377 = vpack.c.b16 %v345, %v344
      %v378 = vpack.c.b16 %v347, %v346
      %v379 = vpack.c.b16 %v349, %v348
      %v380 = vpack.c.b16 %v351, %v350
      %v381 = vpack.c.b16 %v353, %v352
      %v382 = vpack.c.b16 %v355, %v354
      %v383 = vpack.c.b16 %v357, %v356
      %v384 = vpack.c.b16 %v359, %v358
      %v385 = vpack.c.b16 %v361, %v360
      %v386 = vpack.c.b16 %v363, %v362
      %v387 = vpack.c.b16 %v365, %v364
      %v388 = vpack.c.b16 %v367, %v366
      %v389 = vpack.c.b16 %v368, %v368
      %v403 = vunpack.c.l.b16 %v267
      %v404 = vunpack.c.l.b16 %v268
      %v405 = vunpack.c.l.b16 %v269
      %v406 = vunpack.c.l.b16 %v270
      %v407 = vunpack.c.l.b16 %v271
      %v408 = vunpack.c.l.b16 %v272
      %v409 = vunpack.c.l.b16 %v273
      %v410 = vunpack.c.l.b16 %v274
      %v411 = vunpack.c.l.b16 %v275
      %v412 = vunpack.c.l.b16 %v276
      %v413 = vunpack.c.l.b16 %v277
      %v414 = vunpack.c.l.b16 %v278
      %v415 = vunpack.c.l.b16 %v279
      %v416 = vpack.c.b16 %v404, %v403
      %v417 = vpack.c.b16 %v406, %v405
      %v418 = vpack.c.b16 %v408, %v407
      %v419 = vpack.c.b16 %v410, %v409
      %v420 = vpack.c.b16 %v412, %v411
      %v421 = vpack.c.b16 %v414, %v413
      %v422 = vpack.c.b16 %v415, %v415
      %vm429 = vcmask 818176
      %v431 = vsel %vm429, %v369, 0
      %v434 = vsel %vm429, %v370, 0
      %v437 = vsel %vm429, %v371, 0
      %v440 = vsel %vm429, %v372, 0
      %v443 = vsel %vm429, %v373, 0
      %v446 = vsel %vm429, %v374, 0
      %v449 = vsel %vm429, %v375, 0
      %v452 = vsel %vm429, %v376, 0
      %v455 = vsel %vm429, %v377, 0
      %v458 = vsel %vm429, %v378, 0
      %v461 = vsel %vm429, %v379, 0
      %v464 = vsel %vm429, %v380, 0
      %v467 = vsel %vm429, %v381, 0
      %v470 = vsel %vm429, %v382, 0
      %v473 = vsel %vm429, %v383, 0
      %v476 = vsel %vm429, %v384, 0
      %v479 = vsel %vm429, %v385, 0
      %v482 = vsel %vm429, %v386, 0
      %v485 = vsel %vm429, %v387, 0
      %v488 = vsel %vm429, %v388, 0
      %v491 = vsel %vm429, %v389, 0
      %vm493 = vcmask 1041408
      %v495 = vsel %vm493, %v422, 0
      %497 = vmatprep.subr.bf16.mxu0 0
      %498 = vmatpush1.bf16.msra.mxu0 %v416
      %499 = vmatprep.subr.bf16.mxu0 0
      %500 = vmatpush1.bf16.msra.mxu0 %v417
      %501 = vmatprep.subr.bf16.mxu0 0
      %502 = vmatpush1.bf16.msra.mxu0 %v418
      %503 = vmatprep.subr.bf16.mxu0 0
      %504 = vmatpush1.bf16.msra.mxu0 %v419
      %505 = vmatprep.subr.bf16.mxu0 0
      %506 = vmatpush1.bf16.msra.mxu0 %v420
      %507 = vmatprep.subr.bf16.mxu0 0
      %508 = vmatpush1.bf16.msra.mxu0 %v421
      %509 = vmatprep.subr.bf16.mxu0 0
      %510 = vmatpush1.bf16.msra.mxu0 %v495
      %511 = vmatprep.subr.bf16.mxu0 0
      %512 = vmatpush1.bf16.msra.mxu0 0
      %513 = vmatprep.subr.bf16.mxu0 0
      %514 = vmatpush1.bf16.msra.mxu0 0
      %515 = vmatprep.subr.bf16.mxu0 0
      %516 = vmatpush1.bf16.msra.mxu0 0
      %517 = vmatprep.subr.bf16.mxu0 0
      %518 = vmatpush1.bf16.msra.mxu0 0
      %519 = vmatprep.subr.bf16.mxu0 0
      %520 = vmatpush1.bf16.msra.mxu0 0
      %521 = vmatprep.subr.bf16.mxu0 0
      %522 = vmatpush1.bf16.msra.mxu0 0
      %523 = vmatprep.subr.bf16.mxu0 0
      %524 = vmatpush1.bf16.msra.mxu0 0
      %525 = vmatprep.subr.bf16.mxu0 0
      %526 = vmatpush1.bf16.msra.mxu0 0
      %527 = vmatprep.subr.bf16.mxu0 0
      %528 = vmatpush1.bf16.msra.mxu0 0
      %529 = vmatprep.mubr.bf16.mxu0 0
      %530 = vmatmul.mubr.bf16.gmra.mrb[0].mxu0 %v431
      %v531 = vpop.f32.mrb[0].mxu0
      %v532 = vadd.f32 %v285, %v531
      %v533 = vpop.f32.mrb[0].mxu0
      %v534 = vpop.f32.mrb[0].mxu0
      %v535 = vadd.f32 %v285, %v534
      %v536 = vpop.f32.mrb[0].mxu0
      %537 = vmatprep.mubr.bf16.mxu0 0
      %538 = vmatmul.mubr.bf16.gmra.mrb[0].mxu0 %v434
      %v539 = vpop.f32.mrb[0].mxu0
      %v540 = vadd.f32 %v285, %v539
      %v541 = vpop.f32.mrb[0].mxu0
      %v542 = vpop.f32.mrb[0].mxu0
      %v543 = vadd.f32 %v285, %v542
      %v544 = vpop.f32.mrb[0].mxu0
      %545 = vmatprep.mubr.bf16.mxu0 0
      %546 = vmatmul.mubr.bf16.gmra.mrb[0].mxu0 %v437
      %v547 = vpop.f32.mrb[0].mxu0
      %v548 = vadd.f32 %v285, %v547
      %v549 = vpop.f32.mrb[0].mxu0
      %v550 = vpop.f32.mrb[0].mxu0
      %v551 = vadd.f32 %v285, %v550
      %v552 = vpop.f32.mrb[0].mxu0
      %553 = vmatprep.mubr.bf16.mxu0 0
      %554 = vmatmul.mubr.bf16.gmra.mrb[0].mxu0 %v440
      %v555 = vpop.f32.mrb[0].mxu0
      %v556 = vadd.f32 %v285, %v555
      %v557 = vpop.f32.mrb[0].mxu0
      %v558 = vpop.f32.mrb[0].mxu0
      %v559 = vadd.f32 %v285, %v558
      %v560 = vpop.f32.mrb[0].mxu0
      %561 = vmatprep.mubr.bf16.mxu0 0
      %562 = vmatmul.mubr.bf16.gmra.mrb[0].mxu0 %v443
      %v563 = vpop.f32.mrb[0].mxu0
      %v564 = vadd.f32 %v285, %v563
      %v565 = vpop.f32.mrb[0].mxu0
      %v566 = vpop.f32.mrb[0].mxu0
      %v567 = vadd.f32 %v285, %v566
      %v568 = vpop.f32.mrb[0].mxu0
      %569 = vmatprep.mubr.bf16.mxu0 0
      %570 = vmatmul.mubr.bf16.gmra.mrb[0].mxu0 %v446
      %v571 = vpop.f32.mrb[0].mxu0
      %v572 = vadd.f32 %v285, %v571
      %v573 = vpop.f32.mrb[0].mxu0
      %v574 = vpop.f32.mrb[0].mxu0
      %v575 = vadd.f32 %v285, %v574
      %v576 = vpop.f32.mrb[0].mxu0
      %577 = vmatprep.mubr.bf16.mxu0 0
      %578 = vmatmul.mubr.bf16.gmra.mrb[0].mxu0 %v449
      %v579 = vpop.f32.mrb[0].mxu0
      %v580 = vadd.f32 %v285, %v579
      %v581 = vpop.f32.mrb[0].mxu0
      %v582 = vpop.f32.mrb[0].mxu0
      %v583 = vadd.f32 %v285, %v582
      %v584 = vpop.f32.mrb[0].mxu0
      %585 = vmatprep.mubr.bf16.mxu0 0
      %586 = vmatmul.mubr.bf16.gmra.mrb[0].mxu0 %v452
      %v587 = vpop.f32.mrb[0].mxu0
      %v588 = vadd.f32 %v285, %v587
      %v589 = vpop.f32.mrb[0].mxu0
      %v590 = vpop.f32.mrb[0].mxu0
      %v591 = vadd.f32 %v285, %v590
      %v592 = vpop.f32.mrb[0].mxu0
      %593 = vmatprep.mubr.bf16.mxu0 0
      %594 = vmatmul.mubr.bf16.gmra.mrb[0].mxu0 %v455
      %v595 = vpop.f32.mrb[0].mxu0
      %v596 = vadd.f32 %v285, %v595
      %v597 = vpop.f32.mrb[0].mxu0
      %v598 = vpop.f32.mrb[0].mxu0
      %v599 = vadd.f32 %v285, %v598
      %v600 = vpop.f32.mrb[0].mxu0
      %601 = vmatprep.mubr.bf16.mxu0 0
      %602 = vmatmul.mubr.bf16.gmra.mrb[0].mxu0 %v458
      %v603 = vpop.f32.mrb[0].mxu0
      %v604 = vadd.f32 %v285, %v603
      %v605 = vpop.f32.mrb[0].mxu0
      %v606 = vpop.f32.mrb[0].mxu0
      %v607 = vadd.f32 %v285, %v606
      %v608 = vpop.f32.mrb[0].mxu0
      %609 = vmatprep.mubr.bf16.mxu0 0
      %610 = vmatmul.mubr.bf16.gmra.mrb[0].mxu0 %v461
      %v611 = vpop.f32.mrb[0].mxu0
      %v612 = vadd.f32 %v285, %v611
      %v613 = vpop.f32.mrb[0].mxu0
      %v614 = vpop.f32.mrb[0].mxu0
      %v615 = vadd.f32 %v285, %v614
      %v616 = vpop.f32.mrb[0].mxu0
      %617 = vmatprep.mubr.bf16.mxu0 0
      %618 = vmatmul.mubr.bf16.gmra.mrb[0].mxu0 %v464
      %v619 = vpop.f32.mrb[0].mxu0
      %v620 = vadd.f32 %v285, %v619
      %v621 = vpop.f32.mrb[0].mxu0
      %v622 = vpop.f32.mrb[0].mxu0
      %v623 = vadd.f32 %v285, %v622
      %v624 = vpop.f32.mrb[0].mxu0
      %625 = vmatprep.mubr.bf16.mxu0 0
      %626 = vmatmul.mubr.bf16.gmra.mrb[0].mxu0 %v467
      %v627 = vpop.f32.mrb[0].mxu0
      %v628 = vadd.f32 %v285, %v627
      %v629 = vpop.f32.mrb[0].mxu0
      %v630 = vpop.f32.mrb[0].mxu0
      %v631 = vadd.f32 %v285, %v630
      %v632 = vpop.f32.mrb[0].mxu0
      %633 = vmatprep.mubr.bf16.mxu0 0
      %634 = vmatmul.mubr.bf16.gmra.mrb[0].mxu0 %v470
      %v635 = vpop.f32.mrb[0].mxu0
      %v636 = vadd.f32 %v285, %v635
      %v637 = vpop.f32.mrb[0].mxu0
      %v638 = vpop.f32.mrb[0].mxu0
      %v639 = vadd.f32 %v285, %v638
      %v640 = vpop.f32.mrb[0].mxu0
      %641 = vmatprep.mubr.bf16.mxu0 0
      %642 = vmatmul.mubr.bf16.gmra.mrb[0].mxu0 %v473
      %v643 = vpop.f32.mrb[0].mxu0
      %v644 = vadd.f32 %v285, %v643
      %v645 = vpop.f32.mrb[0].mxu0
      %v646 = vpop.f32.mrb[0].mxu0
      %v647 = vadd.f32 %v285, %v646
      %v648 = vpop.f32.mrb[0].mxu0
      %649 = vmatprep.mubr.bf16.mxu0 0
      %650 = vmatmul.mubr.bf16.gmra.mrb[0].mxu0 %v476
      %v651 = vpop.f32.mrb[0].mxu0
      %v652 = vadd.f32 %v285, %v651
      %v653 = vpop.f32.mrb[0].mxu0
      %v654 = vpop.f32.mrb[0].mxu0
      %v655 = vadd.f32 %v285, %v654
      %v656 = vpop.f32.mrb[0].mxu0
      %657 = vmatprep.mubr.bf16.mxu0 0
      %658 = vmatmul.mubr.bf16.gmra.mrb[0].mxu0 %v479
      %v659 = vpop.f32.mrb[0].mxu0
      %v660 = vadd.f32 %v285, %v659
      %v661 = vpop.f32.mrb[0].mxu0
      %v662 = vpop.f32.mrb[0].mxu0
      %v663 = vadd.f32 %v285, %v662
      %v664 = vpop.f32.mrb[0].mxu0
      %665 = vmatprep.mubr.bf16.mxu0 0
      %666 = vmatmul.mubr.bf16.gmra.mrb[0].mxu0 %v482
      %v667 = vpop.f32.mrb[0].mxu0
      %v668 = vadd.f32 %v285, %v667
      %v669 = vpop.f32.mrb[0].mxu0
      %v670 = vpop.f32.mrb[0].mxu0
      %v671 = vadd.f32 %v285, %v670
      %v672 = vpop.f32.mrb[0].mxu0
      %673 = vmatprep.mubr.bf16.mxu0 0
      %674 = vmatmul.mubr.bf16.gmra.mrb[0].mxu0 %v485
      %v675 = vpop.f32.mrb[0].mxu0
      %v676 = vadd.f32 %v285, %v675
      %v677 = vpop.f32.mrb[0].mxu0
      %v678 = vpop.f32.mrb[0].mxu0
      %v679 = vadd.f32 %v285, %v678
      %v680 = vpop.f32.mrb[0].mxu0
      %681 = vmatprep.mubr.bf16.mxu0 0
      %682 = vmatmul.mubr.bf16.gmra.mrb[0].mxu0 %v488
      %v683 = vpop.f32.mrb[0].mxu0
      %v684 = vadd.f32 %v285, %v683
      %v685 = vpop.f32.mrb[0].mxu0
      %v686 = vpop.f32.mrb[0].mxu0
      %v687 = vadd.f32 %v285, %v686
      %v688 = vpop.f32.mrb[0].mxu0
      %689 = vmatprep.mubr.bf16.mxu0 0
      %690 = vmatmul.mubr.bf16.gmra.mrb[0].mxu0 %v491
      %v691 = vpop.f32.mrb[0].mxu0
      %v692 = vadd.f32 %v285, %v691
      %v693 = vpop.f32.mrb[0].mxu0
      %v694 = vpop.f32.mrb[0].mxu0
      %v695 = vpop.f32.mrb[0].mxu0
      %696 = vdwg.mxu0
      %v697 = vmax.f32 %v532, 0.0
      %v698 = vmax.f32 %v535, 0.0
      %v699 = vmax.f32 %v540, 0.0
      %v700 = vmax.f32 %v543, 0.0
      %v701 = vmax.f32 %v548, 0.0
      %v702 = vmax.f32 %v551, 0.0
      %v703 = vmax.f32 %v556, 0.0
      %v704 = vmax.f32 %v559, 0.0
      %v705 = vmax.f32 %v564, 0.0
      %v706 = vmax.f32 %v567, 0.0
      %v707 = vmax.f32 %v572, 0.0
      %v708 = vmax.f32 %v575, 0.0
      %v709 = vmax.f32 %v580, 0.0
      %v710 = vmax.f32 %v583, 0.0
      %v711 = vmax.f32 %v588, 0.0
      %v712 = vmax.f32 %v591, 0.0
      %v713 = vmax.f32 %v596, 0.0
      %v714 = vmax.f32 %v599, 0.0
      %v715 = vmax.f32 %v604, 0.0
      %v716 = vmax.f32 %v607, 0.0
      %v717 = vmax.f32 %v612, 0.0
      %v718 = vmax.f32 %v615, 0.0
      %v719 = vmax.f32 %v620, 0.0
      %v720 = vmax.f32 %v623, 0.0
      %v721 = vmax.f32 %v628, 0.0
      %v722 = vmax.f32 %v631, 0.0
      %v723 = vmax.f32 %v636, 0.0
      %v724 = vmax.f32 %v639, 0.0
      %v725 = vmax.f32 %v644, 0.0
      %v726 = vmax.f32 %v647, 0.0
      %v727 = vmax.f32 %v652, 0.0
      %v728 = vmax.f32 %v655, 0.0
      %v729 = vmax.f32 %v660, 0.0
      %v730 = vmax.f32 %v663, 0.0
      %v731 = vmax.f32 %v668, 0.0
      %v732 = vmax.f32 %v671, 0.0
      %v733 = vmax.f32 %v676, 0.0
      %v734 = vmax.f32 %v679, 0.0
      %v735 = vmax.f32 %v684, 0.0
      %v736 = vmax.f32 %v687, 0.0
      %v737 = vmax.f32 %v692, 0.0
      %v738 = vpack.c.bf16 %v698, %v697
      %v739 = vpack.c.bf16 %v700, %v699
      %v740 = vpack.c.bf16 %v702, %v701
      %v741 = vpack.c.bf16 %v704, %v703
      %v742 = vpack.c.bf16 %v706, %v705
      %v743 = vpack.c.bf16 %v708, %v707
      %v744 = vpack.c.bf16 %v710, %v709
      %v745 = vpack.c.bf16 %v712, %v711
      %v746 = vpack.c.bf16 %v714, %v713
      %v747 = vpack.c.bf16 %v716, %v715
      %v748 = vpack.c.bf16 %v718, %v717
      %v749 = vpack.c.bf16 %v720, %v719
      %v750 = vpack.c.bf16 %v722, %v721
      %v751 = vpack.c.bf16 %v724, %v723
      %v752 = vpack.c.bf16 %v726, %v725
      %v753 = vpack.c.bf16 %v728, %v727
      %v754 = vpack.c.bf16 %v730, %v729
      %v755 = vpack.c.bf16 %v732, %v731
      %v756 = vpack.c.bf16 %v734, %v733
      %v757 = vpack.c.bf16 %v736, %v735
      %v758 = vpack.c.bf16 %v737, %v737
      %v780 = vunpack.c.l.b16 %v738
      %v781 = vunpack.c.h.b16 %v738
      %v782 = vunpack.c.l.b16 %v739
      %v783 = vunpack.c.h.b16 %v739
      %v784 = vunpack.c.l.b16 %v740
      %v785 = vunpack.c.h.b16 %v740
      %v786 = vunpack.c.l.b16 %v741
      %v787 = vunpack.c.h.b16 %v741
      %v788 = vunpack.c.l.b16 %v742
      %v789 = vunpack.c.h.b16 %v742
      %v790 = vunpack.c.l.b16 %v743
      %v791 = vunpack.c.h.b16 %v743
      %v792 = vunpack.c.l.b16 %v744
      %v793 = vunpack.c.h.b16 %v744
      %v794 = vunpack.c.l.b16 %v745
      %v795 = vunpack.c.h.b16 %v745
      %v796 = vunpack.c.l.b16 %v746
      %v797 = vunpack.c.h.b16 %v746
      %v798 = vunpack.c.l.b16 %v747
      %v799 = vunpack.c.h.b16 %v747
      %v800 = vunpack.c.l.b16 %v748
      %v801 = vunpack.c.h.b16 %v748
      %v802 = vunpack.c.l.b16 %v749
      %v803 = vunpack.c.h.b16 %v749
      %v804 = vunpack.c.l.b16 %v750
      %v805 = vunpack.c.h.b16 %v750
      %v806 = vunpack.c.l.b16 %v751
      %v807 = vunpack.c.h.b16 %v751
      %v808 = vunpack.c.l.b16 %v752
      %v809 = vunpack.c.h.b16 %v752
      %v810 = vunpack.c.l.b16 %v753
      %v811 = vunpack.c.h.b16 %v753
      %v812 = vunpack.c.l.b16 %v754
      %v813 = vunpack.c.h.b16 %v754
      %v814 = vunpack.c.l.b16 %v755
      %v815 = vunpack.c.h.b16 %v755
      %v816 = vunpack.c.l.b16 %v756
      %v817 = vunpack.c.h.b16 %v756
      %v818 = vunpack.c.l.b16 %v757
      %v819 = vunpack.c.h.b16 %v757
      %v820 = vunpack.c.l.b16 %v758
      %v821 = vpack.c.b16 %v780, %v780
      %v822 = vpack.c.b16 %v781, %v781
      %v823 = vpack.c.b16 %v782, %v782
      %v824 = vpack.c.b16 %v783, %v783
      %v825 = vpack.c.b16 %v784, %v784
      %v826 = vpack.c.b16 %v785, %v785
      %v827 = vpack.c.b16 %v786, %v786
      %v828 = vpack.c.b16 %v787, %v787
      %v829 = vpack.c.b16 %v788, %v788
      %v830 = vpack.c.b16 %v789, %v789
      %v831 = vpack.c.b16 %v790, %v790
      %v832 = vpack.c.b16 %v791, %v791
      %v833 = vpack.c.b16 %v792, %v792
      %v834 = vpack.c.b16 %v793, %v793
      %v835 = vpack.c.b16 %v794, %v794
      %v836 = vpack.c.b16 %v795, %v795
      %v837 = vpack.c.b16 %v796, %v796
      %v838 = vpack.c.b16 %v797, %v797
      %v839 = vpack.c.b16 %v798, %v798
      %v840 = vpack.c.b16 %v799, %v799
      %v841 = vpack.c.b16 %v800, %v800
      %v842 = vpack.c.b16 %v801, %v801
      %v843 = vpack.c.b16 %v802, %v802
      %v844 = vpack.c.b16 %v803, %v803
      %v845 = vpack.c.b16 %v804, %v804
      %v846 = vpack.c.b16 %v805, %v805
      %v847 = vpack.c.b16 %v806, %v806
      %v848 = vpack.c.b16 %v807, %v807
      %v849 = vpack.c.b16 %v808, %v808
      %v850 = vpack.c.b16 %v809, %v809
      %v851 = vpack.c.b16 %v810, %v810
      %v852 = vpack.c.b16 %v811, %v811
      %v853 = vpack.c.b16 %v812, %v812
      %v854 = vpack.c.b16 %v813, %v813
      %v855 = vpack.c.b16 %v814, %v814
      %v856 = vpack.c.b16 %v815, %v815
      %v857 = vpack.c.b16 %v816, %v816
      %v858 = vpack.c.b16 %v817, %v817
      %v859 = vpack.c.b16 %v818, %v818
      %v860 = vpack.c.b16 %v819, %v819
      %v861 = vpack.c.b16 %v820, %v820
      %903 = vst [vmem:[%s223] sm:$0xf] %v821
      %904 = vst [vmem:[%s223 + $0x4] sm:$0xf] %v822
      %905 = vst [vmem:[%s223 + $0x8] sm:$0xf] %v823
      %906 = vst [vmem:[%s223 + $0xc] sm:$0xf] %v824
      %907 = vst [vmem:[%s223 + $0x10] sm:$0xf] %v825
      %908 = vst [vmem:[%s223 + $0x14] sm:$0xf] %v826
      %909 = vst [vmem:[%s223 + $0x18] sm:$0xf] %v827
      %910 = vst [vmem:[%s223 + $0x1c] sm:$0xf] %v828
      %911 = vst [vmem:[%s223 + $0x20] sm:$0xf] %v829
      %912 = vst [vmem:[%s223 + $0x24] sm:$0xf] %v830
      %913 = vst [vmem:[%s223 + $0x28] sm:$0xf] %v831
      %914 = vst [vmem:[%s223 + $0x2c] sm:$0xf] %v832
      %915 = vst [vmem:[%s223 + $0x30] sm:$0xf] %v833
      %916 = vst [vmem:[%s223 + $0x34] sm:$0xf] %v834
      %917 = vst [vmem:[%s223 + $0x38] sm:$0xf] %v835
      %918 = vst [vmem:[%s223 + $0x3c] sm:$0xf] %v836
      %919 = vst [vmem:[%s223 + $0x40] sm:$0xf] %v837
      %920 = vst [vmem:[%s223 + $0x44] sm:$0xf] %v838
      %921 = vst [vmem:[%s223 + $0x48] sm:$0xf] %v839
      %922 = vst [vmem:[%s223 + $0x4c] sm:$0xf] %v840
      %923 = vst [vmem:[%s223 + $0x50] sm:$0xf] %v841
      %924 = vst [vmem:[%s223 + $0x54] sm:$0xf] %v842
      %925 = vst [vmem:[%s223 + $0x58] sm:$0xf] %v843
      %926 = vst [vmem:[%s223 + $0x5c] sm:$0xf] %v844
      %927 = vst [vmem:[%s223 + $0x60] sm:$0xf] %v845
      %928 = vst [vmem:[%s223 + $0x64] sm:$0xf] %v846
      %929 = vst [vmem:[%s223 + $0x68] sm:$0xf] %v847
      %930 = vst [vmem:[%s223 + $0x6c] sm:$0xf] %v848
      %931 = vst [vmem:[%s223 + $0x70] sm:$0xf] %v849
      %932 = vst [vmem:[%s223 + $0x74] sm:$0xf] %v850
      %933 = vst [vmem:[%s223 + $0x78] sm:$0xf] %v851
      %934 = vst [vmem:[%s223 + $0x7c] sm:$0xf] %v852
      %935 = vst [vmem:[%s223 + $0x80] sm:$0xf] %v853
      %936 = vst [vmem:[%s223 + $0x84] sm:$0xf] %v854
      %937 = vst [vmem:[%s223 + $0x88] sm:$0xf] %v855
      %938 = vst [vmem:[%s223 + $0x8c] sm:$0xf] %v856
      %939 = vst [vmem:[%s223 + $0x90] sm:$0xf] %v857
      %940 = vst [vmem:[%s223 + $0x94] sm:$0xf] %v858
      %941 = vst [vmem:[%s223 + $0x98] sm:$0xf] %v859
      %942 = vst [vmem:[%s223 + $0x9c] sm:$0xf] %v860
      %943 = vst [vmem:[%s223 + $0xa0] sm:$0xf] %v861
      %s944 = smul.u32 41, %s18
      %p945 = scmp.lt.s32.totalorder %s944, 81
      %s946 = scalar_select %p945, %s944, 81
      %p947 = scmp.lt.s32.totalorder %s19, 0
      %s948 = scalar_select %p947, %s19, 0
      %s949 = sadd.s32 %s948, %s946
      %s950 = smul.addr %s949, 4
      %s951 = scalar_lea.vmem %s3, %s950
      // Predicated region
      $region33: #{_lambda_.3} parent=31 // pred_check
        %p952 = pneg %p124
      $region34: #{_lambda_.3} parent=31 // pred_check_branch
        %954 = sbr.rel (%p952) target = $region36
      $region35: #{_lambda_.3} parent=31 // pred_region
        %s955 = smul.u32 41, %s18
      $region36: #{_lambda_.3} parent=31 // pred_fallthru
        _
    $region32: #{_lambda_.3} parent=5 // pred_fallthru
      _
    %p956 = scmp.le.s32.totalorder 2, %s9
    // Predicated region
    $region37: #{_lambda_.3} parent=5 // pred_check
      %p957 = pneg %p956
    $region38: #{_lambda_.3} parent=5 // pred_check_branch
      %959 = sbr.rel (%p957) target = $region40
    $region39: #{_lambda_.3} parent=5 // pred_region
      %s960 = ssub.s32 %s9, 2
      // Predicated region
      $region41: #{_lambda_.3} parent=39 // pred_check
        %p961 = pneg %p130
      $region42: #{_lambda_.3} parent=39 // pred_check_branch
        %963 = sbr.rel (%p961) target = $region44
      $region43: #{_lambda_.3} parent=39 // pred_region
        %s964 = smul.u32 41, %s20
        %p965 = scmp.lt.s32.totalorder %s964, 81
        %s966 = scalar_select %p965, %s964, 81
        %p967 = scmp.lt.s32.totalorder %s21, 0
        %s968 = scalar_select %p967, %s21, 0
        %s969 = sadd.s32 %s968, %s966
        %s970 = smul.addr %s969, 4
        %s971 = scalar_lea.vmem %s3, %s970
      $region44: #{_lambda_.3} parent=39 // pred_fallthru
        _
    $region40: #{_lambda_.3} parent=5 // pred_fallthru
      _
  $region6: #{_lambda_.3} parent=0 // loop_footer
    %s13 = sadd.s32 1, %s9
  $region7: #{_lambda_.3} parent=0 // loop_footer_branch
    %8 = sbr.rel target = $region3
  $region8: #{_lambda_.3} parent=0 // loop_exit
    _

// kernel: _lambda_.4
$region0: #{_lambda_.4}
  #allocation0 [shape = 'u32[]', space=smem, size = 0x4, offset = 0x4, fixed_abs, tag = 'smem constant byte address 0x4 - core index']
  #allocation1 [shape = 'u32[144,128]{1,0:T(1,128)}', space=vmem, size = 0x12000, scoped, tag = 'internal scratch']
  %s0 = inlined_call_operand.vmem [shape: bf16[112,3200], index: 0, kind: input, shape index: {}]
  %s1 = inlined_call_operand.vmem [shape: bf16[3200,128], index: 1, kind: input, shape index: {}]
  %s2 = inlined_call_operand.vmem [shape: f32[1,128], index: 2, kind: input, shape index: {}]
  %s3 = inlined_call_operand.vmem [shape: bf16[112,128], index: 3, kind: output, shape index: {}]
  %s4 = sld [smem:[#allocation0]]
  $region45: #{_lambda_.4} parent=0
    _
  %s6 = ssub.s32 1, %s4
  %s7 = scalar_select 0, %s6, %s4
  loop: start=0, step=1, limit=4
  $region2: #{_lambda_.4} parent=0 // loop_pre_header
    _
  $region3: #{_lambda_.4} parent=0 // loop_header
    %s9 = sphi 0, %s13
    %p10 = scmp.ge.s32.totalorder %s9, 4
    %s16 = sphi 0, %s28
    %s17 = sphi 0, %s24
    %s18 = sphi 0, %s16
    %s19 = sphi 0, %s17
    %s20 = sphi 0, %s18
    %s21 = sphi 0, %s19
    %s31 = sphi 0, %s33
    %s34 = sphi 0, %s31
    %s35 = sphi 0, %s34
    %s51 = sphi 0, %s35
    %s57 = sphi 0, %s59
    %s60 = sphi 0, %s57
    %s61 = sphi 0, %s60
    %s77 = sphi 0, %s61
    %s83 = sphi 0, %s85
    %s86 = sphi 0, %s83
    %s87 = sphi 0, %s86
    %s103 = sphi 0, %s87
    %s111 = sphi 0, %s113
    %s114 = sphi 0, %s111
    %s115 = sphi 0, %s114
    %s131 = sphi 0, %s115
  $region4: #{_lambda_.4} parent=0 // loop_header_branch
    %12 = sbr.rel (%p10) target = $region8
  $region5: #{_lambda_.4} parent=0 // loop_body
    %s14 = ssub.s32 %s9, 1
    %s15 = ssub.s32 %s9, 2
    %s22 = sadd.s32 1, %s17
    %p23 = scmp.ge.s32.totalorder %s22, 1
    %s24 = scalar_select %p23, 0, %s22
    %s25 = sadd.s32 1, %s16
    %s26 = scalar_select %p23, %s25, %s16
    %p27 = scmp.ge.s32.totalorder %s26, 2
    %s28 = scalar_select %p27, 0, %s26
    %s29 = ssub.s32 %s16, %s28
    %p30 = scmp.eq.s32.totalorder %s29, 0
    %s32 = sadd.s32 %s31, 1
    %s33 = scalar_select %p30, %s31, %s32
    %p36 = pneg %p30
    %p37 = scmp.eq.s32.totalorder %s9, 1
    %p38 = por %p36, %p37
    %p39 = scmp.ne.s32.totalorder %s31, %s34
    %p40 = scmp.eq.s32.totalorder %s9, 0
    %p41 = por %p39, %p40
    %p42 = scmp.ne.s32.totalorder %s31, %s34
    %p43 = scmp.eq.s32.totalorder %s14, 1
    %p44 = por %p42, %p43
    %p45 = scmp.ne.s32.totalorder %s34, %s35
    %p46 = scmp.eq.s32.totalorder %s14, 0
    %p47 = por %p45, %p46
    %p48 = scmp.ne.s32.totalorder %s34, %s35
    %p49 = scmp.eq.s32.totalorder %s15, 1
    %p50 = por %p48, %p49
    %p52 = scmp.ne.s32.totalorder %s35, %s51
    %p53 = scmp.eq.s32.totalorder %s15, 0
    %p54 = por %p52, %p53
    %s55 = ssub.s32 %s17, %s24
    %p56 = scmp.eq.s32.totalorder %s55, 0
    %s58 = sadd.s32 %s57, 1
    %s59 = scalar_select %p56, %s57, %s58
    %p62 = pneg %p56
    %p63 = scmp.eq.s32.totalorder %s9, 1
    %p64 = por %p62, %p63
    %p65 = scmp.ne.s32.totalorder %s57, %s60
    %p66 = scmp.eq.s32.totalorder %s9, 0
    %p67 = por %p65, %p66
    %p68 = scmp.ne.s32.totalorder %s57, %s60
    %p69 = scmp.eq.s32.totalorder %s14, 1
    %p70 = por %p68, %p69
    %p71 = scmp.ne.s32.totalorder %s60, %s61
    %p72 = scmp.eq.s32.totalorder %s14, 0
    %p73 = por %p71, %p72
    %p74 = scmp.ne.s32.totalorder %s60, %s61
    %p75 = scmp.eq.s32.totalorder %s15, 1
    %p76 = por %p74, %p75
    %p78 = scmp.ne.s32.totalorder %s61, %s77
    %p79 = scmp.eq.s32.totalorder %s15, 0
    %p80 = por %p78, %p79
    %s81 = ssub.s32 %s17, %s24
    %p82 = scmp.eq.s32.totalorder %s81, 0
    %s84 = sadd.s32 %s83, 1
    %s85 = scalar_select %p82, %s83, %s84
    %p88 = pneg %p82
    %p89 = scmp.eq.s32.totalorder %s9, 1
    %p90 = por %p88, %p89
    %p91 = scmp.ne.s32.totalorder %s83, %s86
    %p92 = scmp.eq.s32.totalorder %s9, 0
    %p93 = por %p91, %p92
    %p94 = scmp.ne.s32.totalorder %s83, %s86
    %p95 = scmp.eq.s32.totalorder %s14, 1
    %p96 = por %p94, %p95
    %p97 = scmp.ne.s32.totalorder %s86, %s87
    %p98 = scmp.eq.s32.totalorder %s14, 0
    %p99 = por %p97, %p98
    %p100 = scmp.ne.s32.totalorder %s86, %s87
    %p101 = scmp.eq.s32.totalorder %s15, 1
    %p102 = por %p100, %p101
    %p104 = scmp.ne.s32.totalorder %s87, %s103
    %p105 = scmp.eq.s32.totalorder %s15, 0
    %p106 = por %p104, %p105
    %s107 = ssub.s32 %s16, %s28
    %s108 = ssub.s32 %s17, %s24
    %s109 = sor.u32 %s107, %s108
    %p110 = scmp.eq.s32.totalorder %s109, 0
    %s112 = sadd.s32 %s111, 1
    %s113 = scalar_select %p110, %s111, %s112
    %p116 = pneg %p110
    %p117 = scmp.eq.s32.totalorder %s9, 1
    %p118 = por %p116, %p117
    %p119 = scmp.ne.s32.totalorder %s111, %s114
    %p120 = scmp.eq.s32.totalorder %s9, 0
    %p121 = por %p119, %p120
    %p122 = scmp.ne.s32.totalorder %s111, %s114
    %p123 = scmp.eq.s32.totalorder %s14, 1
    %p124 = por %p122, %p123
    %p125 = scmp.ne.s32.totalorder %s114, %s115
    %p126 = scmp.eq.s32.totalorder %s14, 0
    %p127 = por %p125, %p126
    %p128 = scmp.ne.s32.totalorder %s114, %s115
    %p129 = scmp.eq.s32.totalorder %s15, 1
    %p130 = por %p128, %p129
    %p132 = scmp.ne.s32.totalorder %s115, %s131
    %p133 = scmp.eq.s32.totalorder %s15, 0
    %p134 = por %p132, %p133
    %p135 = scmp.le.s32.totalorder 1, %s9
    %p136 = scmp.lt.s32.totalorder %s9, 3
    %p137 = pnand %p135, %p136
    %p138 = pneg %p137
    // Predicated region
    $region9: #{_lambda_.4} parent=5 // pred_check
      _
    $region10: #{_lambda_.4} parent=5 // pred_check_branch
      %140 = sbr.rel (%p137) target = $region12
    $region11: #{_lambda_.4} parent=5 // pred_region
      %s141 = ssub.s32 %s9, 1
      // Predicated region
      $region13: #{_lambda_.4} parent=11 // pred_check
        %p142 = pneg %p73
      $region14: #{_lambda_.4} parent=11 // pred_check_branch
        %144 = sbr.rel (%p142) target = $region16
      $region15: #{_lambda_.4} parent=11 // pred_region
        %p145 = scmp.lt.s32.totalorder %s19, 0
        %s146 = scalar_select %p145, %s19, 0
        %s147 = smul.addr %s146, 4
        %s148 = scalar_lea.vmem %s1, %s147
      $region16: #{_lambda_.4} parent=11 // pred_fallthru
        _
      // Predicated region
      $region17: #{_lambda_.4} parent=11 // pred_check
        %p149 = pneg %p99
      $region18: #{_lambda_.4} parent=11 // pred_check_branch
        %151 = sbr.rel (%p149) target = $region20
      $region19: #{_lambda_.4} parent=11 // pred_region
        %p152 = scmp.lt.s32.totalorder %s19, 0
        %s153 = scalar_select %p152, %s19, 0
        %s154 = scalar_lea.vmem %s2, %s153
      $region20: #{_lambda_.4} parent=11 // pred_fallthru
        _
    $region12: #{_lambda_.4} parent=5 // pred_fallthru
      _
    %p155 = scmp.lt.s32.totalorder %s9, 2
    // Predicated region
    $region21: #{_lambda_.4} parent=5 // pred_check
      %p156 = pneg %p155
    $region22: #{_lambda_.4} parent=5 // pred_check_branch
      %158 = sbr.rel (%p156) target = $region24
    $region23: #{_lambda_.4} parent=5 // pred_region
      // Predicated region
      $region25: #{_lambda_.4} parent=23 // pred_check
        %p159 = pneg %p41
      $region26: #{_lambda_.4} parent=23 // pred_check_branch
        %161 = sbr.rel (%p159) target = $region28
      $region27: #{_lambda_.4} parent=23 // pred_region
        %s162 = smul.u32 7, %s16
        %p163 = scmp.lt.s32.totalorder %s162, 13
        %s164 = scalar_select %p163, %s162, 13
        %s165 = smul.addr %s164, 25
        %s166 = smul.addr %s165, 4
        %s167 = scalar_lea.vmem %s0, %s166
        %s168 = smul.u32 7, %s16
      $region28: #{_lambda_.4} parent=23 // pred_fallthru
        _
    $region24: #{_lambda_.4} parent=5 // pred_fallthru
      _
    %p169 = scmp.le.s32.totalorder 1, %s9
    %p170 = scmp.lt.s32.totalorder %s9, 3
    %p171 = pnand %p169, %p170
    %p172 = pneg %p171
    // Predicated region
    $region29: #{_lambda_.4} parent=5 // pred_check
      _
    $region30: #{_lambda_.4} parent=5 // pred_check_branch
      %174 = sbr.rel (%p171) target = $region32
    $region31: #{_lambda_.4} parent=5 // pred_region
      %s175 = ssub.s32 %s9, 1
      %s176 = smul.u32 7, %s18
      %p177 = scmp.lt.s32.totalorder %s176, 13
      %s178 = scalar_select %p177, %s176, 13
      %s179 = smul.addr %s178, 25
      %s180 = smul.addr %s179, 4
      %s181 = scalar_lea.vmem %s0, %s180
      %p182 = pneg %p47
      %p183 = pneg %p44
      %p184 = scmp.lt.s32.totalorder %s19, 0
      %s185 = scalar_select %p184, %s19, 0
      %s186 = smul.addr %s185, 4
      %s187 = scalar_lea.vmem %s1, %s186
      %p188 = pneg %p73
      %p189 = pneg %p70
      %p190 = scmp.lt.s32.totalorder %s19, 0
      %s191 = scalar_select %p190, %s19, 0
      %s192 = scalar_lea.vmem %s2, %s191
      %p193 = pneg %p99
      %p194 = pneg %p96
      %p195 = pneg %p127
      %p196 = pneg %p124
      %s197 = smul.u32 7, %s18
      %p198 = scmp.lt.s32.totalorder %s197, 13
      %s199 = scalar_select %p198, %s197, 13
      %p200 = scmp.lt.s32.totalorder %s19, 0
      %s201 = scalar_select %p200, %s19, 0
      %s202 = sadd.s32 %s201, %s199
      %s203 = smul.addr %s202, 4
      %s204 = scalar_lea.vmem %s3, %s203
      %s205 = smul.u32 7, %s18
      %p206 = scmp.lt.s32.totalorder %s205, 13
      %s207 = scalar_select %p206, %s205, 13
      %s208 = smul.addr %s207, 25
      %s209 = smul.addr %s208, 4
      %s210 = scalar_lea.vmem %s0, %s209
      %s211 = smul.u32 7, %s18
      %p212 = scmp.lt.s32.totalorder %s19, 0
      %s213 = scalar_select %p212, %s19, 0
      %s214 = smul.addr %s213, 4
      %s215 = scalar_lea.vmem %s1, %s214
      %p216 = scmp.lt.s32.totalorder %s19, 0
      %s217 = scalar_select %p216, %s19, 0
      %s218 = scalar_lea.vmem %s2, %s217
      %s219 = smul.u32 7, %s18
      %p220 = scmp.lt.s32.totalorder %s219, 13
      %s221 = scalar_select %p220, %s219, 13
      %p222 = scmp.lt.s32.totalorder %s19, 0
      %s223 = scalar_select %p222, %s19, 0
      %s224 = sadd.s32 %s223, %s221
      %s225 = smul.addr %s224, 4
      %s226 = scalar_lea.vmem %s3, %s225
      %s227 = smul.u32 7, %s18
      %v229 = vld [vmem:[%s210] sm:$0xff]
      %v230 = vld [vmem:[%s210 + $0x8] sm:$0xff]
      %v231 = vld [vmem:[%s210 + $0x10] sm:$0xff]
      %v232 = vld [vmem:[%s210 + $0x18] sm:$0xff]
      %v233 = vld [vmem:[%s210 + $0x20] sm:$0xff]
      %v234 = vld [vmem:[%s210 + $0x28] sm:$0xff]
      %v235 = vld [vmem:[%s210 + $0x30] sm:$0xff]
      %v236 = vld [vmem:[%s210 + $0x38] sm:$0xff]
      %v237 = vld [vmem:[%s210 + $0x40] sm:$0xff]
      %v238 = vld [vmem:[%s210 + $0x48] sm:$0xff]
      %v239 = vld [vmem:[%s210 + $0x50] sm:$0xff]
      %v240 = vld [vmem:[%s210 + $0x58] sm:$0xff]
      %v241 = vld [vmem:[%s210 + $0x60] sm:$0xf]
      %v242 = vld [vmem:[%s210 + $0x64] sm:$0xff]
      %v243 = vld [vmem:[%s210 + $0x6c] sm:$0xff]
      %v244 = vld [vmem:[%s210 + $0x74] sm:$0xff]
      %v245 = vld [vmem:[%s210 + $0x7c] sm:$0xff]
      %v246 = vld [vmem:[%s210 + $0x84] sm:$0xff]
      %v247 = vld [vmem:[%s210 + $0x8c] sm:$0xff]
      %v248 = vld [vmem:[%s210 + $0x94] sm:$0xff]
      %v249 = vld [vmem:[%s210 + $0x9c] sm:$0xff]
      %v250 = vld [vmem:[%s210 + $0xa4] sm:$0xff]
      %v251 = vld [vmem:[%s210 + $0xac] sm:$0xff]
      %v252 = vld [vmem:[%s210 + $0xb4] sm:$0xff]
      %v253 = vld [vmem:[%s210 + $0xbc] sm:$0xff]
      %v254 = vld [vmem:[%s210 + $0xc4] sm:$0xf]
      %v255 = vld [vmem:[%s210 + $0xc8] sm:$0xff]
      %v256 = vld [vmem:[%s210 + $0xd0] sm:$0xff]
      %v257 = vld [vmem:[%s210 + $0xd8] sm:$0xff]
      %v258 = vld [vmem:[%s210 + $0xe0] sm:$0xff]
      %v259 = vld [vmem:[%s210 + $0xe8] sm:$0xff]
      %v260 = vld [vmem:[%s210 + $0xf0] sm:$0xff]
      %v261 = vld [vmem:[%s210 + $0xf8] sm:$0xff]
      %v262 = vld [vmem:[%s210 + $0x100] sm:$0xff]
      %v263 = vld [vmem:[%s210 + $0x108] sm:$0xff]
      %v264 = vld [vmem:[%s210 + $0x110] sm:$0xff]
      %v265 = vld [vmem:[%s210 + $0x118] sm:$0xff]
      %v266 = vld [vmem:[%s210 + $0x120] sm:$0xff]
      %v267 = vld [vmem:[%s210 + $0x128] sm:$0xf]
      %v268 = vld [vmem:[%s210 + $0x12c] sm:$0xff]
      %v269 = vld [vmem:[%s210 + $0x134] sm:$0xff]
      %v270 = vld [vmem:[%s210 + $0x13c] sm:$0xff]
      %v271 = vld [vmem:[%s210 + $0x144] sm:$0xff]
      %v272 = vld [vmem:[%s210 + $0x14c] sm:$0xff]
      %v273 = vld [vmem:[%s210 + $0x154] sm:$0xff]
      %v274 = vld [vmem:[%s210 + $0x15c] sm:$0xff]
      %v275 = vld [vmem:[%s210 + $0x164] sm:$0xff]
      %v276 = vld [vmem:[%s210 + $0x16c] sm:$0xff]
      %v277 = vld [vmem:[%s210 + $0x174] sm:$0xff]
      %v278 = vld [vmem:[%s210 + $0x17c] sm:$0xff]
      %v279 = vld [vmem:[%s210 + $0x184] sm:$0xff]
      %v280 = vld [vmem:[%s210 + $0x18c] sm:$0xf]
      %v281 = vld [vmem:[%s210 + $0x190] sm:$0xff]
      %v282 = vld [vmem:[%s210 + $0x198] sm:$0xff]
      %v283 = vld [vmem:[%s210 + $0x1a0] sm:$0xff]
      %v284 = vld [vmem:[%s210 + $0x1a8] sm:$0xff]
      %v285 = vld [vmem:[%s210 + $0x1b0] sm:$0xff]
      %v286 = vld [vmem:[%s210 + $0x1b8] sm:$0xff]
      %v287 = vld [vmem:[%s210 + $0x1c0] sm:$0xff]
      %v288 = vld [vmem:[%s210 + $0x1c8] sm:$0xff]
      %v289 = vld [vmem:[%s210 + $0x1d0] sm:$0xff]
      %v290 = vld [vmem:[%s210 + $0x1d8] sm:$0xff]
      %v291 = vld [vmem:[%s210 + $0x1e0] sm:$0xff]
      %v292 = vld [vmem:[%s210 + $0x1e8] sm:$0xff]
      %v293 = vld [vmem:[%s210 + $0x1f0] sm:$0xf]
      %v294 = vld [vmem:[%s210 + $0x1f4] sm:$0xff]
      %v295 = vld [vmem:[%s210 + $0x1fc] sm:$0xff]
      %v296 = vld [vmem:[%s210 + $0x204] sm:$0xff]
      %v297 = vld [vmem:[%s210 + $0x20c] sm:$0xff]
      %v298 = vld [vmem:[%s210 + $0x214] sm:$0xff]
      %v299 = vld [vmem:[%s210 + $0x21c] sm:$0xff]
      %v300 = vld [vmem:[%s210 + $0x224] sm:$0xff]
      %v301 = vld [vmem:[%s210 + $0x22c] sm:$0xff]
      %v302 = vld [vmem:[%s210 + $0x234] sm:$0xff]
      %v303 = vld [vmem:[%s210 + $0x23c] sm:$0xff]
      %v304 = vld [vmem:[%s210 + $0x244] sm:$0xff]
      %v305 = vld [vmem:[%s210 + $0x24c] sm:$0xff]
      %v306 = vld [vmem:[%s210 + $0x254] sm:$0xf]
      %v307 = vld [vmem:[%s210 + $0x258] sm:$0xff]
      %v308 = vld [vmem:[%s210 + $0x260] sm:$0xff]
      %v309 = vld [vmem:[%s210 + $0x268] sm:$0xff]
      %v310 = vld [vmem:[%s210 + $0x270] sm:$0xff]
      %v311 = vld [vmem:[%s210 + $0x278] sm:$0xff]
      %v312 = vld [vmem:[%s210 + $0x280] sm:$0xff]
      %v313 = vld [vmem:[%s210 + $0x288] sm:$0xff]
      %v314 = vld [vmem:[%s210 + $0x290] sm:$0xff]
      %v315 = vld [vmem:[%s210 + $0x298] sm:$0xff]
      %v316 = vld [vmem:[%s210 + $0x2a0] sm:$0xff]
      %v317 = vld [vmem:[%s210 + $0x2a8] sm:$0xff]
      %v318 = vld [vmem:[%s210 + $0x2b0] sm:$0xff]
      %v319 = vld [vmem:[%s210 + $0x2b8] sm:$0xf]
      %v320 = vld [vmem:[%s215] sm:$0xf]
      %v321 = vld [vmem:[%s215 + $0x4] sm:$0xf]
      %v322 = vld [vmem:[%s215 + $0x8] sm:$0xf]
      %v323 = vld [vmem:[%s215 + $0xc] sm:$0xf]
      %v324 = vld [vmem:[%s215 + $0x10] sm:$0xf]
      %v325 = vld [vmem:[%s215 + $0x14] sm:$0xf]
      %v326 = vld [vmem:[%s215 + $0x18] sm:$0xf]
      %v327 = vld [vmem:[%s215 + $0x1c] sm:$0xf]
      %v328 = vld [vmem:[%s215 + $0x20] sm:$0xf]
      %v329 = vld [vmem:[%s215 + $0x24] sm:$0xf]
      %v330 = vld [vmem:[%s215 + $0x28] sm:$0xf]
      %v331 = vld [vmem:[%s215 + $0x2c] sm:$0xf]
      %v332 = vld [vmem:[%s215 + $0x30] sm:$0xf]
      %v333 = vld [vmem:[%s215 + $0x34] sm:$0xf]
      %v334 = vld [vmem:[%s215 + $0x38] sm:$0xf]
      %v335 = vld [vmem:[%s215 + $0x3c] sm:$0xf]
      %v336 = vld [vmem:[%s215 + $0x40] sm:$0xf]
      %v337 = vld [vmem:[%s215 + $0x44] sm:$0xf]
      %v338 = vld [vmem:[%s215 + $0x48] sm:$0xf]
      %v339 = vld [vmem:[%s215 + $0x4c] sm:$0xf]
      %v340 = vld [vmem:[%s215 + $0x50] sm:$0xf]
      %v341 = vld [vmem:[%s215 + $0x54] sm:$0xf]
      %v342 = vld [vmem:[%s215 + $0x58] sm:$0xf]
      %v343 = vld [vmem:[%s215 + $0x5c] sm:$0xf]
      %v344 = vld [vmem:[%s215 + $0x60] sm:$0xf]
      %v345 = vld [vmem:[%s215 + $0x64] sm:$0xf]
      %v346 = vld [vmem:[%s215 + $0x68] sm:$0xf]
      %v347 = vld [vmem:[%s215 + $0x6c] sm:$0xf]
      %v348 = vld [vmem:[%s215 + $0x70] sm:$0xf]
      %v349 = vld [vmem:[%s215 + $0x74] sm:$0xf]
      %v350 = vld [vmem:[%s215 + $0x78] sm:$0xf]
      %v351 = vld [vmem:[%s215 + $0x7c] sm:$0xf]
      %v352 = vld [vmem:[%s215 + $0x80] sm:$0xf]
      %v353 = vld [vmem:[%s215 + $0x84] sm:$0xf]
      %v354 = vld [vmem:[%s215 + $0x88] sm:$0xf]
      %v355 = vld [vmem:[%s215 + $0x8c] sm:$0xf]
      %v356 = vld [vmem:[%s215 + $0x90] sm:$0xf]
      %v357 = vld [vmem:[%s215 + $0x94] sm:$0xf]
      %v358 = vld [vmem:[%s215 + $0x98] sm:$0xf]
      %v359 = vld [vmem:[%s215 + $0x9c] sm:$0xf]
      %v360 = vld [vmem:[%s215 + $0xa0] sm:$0xf]
      %v361 = vld [vmem:[%s215 + $0xa4] sm:$0xf]
      %v362 = vld [vmem:[%s215 + $0xa8] sm:$0xf]
      %v363 = vld [vmem:[%s215 + $0xac] sm:$0xf]
      %v364 = vld [vmem:[%s215 + $0xb0] sm:$0xf]
      %v365 = vld [vmem:[%s215 + $0xb4] sm:$0xf]
      %v366 = vld [vmem:[%s215 + $0xb8] sm:$0xf]
      %v367 = vld [vmem:[%s215 + $0xbc] sm:$0xf]
      %v368 = vld [vmem:[%s215 + $0xc0] sm:$0xf]
      %v369 = vld [vmem:[%s215 + $0xc4] sm:$0xf]
      %v370 = vld [vmem:[%s215 + $0xc8] sm:$0xf]
      %v371 = vld [vmem:[%s215 + $0xcc] sm:$0xf]
      %v372 = vld [vmem:[%s215 + $0xd0] sm:$0xf]
      %v373 = vld [vmem:[%s215 + $0xd4] sm:$0xf]
      %v374 = vld [vmem:[%s215 + $0xd8] sm:$0xf]
      %v375 = vld [vmem:[%s215 + $0xdc] sm:$0xf]
      %v376 = vld [vmem:[%s215 + $0xe0] sm:$0xf]
      %v377 = vld [vmem:[%s215 + $0xe4] sm:$0xf]
      %v378 = vld [vmem:[%s215 + $0xe8] sm:$0xf]
      %v379 = vld [vmem:[%s215 + $0xec] sm:$0xf]
      %v380 = vld [vmem:[%s215 + $0xf0] sm:$0xf]
      %v381 = vld [vmem:[%s215 + $0xf4] sm:$0xf]
      %v382 = vld [vmem:[%s215 + $0xf8] sm:$0xf]
      %v383 = vld [vmem:[%s215 + $0xfc] sm:$0xf]
      %v384 = vld [vmem:[%s215 + $0x100] sm:$0xf]
      %v385 = vld [vmem:[%s215 + $0x104] sm:$0xf]
      %v386 = vld [vmem:[%s215 + $0x108] sm:$0xf]
      %v387 = vld [vmem:[%s215 + $0x10c] sm:$0xf]
      %v388 = vld [vmem:[%s215 + $0x110] sm:$0xf]
      %v389 = vld [vmem:[%s215 + $0x114] sm:$0xf]
      %v390 = vld [vmem:[%s215 + $0x118] sm:$0xf]
      %v391 = vld [vmem:[%s215 + $0x11c] sm:$0xf]
      %v392 = vld [vmem:[%s215 + $0x120] sm:$0xf]
      %v393 = vld [vmem:[%s215 + $0x124] sm:$0xf]
      %v394 = vld [vmem:[%s215 + $0x128] sm:$0xf]
      %v395 = vld [vmem:[%s215 + $0x12c] sm:$0xf]
      %v396 = vld [vmem:[%s215 + $0x130] sm:$0xf]
      %v397 = vld [vmem:[%s215 + $0x134] sm:$0xf]
      %v398 = vld [vmem:[%s215 + $0x138] sm:$0xf]
      %v399 = vld [vmem:[%s215 + $0x13c] sm:$0xf]
      %v400 = vld [vmem:[%s215 + $0x140] sm:$0xf]
      %v401 = vld [vmem:[%s215 + $0x144] sm:$0xf]
      %v402 = vld [vmem:[%s215 + $0x148] sm:$0xf]
      %v403 = vld [vmem:[%s215 + $0x14c] sm:$0xf]
      %v404 = vld [vmem:[%s215 + $0x150] sm:$0xf]
      %v405 = vld [vmem:[%s215 + $0x154] sm:$0xf]
      %v406 = vld [vmem:[%s215 + $0x158] sm:$0xf]
      %v407 = vld [vmem:[%s215 + $0x15c] sm:$0xf]
      %v408 = vld [vmem:[%s215 + $0x160] sm:$0xf]
      %v409 = vld [vmem:[%s215 + $0x164] sm:$0xf]
      %v410 = vld [vmem:[%s215 + $0x168] sm:$0xf]
      %v411 = vld [vmem:[%s215 + $0x16c] sm:$0xf]
      %v412 = vld [vmem:[%s215 + $0x170] sm:$0xf]
      %v413 = vld [vmem:[%s215 + $0x174] sm:$0xf]
      %v414 = vld [vmem:[%s215 + $0x178] sm:$0xf]
      %v415 = vld [vmem:[%s215 + $0x17c] sm:$0xf]
      %v416 = vld [vmem:[%s215 + $0x180] sm:$0xf]
      %v417 = vld [vmem:[%s215 + $0x184] sm:$0xf]
      %v418 = vld [vmem:[%s215 + $0x188] sm:$0xf]
      %v419 = vld [vmem:[%s215 + $0x18c] sm:$0xf]
      %v420 = vld [vmem:[%s215 + $0x190] sm:$0xf]
      %v421 = vld [vmem:[%s215 + $0x194] sm:$0xf]
      %v422 = vld [vmem:[%s215 + $0x198] sm:$0xf]
      %v423 = vld [vmem:[%s215 + $0x19c] sm:$0xf]
      %v424 = vld [vmem:[%s215 + $0x1a0] sm:$0xf]
      %v425 = vld [vmem:[%s215 + $0x1a4] sm:$0xf]
      %v426 = vld [vmem:[%s215 + $0x1a8] sm:$0xf]
      %v427 = vld [vmem:[%s215 + $0x1ac] sm:$0xf]
      %v428 = vld [vmem:[%s215 + $0x1b0] sm:$0xf]
      %v429 = vld [vmem:[%s215 + $0x1b4] sm:$0xf]
      %v430 = vld [vmem:[%s215 + $0x1b8] sm:$0xf]
      %v431 = vld [vmem:[%s215 + $0x1bc] sm:$0xf]
      %v432 = vld [vmem:[%s215 + $0x1c0] sm:$0xf]
      %v433 = vld [vmem:[%s215 + $0x1c4] sm:$0xf]
      %v434 = vld [vmem:[%s215 + $0x1c8] sm:$0xf]
      %v435 = vld [vmem:[%s215 + $0x1cc] sm:$0xf]
      %v436 = vld [vmem:[%s215 + $0x1d0] sm:$0xf]
      %v437 = vld [vmem:[%s215 + $0x1d4] sm:$0xf]
      %v438 = vld [vmem:[%s215 + $0x1d8] sm:$0xf]
      %v439 = vld [vmem:[%s215 + $0x1dc] sm:$0xf]
      %v440 = vld [vmem:[%s215 + $0x1e0] sm:$0xf]
      %v441 = vld [vmem:[%s215 + $0x1e4] sm:$0xf]
      %v442 = vld [vmem:[%s215 + $0x1e8] sm:$0xf]
      %v443 = vld [vmem:[%s215 + $0x1ec] sm:$0xf]
      %v444 = vld [vmem:[%s215 + $0x1f0] sm:$0xf]
      %v445 = vld [vmem:[%s215 + $0x1f4] sm:$0xf]
      %v446 = vld [vmem:[%s215 + $0x1f8] sm:$0xf]
      %v447 = vld [vmem:[%s215 + $0x1fc] sm:$0xf]
      %v448 = vld [vmem:[%s215 + $0x200] sm:$0xf]
      %v449 = vld [vmem:[%s215 + $0x204] sm:$0xf]
      %v450 = vld [vmem:[%s215 + $0x208] sm:$0xf]
      %v451 = vld [vmem:[%s215 + $0x20c] sm:$0xf]
      %v452 = vld [vmem:[%s215 + $0x210] sm:$0xf]
      %v453 = vld [vmem:[%s215 + $0x214] sm:$0xf]
      %v454 = vld [vmem:[%s215 + $0x218] sm:$0xf]
      %v455 = vld [vmem:[%s215 + $0x21c] sm:$0xf]
      %v456 = vld [vmem:[%s215 + $0x220] sm:$0xf]
      %v457 = vld [vmem:[%s215 + $0x224] sm:$0xf]
      %v458 = vld [vmem:[%s215 + $0x228] sm:$0xf]
      %v459 = vld [vmem:[%s215 + $0x22c] sm:$0xf]
      %v460 = vld [vmem:[%s215 + $0x230] sm:$0xf]
      %v461 = vld [vmem:[%s215 + $0x234] sm:$0xf]
      %v462 = vld [vmem:[%s215 + $0x238] sm:$0xf]
      %v463 = vld [vmem:[%s215 + $0x23c] sm:$0xf]
      %v464 = vld [vmem:[%s215 + $0x240] sm:$0xf]
      %v465 = vld [vmem:[%s215 + $0x244] sm:$0xf]
      %v466 = vld [vmem:[%s215 + $0x248] sm:$0xf]
      %v467 = vld [vmem:[%s215 + $0x24c] sm:$0xf]
      %v468 = vld [vmem:[%s215 + $0x250] sm:$0xf]
      %v469 = vld [vmem:[%s215 + $0x254] sm:$0xf]
      %v470 = vld [vmem:[%s215 + $0x258] sm:$0xf]
      %v471 = vld [vmem:[%s215 + $0x25c] sm:$0xf]
      %v472 = vld [vmem:[%s215 + $0x260] sm:$0xf]
      %v473 = vld [vmem:[%s215 + $0x264] sm:$0xf]
      %v474 = vld [vmem:[%s215 + $0x268] sm:$0xf]
      %v475 = vld [vmem:[%s215 + $0x26c] sm:$0xf]
      %v476 = vld [vmem:[%s215 + $0x270] sm:$0xf]
      %v477 = vld [vmem:[%s215 + $0x274] sm:$0xf]
      %v478 = vld [vmem:[%s215 + $0x278] sm:$0xf]
      %v479 = vld [vmem:[%s215 + $0x27c] sm:$0xf]
      %v480 = vld [vmem:[%s215 + $0x280] sm:$0xf]
      %v481 = vld [vmem:[%s215 + $0x284] sm:$0xf]
      %v482 = vld [vmem:[%s215 + $0x288] sm:$0xf]
      %v483 = vld [vmem:[%s215 + $0x28c] sm:$0xf]
      %v484 = vld [vmem:[%s215 + $0x290] sm:$0xf]
      %v485 = vld [vmem:[%s215 + $0x294] sm:$0xf]
      %v486 = vld [vmem:[%s215 + $0x298] sm:$0xf]
      %v487 = vld [vmem:[%s215 + $0x29c] sm:$0xf]
      %v488 = vld [vmem:[%s215 + $0x2a0] sm:$0xf]
      %v489 = vld [vmem:[%s215 + $0x2a4] sm:$0xf]
      %v490 = vld [vmem:[%s215 + $0x2a8] sm:$0xf]
      %v491 = vld [vmem:[%s215 + $0x2ac] sm:$0xf]
      %v492 = vld [vmem:[%s215 + $0x2b0] sm:$0xf]
      %v493 = vld [vmem:[%s215 + $0x2b4] sm:$0xf]
      %v494 = vld [vmem:[%s215 + $0x2b8] sm:$0xf]
      %v495 = vld [vmem:[%s215 + $0x2bc] sm:$0xf]
      %v496 = vld [vmem:[%s215 + $0x2c0] sm:$0xf]
      %v497 = vld [vmem:[%s215 + $0x2c4] sm:$0xf]
      %v498 = vld [vmem:[%s215 + $0x2c8] sm:$0xf]
      %v499 = vld [vmem:[%s215 + $0x2cc] sm:$0xf]
      %v500 = vld [vmem:[%s215 + $0x2d0] sm:$0xf]
      %v501 = vld [vmem:[%s215 + $0x2d4] sm:$0xf]
      %v502 = vld [vmem:[%s215 + $0x2d8] sm:$0xf]
      %v503 = vld [vmem:[%s215 + $0x2dc] sm:$0xf]
      %v504 = vld [vmem:[%s215 + $0x2e0] sm:$0xf]
      %v505 = vld [vmem:[%s215 + $0x2e4] sm:$0xf]
      %v506 = vld [vmem:[%s215 + $0x2e8] sm:$0xf]
      %v507 = vld [vmem:[%s215 + $0x2ec] sm:$0xf]
      %v508 = vld [vmem:[%s215 + $0x2f0] sm:$0xf]
      %v509 = vld [vmem:[%s215 + $0x2f4] sm:$0xf]
      %v510 = vld [vmem:[%s215 + $0x2f8] sm:$0xf]
      %v511 = vld [vmem:[%s215 + $0x2fc] sm:$0xf]
      %v512 = vld [vmem:[%s215 + $0x300] sm:$0xf]
      %v513 = vld [vmem:[%s215 + $0x304] sm:$0xf]
      %v514 = vld [vmem:[%s215 + $0x308] sm:$0xf]
      %v515 = vld [vmem:[%s215 + $0x30c] sm:$0xf]
      %v516 = vld [vmem:[%s215 + $0x310] sm:$0xf]
      %v517 = vld [vmem:[%s215 + $0x314] sm:$0xf]
      %v518 = vld [vmem:[%s215 + $0x318] sm:$0xf]
      %v519 = vld [vmem:[%s215 + $0x31c] sm:$0xf]
      %v520 = vld [vmem:[%s215 + $0x320] sm:$0xf]
      %v521 = vld [vmem:[%s215 + $0x324] sm:$0xf]
      %v522 = vld [vmem:[%s215 + $0x328] sm:$0xf]
      %v523 = vld [vmem:[%s215 + $0x32c] sm:$0xf]
      %v524 = vld [vmem:[%s215 + $0x330] sm:$0xf]
      %v525 = vld [vmem:[%s215 + $0x334] sm:$0xf]
      %v526 = vld [vmem:[%s215 + $0x338] sm:$0xf]
      %v527 = vld [vmem:[%s215 + $0x33c] sm:$0xf]
      %v528 = vld [vmem:[%s215 + $0x340] sm:$0xf]
      %v529 = vld [vmem:[%s215 + $0x344] sm:$0xf]
      %v530 = vld [vmem:[%s215 + $0x348] sm:$0xf]
      %v531 = vld [vmem:[%s215 + $0x34c] sm:$0xf]
      %v532 = vld [vmem:[%s215 + $0x350] sm:$0xf]
      %v533 = vld [vmem:[%s215 + $0x354] sm:$0xf]
      %v534 = vld [vmem:[%s215 + $0x358] sm:$0xf]
      %v535 = vld [vmem:[%s215 + $0x35c] sm:$0xf]
      %v536 = vld [vmem:[%s215 + $0x360] sm:$0xf]
      %v537 = vld [vmem:[%s215 + $0x364] sm:$0xf]
      %v538 = vld [vmem:[%s215 + $0x368] sm:$0xf]
      %v539 = vld [vmem:[%s215 + $0x36c] sm:$0xf]
      %v540 = vld [vmem:[%s215 + $0x370] sm:$0xf]
      %v541 = vld [vmem:[%s215 + $0x374] sm:$0xf]
      %v542 = vld [vmem:[%s215 + $0x378] sm:$0xf]
      %v543 = vld [vmem:[%s215 + $0x37c] sm:$0xf]
      %v544 = vld [vmem:[%s215 + $0x380] sm:$0xf]
      %v545 = vld [vmem:[%s215 + $0x384] sm:$0xf]
      %v546 = vld [vmem:[%s215 + $0x388] sm:$0xf]
      %v547 = vld [vmem:[%s215 + $0x38c] sm:$0xf]
      %v548 = vld [vmem:[%s215 + $0x390] sm:$0xf]
      %v549 = vld [vmem:[%s215 + $0x394] sm:$0xf]
      %v550 = vld [vmem:[%s215 + $0x398] sm:$0xf]
      %v551 = vld [vmem:[%s215 + $0x39c] sm:$0xf]
      %v552 = vld [vmem:[%s215 + $0x3a0] sm:$0xf]
      %v553 = vld [vmem:[%s215 + $0x3a4] sm:$0xf]
      %v554 = vld [vmem:[%s215 + $0x3a8] sm:$0xf]
      %v555 = vld [vmem:[%s215 + $0x3ac] sm:$0xf]
      %v556 = vld [vmem:[%s215 + $0x3b0] sm:$0xf]
      %v557 = vld [vmem:[%s215 + $0x3b4] sm:$0xf]
      %v558 = vld [vmem:[%s215 + $0x3b8] sm:$0xf]
      %v559 = vld [vmem:[%s215 + $0x3bc] sm:$0xf]
      %v560 = vld [vmem:[%s215 + $0x3c0] sm:$0xf]
      %v561 = vld [vmem:[%s215 + $0x3c4] sm:$0xf]
      %v562 = vld [vmem:[%s215 + $0x3c8] sm:$0xf]
      %v563 = vld [vmem:[%s215 + $0x3cc] sm:$0xf]
      %v564 = vld [vmem:[%s215 + $0x3d0] sm:$0xf]
      %v565 = vld [vmem:[%s215 + $0x3d4] sm:$0xf]
      %v566 = vld [vmem:[%s215 + $0x3d8] sm:$0xf]
      %v567 = vld [vmem:[%s215 + $0x3dc] sm:$0xf]
      %v568 = vld [vmem:[%s215 + $0x3e0] sm:$0xf]
      %v569 = vld [vmem:[%s215 + $0x3e4] sm:$0xf]
      %v570 = vld [vmem:[%s215 + $0x3e8] sm:$0xf]
      %v571 = vld [vmem:[%s215 + $0x3ec] sm:$0xf]
      %v572 = vld [vmem:[%s215 + $0x3f0] sm:$0xf]
      %v573 = vld [vmem:[%s215 + $0x3f4] sm:$0xf]
      %v574 = vld [vmem:[%s215 + $0x3f8] sm:$0xf]
      %v575 = vld [vmem:[%s215 + $0x3fc] sm:$0xf]
      %v576 = vld [vmem:[%s215 + $0x400] sm:$0xf]
      %v577 = vld [vmem:[%s215 + $0x404] sm:$0xf]
      %v578 = vld [vmem:[%s215 + $0x408] sm:$0xf]
      %v579 = vld [vmem:[%s215 + $0x40c] sm:$0xf]
      %v580 = vld [vmem:[%s215 + $0x410] sm:$0xf]
      %v581 = vld [vmem:[%s215 + $0x414] sm:$0xf]
      %v582 = vld [vmem:[%s215 + $0x418] sm:$0xf]
      %v583 = vld [vmem:[%s215 + $0x41c] sm:$0xf]
      %v584 = vld [vmem:[%s215 + $0x420] sm:$0xf]
      %v585 = vld [vmem:[%s215 + $0x424] sm:$0xf]
      %v586 = vld [vmem:[%s215 + $0x428] sm:$0xf]
      %v587 = vld [vmem:[%s215 + $0x42c] sm:$0xf]
      %v588 = vld [vmem:[%s215 + $0x430] sm:$0xf]
      %v589 = vld [vmem:[%s215 + $0x434] sm:$0xf]
      %v590 = vld [vmem:[%s215 + $0x438] sm:$0xf]
      %v591 = vld [vmem:[%s215 + $0x43c] sm:$0xf]
      %v592 = vld [vmem:[%s215 + $0x440] sm:$0xf]
      %v593 = vld [vmem:[%s215 + $0x444] sm:$0xf]
      %v594 = vld [vmem:[%s215 + $0x448] sm:$0xf]
      %v595 = vld [vmem:[%s215 + $0x44c] sm:$0xf]
      %v596 = vld [vmem:[%s215 + $0x450] sm:$0xf]
      %v597 = vld [vmem:[%s215 + $0x454] sm:$0xf]
      %v598 = vld [vmem:[%s215 + $0x458] sm:$0xf]
      %v599 = vld [vmem:[%s215 + $0x45c] sm:$0xf]
      %v600 = vld [vmem:[%s215 + $0x460] sm:$0xf]
      %v601 = vld [vmem:[%s215 + $0x464] sm:$0xf]
      %v602 = vld [vmem:[%s215 + $0x468] sm:$0xf]
      %v603 = vld [vmem:[%s215 + $0x46c] sm:$0xf]
      %v604 = vld [vmem:[%s215 + $0x470] sm:$0xf]
      %v605 = vld [vmem:[%s215 + $0x474] sm:$0xf]
      %v606 = vld [vmem:[%s215 + $0x478] sm:$0xf]
      %v607 = vld [vmem:[%s215 + $0x47c] sm:$0xf]
      %v608 = vld [vmem:[%s215 + $0x480] sm:$0xf]
      %v609 = vld [vmem:[%s215 + $0x484] sm:$0xf]
      %v610 = vld [vmem:[%s215 + $0x488] sm:$0xf]
      %v611 = vld [vmem:[%s215 + $0x48c] sm:$0xf]
      %v612 = vld [vmem:[%s215 + $0x490] sm:$0xf]
      %v613 = vld [vmem:[%s215 + $0x494] sm:$0xf]
      %v614 = vld [vmem:[%s215 + $0x498] sm:$0xf]
      %v615 = vld [vmem:[%s215 + $0x49c] sm:$0xf]
      %v616 = vld [vmem:[%s215 + $0x4a0] sm:$0xf]
      %v617 = vld [vmem:[%s215 + $0x4a4] sm:$0xf]
      %v618 = vld [vmem:[%s215 + $0x4a8] sm:$0xf]
      %v619 = vld [vmem:[%s215 + $0x4ac] sm:$0xf]
      %v620 = vld [vmem:[%s215 + $0x4b0] sm:$0xf]
      %v621 = vld [vmem:[%s215 + $0x4b4] sm:$0xf]
      %v622 = vld [vmem:[%s215 + $0x4b8] sm:$0xf]
      %v623 = vld [vmem:[%s215 + $0x4bc] sm:$0xf]
      %v624 = vld [vmem:[%s215 + $0x4c0] sm:$0xf]
      %v625 = vld [vmem:[%s215 + $0x4c4] sm:$0xf]
      %v626 = vld [vmem:[%s215 + $0x4c8] sm:$0xf]
      %v627 = vld [vmem:[%s215 + $0x4cc] sm:$0xf]
      %v628 = vld [vmem:[%s215 + $0x4d0] sm:$0xf]
      %v629 = vld [vmem:[%s215 + $0x4d4] sm:$0xf]
      %v630 = vld [vmem:[%s215 + $0x4d8] sm:$0xf]
      %v631 = vld [vmem:[%s215 + $0x4dc] sm:$0xf]
      %v632 = vld [vmem:[%s215 + $0x4e0] sm:$0xf]
      %v633 = vld [vmem:[%s215 + $0x4e4] sm:$0xf]
      %v634 = vld [vmem:[%s215 + $0x4e8] sm:$0xf]
      %v635 = vld [vmem:[%s215 + $0x4ec] sm:$0xf]
      %v636 = vld [vmem:[%s215 + $0x4f0] sm:$0xf]
      %v637 = vld [vmem:[%s215 + $0x4f4] sm:$0xf]
      %v638 = vld [vmem:[%s215 + $0x4f8] sm:$0xf]
      %v639 = vld [vmem:[%s215 + $0x4fc] sm:$0xf]
      %v640 = vld [vmem:[%s215 + $0x500] sm:$0xf]
      %v641 = vld [vmem:[%s215 + $0x504] sm:$0xf]
      %v642 = vld [vmem:[%s215 + $0x508] sm:$0xf]
      %v643 = vld [vmem:[%s215 + $0x50c] sm:$0xf]
      %v644 = vld [vmem:[%s215 + $0x510] sm:$0xf]
      %v645 = vld [vmem:[%s215 + $0x514] sm:$0xf]
      %v646 = vld [vmem:[%s215 + $0x518] sm:$0xf]
      %v647 = vld [vmem:[%s215 + $0x51c] sm:$0xf]
      %v648 = vld [vmem:[%s215 + $0x520] sm:$0xf]
      %v649 = vld [vmem:[%s215 + $0x524] sm:$0xf]
      %v650 = vld [vmem:[%s215 + $0x528] sm:$0xf]
      %v651 = vld [vmem:[%s215 + $0x52c] sm:$0xf]
      %v652 = vld [vmem:[%s215 + $0x530] sm:$0xf]
      %v653 = vld [vmem:[%s215 + $0x534] sm:$0xf]
      %v654 = vld [vmem:[%s215 + $0x538] sm:$0xf]
      %v655 = vld [vmem:[%s215 + $0x53c] sm:$0xf]
      %v656 = vld [vmem:[%s215 + $0x540] sm:$0xf]
      %v657 = vld [vmem:[%s215 + $0x544] sm:$0xf]
      %v658 = vld [vmem:[%s215 + $0x548] sm:$0xf]
      %v659 = vld [vmem:[%s215 + $0x54c] sm:$0xf]
      %v660 = vld [vmem:[%s215 + $0x550] sm:$0xf]
      %v661 = vld [vmem:[%s215 + $0x554] sm:$0xf]
      %v662 = vld [vmem:[%s215 + $0x558] sm:$0xf]
      %v663 = vld [vmem:[%s215 + $0x55c] sm:$0xf]
      %v664 = vld [vmem:[%s215 + $0x560] sm:$0xf]
      %v665 = vld [vmem:[%s215 + $0x564] sm:$0xf]
      %v666 = vld [vmem:[%s215 + $0x568] sm:$0xf]
      %v667 = vld [vmem:[%s215 + $0x56c] sm:$0xf]
      %v668 = vld [vmem:[%s215 + $0x570] sm:$0xf]
      %v669 = vld [vmem:[%s215 + $0x574] sm:$0xf]
      %v670 = vld [vmem:[%s215 + $0x578] sm:$0xf]
      %v671 = vld [vmem:[%s215 + $0x57c] sm:$0xf]
      %v672 = vld [vmem:[%s215 + $0x580] sm:$0xf]
      %v673 = vld [vmem:[%s215 + $0x584] sm:$0xf]
      %v674 = vld [vmem:[%s215 + $0x588] sm:$0xf]
      %v675 = vld [vmem:[%s215 + $0x58c] sm:$0xf]
      %v676 = vld [vmem:[%s215 + $0x590] sm:$0xf]
      %v677 = vld [vmem:[%s215 + $0x594] sm:$0xf]
      %v678 = vld [vmem:[%s215 + $0x598] sm:$0xf]
      %v679 = vld [vmem:[%s215 + $0x59c] sm:$0xf]
      %v680 = vld [vmem:[%s215 + $0x5a0] sm:$0xf]
      %v681 = vld [vmem:[%s215 + $0x5a4] sm:$0xf]
      %v682 = vld [vmem:[%s215 + $0x5a8] sm:$0xf]
      %v683 = vld [vmem:[%s215 + $0x5ac] sm:$0xf]
      %v684 = vld [vmem:[%s215 + $0x5b0] sm:$0xf]
      %v685 = vld [vmem:[%s215 + $0x5b4] sm:$0xf]
      %v686 = vld [vmem:[%s215 + $0x5b8] sm:$0xf]
      %v687 = vld [vmem:[%s215 + $0x5bc] sm:$0xf]
      %v688 = vld [vmem:[%s215 + $0x5c0] sm:$0xf]
      %v689 = vld [vmem:[%s215 + $0x5c4] sm:$0xf]
      %v690 = vld [vmem:[%s215 + $0x5c8] sm:$0xf]
      %v691 = vld [vmem:[%s215 + $0x5cc] sm:$0xf]
      %v692 = vld [vmem:[%s215 + $0x5d0] sm:$0xf]
      %v693 = vld [vmem:[%s215 + $0x5d4] sm:$0xf]
      %v694 = vld [vmem:[%s215 + $0x5d8] sm:$0xf]
      %v695 = vld [vmem:[%s215 + $0x5dc] sm:$0xf]
      %v696 = vld [vmem:[%s215 + $0x5e0] sm:$0xf]
      %v697 = vld [vmem:[%s215 + $0x5e4] sm:$0xf]
      %v698 = vld [vmem:[%s215 + $0x5e8] sm:$0xf]
      %v699 = vld [vmem:[%s215 + $0x5ec] sm:$0xf]
      %v700 = vld [vmem:[%s215 + $0x5f0] sm:$0xf]
      %v701 = vld [vmem:[%s215 + $0x5f4] sm:$0xf]
      %v702 = vld [vmem:[%s215 + $0x5f8] sm:$0xf]
      %v703 = vld [vmem:[%s215 + $0x5fc] sm:$0xf]
      %v704 = vld [vmem:[%s215 + $0x600] sm:$0xf]
      %v705 = vld [vmem:[%s215 + $0x604] sm:$0xf]
      %v706 = vld [vmem:[%s215 + $0x608] sm:$0xf]
      %v707 = vld [vmem:[%s215 + $0x60c] sm:$0xf]
      %v708 = vld [vmem:[%s215 + $0x610] sm:$0xf]
      %v709 = vld [vmem:[%s215 + $0x614] sm:$0xf]
      %v710 = vld [vmem:[%s215 + $0x618] sm:$0xf]
      %v711 = vld [vmem:[%s215 + $0x61c] sm:$0xf]
      %v712 = vld [vmem:[%s215 + $0x620] sm:$0xf]
      %v713 = vld [vmem:[%s215 + $0x624] sm:$0xf]
      %v714 = vld [vmem:[%s215 + $0x628] sm:$0xf]
      %v715 = vld [vmem:[%s215 + $0x62c] sm:$0xf]
      %v716 = vld [vmem:[%s215 + $0x630] sm:$0xf]
      %v717 = vld [vmem:[%s215 + $0x634] sm:$0xf]
      %v718 = vld [vmem:[%s215 + $0x638] sm:$0xf]
      %v719 = vld [vmem:[%s215 + $0x63c] sm:$0xf]
      %v720 = vld [vmem:[%s218] sm:$0x1]
      %v722 = vlaneseq
      %v723 = vshrl.u32 %v722, 7
      %v724 = vsub.s32 0, %v723
      %v725 = vrot.slane %v720, %v724
      %v818 = vunpack.c.l.b16 %v229
      %v819 = vunpack.c.h.b16 %v229
      %v820 = vunpack.c.l.b16 %v230
      %v821 = vunpack.c.h.b16 %v230
      %v822 = vunpack.c.l.b16 %v231
      %v823 = vunpack.c.h.b16 %v231
      %v824 = vunpack.c.l.b16 %v232
      %v825 = vunpack.c.h.b16 %v232
      %v826 = vunpack.c.l.b16 %v233
      %v827 = vunpack.c.h.b16 %v233
      %v828 = vunpack.c.l.b16 %v234
      %v829 = vunpack.c.h.b16 %v234
      %v830 = vunpack.c.l.b16 %v235
      %v831 = vunpack.c.h.b16 %v235
      %v832 = vunpack.c.l.b16 %v236
      %v833 = vunpack.c.h.b16 %v236
      %v834 = vunpack.c.l.b16 %v237
      %v835 = vunpack.c.h.b16 %v237
      %v836 = vunpack.c.l.b16 %v238
      %v837 = vunpack.c.h.b16 %v238
      %v838 = vunpack.c.l.b16 %v239
      %v839 = vunpack.c.h.b16 %v239
      %v840 = vunpack.c.l.b16 %v240
      %v841 = vunpack.c.h.b16 %v240
      %v842 = vunpack.c.l.b16 %v241
      %v843 = vunpack.c.l.b16 %v242
      %v844 = vunpack.c.h.b16 %v242
      %v845 = vunpack.c.l.b16 %v243
      %v846 = vunpack.c.h.b16 %v243
      %v847 = vunpack.c.l.b16 %v244
      %v848 = vunpack.c.h.b16 %v244
      %v849 = vunpack.c.l.b16 %v245
      %v850 = vunpack.c.h.b16 %v245
      %v851 = vunpack.c.l.b16 %v246
      %v852 = vunpack.c.h.b16 %v246
      %v853 = vunpack.c.l.b16 %v247
      %v854 = vunpack.c.h.b16 %v247
      %v855 = vunpack.c.l.b16 %v248
      %v856 = vunpack.c.h.b16 %v248
      %v857 = vunpack.c.l.b16 %v249
      %v858 = vunpack.c.h.b16 %v249
      %v859 = vunpack.c.l.b16 %v250
      %v860 = vunpack.c.h.b16 %v250
      %v861 = vunpack.c.l.b16 %v251
      %v862 = vunpack.c.h.b16 %v251
      %v863 = vunpack.c.l.b16 %v252
      %v864 = vunpack.c.h.b16 %v252
      %v865 = vunpack.c.l.b16 %v253
      %v866 = vunpack.c.h.b16 %v253
      %v867 = vunpack.c.l.b16 %v254
      %v868 = vunpack.c.l.b16 %v255
      %v869 = vunpack.c.h.b16 %v255
      %v870 = vunpack.c.l.b16 %v256
      %v871 = vunpack.c.h.b16 %v256
      %v872 = vunpack.c.l.b16 %v257
      %v873 = vunpack.c.h.b16 %v257
      %v874 = vunpack.c.l.b16 %v258
      %v875 = vunpack.c.h.b16 %v258
      %v876 = vunpack.c.l.b16 %v259
      %v877 = vunpack.c.h.b16 %v259
      %v878 = vunpack.c.l.b16 %v260
      %v879 = vunpack.c.h.b16 %v260
      %v880 = vunpack.c.l.b16 %v261
      %v881 = vunpack.c.h.b16 %v261
      %v882 = vunpack.c.l.b16 %v262
      %v883 = vunpack.c.h.b16 %v262
      %v884 = vunpack.c.l.b16 %v263
      %v885 = vunpack.c.h.b16 %v263
      %v886 = vunpack.c.l.b16 %v264
      %v887 = vunpack.c.h.b16 %v264
      %v888 = vunpack.c.l.b16 %v265
      %v889 = vunpack.c.h.b16 %v265
      %v890 = vunpack.c.l.b16 %v266
      %v891 = vunpack.c.h.b16 %v266
      %v892 = vunpack.c.l.b16 %v267
      %v893 = vunpack.c.l.b16 %v268
      %v894 = vunpack.c.h.b16 %v268
      %v895 = vunpack.c.l.b16 %v269
      %v896 = vunpack.c.h.b16 %v269
      %v897 = vunpack.c.l.b16 %v270
      %v898 = vunpack.c.h.b16 %v270
      %v899 = vunpack.c.l.b16 %v271
      %v900 = vunpack.c.h.b16 %v271
      %v901 = vunpack.c.l.b16 %v272
      %v902 = vunpack.c.h.b16 %v272
      %v903 = vunpack.c.l.b16 %v273
      %v904 = vunpack.c.h.b16 %v273
      %v905 = vunpack.c.l.b16 %v274
      %v906 = vunpack.c.h.b16 %v274
      %v907 = vunpack.c.l.b16 %v275
      %v908 = vunpack.c.h.b16 %v275
      %v909 = vunpack.c.l.b16 %v276
      %v910 = vunpack.c.h.b16 %v276
      %v911 = vunpack.c.l.b16 %v277
      %v912 = vunpack.c.h.b16 %v277
      %v913 = vunpack.c.l.b16 %v278
      %v914 = vunpack.c.h.b16 %v278
      %v915 = vunpack.c.l.b16 %v279
      %v916 = vunpack.c.h.b16 %v279
      %v917 = vunpack.c.l.b16 %v280
      %v918 = vunpack.c.l.b16 %v281
      %v919 = vunpack.c.h.b16 %v281
      %v920 = vunpack.c.l.b16 %v282
      %v921 = vunpack.c.h.b16 %v282
      %v922 = vunpack.c.l.b16 %v283
      %v923 = vunpack.c.h.b16 %v283
      %v924 = vunpack.c.l.b16 %v284
      %v925 = vunpack.c.h.b16 %v284
      %v926 = vunpack.c.l.b16 %v285
      %v927 = vunpack.c.h.b16 %v285
      %v928 = vunpack.c.l.b16 %v286
      %v929 = vunpack.c.h.b16 %v286
      %v930 = vunpack.c.l.b16 %v287
      %v931 = vunpack.c.h.b16 %v287
      %v932 = vunpack.c.l.b16 %v288
      %v933 = vunpack.c.h.b16 %v288
      %v934 = vunpack.c.l.b16 %v289
      %v935 = vunpack.c.h.b16 %v289
      %v936 = vunpack.c.l.b16 %v290
      %v937 = vunpack.c.h.b16 %v290
      %v938 = vunpack.c.l.b16 %v291
      %v939 = vunpack.c.h.b16 %v291
      %v940 = vunpack.c.l.b16 %v292
      %v941 = vunpack.c.h.b16 %v292
      %v942 = vunpack.c.l.b16 %v293
      %v943 = vunpack.c.l.b16 %v294
      %v944 = vunpack.c.h.b16 %v294
      %v945 = vunpack.c.l.b16 %v295
      %v946 = vunpack.c.h.b16 %v295
      %v947 = vunpack.c.l.b16 %v296
      %v948 = vunpack.c.h.b16 %v296
      %v949 = vunpack.c.l.b16 %v297
      %v950 = vunpack.c.h.b16 %v297
      %v951 = vunpack.c.l.b16 %v298
      %v952 = vunpack.c.h.b16 %v298
      %v953 = vunpack.c.l.b16 %v299
      %v954 = vunpack.c.h.b16 %v299
      %v955 = vunpack.c.l.b16 %v300
      %v956 = vunpack.c.h.b16 %v300
      %v957 = vunpack.c.l.b16 %v301
      %v958 = vunpack.c.h.b16 %v301
      %v959 = vunpack.c.l.b16 %v302
      %v960 = vunpack.c.h.b16 %v302
      %v961 = vunpack.c.l.b16 %v303
      %v962 = vunpack.c.h.b16 %v303
      %v963 = vunpack.c.l.b16 %v304
      %v964 = vunpack.c.h.b16 %v304
      %v965 = vunpack.c.l.b16 %v305
      %v966 = vunpack.c.h.b16 %v305
      %v967 = vunpack.c.l.b16 %v306
      %v968 = vunpack.c.l.b16 %v307
      %v969 = vunpack.c.h.b16 %v307
      %v970 = vunpack.c.l.b16 %v308
      %v971 = vunpack.c.h.b16 %v308
      %v972 = vunpack.c.l.b16 %v309
      %v973 = vunpack.c.h.b16 %v309
      %v974 = vunpack.c.l.b16 %v310
      %v975 = vunpack.c.h.b16 %v310
      %v976 = vunpack.c.l.b16 %v311
      %v977 = vunpack.c.h.b16 %v311
      %v978 = vunpack.c.l.b16 %v312
      %v979 = vunpack.c.h.b16 %v312
      %v980 = vunpack.c.l.b16 %v313
      %v981 = vunpack.c.h.b16 %v313
      %v982 = vunpack.c.l.b16 %v314
      %v983 = vunpack.c.h.b16 %v314
      %v984 = vunpack.c.l.b16 %v315
      %v985 = vunpack.c.h.b16 %v315
      %v986 = vunpack.c.l.b16 %v316
      %v987 = vunpack.c.h.b16 %v316
      %v988 = vunpack.c.l.b16 %v317
      %v989 = vunpack.c.h.b16 %v317
      %v990 = vunpack.c.l.b16 %v318
      %v991 = vunpack.c.h.b16 %v318
      %v992 = vunpack.c.l.b16 %v319
      %v993 = vpack.c.b16 %v843, %v818
      %v994 = vpack.c.b16 %v844, %v819
      %v995 = vpack.c.b16 %v845, %v820
      %v996 = vpack.c.b16 %v846, %v821
      %v997 = vpack.c.b16 %v847, %v822
      %v998 = vpack.c.b16 %v848, %v823
      %v999 = vpack.c.b16 %v849, %v824
      %v1000 = vpack.c.b16 %v850, %v825
      %v1001 = vpack.c.b16 %v851, %v826
      %v1002 = vpack.c.b16 %v852, %v827
      %v1003 = vpack.c.b16 %v853, %v828
      %v1004 = vpack.c.b16 %v854, %v829
      %v1005 = vpack.c.b16 %v855, %v830
      %v1006 = vpack.c.b16 %v856, %v831
      %v1007 = vpack.c.b16 %v857, %v832
      %v1008 = vpack.c.b16 %v858, %v833
      %v1009 = vpack.c.b16 %v859, %v834
      %v1010 = vpack.c.b16 %v860, %v835
      %v1011 = vpack.c.b16 %v861, %v836
      %v1012 = vpack.c.b16 %v862, %v837
      %v1013 = vpack.c.b16 %v863, %v838
      %v1014 = vpack.c.b16 %v864, %v839
      %v1015 = vpack.c.b16 %v865, %v840
      %v1016 = vpack.c.b16 %v866, %v841
      %v1017 = vpack.c.b16 %v867, %v842
      %v1018 = vpack.c.b16 %v893, %v868
      %v1019 = vpack.c.b16 %v894, %v869
      %v1020 = vpack.c.b16 %v895, %v870
      %v1021 = vpack.c.b16 %v896, %v871
      %v1022 = vpack.c.b16 %v897, %v872
      %v1023 = vpack.c.b16 %v898, %v873
      %v1024 = vpack.c.b16 %v899, %v874
      %v1025 = vpack.c.b16 %v900, %v875
      %v1026 = vpack.c.b16 %v901, %v876
      %v1027 = vpack.c.b16 %v902, %v877
      %v1028 = vpack.c.b16 %v903, %v878
      %v1029 = vpack.c.b16 %v904, %v879
      %v1030 = vpack.c.b16 %v905, %v880
      %v1031 = vpack.c.b16 %v906, %v881
      %v1032 = vpack.c.b16 %v907, %v882
      %v1033 = vpack.c.b16 %v908, %v883
      %v1034 = vpack.c.b16 %v909, %v884
      %v1035 = vpack.c.b16 %v910, %v885
      %v1036 = vpack.c.b16 %v911, %v886
      %v1037 = vpack.c.b16 %v912, %v887
      %v1038 = vpack.c.b16 %v913, %v888
      %v1039 = vpack.c.b16 %v914, %v889
      %v1040 = vpack.c.b16 %v915, %v890
      %v1041 = vpack.c.b16 %v916, %v891
      %v1042 = vpack.c.b16 %v917, %v892
      %v1043 = vpack.c.b16 %v943, %v918
      %v1044 = vpack.c.b16 %v944, %v919
      %v1045 = vpack.c.b16 %v945, %v920
      %v1046 = vpack.c.b16 %v946, %v921
      %v1047 = vpack.c.b16 %v947, %v922
      %v1048 = vpack.c.b16 %v948, %v923
      %v1049 = vpack.c.b16 %v949, %v924
      %v1050 = vpack.c.b16 %v950, %v925
      %v1051 = vpack.c.b16 %v951, %v926
      %v1052 = vpack.c.b16 %v952, %v927
      %v1053 = vpack.c.b16 %v953, %v928
      %v1054 = vpack.c.b16 %v954, %v929
      %v1055 = vpack.c.b16 %v955, %v930
      %v1056 = vpack.c.b16 %v956, %v931
      %v1057 = vpack.c.b16 %v957, %v932
      %v1058 = vpack.c.b16 %v958, %v933
      %v1059 = vpack.c.b16 %v959, %v934
      %v1060 = vpack.c.b16 %v960, %v935
      %v1061 = vpack.c.b16 %v961, %v936
      %v1062 = vpack.c.b16 %v962, %v937
      %v1063 = vpack.c.b16 %v963, %v938
      %v1064 = vpack.c.b16 %v964, %v939
      %v1065 = vpack.c.b16 %v965, %v940
      %v1066 = vpack.c.b16 %v966, %v941
      %v1067 = vpack.c.b16 %v967, %v942
      %v1068 = vpack.c.b16 %v968, %v968
      %v1069 = vpack.c.b16 %v969, %v969
      %v1070 = vpack.c.b16 %v970, %v970
      %v1071 = vpack.c.b16 %v971, %v971
      %v1072 = vpack.c.b16 %v972, %v972
      %v1073 = vpack.c.b16 %v973, %v973
      %v1074 = vpack.c.b16 %v974, %v974
      %v1075 = vpack.c.b16 %v975, %v975
      %v1076 = vpack.c.b16 %v976, %v976
      %v1077 = vpack.c.b16 %v977, %v977
      %v1078 = vpack.c.b16 %v978, %v978
      %v1079 = vpack.c.b16 %v979, %v979
      %v1080 = vpack.c.b16 %v980, %v980
      %v1081 = vpack.c.b16 %v981, %v981
      %v1082 = vpack.c.b16 %v982, %v982
      %v1083 = vpack.c.b16 %v983, %v983
      %v1084 = vpack.c.b16 %v984, %v984
      %v1085 = vpack.c.b16 %v985, %v985
      %v1086 = vpack.c.b16 %v986, %v986
      %v1087 = vpack.c.b16 %v987, %v987
      %v1088 = vpack.c.b16 %v988, %v988
      %v1089 = vpack.c.b16 %v989, %v989
      %v1090 = vpack.c.b16 %v990, %v990
      %v1091 = vpack.c.b16 %v991, %v991
      %v1092 = vpack.c.b16 %v992, %v992
      %v1593 = vunpack.c.l.b16 %v320
      %v1594 = vunpack.c.l.b16 %v321
      %v1595 = vunpack.c.l.b16 %v322
      %v1596 = vunpack.c.l.b16 %v323
      %v1597 = vunpack.c.l.b16 %v324
      %v1598 = vunpack.c.l.b16 %v325
      %v1599 = vunpack.c.l.b16 %v326
      %v1600 = vunpack.c.l.b16 %v327
      %v1601 = vunpack.c.l.b16 %v328
      %v1602 = vunpack.c.l.b16 %v329
      %v1603 = vunpack.c.l.b16 %v330
      %v1604 = vunpack.c.l.b16 %v331
      %v1605 = vunpack.c.l.b16 %v332
      %v1606 = vunpack.c.l.b16 %v333
      %v1607 = vunpack.c.l.b16 %v334
      %v1608 = vunpack.c.l.b16 %v335
      %v1609 = vunpack.c.l.b16 %v336
      %v1610 = vunpack.c.l.b16 %v337
      %v1611 = vunpack.c.l.b16 %v338
      %v1612 = vunpack.c.l.b16 %v339
      %v1613 = vunpack.c.l.b16 %v340
      %v1614 = vunpack.c.l.b16 %v341
      %v1615 = vunpack.c.l.b16 %v342
      %v1616 = vunpack.c.l.b16 %v343
      %v1617 = vunpack.c.l.b16 %v344
      %v1618 = vunpack.c.l.b16 %v345
      %v1619 = vunpack.c.l.b16 %v346
      %v1620 = vunpack.c.l.b16 %v347
      %v1621 = vunpack.c.l.b16 %v348
      %v1622 = vunpack.c.l.b16 %v349
      %v1623 = vunpack.c.l.b16 %v350
      %v1624 = vunpack.c.l.b16 %v351
      %v1625 = vunpack.c.l.b16 %v352
      %v1626 = vunpack.c.l.b16 %v353
      %v1627 = vunpack.c.l.b16 %v354
      %v1628 = vunpack.c.l.b16 %v355
      %v1629 = vunpack.c.l.b16 %v356
      %v1630 = vunpack.c.l.b16 %v357
      %v1631 = vunpack.c.l.b16 %v358
      %v1632 = vunpack.c.l.b16 %v359
      %v1633 = vunpack.c.l.b16 %v360
      %v1634 = vunpack.c.l.b16 %v361
      %v1635 = vunpack.c.l.b16 %v362
      %v1636 = vunpack.c.l.b16 %v363
      %v1637 = vunpack.c.l.b16 %v364
      %v1638 = vunpack.c.l.b16 %v365
      %v1639 = vunpack.c.l.b16 %v366
      %v1640 = vunpack.c.l.b16 %v367
      %v1641 = vunpack.c.l.b16 %v368
      %v1642 = vunpack.c.l.b16 %v369
      %v1643 = vunpack.c.l.b16 %v370
      %v1644 = vunpack.c.l.b16 %v371
      %v1645 = vunpack.c.l.b16 %v372
      %v1646 = vunpack.c.l.b16 %v373
      %v1647 = vunpack.c.l.b16 %v374
      %v1648 = vunpack.c.l.b16 %v375
      %v1649 = vunpack.c.l.b16 %v376
      %v1650 = vunpack.c.l.b16 %v377
      %v1651 = vunpack.c.l.b16 %v378
      %v1652 = vunpack.c.l.b16 %v379
      %v1653 = vunpack.c.l.b16 %v380
      %v1654 = vunpack.c.l.b16 %v381
      %v1655 = vunpack.c.l.b16 %v382
      %v1656 = vunpack.c.l.b16 %v383
      %v1657 = vunpack.c.l.b16 %v384
      %v1658 = vunpack.c.l.b16 %v385
      %v1659 = vunpack.c.l.b16 %v386
      %v1660 = vunpack.c.l.b16 %v387
      %v1661 = vunpack.c.l.b16 %v388
      %v1662 = vunpack.c.l.b16 %v389
      %v1663 = vunpack.c.l.b16 %v390
      %v1664 = vunpack.c.l.b16 %v391
      %v1665 = vunpack.c.l.b16 %v392
      %v1666 = vunpack.c.l.b16 %v393
      %v1667 = vunpack.c.l.b16 %v394
      %v1668 = vunpack.c.l.b16 %v395
      %v1669 = vunpack.c.l.b16 %v396
      %v1670 = vunpack.c.l.b16 %v397
      %v1671 = vunpack.c.l.b16 %v398
      %v1672 = vunpack.c.l.b16 %v399
      %v1673 = vunpack.c.l.b16 %v400
      %v1674 = vunpack.c.l.b16 %v401
      %v1675 = vunpack.c.l.b16 %v402
      %v1676 = vunpack.c.l.b16 %v403
      %v1677 = vunpack.c.l.b16 %v404
      %v1678 = vunpack.c.l.b16 %v405
      %v1679 = vunpack.c.l.b16 %v406
      %v1680 = vunpack.c.l.b16 %v407
      %v1681 = vunpack.c.l.b16 %v408
      %v1682 = vunpack.c.l.b16 %v409
      %v1683 = vunpack.c.l.b16 %v410
      %v1684 = vunpack.c.l.b16 %v411
      %v1685 = vunpack.c.l.b16 %v412
      %v1686 = vunpack.c.l.b16 %v413
      %v1687 = vunpack.c.l.b16 %v414
      %v1688 = vunpack.c.l.b16 %v415
      %v1689 = vunpack.c.l.b16 %v416
      %v1690 = vunpack.c.l.b16 %v417
      %v1691 = vunpack.c.l.b16 %v418
      %v1692 = vunpack.c.l.b16 %v419
      %v1693 = vunpack.c.l.b16 %v420
      %v1694 = vunpack.c.l.b16 %v421
      %v1695 = vunpack.c.l.b16 %v422
      %v1696 = vunpack.c.l.b16 %v423
      %v1697 = vunpack.c.l.b16 %v424
      %v1698 = vunpack.c.l.b16 %v425
      %v1699 = vunpack.c.l.b16 %v426
      %v1700 = vunpack.c.l.b16 %v427
      %v1701 = vunpack.c.l.b16 %v428
      %v1702 = vunpack.c.l.b16 %v429
      %v1703 = vunpack.c.l.b16 %v430
      %v1704 = vunpack.c.l.b16 %v431
      %v1705 = vunpack.c.l.b16 %v432
      %v1706 = vunpack.c.l.b16 %v433
      %v1707 = vunpack.c.l.b16 %v434
      %v1708 = vunpack.c.l.b16 %v435
      %v1709 = vunpack.c.l.b16 %v436
      %v1710 = vunpack.c.l.b16 %v437
      %v1711 = vunpack.c.l.b16 %v438
      %v1712 = vunpack.c.l.b16 %v439
      %v1713 = vunpack.c.l.b16 %v440
      %v1714 = vunpack.c.l.b16 %v441
      %v1715 = vunpack.c.l.b16 %v442
      %v1716 = vunpack.c.l.b16 %v443
      %v1717 = vunpack.c.l.b16 %v444
      %v1718 = vunpack.c.l.b16 %v445
      %v1719 = vunpack.c.l.b16 %v446
      %v1720 = vunpack.c.l.b16 %v447
      %v1721 = vunpack.c.l.b16 %v448
      %v1722 = vunpack.c.l.b16 %v449
      %v1723 = vunpack.c.l.b16 %v450
      %v1724 = vunpack.c.l.b16 %v451
      %v1725 = vunpack.c.l.b16 %v452
      %v1726 = vunpack.c.l.b16 %v453
      %v1727 = vunpack.c.l.b16 %v454
      %v1728 = vunpack.c.l.b16 %v455
      %v1729 = vunpack.c.l.b16 %v456
      %v1730 = vunpack.c.l.b16 %v457
      %v1731 = vunpack.c.l.b16 %v458
      %v1732 = vunpack.c.l.b16 %v459
      %v1733 = vunpack.c.l.b16 %v460
      %v1734 = vunpack.c.l.b16 %v461
      %v1735 = vunpack.c.l.b16 %v462
      %v1736 = vunpack.c.l.b16 %v463
      %v1737 = vunpack.c.l.b16 %v464
      %v1738 = vunpack.c.l.b16 %v465
      %v1739 = vunpack.c.l.b16 %v466
      %v1740 = vunpack.c.l.b16 %v467
      %v1741 = vunpack.c.l.b16 %v468
      %v1742 = vunpack.c.l.b16 %v469
      %v1743 = vunpack.c.l.b16 %v470
      %v1744 = vunpack.c.l.b16 %v471
      %v1745 = vunpack.c.l.b16 %v472
      %v1746 = vunpack.c.l.b16 %v473
      %v1747 = vunpack.c.l.b16 %v474
      %v1748 = vunpack.c.l.b16 %v475
      %v1749 = vunpack.c.l.b16 %v476
      %v1750 = vunpack.c.l.b16 %v477
      %v1751 = vunpack.c.l.b16 %v478
      %v1752 = vunpack.c.l.b16 %v479
      %v1753 = vunpack.c.l.b16 %v480
      %v1754 = vunpack.c.l.b16 %v481
      %v1755 = vunpack.c.l.b16 %v482
      %v1756 = vunpack.c.l.b16 %v483
      %v1757 = vunpack.c.l.b16 %v484
      %v1758 = vunpack.c.l.b16 %v485
      %v1759 = vunpack.c.l.b16 %v486
      %v1760 = vunpack.c.l.b16 %v487
      %v1761 = vunpack.c.l.b16 %v488
      %v1762 = vunpack.c.l.b16 %v489
      %v1763 = vunpack.c.l.b16 %v490
      %v1764 = vunpack.c.l.b16 %v491
      %v1765 = vunpack.c.l.b16 %v492
      %v1766 = vunpack.c.l.b16 %v493
      %v1767 = vunpack.c.l.b16 %v494
      %v1768 = vunpack.c.l.b16 %v495
      %v1769 = vunpack.c.l.b16 %v496
      %v1770 = vunpack.c.l.b16 %v497
      %v1771 = vunpack.c.l.b16 %v498
      %v1772 = vunpack.c.l.b16 %v499
      %v1773 = vunpack.c.l.b16 %v500
      %v1774 = vunpack.c.l.b16 %v501
      %v1775 = vunpack.c.l.b16 %v502
      %v1776 = vunpack.c.l.b16 %v503
      %v1777 = vunpack.c.l.b16 %v504
      %v1778 = vunpack.c.l.b16 %v505
      %v1779 = vunpack.c.l.b16 %v506
      %v1780 = vunpack.c.l.b16 %v507
      %v1781 = vunpack.c.l.b16 %v508
      %v1782 = vunpack.c.l.b16 %v509
      %v1783 = vunpack.c.l.b16 %v510
      %v1784 = vunpack.c.l.b16 %v511
      %v1785 = vunpack.c.l.b16 %v512
      %v1786 = vunpack.c.l.b16 %v513
      %v1787 = vunpack.c.l.b16 %v514
      %v1788 = vunpack.c.l.b16 %v515
      %v1789 = vunpack.c.l.b16 %v516
      %v1790 = vunpack.c.l.b16 %v517
      %v1791 = vunpack.c.l.b16 %v518
      %v1792 = vunpack.c.l.b16 %v519
      %v1793 = vunpack.c.l.b16 %v520
      %v1794 = vunpack.c.l.b16 %v521
      %v1795 = vunpack.c.l.b16 %v522
      %v1796 = vunpack.c.l.b16 %v523
      %v1797 = vunpack.c.l.b16 %v524
      %v1798 = vunpack.c.l.b16 %v525
      %v1799 = vunpack.c.l.b16 %v526
      %v1800 = vunpack.c.l.b16 %v527
      %v1801 = vunpack.c.l.b16 %v528
      %v1802 = vunpack.c.l.b16 %v529
      %v1803 = vunpack.c.l.b16 %v530
      %v1804 = vunpack.c.l.b16 %v531
      %v1805 = vunpack.c.l.b16 %v532
      %v1806 = vunpack.c.l.b16 %v533
      %v1807 = vunpack.c.l.b16 %v534
      %v1808 = vunpack.c.l.b16 %v535
      %v1809 = vunpack.c.l.b16 %v536
      %v1810 = vunpack.c.l.b16 %v537
      %v1811 = vunpack.c.l.b16 %v538
      %v1812 = vunpack.c.l.b16 %v539
      %v1813 = vunpack.c.l.b16 %v540
      %v1814 = vunpack.c.l.b16 %v541
      %v1815 = vunpack.c.l.b16 %v542
      %v1816 = vunpack.c.l.b16 %v543
      %v1817 = vunpack.c.l.b16 %v544
      %v1818 = vunpack.c.l.b16 %v545
      %v1819 = vunpack.c.l.b16 %v546
      %v1820 = vunpack.c.l.b16 %v547
      %v1821 = vunpack.c.l.b16 %v548
      %v1822 = vunpack.c.l.b16 %v549
      %v1823 = vunpack.c.l.b16 %v550
      %v1824 = vunpack.c.l.b16 %v551
      %v1825 = vunpack.c.l.b16 %v552
      %v1826 = vunpack.c.l.b16 %v553
      %v1827 = vunpack.c.l.b16 %v554
      %v1828 = vunpack.c.l.b16 %v555
      %v1829 = vunpack.c.l.b16 %v556
      %v1830 = vunpack.c.l.b16 %v557
      %v1831 = vunpack.c.l.b16 %v558
      %v1832 = vunpack.c.l.b16 %v559
      %v1833 = vunpack.c.l.b16 %v560
      %v1834 = vunpack.c.l.b16 %v561
      %v1835 = vunpack.c.l.b16 %v562
      %v1836 = vunpack.c.l.b16 %v563
      %v1837 = vunpack.c.l.b16 %v564
      %v1838 = vunpack.c.l.b16 %v565
      %v1839 = vunpack.c.l.b16 %v566
      %v1840 = vunpack.c.l.b16 %v567
      %v1841 = vunpack.c.l.b16 %v568
      %v1842 = vunpack.c.l.b16 %v569
      %v1843 = vunpack.c.l.b16 %v570
      %v1844 = vunpack.c.l.b16 %v571
      %v1845 = vunpack.c.l.b16 %v572
      %v1846 = vunpack.c.l.b16 %v573
      %v1847 = vunpack.c.l.b16 %v574
      %v1848 = vunpack.c.l.b16 %v575
      %v1849 = vunpack.c.l.b16 %v576
      %v1850 = vunpack.c.l.b16 %v577
      %v1851 = vunpack.c.l.b16 %v578
      %v1852 = vunpack.c.l.b16 %v579
      %v1853 = vunpack.c.l.b16 %v580
      %v1854 = vunpack.c.l.b16 %v581
      %v1855 = vunpack.c.l.b16 %v582
      %v1856 = vunpack.c.l.b16 %v583
      %v1857 = vunpack.c.l.b16 %v584
      %v1858 = vunpack.c.l.b16 %v585
      %v1859 = vunpack.c.l.b16 %v586
      %v1860 = vunpack.c.l.b16 %v587
      %v1861 = vunpack.c.l.b16 %v588
      %v1862 = vunpack.c.l.b16 %v589
      %v1863 = vunpack.c.l.b16 %v590
      %v1864 = vunpack.c.l.b16 %v591
      %v1865 = vunpack.c.l.b16 %v592
      %v1866 = vunpack.c.l.b16 %v593
      %v1867 = vunpack.c.l.b16 %v594
      %v1868 = vunpack.c.l.b16 %v595
      %v1869 = vunpack.c.l.b16 %v596
      %v1870 = vunpack.c.l.b16 %v597
      %v1871 = vunpack.c.l.b16 %v598
      %v1872 = vunpack.c.l.b16 %v599
      %v1873 = vunpack.c.l.b16 %v600
      %v1874 = vunpack.c.l.b16 %v601
      %v1875 = vunpack.c.l.b16 %v602
      %v1876 = vunpack.c.l.b16 %v603
      %v1877 = vunpack.c.l.b16 %v604
      %v1878 = vunpack.c.l.b16 %v605
      %v1879 = vunpack.c.l.b16 %v606
      %v1880 = vunpack.c.l.b16 %v607
      %v1881 = vunpack.c.l.b16 %v608
      %v1882 = vunpack.c.l.b16 %v609
      %v1883 = vunpack.c.l.b16 %v610
      %v1884 = vunpack.c.l.b16 %v611
      %v1885 = vunpack.c.l.b16 %v612
      %v1886 = vunpack.c.l.b16 %v613
      %v1887 = vunpack.c.l.b16 %v614
      %v1888 = vunpack.c.l.b16 %v615
      %v1889 = vunpack.c.l.b16 %v616
      %v1890 = vunpack.c.l.b16 %v617
      %v1891 = vunpack.c.l.b16 %v618
      %v1892 = vunpack.c.l.b16 %v619
      %v1893 = vunpack.c.l.b16 %v620
      %v1894 = vunpack.c.l.b16 %v621
      %v1895 = vunpack.c.l.b16 %v622
      %v1896 = vunpack.c.l.b16 %v623
      %v1897 = vunpack.c.l.b16 %v624
      %v1898 = vunpack.c.l.b16 %v625
      %v1899 = vunpack.c.l.b16 %v626
      %v1900 = vunpack.c.l.b16 %v627
      %v1901 = vunpack.c.l.b16 %v628
      %v1902 = vunpack.c.l.b16 %v629
      %v1903 = vunpack.c.l.b16 %v630
      %v1904 = vunpack.c.l.b16 %v631
      %v1905 = vunpack.c.l.b16 %v632
      %v1906 = vunpack.c.l.b16 %v633
      %v1907 = vunpack.c.l.b16 %v634
      %v1908 = vunpack.c.l.b16 %v635
      %v1909 = vunpack.c.l.b16 %v636
      %v1910 = vunpack.c.l.b16 %v637
      %v1911 = vunpack.c.l.b16 %v638
      %v1912 = vunpack.c.l.b16 %v639
      %v1913 = vunpack.c.l.b16 %v640
      %v1914 = vunpack.c.l.b16 %v641
      %v1915 = vunpack.c.l.b16 %v642
      %v1916 = vunpack.c.l.b16 %v643
      %v1917 = vunpack.c.l.b16 %v644
      %v1918 = vunpack.c.l.b16 %v645
      %v1919 = vunpack.c.l.b16 %v646
      %v1920 = vunpack.c.l.b16 %v647
      %v1921 = vunpack.c.l.b16 %v648
      %v1922 = vunpack.c.l.b16 %v649
      %v1923 = vunpack.c.l.b16 %v650
      %v1924 = vunpack.c.l.b16 %v651
      %v1925 = vunpack.c.l.b16 %v652
      %v1926 = vunpack.c.l.b16 %v653
      %v1927 = vunpack.c.l.b16 %v654
      %v1928 = vunpack.c.l.b16 %v655
      %v1929 = vunpack.c.l.b16 %v656
      %v1930 = vunpack.c.l.b16 %v657
      %v1931 = vunpack.c.l.b16 %v658
      %v1932 = vunpack.c.l.b16 %v659
      %v1933 = vunpack.c.l.b16 %v660
      %v1934 = vunpack.c.l.b16 %v661
      %v1935 = vunpack.c.l.b16 %v662
      %v1936 = vunpack.c.l.b16 %v663
      %v1937 = vunpack.c.l.b16 %v664
      %v1938 = vunpack.c.l.b16 %v665
      %v1939 = vunpack.c.l.b16 %v666
      %v1940 = vunpack.c.l.b16 %v667
      %v1941 = vunpack.c.l.b16 %v668
      %v1942 = vunpack.c.l.b16 %v669
      %v1943 = vunpack.c.l.b16 %v670
      %v1944 = vunpack.c.l.b16 %v671
      %v1945 = vunpack.c.l.b16 %v672
      %v1946 = vunpack.c.l.b16 %v673
      %v1947 = vunpack.c.l.b16 %v674
      %v1948 = vunpack.c.l.b16 %v675
      %v1949 = vunpack.c.l.b16 %v676
      %v1950 = vunpack.c.l.b16 %v677
      %v1951 = vunpack.c.l.b16 %v678
      %v1952 = vunpack.c.l.b16 %v679
      %v1953 = vunpack.c.l.b16 %v680
      %v1954 = vunpack.c.l.b16 %v681
      %v1955 = vunpack.c.l.b16 %v682
      %v1956 = vunpack.c.l.b16 %v683
      %v1957 = vunpack.c.l.b16 %v684
      %v1958 = vunpack.c.l.b16 %v685
      %v1959 = vunpack.c.l.b16 %v686
      %v1960 = vunpack.c.l.b16 %v687
      %v1961 = vunpack.c.l.b16 %v688
      %v1962 = vunpack.c.l.b16 %v689
      %v1963 = vunpack.c.l.b16 %v690
      %v1964 = vunpack.c.l.b16 %v691
      %v1965 = vunpack.c.l.b16 %v692
      %v1966 = vunpack.c.l.b16 %v693
      %v1967 = vunpack.c.l.b16 %v694
      %v1968 = vunpack.c.l.b16 %v695
      %v1969 = vunpack.c.l.b16 %v696
      %v1970 = vunpack.c.l.b16 %v697
      %v1971 = vunpack.c.l.b16 %v698
      %v1972 = vunpack.c.l.b16 %v699
      %v1973 = vunpack.c.l.b16 %v700
      %v1974 = vunpack.c.l.b16 %v701
      %v1975 = vunpack.c.l.b16 %v702
      %v1976 = vunpack.c.l.b16 %v703
      %v1977 = vunpack.c.l.b16 %v704
      %v1978 = vunpack.c.l.b16 %v705
      %v1979 = vunpack.c.l.b16 %v706
      %v1980 = vunpack.c.l.b16 %v707
      %v1981 = vunpack.c.l.b16 %v708
      %v1982 = vunpack.c.l.b16 %v709
      %v1983 = vunpack.c.l.b16 %v710
      %v1984 = vunpack.c.l.b16 %v711
      %v1985 = vunpack.c.l.b16 %v712
      %v1986 = vunpack.c.l.b16 %v713
      %v1987 = vunpack.c.l.b16 %v714
      %v1988 = vunpack.c.l.b16 %v715
      %v1989 = vunpack.c.l.b16 %v716
      %v1990 = vunpack.c.l.b16 %v717
      %v1991 = vunpack.c.l.b16 %v718
      %v1992 = vunpack.c.l.b16 %v719
      %v1993 = vpack.c.b16 %v1594, %v1593
      %v1994 = vpack.c.b16 %v1596, %v1595
      %v1995 = vpack.c.b16 %v1598, %v1597
      %v1996 = vpack.c.b16 %v1600, %v1599
      %v1997 = vpack.c.b16 %v1602, %v1601
      %v1998 = vpack.c.b16 %v1604, %v1603
      %v1999 = vpack.c.b16 %v1606, %v1605
      %v2000 = vpack.c.b16 %v1608, %v1607
      %v2001 = vpack.c.b16 %v1610, %v1609
      %v2002 = vpack.c.b16 %v1612, %v1611
      %v2003 = vpack.c.b16 %v1614, %v1613
      %v2004 = vpack.c.b16 %v1616, %v1615
      %v2005 = vpack.c.b16 %v1618, %v1617
      %v2006 = vpack.c.b16 %v1620, %v1619
      %v2007 = vpack.c.b16 %v1622, %v1621
      %v2008 = vpack.c.b16 %v1624, %v1623
      %v2009 = vpack.c.b16 %v1626, %v1625
      %v2010 = vpack.c.b16 %v1628, %v1627
      %v2011 = vpack.c.b16 %v1630, %v1629
      %v2012 = vpack.c.b16 %v1632, %v1631
      %v2013 = vpack.c.b16 %v1634, %v1633
      %v2014 = vpack.c.b16 %v1636, %v1635
      %v2015 = vpack.c.b16 %v1638, %v1637
      %v2016 = vpack.c.b16 %v1640, %v1639
      %v2017 = vpack.c.b16 %v1642, %v1641
      %v2018 = vpack.c.b16 %v1644, %v1643
      %v2019 = vpack.c.b16 %v1646, %v1645
      %v2020 = vpack.c.b16 %v1648, %v1647
      %v2021 = vpack.c.b16 %v1650, %v1649
      %v2022 = vpack.c.b16 %v1652, %v1651
      %v2023 = vpack.c.b16 %v1654, %v1653
      %v2024 = vpack.c.b16 %v1656, %v1655
      %v2025 = vpack.c.b16 %v1658, %v1657
      %v2026 = vpack.c.b16 %v1660, %v1659
      %v2027 = vpack.c.b16 %v1662, %v1661
      %v2028 = vpack.c.b16 %v1664, %v1663
      %v2029 = vpack.c.b16 %v1666, %v1665
      %v2030 = vpack.c.b16 %v1668, %v1667
      %v2031 = vpack.c.b16 %v1670, %v1669
      %v2032 = vpack.c.b16 %v1672, %v1671
      %v2033 = vpack.c.b16 %v1674, %v1673
      %v2034 = vpack.c.b16 %v1676, %v1675
      %v2035 = vpack.c.b16 %v1678, %v1677
      %v2036 = vpack.c.b16 %v1680, %v1679
      %v2037 = vpack.c.b16 %v1682, %v1681
      %v2038 = vpack.c.b16 %v1684, %v1683
      %v2039 = vpack.c.b16 %v1686, %v1685
      %v2040 = vpack.c.b16 %v1688, %v1687
      %v2041 = vpack.c.b16 %v1690, %v1689
      %v2042 = vpack.c.b16 %v1692, %v1691
      %v2043 = vpack.c.b16 %v1694, %v1693
      %v2044 = vpack.c.b16 %v1696, %v1695
      %v2045 = vpack.c.b16 %v1698, %v1697
      %v2046 = vpack.c.b16 %v1700, %v1699
      %v2047 = vpack.c.b16 %v1702, %v1701
      %v2048 = vpack.c.b16 %v1704, %v1703
      %v2049 = vpack.c.b16 %v1706, %v1705
      %v2050 = vpack.c.b16 %v1708, %v1707
      %v2051 = vpack.c.b16 %v1710, %v1709
      %v2052 = vpack.c.b16 %v1712, %v1711
      %v2053 = vpack.c.b16 %v1714, %v1713
      %v2054 = vpack.c.b16 %v1716, %v1715
      %v2055 = vpack.c.b16 %v1718, %v1717
      %v2056 = vpack.c.b16 %v1720, %v1719
      %v2057 = vpack.c.b16 %v1722, %v1721
      %v2058 = vpack.c.b16 %v1724, %v1723
      %v2059 = vpack.c.b16 %v1726, %v1725
      %v2060 = vpack.c.b16 %v1728, %v1727
      %v2061 = vpack.c.b16 %v1730, %v1729
      %v2062 = vpack.c.b16 %v1732, %v1731
      %v2063 = vpack.c.b16 %v1734, %v1733
      %v2064 = vpack.c.b16 %v1736, %v1735
      %v2065 = vpack.c.b16 %v1738, %v1737
      %v2066 = vpack.c.b16 %v1740, %v1739
      %v2067 = vpack.c.b16 %v1742, %v1741
      %v2068 = vpack.c.b16 %v1744, %v1743
      %v2069 = vpack.c.b16 %v1746, %v1745
      %v2070 = vpack.c.b16 %v1748, %v1747
      %v2071 = vpack.c.b16 %v1750, %v1749
      %v2072 = vpack.c.b16 %v1752, %v1751
      %v2073 = vpack.c.b16 %v1754, %v1753
      %v2074 = vpack.c.b16 %v1756, %v1755
      %v2075 = vpack.c.b16 %v1758, %v1757
      %v2076 = vpack.c.b16 %v1760, %v1759
      %v2077 = vpack.c.b16 %v1762, %v1761
      %v2078 = vpack.c.b16 %v1764, %v1763
      %v2079 = vpack.c.b16 %v1766, %v1765
      %v2080 = vpack.c.b16 %v1768, %v1767
      %v2081 = vpack.c.b16 %v1770, %v1769
      %v2082 = vpack.c.b16 %v1772, %v1771
      %v2083 = vpack.c.b16 %v1774, %v1773
      %v2084 = vpack.c.b16 %v1776, %v1775
      %v2085 = vpack.c.b16 %v1778, %v1777
      %v2086 = vpack.c.b16 %v1780, %v1779
      %v2087 = vpack.c.b16 %v1782, %v1781
      %v2088 = vpack.c.b16 %v1784, %v1783
      %v2089 = vpack.c.b16 %v1786, %v1785
      %v2090 = vpack.c.b16 %v1788, %v1787
      %v2091 = vpack.c.b16 %v1790, %v1789
      %v2092 = vpack.c.b16 %v1792, %v1791
      %v2093 = vpack.c.b16 %v1794, %v1793
      %v2094 = vpack.c.b16 %v1796, %v1795
      %v2095 = vpack.c.b16 %v1798, %v1797
      %v2096 = vpack.c.b16 %v1800, %v1799
      %v2097 = vpack.c.b16 %v1802, %v1801
      %v2098 = vpack.c.b16 %v1804, %v1803
      %v2099 = vpack.c.b16 %v1806, %v1805
      %v2100 = vpack.c.b16 %v1808, %v1807
      %v2101 = vpack.c.b16 %v1810, %v1809
      %v2102 = vpack.c.b16 %v1812, %v1811
      %v2103 = vpack.c.b16 %v1814, %v1813
      %v2104 = vpack.c.b16 %v1816, %v1815
      %v2105 = vpack.c.b16 %v1818, %v1817
      %v2106 = vpack.c.b16 %v1820, %v1819
      %v2107 = vpack.c.b16 %v1822, %v1821
      %v2108 = vpack.c.b16 %v1824, %v1823
      %v2109 = vpack.c.b16 %v1826, %v1825
      %v2110 = vpack.c.b16 %v1828, %v1827
      %v2111 = vpack.c.b16 %v1830, %v1829
      %v2112 = vpack.c.b16 %v1832, %v1831
      %v2113 = vpack.c.b16 %v1834, %v1833
      %v2114 = vpack.c.b16 %v1836, %v1835
      %v2115 = vpack.c.b16 %v1838, %v1837
      %v2116 = vpack.c.b16 %v1840, %v1839
      %v2117 = vpack.c.b16 %v1842, %v1841
      %v2118 = vpack.c.b16 %v1844, %v1843
      %v2119 = vpack.c.b16 %v1846, %v1845
      %v2120 = vpack.c.b16 %v1848, %v1847
      %v2121 = vpack.c.b16 %v1850, %v1849
      %v2122 = vpack.c.b16 %v1852, %v1851
      %v2123 = vpack.c.b16 %v1854, %v1853
      %v2124 = vpack.c.b16 %v1856, %v1855
      %v2125 = vpack.c.b16 %v1858, %v1857
      %v2126 = vpack.c.b16 %v1860, %v1859
      %v2127 = vpack.c.b16 %v1862, %v1861
      %v2128 = vpack.c.b16 %v1864, %v1863
      %v2129 = vpack.c.b16 %v1866, %v1865
      %v2130 = vpack.c.b16 %v1868, %v1867
      %v2131 = vpack.c.b16 %v1870, %v1869
      %v2132 = vpack.c.b16 %v1872, %v1871
      %v2133 = vpack.c.b16 %v1874, %v1873
      %v2134 = vpack.c.b16 %v1876, %v1875
      %v2135 = vpack.c.b16 %v1878, %v1877
      %v2136 = vpack.c.b16 %v1880, %v1879
      %v2137 = vpack.c.b16 %v1882, %v1881
      %v2138 = vpack.c.b16 %v1884, %v1883
      %v2139 = vpack.c.b16 %v1886, %v1885
      %v2140 = vpack.c.b16 %v1888, %v1887
      %v2141 = vpack.c.b16 %v1890, %v1889
      %v2142 = vpack.c.b16 %v1892, %v1891
      %v2143 = vpack.c.b16 %v1894, %v1893
      %v2144 = vpack.c.b16 %v1896, %v1895
      %v2145 = vpack.c.b16 %v1898, %v1897
      %v2146 = vpack.c.b16 %v1900, %v1899
      %v2147 = vpack.c.b16 %v1902, %v1901
      %v2148 = vpack.c.b16 %v1904, %v1903
      %v2149 = vpack.c.b16 %v1906, %v1905
      %v2150 = vpack.c.b16 %v1908, %v1907
      %v2151 = vpack.c.b16 %v1910, %v1909
      %v2152 = vpack.c.b16 %v1912, %v1911
      %v2153 = vpack.c.b16 %v1914, %v1913
      %v2154 = vpack.c.b16 %v1916, %v1915
      %v2155 = vpack.c.b16 %v1918, %v1917
      %v2156 = vpack.c.b16 %v1920, %v1919
      %v2157 = vpack.c.b16 %v1922, %v1921
      %v2158 = vpack.c.b16 %v1924, %v1923
      %v2159 = vpack.c.b16 %v1926, %v1925
      %v2160 = vpack.c.b16 %v1928, %v1927
      %v2161 = vpack.c.b16 %v1930, %v1929
      %v2162 = vpack.c.b16 %v1932, %v1931
      %v2163 = vpack.c.b16 %v1934, %v1933
      %v2164 = vpack.c.b16 %v1936, %v1935
      %v2165 = vpack.c.b16 %v1938, %v1937
      %v2166 = vpack.c.b16 %v1940, %v1939
      %v2167 = vpack.c.b16 %v1942, %v1941
      %v2168 = vpack.c.b16 %v1944, %v1943
      %v2169 = vpack.c.b16 %v1946, %v1945
      %v2170 = vpack.c.b16 %v1948, %v1947
      %v2171 = vpack.c.b16 %v1950, %v1949
      %v2172 = vpack.c.b16 %v1952, %v1951
      %v2173 = vpack.c.b16 %v1954, %v1953
      %v2174 = vpack.c.b16 %v1956, %v1955
      %v2175 = vpack.c.b16 %v1958, %v1957
      %v2176 = vpack.c.b16 %v1960, %v1959
      %v2177 = vpack.c.b16 %v1962, %v1961
      %v2178 = vpack.c.b16 %v1964, %v1963
      %v2179 = vpack.c.b16 %v1966, %v1965
      %v2180 = vpack.c.b16 %v1968, %v1967
      %v2181 = vpack.c.b16 %v1970, %v1969
      %v2182 = vpack.c.b16 %v1972, %v1971
      %v2183 = vpack.c.b16 %v1974, %v1973
      %v2184 = vpack.c.b16 %v1976, %v1975
      %v2185 = vpack.c.b16 %v1978, %v1977
      %v2186 = vpack.c.b16 %v1980, %v1979
      %v2187 = vpack.c.b16 %v1982, %v1981
      %v2188 = vpack.c.b16 %v1984, %v1983
      %v2189 = vpack.c.b16 %v1986, %v1985
      %v2190 = vpack.c.b16 %v1988, %v1987
      %v2191 = vpack.c.b16 %v1990, %v1989
      %v2192 = vpack.c.b16 %v1992, %v1991
      %2393 = vmatprep.subr.bf16.mxu0 0
      %2394 = vmatpush1.bf16.msra.mxu0 %v1993
      %2395 = vmatprep.subr.bf16.mxu0 0
      %2396 = vmatpush1.bf16.msra.mxu0 %v1994
      %2397 = vmatprep.subr.bf16.mxu0 0
      %2398 = vmatpush1.bf16.msra.mxu0 %v1995
      %2399 = vmatprep.subr.bf16.mxu0 0
      %2400 = vmatpush1.bf16.msra.mxu0 %v1996
      %2401 = vmatprep.subr.bf16.mxu0 0
      %2402 = vmatpush1.bf16.msra.mxu0 %v1997
      %2403 = vmatprep.subr.bf16.mxu0 0
      %2404 = vmatpush1.bf16.msra.mxu0 %v1998
      %2405 = vmatprep.subr.bf16.mxu0 0
      %2406 = vmatpush1.bf16.msra.mxu0 %v1999
      %2407 = vmatprep.subr.bf16.mxu0 0
      %2408 = vmatpush1.bf16.msra.mxu0 %v2000
      %2409 = vmatprep.subr.bf16.mxu0 0
      %2410 = vmatpush1.bf16.msra.mxu0 %v2001
      %2411 = vmatprep.subr.bf16.mxu0 0
      %2412 = vmatpush1.bf16.msra.mxu0 %v2002
      %2413 = vmatprep.subr.bf16.mxu0 0
      %2414 = vmatpush1.bf16.msra.mxu0 %v2003
      %2415 = vmatprep.subr.bf16.mxu0 0
      %2416 = vmatpush1.bf16.msra.mxu0 %v2004
      %2417 = vmatprep.subr.bf16.mxu0 0
      %2418 = vmatpush1.bf16.msra.mxu0 %v2005
      %2419 = vmatprep.subr.bf16.mxu0 0
      %2420 = vmatpush1.bf16.msra.mxu0 %v2006
      %2421 = vmatprep.subr.bf16.mxu0 0
      %2422 = vmatpush1.bf16.msra.mxu0 %v2007
      %2423 = vmatprep.subr.bf16.mxu0 0
      %2424 = vmatpush1.bf16.msra.mxu0 %v2008
      %2425 = vmatprep.mubr.bf16.mxu0 %v994
      %2426 = vmatmul.mubr.bf16.gmra.mrb[0].mxu0 %v993
      %v2427 = vpop.f32.mrb[0].mxu0
      %v2428 = vadd.f32 %v725, %v2427
      %v2429 = vpop.f32.mrb[0].mxu0
      %v2430 = vpop.f32.mrb[0].mxu0
      %v2431 = vadd.f32 %v725, %v2430
      %v2432 = vpop.f32.mrb[0].mxu0
      %2433 = vmatprep.mubr.bf16.mxu0 %v1019
      %2434 = vmatmul.mubr.bf16.gmra.mrb[0].mxu0 %v1018
      %v2435 = vpop.f32.mrb[0].mxu0
      %v2436 = vadd.f32 %v725, %v2435
      %v2437 = vpop.f32.mrb[0].mxu0
      %v2438 = vpop.f32.mrb[0].mxu0
      %v2439 = vadd.f32 %v725, %v2438
      %v2440 = vpop.f32.mrb[0].mxu0
      %2441 = vmatprep.mubr.bf16.mxu0 %v1044
      %2442 = vmatmul.mubr.bf16.gmra.mrb[0].mxu0 %v1043
      %v2443 = vpop.f32.mrb[0].mxu0
      %v2444 = vadd.f32 %v725, %v2443
      %v2445 = vpop.f32.mrb[0].mxu0
      %v2446 = vpop.f32.mrb[0].mxu0
      %v2447 = vadd.f32 %v725, %v2446
      %v2448 = vpop.f32.mrb[0].mxu0
      %2449 = vmatprep.mubr.bf16.mxu0 %v1069
      %2450 = vmatmul.mubr.bf16.gmra.mrb[0].mxu0 %v1068
      %v2451 = vpop.f32.mrb[0].mxu0
      %v2452 = vadd.f32 %v725, %v2451
      %v2453 = vpop.f32.mrb[0].mxu0
      %v2454 = vpop.f32.mrb[0].mxu0
      %v2455 = vpop.f32.mrb[0].mxu0
      %2456 = vdwg.mxu0
      %2457 = vmatprep.subr.bf16.mxu0 0
      %2458 = vmatpush1.bf16.msra.mxu0 %v2009
      %2459 = vmatprep.subr.bf16.mxu0 0
      %2460 = vmatpush1.bf16.msra.mxu0 %v2010
      %2461 = vmatprep.subr.bf16.mxu0 0
      %2462 = vmatpush1.bf16.msra.mxu0 %v2011
      %2463 = vmatprep.subr.bf16.mxu0 0
      %2464 = vmatpush1.bf16.msra.mxu0 %v2012
      %2465 = vmatprep.subr.bf16.mxu0 0
      %2466 = vmatpush1.bf16.msra.mxu0 %v2013
      %2467 = vmatprep.subr.bf16.mxu0 0
      %2468 = vmatpush1.bf16.msra.mxu0 %v2014
      %2469 = vmatprep.subr.bf16.mxu0 0
      %2470 = vmatpush1.bf16.msra.mxu0 %v2015
      %2471 = vmatprep.subr.bf16.mxu0 0
      %2472 = vmatpush1.bf16.msra.mxu0 %v2016
      %2473 = vmatprep.subr.bf16.mxu0 0
      %2474 = vmatpush1.bf16.msra.mxu0 %v2017
      %2475 = vmatprep.subr.bf16.mxu0 0
      %2476 = vmatpush1.bf16.msra.mxu0 %v2018
      %2477 = vmatprep.subr.bf16.mxu0 0
      %2478 = vmatpush1.bf16.msra.mxu0 %v2019
      %2479 = vmatprep.subr.bf16.mxu0 0
      %2480 = vmatpush1.bf16.msra.mxu0 %v2020
      %2481 = vmatprep.subr.bf16.mxu0 0
      %2482 = vmatpush1.bf16.msra.mxu0 %v2021
      %2483 = vmatprep.subr.bf16.mxu0 0
      %2484 = vmatpush1.bf16.msra.mxu0 %v2022
      %2485 = vmatprep.subr.bf16.mxu0 0
      %2486 = vmatpush1.bf16.msra.mxu0 %v2023
      %2487 = vmatprep.subr.bf16.mxu0 0
      %2488 = vmatpush1.bf16.msra.mxu0 %v2024
      %2489 = vmatprep.mubr.bf16.mxu0 %v996
      %2490 = vmatmul.mubr.bf16.gmra.mrb[0].mxu0 %v995
      %v2491 = vpop.f32.mrb[0].mxu0
      %v2492 = vadd.f32 %v2428, %v2491
      %v2493 = vpop.f32.mrb[0].mxu0
      %v2494 = vpop.f32.mrb[0].mxu0
      %v2495 = vadd.f32 %v2431, %v2494
      %v2496 = vpop.f32.mrb[0].mxu0
      %2497 = vmatprep.mubr.bf16.mxu0 %v1021
      %2498 = vmatmul.mubr.bf16.gmra.mrb[0].mxu0 %v1020
      %v2499 = vpop.f32.mrb[0].mxu0
      %v2500 = vadd.f32 %v2436, %v2499
      %v2501 = vpop.f32.mrb[0].mxu0
      %v2502 = vpop.f32.mrb[0].mxu0
      %v2503 = vadd.f32 %v2439, %v2502
      %v2504 = vpop.f32.mrb[0].mxu0
      %2505 = vmatprep.mubr.bf16.mxu0 %v1046
      %2506 = vmatmul.mubr.bf16.gmra.mrb[0].mxu0 %v1045
      %v2507 = vpop.f32.mrb[0].mxu0
      %v2508 = vadd.f32 %v2444, %v2507
      %v2509 = vpop.f32.mrb[0].mxu0
      %v2510 = vpop.f32.mrb[0].mxu0
      %v2511 = vadd.f32 %v2447, %v2510
      %v2512 = vpop.f32.mrb[0].mxu0
      %2513 = vmatprep.mubr.bf16.mxu0 %v1071
      %2514 = vmatmul.mubr.bf16.gmra.mrb[0].mxu0 %v1070
      %v2515 = vpop.f32.mrb[0].mxu0
      %v2516 = vadd.f32 %v2452, %v2515
      %v2517 = vpop.f32.mrb[0].mxu0
      %v2518 = vpop.f32.mrb[0].mxu0
      %v2519 = vpop.f32.mrb[0].mxu0
      %2520 = vdwg.mxu0
      %2521 = vmatprep.subr.bf16.mxu0 0
      %2522 = vmatpush1.bf16.msra.mxu0 %v2025
      %2523 = vmatprep.subr.bf16.mxu0 0
      %2524 = vmatpush1.bf16.msra.mxu0 %v2026
      %2525 = vmatprep.subr.bf16.mxu0 0
      %2526 = vmatpush1.bf16.msra.mxu0 %v2027
      %2527 = vmatprep.subr.bf16.mxu0 0
      %2528 = vmatpush1.bf16.msra.mxu0 %v2028
      %2529 = vmatprep.subr.bf16.mxu0 0
      %2530 = vmatpush1.bf16.msra.mxu0 %v2029
      %2531 = vmatprep.subr.bf16.mxu0 0
      %2532 = vmatpush1.bf16.msra.mxu0 %v2030
      %2533 = vmatprep.subr.bf16.mxu0 0
      %2534 = vmatpush1.bf16.msra.mxu0 %v2031
      %2535 = vmatprep.subr.bf16.mxu0 0
      %2536 = vmatpush1.bf16.msra.mxu0 %v2032
      %2537 = vmatprep.subr.bf16.mxu0 0
      %2538 = vmatpush1.bf16.msra.mxu0 %v2033
      %2539 = vmatprep.subr.bf16.mxu0 0
      %2540 = vmatpush1.bf16.msra.mxu0 %v2034
      %2541 = vmatprep.subr.bf16.mxu0 0
      %2542 = vmatpush1.bf16.msra.mxu0 %v2035
      %2543 = vmatprep.subr.bf16.mxu0 0
      %2544 = vmatpush1.bf16.msra.mxu0 %v2036
      %2545 = vmatprep.subr.bf16.mxu0 0
      %2546 = vmatpush1.bf16.msra.mxu0 %v2037
      %2547 = vmatprep.subr.bf16.mxu0 0
      %2548 = vmatpush1.bf16.msra.mxu0 %v2038
      %2549 = vmatprep.subr.bf16.mxu0 0
      %2550 = vmatpush1.bf16.msra.mxu0 %v2039
      %2551 = vmatprep.subr.bf16.mxu0 0
      %2552 = vmatpush1.bf16.msra.mxu0 %v2040
      %2553 = vmatprep.mubr.bf16.mxu0 %v998
      %2554 = vmatmul.mubr.bf16.gmra.mrb[0].mxu0 %v997
      %v2555 = vpop.f32.mrb[0].mxu0
      %v2556 = vadd.f32 %v2492, %v2555
      %v2557 = vpop.f32.mrb[0].mxu0
      %v2558 = vpop.f32.mrb[0].mxu0
      %v2559 = vadd.f32 %v2495, %v2558
      %v2560 = vpop.f32.mrb[0].mxu0
      %2561 = vmatprep.mubr.bf16.mxu0 %v1023
      %2562 = vmatmul.mubr.bf16.gmra.mrb[0].mxu0 %v1022
      %v2563 = vpop.f32.mrb[0].mxu0
      %v2564 = vadd.f32 %v2500, %v2563
      %v2565 = vpop.f32.mrb[0].mxu0
      %v2566 = vpop.f32.mrb[0].mxu0
      %v2567 = vadd.f32 %v2503, %v2566
      %v2568 = vpop.f32.mrb[0].mxu0
      %2569 = vmatprep.mubr.bf16.mxu0 %v1048
      %2570 = vmatmul.mubr.bf16.gmra.mrb[0].mxu0 %v1047
      %v2571 = vpop.f32.mrb[0].mxu0
      %v2572 = vadd.f32 %v2508, %v2571
      %v2573 = vpop.f32.mrb[0].mxu0
      %v2574 = vpop.f32.mrb[0].mxu0
      %v2575 = vadd.f32 %v2511, %v2574
      %v2576 = vpop.f32.mrb[0].mxu0
      %2577 = vmatprep.mubr.bf16.mxu0 %v1073
      %2578 = vmatmul.mubr.bf16.gmra.mrb[0].mxu0 %v1072
      %v2579 = vpop.f32.mrb[0].mxu0
      %v2580 = vadd.f32 %v2516, %v2579
      %v2581 = vpop.f32.mrb[0].mxu0
      %v2582 = vpop.f32.mrb[0].mxu0
      %v2583 = vpop.f32.mrb[0].mxu0
      %2584 = vdwg.mxu0
      %2585 = vmatprep.subr.bf16.mxu0 0
      %2586 = vmatpush1.bf16.msra.mxu0 %v2041
      %2587 = vmatprep.subr.bf16.mxu0 0
      %2588 = vmatpush1.bf16.msra.mxu0 %v2042
      %2589 = vmatprep.subr.bf16.mxu0 0
      %2590 = vmatpush1.bf16.msra.mxu0 %v2043
      %2591 = vmatprep.subr.bf16.mxu0 0
      %2592 = vmatpush1.bf16.msra.mxu0 %v2044
      %2593 = vmatprep.subr.bf16.mxu0 0
      %2594 = vmatpush1.bf16.msra.mxu0 %v2045
      %2595 = vmatprep.subr.bf16.mxu0 0
      %2596 = vmatpush1.bf16.msra.mxu0 %v2046
      %2597 = vmatprep.subr.bf16.mxu0 0
      %2598 = vmatpush1.bf16.msra.mxu0 %v2047
      %2599 = vmatprep.subr.bf16.mxu0 0
      %2600 = vmatpush1.bf16.msra.mxu0 %v2048
      %2601 = vmatprep.subr.bf16.mxu0 0
      %2602 = vmatpush1.bf16.msra.mxu0 %v2049
      %2603 = vmatprep.subr.bf16.mxu0 0
      %2604 = vmatpush1.bf16.msra.mxu0 %v2050
      %2605 = vmatprep.subr.bf16.mxu0 0
      %2606 = vmatpush1.bf16.msra.mxu0 %v2051
      %2607 = vmatprep.subr.bf16.mxu0 0
      %2608 = vmatpush1.bf16.msra.mxu0 %v2052
      %2609 = vmatprep.subr.bf16.mxu0 0
      %2610 = vmatpush1.bf16.msra.mxu0 %v2053
      %2611 = vmatprep.subr.bf16.mxu0 0
      %2612 = vmatpush1.bf16.msra.mxu0 %v2054
      %2613 = vmatprep.subr.bf16.mxu0 0
      %2614 = vmatpush1.bf16.msra.mxu0 %v2055
      %2615 = vmatprep.subr.bf16.mxu0 0
      %2616 = vmatpush1.bf16.msra.mxu0 %v2056
      %2617 = vmatprep.mubr.bf16.mxu0 %v1000
      %2618 = vmatmul.mubr.bf16.gmra.mrb[0].mxu0 %v999
      %v2619 = vpop.f32.mrb[0].mxu0
      %v2620 = vadd.f32 %v2556, %v2619
      %v2621 = vpop.f32.mrb[0].mxu0
      %v2622 = vpop.f32.mrb[0].mxu0
      %v2623 = vadd.f32 %v2559, %v2622
      %v2624 = vpop.f32.mrb[0].mxu0
      %2625 = vmatprep.mubr.bf16.mxu0 %v1025
      %2626 = vmatmul.mubr.bf16.gmra.mrb[0].mxu0 %v1024
      %v2627 = vpop.f32.mrb[0].mxu0
      %v2628 = vadd.f32 %v2564, %v2627
      %v2629 = vpop.f32.mrb[0].mxu0
      %v2630 = vpop.f32.mrb[0].mxu0
      %v2631 = vadd.f32 %v2567, %v2630
      %v2632 = vpop.f32.mrb[0].mxu0
      %2633 = vmatprep.mubr.bf16.mxu0 %v1050
      %2634 = vmatmul.mubr.bf16.gmra.mrb[0].mxu0 %v1049
      %v2635 = vpop.f32.mrb[0].mxu0
      %v2636 = vadd.f32 %v2572, %v2635
      %v2637 = vpop.f32.mrb[0].mxu0
      %v2638 = vpop.f32.mrb[0].mxu0
      %v2639 = vadd.f32 %v2575, %v2638
      %v2640 = vpop.f32.mrb[0].mxu0
      %2641 = vmatprep.mubr.bf16.mxu0 %v1075
      %2642 = vmatmul.mubr.bf16.gmra.mrb[0].mxu0 %v1074
      %v2643 = vpop.f32.mrb[0].mxu0
      %v2644 = vadd.f32 %v2580, %v2643
      %v2645 = vpop.f32.mrb[0].mxu0
      %v2646 = vpop.f32.mrb[0].mxu0
      %v2647 = vpop.f32.mrb[0].mxu0
      %2648 = vdwg.mxu0
      %2649 = vmatprep.subr.bf16.mxu0 0
      %2650 = vmatpush1.bf16.msra.mxu0 %v2057
      %2651 = vmatprep.subr.bf16.mxu0 0
      %2652 = vmatpush1.bf16.msra.mxu0 %v2058
      %2653 = vmatprep.subr.bf16.mxu0 0
      %2654 = vmatpush1.bf16.msra.mxu0 %v2059
      %2655 = vmatprep.subr.bf16.mxu0 0
      %2656 = vmatpush1.bf16.msra.mxu0 %v2060
      %2657 = vmatprep.subr.bf16.mxu0 0
      %2658 = vmatpush1.bf16.msra.mxu0 %v2061
      %2659 = vmatprep.subr.bf16.mxu0 0
      %2660 = vmatpush1.bf16.msra.mxu0 %v2062
      %2661 = vmatprep.subr.bf16.mxu0 0
      %2662 = vmatpush1.bf16.msra.mxu0 %v2063
      %2663 = vmatprep.subr.bf16.mxu0 0
      %2664 = vmatpush1.bf16.msra.mxu0 %v2064
      %2665 = vmatprep.subr.bf16.mxu0 0
      %2666 = vmatpush1.bf16.msra.mxu0 %v2065
      %2667 = vmatprep.subr.bf16.mxu0 0
      %2668 = vmatpush1.bf16.msra.mxu0 %v2066
      %2669 = vmatprep.subr.bf16.mxu0 0
      %2670 = vmatpush1.bf16.msra.mxu0 %v2067
      %2671 = vmatprep.subr.bf16.mxu0 0
      %2672 = vmatpush1.bf16.msra.mxu0 %v2068
      %2673 = vmatprep.subr.bf16.mxu0 0
      %2674 = vmatpush1.bf16.msra.mxu0 %v2069
      %2675 = vmatprep.subr.bf16.mxu0 0
      %2676 = vmatpush1.bf16.msra.mxu0 %v2070
      %2677 = vmatprep.subr.bf16.mxu0 0
      %2678 = vmatpush1.bf16.msra.mxu0 %v2071
      %2679 = vmatprep.subr.bf16.mxu0 0
      %2680 = vmatpush1.bf16.msra.mxu0 %v2072
      %2681 = vmatprep.mubr.bf16.mxu0 %v1002
      %2682 = vmatmul.mubr.bf16.gmra.mrb[0].mxu0 %v1001
      %v2683 = vpop.f32.mrb[0].mxu0
      %v2684 = vadd.f32 %v2620, %v2683
      %v2685 = vpop.f32.mrb[0].mxu0
      %v2686 = vpop.f32.mrb[0].mxu0
      %v2687 = vadd.f32 %v2623, %v2686
      %v2688 = vpop.f32.mrb[0].mxu0
      %2689 = vmatprep.mubr.bf16.mxu0 %v1027
      %2690 = vmatmul.mubr.bf16.gmra.mrb[0].mxu0 %v1026
      %v2691 = vpop.f32.mrb[0].mxu0
      %v2692 = vadd.f32 %v2628, %v2691
      %v2693 = vpop.f32.mrb[0].mxu0
      %v2694 = vpop.f32.mrb[0].mxu0
      %v2695 = vadd.f32 %v2631, %v2694
      %v2696 = vpop.f32.mrb[0].mxu0
      %2697 = vmatprep.mubr.bf16.mxu0 %v1052
      %2698 = vmatmul.mubr.bf16.gmra.mrb[0].mxu0 %v1051
      %v2699 = vpop.f32.mrb[0].mxu0
      %v2700 = vadd.f32 %v2636, %v2699
      %v2701 = vpop.f32.mrb[0].mxu0
      %v2702 = vpop.f32.mrb[0].mxu0
      %v2703 = vadd.f32 %v2639, %v2702
      %v2704 = vpop.f32.mrb[0].mxu0
      %2705 = vmatprep.mubr.bf16.mxu0 %v1077
      %2706 = vmatmul.mubr.bf16.gmra.mrb[0].mxu0 %v1076
      %v2707 = vpop.f32.mrb[0].mxu0
      %v2708 = vadd.f32 %v2644, %v2707
      %v2709 = vpop.f32.mrb[0].mxu0
      %v2710 = vpop.f32.mrb[0].mxu0
      %v2711 = vpop.f32.mrb[0].mxu0
      %2712 = vdwg.mxu0
      %2713 = vmatprep.subr.bf16.mxu0 0
      %2714 = vmatpush1.bf16.msra.mxu0 %v2073
      %2715 = vmatprep.subr.bf16.mxu0 0
      %2716 = vmatpush1.bf16.msra.mxu0 %v2074
      %2717 = vmatprep.subr.bf16.mxu0 0
      %2718 = vmatpush1.bf16.msra.mxu0 %v2075
      %2719 = vmatprep.subr.bf16.mxu0 0
      %2720 = vmatpush1.bf16.msra.mxu0 %v2076
      %2721 = vmatprep.subr.bf16.mxu0 0
      %2722 = vmatpush1.bf16.msra.mxu0 %v2077
      %2723 = vmatprep.subr.bf16.mxu0 0
      %2724 = vmatpush1.bf16.msra.mxu0 %v2078
      %2725 = vmatprep.subr.bf16.mxu0 0
      %2726 = vmatpush1.bf16.msra.mxu0 %v2079
      %2727 = vmatprep.subr.bf16.mxu0 0
      %2728 = vmatpush1.bf16.msra.mxu0 %v2080
      %2729 = vmatprep.subr.bf16.mxu0 0
      %2730 = vmatpush1.bf16.msra.mxu0 %v2081
      %2731 = vmatprep.subr.bf16.mxu0 0
      %2732 = vmatpush1.bf16.msra.mxu0 %v2082
      %2733 = vmatprep.subr.bf16.mxu0 0
      %2734 = vmatpush1.bf16.msra.mxu0 %v2083
      %2735 = vmatprep.subr.bf16.mxu0 0
      %2736 = vmatpush1.bf16.msra.mxu0 %v2084
      %2737 = vmatprep.subr.bf16.mxu0 0
      %2738 = vmatpush1.bf16.msra.mxu0 %v2085
      %2739 = vmatprep.subr.bf16.mxu0 0
      %2740 = vmatpush1.bf16.msra.mxu0 %v2086
      %2741 = vmatprep.subr.bf16.mxu0 0
      %2742 = vmatpush1.bf16.msra.mxu0 %v2087
      %2743 = vmatprep.subr.bf16.mxu0 0
      %2744 = vmatpush1.bf16.msra.mxu0 %v2088
      %2745 = vmatprep.mubr.bf16.mxu0 %v1004
      %2746 = vmatmul.mubr.bf16.gmra.mrb[0].mxu0 %v1003
      %v2747 = vpop.f32.mrb[0].mxu0
      %v2748 = vadd.f32 %v2684, %v2747
      %v2749 = vpop.f32.mrb[0].mxu0
      %v2750 = vpop.f32.mrb[0].mxu0
      %v2751 = vadd.f32 %v2687, %v2750
      %v2752 = vpop.f32.mrb[0].mxu0
      %2753 = vmatprep.mubr.bf16.mxu0 %v1029
      %2754 = vmatmul.mubr.bf16.gmra.mrb[0].mxu0 %v1028
      %v2755 = vpop.f32.mrb[0].mxu0
      %v2756 = vadd.f32 %v2692, %v2755
      %v2757 = vpop.f32.mrb[0].mxu0
      %v2758 = vpop.f32.mrb[0].mxu0
      %v2759 = vadd.f32 %v2695, %v2758
      %v2760 = vpop.f32.mrb[0].mxu0
      %2761 = vmatprep.mubr.bf16.mxu0 %v1054
      %2762 = vmatmul.mubr.bf16.gmra.mrb[0].mxu0 %v1053
      %v2763 = vpop.f32.mrb[0].mxu0
      %v2764 = vadd.f32 %v2700, %v2763
      %v2765 = vpop.f32.mrb[0].mxu0
      %v2766 = vpop.f32.mrb[0].mxu0
      %v2767 = vadd.f32 %v2703, %v2766
      %v2768 = vpop.f32.mrb[0].mxu0
      %2769 = vmatprep.mubr.bf16.mxu0 %v1079
      %2770 = vmatmul.mubr.bf16.gmra.mrb[0].mxu0 %v1078
      %v2771 = vpop.f32.mrb[0].mxu0
      %v2772 = vadd.f32 %v2708, %v2771
      %v2773 = vpop.f32.mrb[0].mxu0
      %v2774 = vpop.f32.mrb[0].mxu0
      %v2775 = vpop.f32.mrb[0].mxu0
      %2776 = vdwg.mxu0
      %2777 = vmatprep.subr.bf16.mxu0 0
      %2778 = vmatpush1.bf16.msra.mxu0 %v2089
      %2779 = vmatprep.subr.bf16.mxu0 0
      %2780 = vmatpush1.bf16.msra.mxu0 %v2090
      %2781 = vmatprep.subr.bf16.mxu0 0
      %2782 = vmatpush1.bf16.msra.mxu0 %v2091
      %2783 = vmatprep.subr.bf16.mxu0 0
      %2784 = vmatpush1.bf16.msra.mxu0 %v2092
      %2785 = vmatprep.subr.bf16.mxu0 0
      %2786 = vmatpush1.bf16.msra.mxu0 %v2093
      %2787 = vmatprep.subr.bf16.mxu0 0
      %2788 = vmatpush1.bf16.msra.mxu0 %v2094
      %2789 = vmatprep.subr.bf16.mxu0 0
      %2790 = vmatpush1.bf16.msra.mxu0 %v2095
      %2791 = vmatprep.subr.bf16.mxu0 0
      %2792 = vmatpush1.bf16.msra.mxu0 %v2096
      %2793 = vmatprep.subr.bf16.mxu0 0
      %2794 = vmatpush1.bf16.msra.mxu0 %v2097
      %2795 = vmatprep.subr.bf16.mxu0 0
      %2796 = vmatpush1.bf16.msra.mxu0 %v2098
      %2797 = vmatprep.subr.bf16.mxu0 0
      %2798 = vmatpush1.bf16.msra.mxu0 %v2099
      %2799 = vmatprep.subr.bf16.mxu0 0
      %2800 = vmatpush1.bf16.msra.mxu0 %v2100
      %2801 = vmatprep.subr.bf16.mxu0 0
      %2802 = vmatpush1.bf16.msra.mxu0 %v2101
      %2803 = vmatprep.subr.bf16.mxu0 0
      %2804 = vmatpush1.bf16.msra.mxu0 %v2102
      %2805 = vmatprep.subr.bf16.mxu0 0
      %2806 = vmatpush1.bf16.msra.mxu0 %v2103
      %2807 = vmatprep.subr.bf16.mxu0 0
      %2808 = vmatpush1.bf16.msra.mxu0 %v2104
      %2809 = vmatprep.mubr.bf16.mxu0 %v1006
      %2810 = vmatmul.mubr.bf16.gmra.mrb[0].mxu0 %v1005
      %v2811 = vpop.f32.mrb[0].mxu0
      %v2812 = vadd.f32 %v2748, %v2811
      %v2813 = vpop.f32.mrb[0].mxu0
      %v2814 = vpop.f32.mrb[0].mxu0
      %v2815 = vadd.f32 %v2751, %v2814
      %v2816 = vpop.f32.mrb[0].mxu0
      %2817 = vmatprep.mubr.bf16.mxu0 %v1031
      %2818 = vmatmul.mubr.bf16.gmra.mrb[0].mxu0 %v1030
      %v2819 = vpop.f32.mrb[0].mxu0
      %v2820 = vadd.f32 %v2756, %v2819
      %v2821 = vpop.f32.mrb[0].mxu0
      %v2822 = vpop.f32.mrb[0].mxu0
      %v2823 = vadd.f32 %v2759, %v2822
      %v2824 = vpop.f32.mrb[0].mxu0
      %2825 = vmatprep.mubr.bf16.mxu0 %v1056
      %2826 = vmatmul.mubr.bf16.gmra.mrb[0].mxu0 %v1055
      %v2827 = vpop.f32.mrb[0].mxu0
      %v2828 = vadd.f32 %v2764, %v2827
      %v2829 = vpop.f32.mrb[0].mxu0
      %v2830 = vpop.f32.mrb[0].mxu0
      %v2831 = vadd.f32 %v2767, %v2830
      %v2832 = vpop.f32.mrb[0].mxu0
      %2833 = vmatprep.mubr.bf16.mxu0 %v1081
      %2834 = vmatmul.mubr.bf16.gmra.mrb[0].mxu0 %v1080
      %v2835 = vpop.f32.mrb[0].mxu0
      %v2836 = vadd.f32 %v2772, %v2835
      %v2837 = vpop.f32.mrb[0].mxu0
      %v2838 = vpop.f32.mrb[0].mxu0
      %v2839 = vpop.f32.mrb[0].mxu0
      %2840 = vdwg.mxu0
      %2841 = vmatprep.subr.bf16.mxu0 0
      %2842 = vmatpush1.bf16.msra.mxu0 %v2105
      %2843 = vmatprep.subr.bf16.mxu0 0
      %2844 = vmatpush1.bf16.msra.mxu0 %v2106
      %2845 = vmatprep.subr.bf16.mxu0 0
      %2846 = vmatpush1.bf16.msra.mxu0 %v2107
      %2847 = vmatprep.subr.bf16.mxu0 0
      %2848 = vmatpush1.bf16.msra.mxu0 %v2108
      %2849 = vmatprep.subr.bf16.mxu0 0
      %2850 = vmatpush1.bf16.msra.mxu0 %v2109
      %2851 = vmatprep.subr.bf16.mxu0 0
      %2852 = vmatpush1.bf16.msra.mxu0 %v2110
      %2853 = vmatprep.subr.bf16.mxu0 0
      %2854 = vmatpush1.bf16.msra.mxu0 %v2111
      %2855 = vmatprep.subr.bf16.mxu0 0
      %2856 = vmatpush1.bf16.msra.mxu0 %v2112
      %2857 = vmatprep.subr.bf16.mxu0 0
      %2858 = vmatpush1.bf16.msra.mxu0 %v2113
      %2859 = vmatprep.subr.bf16.mxu0 0
      %2860 = vmatpush1.bf16.msra.mxu0 %v2114
      %2861 = vmatprep.subr.bf16.mxu0 0
      %2862 = vmatpush1.bf16.msra.mxu0 %v2115
      %2863 = vmatprep.subr.bf16.mxu0 0
      %2864 = vmatpush1.bf16.msra.mxu0 %v2116
      %2865 = vmatprep.subr.bf16.mxu0 0
      %2866 = vmatpush1.bf16.msra.mxu0 %v2117
      %2867 = vmatprep.subr.bf16.mxu0 0
      %2868 = vmatpush1.bf16.msra.mxu0 %v2118
      %2869 = vmatprep.subr.bf16.mxu0 0
      %2870 = vmatpush1.bf16.msra.mxu0 %v2119
      %2871 = vmatprep.subr.bf16.mxu0 0
      %2872 = vmatpush1.bf16.msra.mxu0 %v2120
      %2873 = vmatprep.mubr.bf16.mxu0 %v1008
      %2874 = vmatmul.mubr.bf16.gmra.mrb[0].mxu0 %v1007
      %v2875 = vpop.f32.mrb[0].mxu0
      %v2876 = vadd.f32 %v2812, %v2875
      %v2877 = vpop.f32.mrb[0].mxu0
      %v2878 = vpop.f32.mrb[0].mxu0
      %v2879 = vadd.f32 %v2815, %v2878
      %v2880 = vpop.f32.mrb[0].mxu0
      %2881 = vmatprep.mubr.bf16.mxu0 %v1033
      %2882 = vmatmul.mubr.bf16.gmra.mrb[0].mxu0 %v1032
      %v2883 = vpop.f32.mrb[0].mxu0
      %v2884 = vadd.f32 %v2820, %v2883
      %v2885 = vpop.f32.mrb[0].mxu0
      %v2886 = vpop.f32.mrb[0].mxu0
      %v2887 = vadd.f32 %v2823, %v2886
      %v2888 = vpop.f32.mrb[0].mxu0
      %2889 = vmatprep.mubr.bf16.mxu0 %v1058
      %2890 = vmatmul.mubr.bf16.gmra.mrb[0].mxu0 %v1057
      %v2891 = vpop.f32.mrb[0].mxu0
      %v2892 = vadd.f32 %v2828, %v2891
      %v2893 = vpop.f32.mrb[0].mxu0
      %v2894 = vpop.f32.mrb[0].mxu0
      %v2895 = vadd.f32 %v2831, %v2894
      %v2896 = vpop.f32.mrb[0].mxu0
      %2897 = vmatprep.mubr.bf16.mxu0 %v1083
      %2898 = vmatmul.mubr.bf16.gmra.mrb[0].mxu0 %v1082
      %v2899 = vpop.f32.mrb[0].mxu0
      %v2900 = vadd.f32 %v2836, %v2899
      %v2901 = vpop.f32.mrb[0].mxu0
      %v2902 = vpop.f32.mrb[0].mxu0
      %v2903 = vpop.f32.mrb[0].mxu0
      %2904 = vdwg.mxu0
      %2905 = vmatprep.subr.bf16.mxu0 0
      %2906 = vmatpush1.bf16.msra.mxu0 %v2121
      %2907 = vmatprep.subr.bf16.mxu0 0
      %2908 = vmatpush1.bf16.msra.mxu0 %v2122
      %2909 = vmatprep.subr.bf16.mxu0 0
      %2910 = vmatpush1.bf16.msra.mxu0 %v2123
      %2911 = vmatprep.subr.bf16.mxu0 0
      %2912 = vmatpush1.bf16.msra.mxu0 %v2124
      %2913 = vmatprep.subr.bf16.mxu0 0
      %2914 = vmatpush1.bf16.msra.mxu0 %v2125
      %2915 = vmatprep.subr.bf16.mxu0 0
      %2916 = vmatpush1.bf16.msra.mxu0 %v2126
      %2917 = vmatprep.subr.bf16.mxu0 0
      %2918 = vmatpush1.bf16.msra.mxu0 %v2127
      %2919 = vmatprep.subr.bf16.mxu0 0
      %2920 = vmatpush1.bf16.msra.mxu0 %v2128
      %2921 = vmatprep.subr.bf16.mxu0 0
      %2922 = vmatpush1.bf16.msra.mxu0 %v2129
      %2923 = vmatprep.subr.bf16.mxu0 0
      %2924 = vmatpush1.bf16.msra.mxu0 %v2130
      %2925 = vmatprep.subr.bf16.mxu0 0
      %2926 = vmatpush1.bf16.msra.mxu0 %v2131
      %2927 = vmatprep.subr.bf16.mxu0 0
      %2928 = vmatpush1.bf16.msra.mxu0 %v2132
      %2929 = vmatprep.subr.bf16.mxu0 0
      %2930 = vmatpush1.bf16.msra.mxu0 %v2133
      %2931 = vmatprep.subr.bf16.mxu0 0
      %2932 = vmatpush1.bf16.msra.mxu0 %v2134
      %2933 = vmatprep.subr.bf16.mxu0 0
      %2934 = vmatpush1.bf16.msra.mxu0 %v2135
      %2935 = vmatprep.subr.bf16.mxu0 0
      %2936 = vmatpush1.bf16.msra.mxu0 %v2136
      %2937 = vmatprep.mubr.bf16.mxu0 %v1010
      %2938 = vmatmul.mubr.bf16.gmra.mrb[0].mxu0 %v1009
      %v2939 = vpop.f32.mrb[0].mxu0
      %v2940 = vadd.f32 %v2876, %v2939
      %v2941 = vpop.f32.mrb[0].mxu0
      %v2942 = vpop.f32.mrb[0].mxu0
      %v2943 = vadd.f32 %v2879, %v2942
      %v2944 = vpop.f32.mrb[0].mxu0
      %2945 = vmatprep.mubr.bf16.mxu0 %v1035
      %2946 = vmatmul.mubr.bf16.gmra.mrb[0].mxu0 %v1034
      %v2947 = vpop.f32.mrb[0].mxu0
      %v2948 = vadd.f32 %v2884, %v2947
      %v2949 = vpop.f32.mrb[0].mxu0
      %v2950 = vpop.f32.mrb[0].mxu0
      %v2951 = vadd.f32 %v2887, %v2950
      %v2952 = vpop.f32.mrb[0].mxu0
      %2953 = vmatprep.mubr.bf16.mxu0 %v1060
      %2954 = vmatmul.mubr.bf16.gmra.mrb[0].mxu0 %v1059
      %v2955 = vpop.f32.mrb[0].mxu0
      %v2956 = vadd.f32 %v2892, %v2955
      %v2957 = vpop.f32.mrb[0].mxu0
      %v2958 = vpop.f32.mrb[0].mxu0
      %v2959 = vadd.f32 %v2895, %v2958
      %v2960 = vpop.f32.mrb[0].mxu0
      %2961 = vmatprep.mubr.bf16.mxu0 %v1085
      %2962 = vmatmul.mubr.bf16.gmra.mrb[0].mxu0 %v1084
      %v2963 = vpop.f32.mrb[0].mxu0
      %v2964 = vadd.f32 %v2900, %v2963
      %v2965 = vpop.f32.mrb[0].mxu0
      %v2966 = vpop.f32.mrb[0].mxu0
      %v2967 = vpop.f32.mrb[0].mxu0
      %2968 = vdwg.mxu0
      %2969 = vmatprep.subr.bf16.mxu0 0
      %2970 = vmatpush1.bf16.msra.mxu0 %v2137
      %2971 = vmatprep.subr.bf16.mxu0 0
      %2972 = vmatpush1.bf16.msra.mxu0 %v2138
      %2973 = vmatprep.subr.bf16.mxu0 0
      %2974 = vmatpush1.bf16.msra.mxu0 %v2139
      %2975 = vmatprep.subr.bf16.mxu0 0
      %2976 = vmatpush1.bf16.msra.mxu0 %v2140
      %2977 = vmatprep.subr.bf16.mxu0 0
      %2978 = vmatpush1.bf16.msra.mxu0 %v2141
      %2979 = vmatprep.subr.bf16.mxu0 0
      %2980 = vmatpush1.bf16.msra.mxu0 %v2142
      %2981 = vmatprep.subr.bf16.mxu0 0
      %2982 = vmatpush1.bf16.msra.mxu0 %v2143
      %2983 = vmatprep.subr.bf16.mxu0 0
      %2984 = vmatpush1.bf16.msra.mxu0 %v2144
      %2985 = vmatprep.subr.bf16.mxu0 0
      %2986 = vmatpush1.bf16.msra.mxu0 %v2145
      %2987 = vmatprep.subr.bf16.mxu0 0
      %2988 = vmatpush1.bf16.msra.mxu0 %v2146
      %2989 = vmatprep.subr.bf16.mxu0 0
      %2990 = vmatpush1.bf16.msra.mxu0 %v2147
      %2991 = vmatprep.subr.bf16.mxu0 0
      %2992 = vmatpush1.bf16.msra.mxu0 %v2148
      %2993 = vmatprep.subr.bf16.mxu0 0
      %2994 = vmatpush1.bf16.msra.mxu0 %v2149
      %2995 = vmatprep.subr.bf16.mxu0 0
      %2996 = vmatpush1.bf16.msra.mxu0 %v2150
      %2997 = vmatprep.subr.bf16.mxu0 0
      %2998 = vmatpush1.bf16.msra.mxu0 %v2151
      %2999 = vmatprep.subr.bf16.mxu0 0
      %3000 = vmatpush1.bf16.msra.mxu0 %v2152
      %3001 = vmatprep.mubr.bf16.mxu0 %v1012
      %3002 = vmatmul.mubr.bf16.gmra.mrb[0].mxu0 %v1011
      %v3003 = vpop.f32.mrb[0].mxu0
      %v3004 = vadd.f32 %v2940, %v3003
      %v3005 = vpop.f32.mrb[0].mxu0
      %v3006 = vpop.f32.mrb[0].mxu0
      %v3007 = vadd.f32 %v2943, %v3006
      %v3008 = vpop.f32.mrb[0].mxu0
      %3009 = vmatprep.mubr.bf16.mxu0 %v1037
      %3010 = vmatmul.mubr.bf16.gmra.mrb[0].mxu0 %v1036
      %v3011 = vpop.f32.mrb[0].mxu0
      %v3012 = vadd.f32 %v2948, %v3011
      %v3013 = vpop.f32.mrb[0].mxu0
      %v3014 = vpop.f32.mrb[0].mxu0
      %v3015 = vadd.f32 %v2951, %v3014
      %v3016 = vpop.f32.mrb[0].mxu0
      %3017 = vmatprep.mubr.bf16.mxu0 %v1062
      %3018 = vmatmul.mubr.bf16.gmra.mrb[0].mxu0 %v1061
      %v3019 = vpop.f32.mrb[0].mxu0
      %v3020 = vadd.f32 %v2956, %v3019
      %v3021 = vpop.f32.mrb[0].mxu0
      %v3022 = vpop.f32.mrb[0].mxu0
      %v3023 = vadd.f32 %v2959, %v3022
      %v3024 = vpop.f32.mrb[0].mxu0
      %3025 = vmatprep.mubr.bf16.mxu0 %v1087
      %3026 = vmatmul.mubr.bf16.gmra.mrb[0].mxu0 %v1086
      %v3027 = vpop.f32.mrb[0].mxu0
      %v3028 = vadd.f32 %v2964, %v3027
      %v3029 = vpop.f32.mrb[0].mxu0
      %v3030 = vpop.f32.mrb[0].mxu0
      %v3031 = vpop.f32.mrb[0].mxu0
      %3032 = vdwg.mxu0
      %3033 = vmatprep.subr.bf16.mxu0 0
      %3034 = vmatpush1.bf16.msra.mxu0 %v2153
      %3035 = vmatprep.subr.bf16.mxu0 0
      %3036 = vmatpush1.bf16.msra.mxu0 %v2154
      %3037 = vmatprep.subr.bf16.mxu0 0
      %3038 = vmatpush1.bf16.msra.mxu0 %v2155
      %3039 = vmatprep.subr.bf16.mxu0 0
      %3040 = vmatpush1.bf16.msra.mxu0 %v2156
      %3041 = vmatprep.subr.bf16.mxu0 0
      %3042 = vmatpush1.bf16.msra.mxu0 %v2157
      %3043 = vmatprep.subr.bf16.mxu0 0
      %3044 = vmatpush1.bf16.msra.mxu0 %v2158
      %3045 = vmatprep.subr.bf16.mxu0 0
      %3046 = vmatpush1.bf16.msra.mxu0 %v2159
      %3047 = vmatprep.subr.bf16.mxu0 0
      %3048 = vmatpush1.bf16.msra.mxu0 %v2160
      %3049 = vmatprep.subr.bf16.mxu0 0
      %3050 = vmatpush1.bf16.msra.mxu0 %v2161
      %3051 = vmatprep.subr.bf16.mxu0 0
      %3052 = vmatpush1.bf16.msra.mxu0 %v2162
      %3053 = vmatprep.subr.bf16.mxu0 0
      %3054 = vmatpush1.bf16.msra.mxu0 %v2163
      %3055 = vmatprep.subr.bf16.mxu0 0
      %3056 = vmatpush1.bf16.msra.mxu0 %v2164
      %3057 = vmatprep.subr.bf16.mxu0 0
      %3058 = vmatpush1.bf16.msra.mxu0 %v2165
      %3059 = vmatprep.subr.bf16.mxu0 0
      %3060 = vmatpush1.bf16.msra.mxu0 %v2166
      %3061 = vmatprep.subr.bf16.mxu0 0
      %3062 = vmatpush1.bf16.msra.mxu0 %v2167
      %3063 = vmatprep.subr.bf16.mxu0 0
      %3064 = vmatpush1.bf16.msra.mxu0 %v2168
      %3065 = vmatprep.mubr.bf16.mxu0 %v1014
      %3066 = vmatmul.mubr.bf16.gmra.mrb[0].mxu0 %v1013
      %v3067 = vpop.f32.mrb[0].mxu0
      %v3068 = vadd.f32 %v3004, %v3067
      %v3069 = vpop.f32.mrb[0].mxu0
      %v3070 = vpop.f32.mrb[0].mxu0
      %v3071 = vadd.f32 %v3007, %v3070
      %v3072 = vpop.f32.mrb[0].mxu0
      %3073 = vmatprep.mubr.bf16.mxu0 %v1039
      %3074 = vmatmul.mubr.bf16.gmra.mrb[0].mxu0 %v1038
      %v3075 = vpop.f32.mrb[0].mxu0
      %v3076 = vadd.f32 %v3012, %v3075
      %v3077 = vpop.f32.mrb[0].mxu0
      %v3078 = vpop.f32.mrb[0].mxu0
      %v3079 = vadd.f32 %v3015, %v3078
      %v3080 = vpop.f32.mrb[0].mxu0
      %3081 = vmatprep.mubr.bf16.mxu0 %v1064
      %3082 = vmatmul.mubr.bf16.gmra.mrb[0].mxu0 %v1063
      %v3083 = vpop.f32.mrb[0].mxu0
      %v3084 = vadd.f32 %v3020, %v3083
      %v3085 = vpop.f32.mrb[0].mxu0
      %v3086 = vpop.f32.mrb[0].mxu0
      %v3087 = vadd.f32 %v3023, %v3086
      %v3088 = vpop.f32.mrb[0].mxu0
      %3089 = vmatprep.mubr.bf16.mxu0 %v1089
      %3090 = vmatmul.mubr.bf16.gmra.mrb[0].mxu0 %v1088
      %v3091 = vpop.f32.mrb[0].mxu0
      %v3092 = vadd.f32 %v3028, %v3091
      %v3093 = vpop.f32.mrb[0].mxu0
      %v3094 = vpop.f32.mrb[0].mxu0
      %v3095 = vpop.f32.mrb[0].mxu0
      %3096 = vdwg.mxu0
      %3097 = vmatprep.subr.bf16.mxu0 0
      %3098 = vmatpush1.bf16.msra.mxu0 %v2169
      %3099 = vmatprep.subr.bf16.mxu0 0
      %3100 = vmatpush1.bf16.msra.mxu0 %v2170
      %3101 = vmatprep.subr.bf16.mxu0 0
      %3102 = vmatpush1.bf16.msra.mxu0 %v2171
      %3103 = vmatprep.subr.bf16.mxu0 0
      %3104 = vmatpush1.bf16.msra.mxu0 %v2172
      %3105 = vmatprep.subr.bf16.mxu0 0
      %3106 = vmatpush1.bf16.msra.mxu0 %v2173
      %3107 = vmatprep.subr.bf16.mxu0 0
      %3108 = vmatpush1.bf16.msra.mxu0 %v2174
      %3109 = vmatprep.subr.bf16.mxu0 0
      %3110 = vmatpush1.bf16.msra.mxu0 %v2175
      %3111 = vmatprep.subr.bf16.mxu0 0
      %3112 = vmatpush1.bf16.msra.mxu0 %v2176
      %3113 = vmatprep.subr.bf16.mxu0 0
      %3114 = vmatpush1.bf16.msra.mxu0 %v2177
      %3115 = vmatprep.subr.bf16.mxu0 0
      %3116 = vmatpush1.bf16.msra.mxu0 %v2178
      %3117 = vmatprep.subr.bf16.mxu0 0
      %3118 = vmatpush1.bf16.msra.mxu0 %v2179
      %3119 = vmatprep.subr.bf16.mxu0 0
      %3120 = vmatpush1.bf16.msra.mxu0 %v2180
      %3121 = vmatprep.subr.bf16.mxu0 0
      %3122 = vmatpush1.bf16.msra.mxu0 %v2181
      %3123 = vmatprep.subr.bf16.mxu0 0
      %3124 = vmatpush1.bf16.msra.mxu0 %v2182
      %3125 = vmatprep.subr.bf16.mxu0 0
      %3126 = vmatpush1.bf16.msra.mxu0 %v2183
      %3127 = vmatprep.subr.bf16.mxu0 0
      %3128 = vmatpush1.bf16.msra.mxu0 %v2184
      %3129 = vmatprep.mubr.bf16.mxu0 %v1016
      %3130 = vmatmul.mubr.bf16.gmra.mrb[0].mxu0 %v1015
      %v3131 = vpop.f32.mrb[0].mxu0
      %v3132 = vadd.f32 %v3068, %v3131
      %v3133 = vpop.f32.mrb[0].mxu0
      %v3134 = vpop.f32.mrb[0].mxu0
      %v3135 = vadd.f32 %v3071, %v3134
      %v3136 = vpop.f32.mrb[0].mxu0
      %3137 = vmatprep.mubr.bf16.mxu0 %v1041
      %3138 = vmatmul.mubr.bf16.gmra.mrb[0].mxu0 %v1040
      %v3139 = vpop.f32.mrb[0].mxu0
      %v3140 = vadd.f32 %v3076, %v3139
      %v3141 = vpop.f32.mrb[0].mxu0
      %v3142 = vpop.f32.mrb[0].mxu0
      %v3143 = vadd.f32 %v3079, %v3142
      %v3144 = vpop.f32.mrb[0].mxu0
      %3145 = vmatprep.mubr.bf16.mxu0 %v1066
      %3146 = vmatmul.mubr.bf16.gmra.mrb[0].mxu0 %v1065
      %v3147 = vpop.f32.mrb[0].mxu0
      %v3148 = vadd.f32 %v3084, %v3147
      %v3149 = vpop.f32.mrb[0].mxu0
      %v3150 = vpop.f32.mrb[0].mxu0
      %v3151 = vadd.f32 %v3087, %v3150
      %v3152 = vpop.f32.mrb[0].mxu0
      %3153 = vmatprep.mubr.bf16.mxu0 %v1091
      %3154 = vmatmul.mubr.bf16.gmra.mrb[0].mxu0 %v1090
      %v3155 = vpop.f32.mrb[0].mxu0
      %v3156 = vadd.f32 %v3092, %v3155
      %v3157 = vpop.f32.mrb[0].mxu0
      %v3158 = vpop.f32.mrb[0].mxu0
      %v3159 = vpop.f32.mrb[0].mxu0
      %3160 = vdwg.mxu0
      %3161 = vmatprep.subr.bf16.mxu0 0
      %3162 = vmatpush1.bf16.msra.mxu0 %v2185
      %3163 = vmatprep.subr.bf16.mxu0 0
      %3164 = vmatpush1.bf16.msra.mxu0 %v2186
      %3165 = vmatprep.subr.bf16.mxu0 0
      %3166 = vmatpush1.bf16.msra.mxu0 %v2187
      %3167 = vmatprep.subr.bf16.mxu0 0
      %3168 = vmatpush1.bf16.msra.mxu0 %v2188
      %3169 = vmatprep.subr.bf16.mxu0 0
      %3170 = vmatpush1.bf16.msra.mxu0 %v2189
      %3171 = vmatprep.subr.bf16.mxu0 0
      %3172 = vmatpush1.bf16.msra.mxu0 %v2190
      %3173 = vmatprep.subr.bf16.mxu0 0
      %3174 = vmatpush1.bf16.msra.mxu0 %v2191
      %3175 = vmatprep.subr.bf16.mxu0 0
      %3176 = vmatpush1.bf16.msra.mxu0 %v2192
      %3177 = vmatprep.subr.bf16.mxu0 0
      %3178 = vmatpush1.bf16.msra.mxu0 0
      %3179 = vmatprep.subr.bf16.mxu0 0
      %3180 = vmatpush1.bf16.msra.mxu0 0
      %3181 = vmatprep.subr.bf16.mxu0 0
      %3182 = vmatpush1.bf16.msra.mxu0 0
      %3183 = vmatprep.subr.bf16.mxu0 0
      %3184 = vmatpush1.bf16.msra.mxu0 0
      %3185 = vmatprep.subr.bf16.mxu0 0
      %3186 = vmatpush1.bf16.msra.mxu0 0
      %3187 = vmatprep.subr.bf16.mxu0 0
      %3188 = vmatpush1.bf16.msra.mxu0 0
      %3189 = vmatprep.subr.bf16.mxu0 0
      %3190 = vmatpush1.bf16.msra.mxu0 0
      %3191 = vmatprep.subr.bf16.mxu0 0
      %3192 = vmatpush1.bf16.msra.mxu0 0
      %3193 = vmatprep.mubr.bf16.mxu0 0
      %3194 = vmatmul.mubr.bf16.gmra.mrb[0].mxu0 %v1017
      %v3195 = vpop.f32.mrb[0].mxu0
      %v3196 = vadd.f32 %v3132, %v3195
      %v3197 = vpop.f32.mrb[0].mxu0
      %v3198 = vpop.f32.mrb[0].mxu0
      %v3199 = vadd.f32 %v3135, %v3198
      %v3200 = vpop.f32.mrb[0].mxu0
      %3201 = vmatprep.mubr.bf16.mxu0 0
      %3202 = vmatmul.mubr.bf16.gmra.mrb[0].mxu0 %v1042
      %v3203 = vpop.f32.mrb[0].mxu0
      %v3204 = vadd.f32 %v3140, %v3203
      %v3205 = vpop.f32.mrb[0].mxu0
      %v3206 = vpop.f32.mrb[0].mxu0
      %v3207 = vadd.f32 %v3143, %v3206
      %v3208 = vpop.f32.mrb[0].mxu0
      %3209 = vmatprep.mubr.bf16.mxu0 0
      %3210 = vmatmul.mubr.bf16.gmra.mrb[0].mxu0 %v1067
      %v3211 = vpop.f32.mrb[0].mxu0
      %v3212 = vadd.f32 %v3148, %v3211
      %v3213 = vpop.f32.mrb[0].mxu0
      %v3214 = vpop.f32.mrb[0].mxu0
      %v3215 = vadd.f32 %v3151, %v3214
      %v3216 = vpop.f32.mrb[0].mxu0
      %3217 = vmatprep.mubr.bf16.mxu0 0
      %3218 = vmatmul.mubr.bf16.gmra.mrb[0].mxu0 %v1092
      %v3219 = vpop.f32.mrb[0].mxu0
      %v3220 = vadd.f32 %v3156, %v3219
      %v3221 = vpop.f32.mrb[0].mxu0
      %v3222 = vpop.f32.mrb[0].mxu0
      %v3223 = vpop.f32.mrb[0].mxu0
      %3224 = vdwg.mxu0
      %v3225 = vmax.f32 %v3196, 0.0
      %v3226 = vmax.f32 %v3199, 0.0
      %v3227 = vmax.f32 %v3204, 0.0
      %v3228 = vmax.f32 %v3207, 0.0
      %v3229 = vmax.f32 %v3212, 0.0
      %v3230 = vmax.f32 %v3215, 0.0
      %v3231 = vmax.f32 %v3220, 0.0
      %v3232 = vpack.c.bf16 %v3226, %v3225
      %v3233 = vpack.c.bf16 %v3228, %v3227
      %v3234 = vpack.c.bf16 %v3230, %v3229
      %v3235 = vpack.c.bf16 %v3231, %v3231
      %v3240 = vunpack.c.l.b16 %v3232
      %v3241 = vunpack.c.h.b16 %v3232
      %v3242 = vunpack.c.l.b16 %v3233
      %v3243 = vunpack.c.h.b16 %v3233
      %v3244 = vunpack.c.l.b16 %v3234
      %v3245 = vunpack.c.h.b16 %v3234
      %v3246 = vunpack.c.l.b16 %v3235
      %v3247 = vpack.c.b16 %v3240, %v3240
      %v3248 = vpack.c.b16 %v3241, %v3241
      %v3249 = vpack.c.b16 %v3242, %v3242
      %v3250 = vpack.c.b16 %v3243, %v3243
      %v3251 = vpack.c.b16 %v3244, %v3244
      %v3252 = vpack.c.b16 %v3245, %v3245
      %v3253 = vpack.c.b16 %v3246, %v3246
      %3261 = vst [vmem:[%s226] sm:$0xf] %v3247
      %3262 = vst [vmem:[%s226 + $0x4] sm:$0xf] %v3248
      %3263 = vst [vmem:[%s226 + $0x8] sm:$0xf] %v3249
      %3264 = vst [vmem:[%s226 + $0xc] sm:$0xf] %v3250
      %3265 = vst [vmem:[%s226 + $0x10] sm:$0xf] %v3251
      %3266 = vst [vmem:[%s226 + $0x14] sm:$0xf] %v3252
      %3267 = vst [vmem:[%s226 + $0x18] sm:$0xf] %v3253
      %s3268 = smul.u32 7, %s18
      %p3269 = scmp.lt.s32.totalorder %s3268, 13
      %s3270 = scalar_select %p3269, %s3268, 13
      %p3271 = scmp.lt.s32.totalorder %s19, 0
      %s3272 = scalar_select %p3271, %s19, 0
      %s3273 = sadd.s32 %s3272, %s3270
      %s3274 = smul.addr %s3273, 4
      %s3275 = scalar_lea.vmem %s3, %s3274
      // Predicated region
      $region33: #{_lambda_.4} parent=31 // pred_check
        %p3276 = pneg %p124
      $region34: #{_lambda_.4} parent=31 // pred_check_branch
        %3278 = sbr.rel (%p3276) target = $region36
      $region35: #{_lambda_.4} parent=31 // pred_region
        %s3279 = smul.u32 7, %s18
      $region36: #{_lambda_.4} parent=31 // pred_fallthru
        _
    $region32: #{_lambda_.4} parent=5 // pred_fallthru
      _
    %p3280 = scmp.le.s32.totalorder 2, %s9
    // Predicated region
    $region37: #{_lambda_.4} parent=5 // pred_check
      %p3281 = pneg %p3280
    $region38: #{_lambda_.4} parent=5 // pred_check_branch
      %3283 = sbr.rel (%p3281) target = $region40
    $region39: #{_lambda_.4} parent=5 // pred_region
      %s3284 = ssub.s32 %s9, 2
      // Predicated region
      $region41: #{_lambda_.4} parent=39 // pred_check
        %p3285 = pneg %p130
      $region42: #{_lambda_.4} parent=39 // pred_check_branch
        %3287 = sbr.rel (%p3285) target = $region44
      $region43: #{_lambda_.4} parent=39 // pred_region
        %s3288 = smul.u32 7, %s20
        %p3289 = scmp.lt.s32.totalorder %s3288, 13
        %s3290 = scalar_select %p3289, %s3288, 13
        %p3291 = scmp.lt.s32.totalorder %s21, 0
        %s3292 = scalar_select %p3291, %s21, 0
        %s3293 = sadd.s32 %s3292, %s3290
        %s3294 = smul.addr %s3293, 4
        %s3295 = scalar_lea.vmem %s3, %s3294
      $region44: #{_lambda_.4} parent=39 // pred_fallthru
        _
    $region40: #{_lambda_.4} parent=5 // pred_fallthru
      _
  $region6: #{_lambda_.4} parent=0 // loop_footer
    %s13 = sadd.s32 1, %s9
  $region7: #{_lambda_.4} parent=0 // loop_footer_branch
    %8 = sbr.rel target = $region3
  $region8: #{_lambda_.4} parent=0 // loop_exit
    _

// kernel: _lambda_.5
$region0: #{_lambda_.5}
  #allocation0 [shape = 'u32[]', space=smem, size = 0x4, offset = 0x4, fixed_abs, tag = 'smem constant byte address 0x4 - core index']
  #allocation1 [shape = 'u32[144,128]{1,0:T(1,128)}', space=vmem, size = 0x12000, scoped, tag = 'internal scratch']
  %s0 = inlined_call_operand.vmem [shape: bf16[2,9,1152], index: 0, kind: input, shape index: {}]
  %s1 = inlined_call_operand.vmem [shape: bf16[1152,128], index: 1, kind: input, shape index: {}]
  %s2 = inlined_call_operand.vmem [shape: f32[1,128], index: 2, kind: input, shape index: {}]
  %s3 = inlined_call_operand.vmem [shape: bf16[9,128,128], index: 3, kind: input, shape index: {}]
  %s4 = inlined_call_operand.vmem [shape: f32[1,128], index: 4, kind: input, shape index: {}]
  %s5 = inlined_call_operand.vmem [shape: bf16[128,512], index: 5, kind: input, shape index: {}]
  %s6 = inlined_call_operand.vmem [shape: f32[1,512], index: 6, kind: input, shape index: {}]
  %s7 = inlined_call_operand.vmem [shape: bf16[512,128], index: 7, kind: input, shape index: {}]
  %s8 = inlined_call_operand.vmem [shape: f32[1,128], index: 8, kind: input, shape index: {}]
  %s9 = inlined_call_operand.vmem [shape: f32[2,1,128], index: 9, kind: output, shape index: {}]
  %s10 = sld [smem:[#allocation0]]
  $region69: #{_lambda_.5} parent=0
    _
  %s12 = ssub.s32 1, %s10
  %s13 = scalar_select 0, %s12, %s10
  loop: start=0, step=1, limit=4
  $region2: #{_lambda_.5} parent=0 // loop_pre_header
    _
  $region3: #{_lambda_.5} parent=0 // loop_header
    %s15 = sphi 0, %s19
    %p16 = scmp.ge.s32.totalorder %s15, 4
    %s25 = sphi 0, %s27
    %s28 = sphi 0, %s25
    %s29 = sphi 0, %s28
    %s45 = sphi 0, %s29
    %s49 = sphi 0, %s49
    %s51 = sphi 0, %s49
    %s52 = sphi 0, %s51
    %s66 = sphi 0, %s52
    %s70 = sphi 0, %s70
    %s72 = sphi 0, %s70
    %s73 = sphi 0, %s72
    %s87 = sphi 0, %s73
    %s91 = sphi 0, %s91
    %s93 = sphi 0, %s91
    %s94 = sphi 0, %s93
    %s108 = sphi 0, %s94
    %s112 = sphi 0, %s112
    %s114 = sphi 0, %s112
    %s115 = sphi 0, %s114
    %s129 = sphi 0, %s115
    %s133 = sphi 0, %s133
    %s135 = sphi 0, %s133
    %s136 = sphi 0, %s135
    %s150 = sphi 0, %s136
    %s154 = sphi 0, %s154
    %s156 = sphi 0, %s154
    %s157 = sphi 0, %s156
    %s171 = sphi 0, %s157
    %s175 = sphi 0, %s175
    %s177 = sphi 0, %s175
    %s178 = sphi 0, %s177
    %s192 = sphi 0, %s178
    %s196 = sphi 0, %s196
    %s198 = sphi 0, %s196
    %s199 = sphi 0, %s198
    %s213 = sphi 0, %s199
    %s219 = sphi 0, %s221
    %s222 = sphi 0, %s219
    %s223 = sphi 0, %s222
    %s239 = sphi 0, %s223
  $region4: #{_lambda_.5} parent=0 // loop_header_branch
    %18 = sbr.rel (%p16) target = $region8
  $region5: #{_lambda_.5} parent=0 // loop_body
    %s20 = ssub.s32 %s15, 1
    %s21 = ssub.s32 %s15, 2
    %s22 = sadd.s32 %s15, 1
    %s23 = ssub.s32 %s15, %s22
    %p24 = scmp.eq.s32.totalorder %s23, 0
    %s26 = sadd.s32 %s25, 1
    %s27 = scalar_select %p24, %s25, %s26
    %p30 = pneg %p24
    %p31 = scmp.eq.s32.totalorder %s15, 1
    %p32 = por %p30, %p31
    %p33 = scmp.ne.s32.totalorder %s25, %s28
    %p34 = scmp.eq.s32.totalorder %s15, 0
    %p35 = por %p33, %p34
    %p36 = scmp.ne.s32.totalorder %s25, %s28
    %p37 = scmp.eq.s32.totalorder %s20, 1
    %p38 = por %p36, %p37
    %p39 = scmp.ne.s32.totalorder %s28, %s29
    %p40 = scmp.eq.s32.totalorder %s20, 0
    %p41 = por %p39, %p40
    %p42 = scmp.ne.s32.totalorder %s28, %s29
    %p43 = scmp.eq.s32.totalorder %s21, 1
    %p44 = por %p42, %p43
    %p46 = scmp.ne.s32.totalorder %s29, %s45
    %p47 = scmp.eq.s32.totalorder %s21, 0
    %p48 = por %p46, %p47
    %s50 = sadd.s32 %s49, 1
    %p53 = scmp.eq.s32.totalorder %s15, 1
    %p54 = scmp.ne.s32.totalorder %s49, %s51
    %p55 = scmp.eq.s32.totalorder %s15, 0
    %p56 = por %p54, %p55
    %p57 = scmp.ne.s32.totalorder %s49, %s51
    %p58 = scmp.eq.s32.totalorder %s20, 1
    %p59 = por %p57, %p58
    %p60 = scmp.ne.s32.totalorder %s51, %s52
    %p61 = scmp.eq.s32.totalorder %s20, 0
    %p62 = por %p60, %p61
    %p63 = scmp.ne.s32.totalorder %s51, %s52
    %p64 = scmp.eq.s32.totalorder %s21, 1
    %p65 = por %p63, %p64
    %p67 = scmp.ne.s32.totalorder %s52, %s66
    %p68 = scmp.eq.s32.totalorder %s21, 0
    %p69 = por %p67, %p68
    %s71 = sadd.s32 %s70, 1
    %p74 = scmp.eq.s32.totalorder %s15, 1
    %p75 = scmp.ne.s32.totalorder %s70, %s72
    %p76 = scmp.eq.s32.totalorder %s15, 0
    %p77 = por %p75, %p76
    %p78 = scmp.ne.s32.totalorder %s70, %s72
    %p79 = scmp.eq.s32.totalorder %s20, 1
    %p80 = por %p78, %p79
    %p81 = scmp.ne.s32.totalorder %s72, %s73
    %p82 = scmp.eq.s32.totalorder %s20, 0
    %p83 = por %p81, %p82
    %p84 = scmp.ne.s32.totalorder %s72, %s73
    %p85 = scmp.eq.s32.totalorder %s21, 1
    %p86 = por %p84, %p85
    %p88 = scmp.ne.s32.totalorder %s73, %s87
    %p89 = scmp.eq.s32.totalorder %s21, 0
    %p90 = por %p88, %p89
    %s92 = sadd.s32 %s91, 1
    %p95 = scmp.eq.s32.totalorder %s15, 1
    %p96 = scmp.ne.s32.totalorder %s91, %s93
    %p97 = scmp.eq.s32.totalorder %s15, 0
    %p98 = por %p96, %p97
    %p99 = scmp.ne.s32.totalorder %s91, %s93
    %p100 = scmp.eq.s32.totalorder %s20, 1
    %p101 = por %p99, %p100
    %p102 = scmp.ne.s32.totalorder %s93, %s94
    %p103 = scmp.eq.s32.totalorder %s20, 0
    %p104 = por %p102, %p103
    %p105 = scmp.ne.s32.totalorder %s93, %s94
    %p106 = scmp.eq.s32.totalorder %s21, 1
    %p107 = por %p105, %p106
    %p109 = scmp.ne.s32.totalorder %s94, %s108
    %p110 = scmp.eq.s32.totalorder %s21, 0
    %p111 = por %p109, %p110
    %s113 = sadd.s32 %s112, 1
    %p116 = scmp.eq.s32.totalorder %s15, 1
    %p117 = scmp.ne.s32.totalorder %s112, %s114
    %p118 = scmp.eq.s32.totalorder %s15, 0
    %p119 = por %p117, %p118
    %p120 = scmp.ne.s32.totalorder %s112, %s114
    %p121 = scmp.eq.s32.totalorder %s20, 1
    %p122 = por %p120, %p121
    %p123 = scmp.ne.s32.totalorder %s114, %s115
    %p124 = scmp.eq.s32.totalorder %s20, 0
    %p125 = por %p123, %p124
    %p126 = scmp.ne.s32.totalorder %s114, %s115
    %p127 = scmp.eq.s32.totalorder %s21, 1
    %p128 = por %p126, %p127
    %p130 = scmp.ne.s32.totalorder %s115, %s129
    %p131 = scmp.eq.s32.totalorder %s21, 0
    %p132 = por %p130, %p131
    %s134 = sadd.s32 %s133, 1
    %p137 = scmp.eq.s32.totalorder %s15, 1
    %p138 = scmp.ne.s32.totalorder %s133, %s135
    %p139 = scmp.eq.s32.totalorder %s15, 0
    %p140 = por %p138, %p139
    %p141 = scmp.ne.s32.totalorder %s133, %s135
    %p142 = scmp.eq.s32.totalorder %s20, 1
    %p143 = por %p141, %p142
    %p144 = scmp.ne.s32.totalorder %s135, %s136
    %p145 = scmp.eq.s32.totalorder %s20, 0
    %p146 = por %p144, %p145
    %p147 = scmp.ne.s32.totalorder %s135, %s136
    %p148 = scmp.eq.s32.totalorder %s21, 1
    %p149 = por %p147, %p148
    %p151 = scmp.ne.s32.totalorder %s136, %s150
    %p152 = scmp.eq.s32.totalorder %s21, 0
    %p153 = por %p151, %p152
    %s155 = sadd.s32 %s154, 1
    %p158 = scmp.eq.s32.totalorder %s15, 1
    %p159 = scmp.ne.s32.totalorder %s154, %s156
    %p160 = scmp.eq.s32.totalorder %s15, 0
    %p161 = por %p159, %p160
    %p162 = scmp.ne.s32.totalorder %s154, %s156
    %p163 = scmp.eq.s32.totalorder %s20, 1
    %p164 = por %p162, %p163
    %p165 = scmp.ne.s32.totalorder %s156, %s157
    %p166 = scmp.eq.s32.totalorder %s20, 0
    %p167 = por %p165, %p166
    %p168 = scmp.ne.s32.totalorder %s156, %s157
    %p169 = scmp.eq.s32.totalorder %s21, 1
    %p170 = por %p168, %p169
    %p172 = scmp.ne.s32.totalorder %s157, %s171
    %p173 = scmp.eq.s32.totalorder %s21, 0
    %p174 = por %p172, %p173
    %s176 = sadd.s32 %s175, 1
    %p179 = scmp.eq.s32.totalorder %s15, 1
    %p180 = scmp.ne.s32.totalorder %s175, %s177
    %p181 = scmp.eq.s32.totalorder %s15, 0
    %p182 = por %p180, %p181
    %p183 = scmp.ne.s32.totalorder %s175, %s177
    %p184 = scmp.eq.s32.totalorder %s20, 1
    %p185 = por %p183, %p184
    %p186 = scmp.ne.s32.totalorder %s177, %s178
    %p187 = scmp.eq.s32.totalorder %s20, 0
    %p188 = por %p186, %p187
    %p189 = scmp.ne.s32.totalorder %s177, %s178
    %p190 = scmp.eq.s32.totalorder %s21, 1
    %p191 = por %p189, %p190
    %p193 = scmp.ne.s32.totalorder %s178, %s192
    %p194 = scmp.eq.s32.totalorder %s21, 0
    %p195 = por %p193, %p194
    %s197 = sadd.s32 %s196, 1
    %p200 = scmp.eq.s32.totalorder %s15, 1
    %p201 = scmp.ne.s32.totalorder %s196, %s198
    %p202 = scmp.eq.s32.totalorder %s15, 0
    %p203 = por %p201, %p202
    %p204 = scmp.ne.s32.totalorder %s196, %s198
    %p205 = scmp.eq.s32.totalorder %s20, 1
    %p206 = por %p204, %p205
    %p207 = scmp.ne.s32.totalorder %s198, %s199
    %p208 = scmp.eq.s32.totalorder %s20, 0
    %p209 = por %p207, %p208
    %p210 = scmp.ne.s32.totalorder %s198, %s199
    %p211 = scmp.eq.s32.totalorder %s21, 1
    %p212 = por %p210, %p211
    %p214 = scmp.ne.s32.totalorder %s199, %s213
    %p215 = scmp.eq.s32.totalorder %s21, 0
    %p216 = por %p214, %p215
    %s217 = ssub.s32 %s15, %s22
    %p218 = scmp.eq.s32.totalorder %s217, 0
    %s220 = sadd.s32 %s219, 1
    %s221 = scalar_select %p218, %s219, %s220
    %p224 = pneg %p218
    %p225 = scmp.eq.s32.totalorder %s15, 1
    %p226 = por %p224, %p225
    %p227 = scmp.ne.s32.totalorder %s219, %s222
    %p228 = scmp.eq.s32.totalorder %s15, 0
    %p229 = por %p227, %p228
    %p230 = scmp.ne.s32.totalorder %s219, %s222
    %p231 = scmp.eq.s32.totalorder %s20, 1
    %p232 = por %p230, %p231
    %p233 = scmp.ne.s32.totalorder %s222, %s223
    %p234 = scmp.eq.s32.totalorder %s20, 0
    %p235 = por %p233, %p234
    %p236 = scmp.ne.s32.totalorder %s222, %s223
    %p237 = scmp.eq.s32.totalorder %s21, 1
    %p238 = por %p236, %p237
    %p240 = scmp.ne.s32.totalorder %s223, %s239
    %p241 = scmp.eq.s32.totalorder %s21, 0
    %p242 = por %p240, %p241
    %p243 = scmp.le.s32.totalorder 1, %s15
    %p244 = scmp.lt.s32.totalorder %s15, 3
    %p245 = pnand %p243, %p244
    %p246 = pneg %p245
    // Predicated region
    $region9: #{_lambda_.5} parent=5 // pred_check
      _
    $region10: #{_lambda_.5} parent=5 // pred_check_branch
      %248 = sbr.rel (%p245) target = $region12
    $region11: #{_lambda_.5} parent=5 // pred_region
      %s249 = ssub.s32 %s15, 1
      // Predicated region
      $region13: #{_lambda_.5} parent=11 // pred_check
        %p250 = pneg %p62
      $region14: #{_lambda_.5} parent=11 // pred_check_branch
        %252 = sbr.rel (%p250) target = $region16
      $region15: #{_lambda_.5} parent=11 // pred_region
        _
      $region16: #{_lambda_.5} parent=11 // pred_fallthru
        _
      // Predicated region
      $region17: #{_lambda_.5} parent=11 // pred_check
        %p253 = pneg %p83
      $region18: #{_lambda_.5} parent=11 // pred_check_branch
        %255 = sbr.rel (%p253) target = $region20
      $region19: #{_lambda_.5} parent=11 // pred_region
        _
      $region20: #{_lambda_.5} parent=11 // pred_fallthru
        _
      // Predicated region
      $region21: #{_lambda_.5} parent=11 // pred_check
        %p256 = pneg %p104
      $region22: #{_lambda_.5} parent=11 // pred_check_branch
        %258 = sbr.rel (%p256) target = $region24
      $region23: #{_lambda_.5} parent=11 // pred_region
        _
      $region24: #{_lambda_.5} parent=11 // pred_fallthru
        _
      // Predicated region
      $region25: #{_lambda_.5} parent=11 // pred_check
        %p259 = pneg %p125
      $region26: #{_lambda_.5} parent=11 // pred_check_branch
        %261 = sbr.rel (%p259) target = $region28
      $region27: #{_lambda_.5} parent=11 // pred_region
        _
      $region28: #{_lambda_.5} parent=11 // pred_fallthru
        _
      // Predicated region
      $region29: #{_lambda_.5} parent=11 // pred_check
        %p262 = pneg %p146
      $region30: #{_lambda_.5} parent=11 // pred_check_branch
        %264 = sbr.rel (%p262) target = $region32
      $region31: #{_lambda_.5} parent=11 // pred_region
        _
      $region32: #{_lambda_.5} parent=11 // pred_fallthru
        _
      // Predicated region
      $region33: #{_lambda_.5} parent=11 // pred_check
        %p265 = pneg %p167
      $region34: #{_lambda_.5} parent=11 // pred_check_branch
        %267 = sbr.rel (%p265) target = $region36
      $region35: #{_lambda_.5} parent=11 // pred_region
        _
      $region36: #{_lambda_.5} parent=11 // pred_fallthru
        _
      // Predicated region
      $region37: #{_lambda_.5} parent=11 // pred_check
        %p268 = pneg %p188
      $region38: #{_lambda_.5} parent=11 // pred_check_branch
        %270 = sbr.rel (%p268) target = $region40
      $region39: #{_lambda_.5} parent=11 // pred_region
        _
      $region40: #{_lambda_.5} parent=11 // pred_fallthru
        _
      // Predicated region
      $region41: #{_lambda_.5} parent=11 // pred_check
        %p271 = pneg %p209
      $region42: #{_lambda_.5} parent=11 // pred_check_branch
        %273 = sbr.rel (%p271) target = $region44
      $region43: #{_lambda_.5} parent=11 // pred_region
        _
      $region44: #{_lambda_.5} parent=11 // pred_fallthru
        _
    $region12: #{_lambda_.5} parent=5 // pred_fallthru
      _
    %p274 = scmp.lt.s32.totalorder %s15, 2
    // Predicated region
    $region45: #{_lambda_.5} parent=5 // pred_check
      %p275 = pneg %p274
    $region46: #{_lambda_.5} parent=5 // pred_check_branch
      %277 = sbr.rel (%p275) target = $region48
    $region47: #{_lambda_.5} parent=5 // pred_region
      // Predicated region
      $region49: #{_lambda_.5} parent=47 // pred_check
        %p278 = pneg %p35
      $region50: #{_lambda_.5} parent=47 // pred_check_branch
        %280 = sbr.rel (%p278) target = $region52
      $region51: #{_lambda_.5} parent=47 // pred_region
        %p281 = scmp.lt.s32.totalorder %s15, 1
        %s282 = scalar_select %p281, %s15, 1
        %s283 = smul.addr %s282, 18
        %s284 = smul.addr %s283, 4
        %s285 = scalar_lea.vmem %s0, %s284
      $region52: #{_lambda_.5} parent=47 // pred_fallthru
        _
    $region48: #{_lambda_.5} parent=5 // pred_fallthru
      _
    %p286 = scmp.le.s32.totalorder 1, %s15
    %p287 = scmp.lt.s32.totalorder %s15, 3
    %p288 = pnand %p286, %p287
    %p289 = pneg %p288
    // Predicated region
    $region53: #{_lambda_.5} parent=5 // pred_check
      _
    $region54: #{_lambda_.5} parent=5 // pred_check_branch
      %291 = sbr.rel (%p288) target = $region56
    $region55: #{_lambda_.5} parent=5 // pred_region
      %s292 = ssub.s32 %s15, 1
      %p293 = scmp.lt.s32.totalorder %s20, 1
      %s294 = scalar_select %p293, %s20, 1
      %s295 = smul.addr %s294, 18
      %s296 = smul.addr %s295, 4
      %s297 = scalar_lea.vmem %s0, %s296
      %p298 = pneg %p41
      %p299 = pneg %p38
      %p300 = pneg %p62
      %p301 = pneg %p59
      %p302 = pneg %p83
      %p303 = pneg %p80
      %p304 = pneg %p104
      %p305 = pneg %p101
      %p306 = pneg %p125
      %p307 = pneg %p122
      %p308 = pneg %p146
      %p309 = pneg %p143
      %p310 = pneg %p167
      %p311 = pneg %p164
      %p312 = pneg %p188
      %p313 = pneg %p185
      %p314 = pneg %p209
      %p315 = pneg %p206
      %p316 = pneg %p235
      %p317 = pneg %p232
      %p318 = scmp.lt.s32.totalorder %s20, 1
      %s319 = scalar_select %p318, %s20, 1
      %s320 = scalar_lea.vmem %s9, %s319
      %p321 = scmp.lt.s32.totalorder %s20, 1
      %s322 = scalar_select %p321, %s20, 1
      %s323 = smul.addr %s322, 18
      %s324 = smul.addr %s323, 4
      %s325 = scalar_lea.vmem %s0, %s324
      %p326 = scmp.lt.s32.totalorder %s20, 1
      %s327 = scalar_select %p326, %s20, 1
      %s328 = scalar_lea.vmem %s9, %s327
      %v330 = vld [vmem:[%s4] sm:$0x1]
      %v331 = vld [vmem:[%s325] sm:$0x11]
      %v332 = vld [vmem:[%s325 + $0x8] sm:$0x11]
      %v333 = vld [vmem:[%s325 + $0x10] sm:$0x11]
      %v334 = vld [vmem:[%s325 + $0x18] sm:$0x11]
      %v335 = vld [vmem:[%s325 + $0x20] sm:$0x1]
      %v336 = vld [vmem:[%s1] sm:$0xf]
      %v337 = vld [vmem:[%s1 + $0x4] sm:$0xf]
      %v338 = vld [vmem:[%s1 + $0x8] sm:$0xf]
      %v339 = vld [vmem:[%s1 + $0xc] sm:$0xf]
      %v340 = vld [vmem:[%s1 + $0x10] sm:$0xf]
      %v341 = vld [vmem:[%s1 + $0x14] sm:$0xf]
      %v342 = vld [vmem:[%s1 + $0x18] sm:$0xf]
      %v343 = vld [vmem:[%s1 + $0x1c] sm:$0xf]
      %v344 = vld [vmem:[%s1 + $0x20] sm:$0xf]
      %v345 = vld [vmem:[%s1 + $0x24] sm:$0xf]
      %v346 = vld [vmem:[%s1 + $0x28] sm:$0xf]
      %v347 = vld [vmem:[%s1 + $0x2c] sm:$0xf]
      %v348 = vld [vmem:[%s1 + $0x30] sm:$0xf]
      %v349 = vld [vmem:[%s1 + $0x34] sm:$0xf]
      %v350 = vld [vmem:[%s1 + $0x38] sm:$0xf]
      %v351 = vld [vmem:[%s1 + $0x3c] sm:$0xf]
      %v352 = vld [vmem:[%s1 + $0x40] sm:$0xf]
      %v353 = vld [vmem:[%s1 + $0x44] sm:$0xf]
      %v354 = vld [vmem:[%s1 + $0x48] sm:$0xf]
      %v355 = vld [vmem:[%s1 + $0x4c] sm:$0xf]
      %v356 = vld [vmem:[%s1 + $0x50] sm:$0xf]
      %v357 = vld [vmem:[%s1 + $0x54] sm:$0xf]
      %v358 = vld [vmem:[%s1 + $0x58] sm:$0xf]
      %v359 = vld [vmem:[%s1 + $0x5c] sm:$0xf]
      %v360 = vld [vmem:[%s1 + $0x60] sm:$0xf]
      %v361 = vld [vmem:[%s1 + $0x64] sm:$0xf]
      %v362 = vld [vmem:[%s1 + $0x68] sm:$0xf]
      %v363 = vld [vmem:[%s1 + $0x6c] sm:$0xf]
      %v364 = vld [vmem:[%s1 + $0x70] sm:$0xf]
      %v365 = vld [vmem:[%s1 + $0x74] sm:$0xf]
      %v366 = vld [vmem:[%s1 + $0x78] sm:$0xf]
      %v367 = vld [vmem:[%s1 + $0x7c] sm:$0xf]
      %v368 = vld [vmem:[%s1 + $0x80] sm:$0xf]
      %v369 = vld [vmem:[%s1 + $0x84] sm:$0xf]
      %v370 = vld [vmem:[%s1 + $0x88] sm:$0xf]
      %v371 = vld [vmem:[%s1 + $0x8c] sm:$0xf]
      %v372 = vld [vmem:[%s1 + $0x90] sm:$0xf]
      %v373 = vld [vmem:[%s1 + $0x94] sm:$0xf]
      %v374 = vld [vmem:[%s1 + $0x98] sm:$0xf]
      %v375 = vld [vmem:[%s1 + $0x9c] sm:$0xf]
      %v376 = vld [vmem:[%s1 + $0xa0] sm:$0xf]
      %v377 = vld [vmem:[%s1 + $0xa4] sm:$0xf]
      %v378 = vld [vmem:[%s1 + $0xa8] sm:$0xf]
      %v379 = vld [vmem:[%s1 + $0xac] sm:$0xf]
      %v380 = vld [vmem:[%s1 + $0xb0] sm:$0xf]
      %v381 = vld [vmem:[%s1 + $0xb4] sm:$0xf]
      %v382 = vld [vmem:[%s1 + $0xb8] sm:$0xf]
      %v383 = vld [vmem:[%s1 + $0xbc] sm:$0xf]
      %v384 = vld [vmem:[%s1 + $0xc0] sm:$0xf]
      %v385 = vld [vmem:[%s1 + $0xc4] sm:$0xf]
      %v386 = vld [vmem:[%s1 + $0xc8] sm:$0xf]
      %v387 = vld [vmem:[%s1 + $0xcc] sm:$0xf]
      %v388 = vld [vmem:[%s1 + $0xd0] sm:$0xf]
      %v389 = vld [vmem:[%s1 + $0xd4] sm:$0xf]
      %v390 = vld [vmem:[%s1 + $0xd8] sm:$0xf]
      %v391 = vld [vmem:[%s1 + $0xdc] sm:$0xf]
      %v392 = vld [vmem:[%s1 + $0xe0] sm:$0xf]
      %v393 = vld [vmem:[%s1 + $0xe4] sm:$0xf]
      %v394 = vld [vmem:[%s1 + $0xe8] sm:$0xf]
      %v395 = vld [vmem:[%s1 + $0xec] sm:$0xf]
      %v396 = vld [vmem:[%s1 + $0xf0] sm:$0xf]
      %v397 = vld [vmem:[%s1 + $0xf4] sm:$0xf]
      %v398 = vld [vmem:[%s1 + $0xf8] sm:$0xf]
      %v399 = vld [vmem:[%s1 + $0xfc] sm:$0xf]
      %v400 = vld [vmem:[%s1 + $0x100] sm:$0xf]
      %v401 = vld [vmem:[%s1 + $0x104] sm:$0xf]
      %v402 = vld [vmem:[%s1 + $0x108] sm:$0xf]
      %v403 = vld [vmem:[%s1 + $0x10c] sm:$0xf]
      %v404 = vld [vmem:[%s1 + $0x110] sm:$0xf]
      %v405 = vld [vmem:[%s1 + $0x114] sm:$0xf]
      %v406 = vld [vmem:[%s1 + $0x118] sm:$0xf]
      %v407 = vld [vmem:[%s1 + $0x11c] sm:$0xf]
      %v408 = vld [vmem:[%s1 + $0x120] sm:$0xf]
      %v409 = vld [vmem:[%s1 + $0x124] sm:$0xf]
      %v410 = vld [vmem:[%s1 + $0x128] sm:$0xf]
      %v411 = vld [vmem:[%s1 + $0x12c] sm:$0xf]
      %v412 = vld [vmem:[%s1 + $0x130] sm:$0xf]
      %v413 = vld [vmem:[%s1 + $0x134] sm:$0xf]
      %v414 = vld [vmem:[%s1 + $0x138] sm:$0xf]
      %v415 = vld [vmem:[%s1 + $0x13c] sm:$0xf]
      %v416 = vld [vmem:[%s1 + $0x140] sm:$0xf]
      %v417 = vld [vmem:[%s1 + $0x144] sm:$0xf]
      %v418 = vld [vmem:[%s1 + $0x148] sm:$0xf]
      %v419 = vld [vmem:[%s1 + $0x14c] sm:$0xf]
      %v420 = vld [vmem:[%s1 + $0x150] sm:$0xf]
      %v421 = vld [vmem:[%s1 + $0x154] sm:$0xf]
      %v422 = vld [vmem:[%s1 + $0x158] sm:$0xf]
      %v423 = vld [vmem:[%s1 + $0x15c] sm:$0xf]
      %v424 = vld [vmem:[%s1 + $0x160] sm:$0xf]
      %v425 = vld [vmem:[%s1 + $0x164] sm:$0xf]
      %v426 = vld [vmem:[%s1 + $0x168] sm:$0xf]
      %v427 = vld [vmem:[%s1 + $0x16c] sm:$0xf]
      %v428 = vld [vmem:[%s1 + $0x170] sm:$0xf]
      %v429 = vld [vmem:[%s1 + $0x174] sm:$0xf]
      %v430 = vld [vmem:[%s1 + $0x178] sm:$0xf]
      %v431 = vld [vmem:[%s1 + $0x17c] sm:$0xf]
      %v432 = vld [vmem:[%s1 + $0x180] sm:$0xf]
      %v433 = vld [vmem:[%s1 + $0x184] sm:$0xf]
      %v434 = vld [vmem:[%s1 + $0x188] sm:$0xf]
      %v435 = vld [vmem:[%s1 + $0x18c] sm:$0xf]
      %v436 = vld [vmem:[%s1 + $0x190] sm:$0xf]
      %v437 = vld [vmem:[%s1 + $0x194] sm:$0xf]
      %v438 = vld [vmem:[%s1 + $0x198] sm:$0xf]
      %v439 = vld [vmem:[%s1 + $0x19c] sm:$0xf]
      %v440 = vld [vmem:[%s1 + $0x1a0] sm:$0xf]
      %v441 = vld [vmem:[%s1 + $0x1a4] sm:$0xf]
      %v442 = vld [vmem:[%s1 + $0x1a8] sm:$0xf]
      %v443 = vld [vmem:[%s1 + $0x1ac] sm:$0xf]
      %v444 = vld [vmem:[%s1 + $0x1b0] sm:$0xf]
      %v445 = vld [vmem:[%s1 + $0x1b4] sm:$0xf]
      %v446 = vld [vmem:[%s1 + $0x1b8] sm:$0xf]
      %v447 = vld [vmem:[%s1 + $0x1bc] sm:$0xf]
      %v448 = vld [vmem:[%s1 + $0x1c0] sm:$0xf]
      %v449 = vld [vmem:[%s1 + $0x1c4] sm:$0xf]
      %v450 = vld [vmem:[%s1 + $0x1c8] sm:$0xf]
      %v451 = vld [vmem:[%s1 + $0x1cc] sm:$0xf]
      %v452 = vld [vmem:[%s1 + $0x1d0] sm:$0xf]
      %v453 = vld [vmem:[%s1 + $0x1d4] sm:$0xf]
      %v454 = vld [vmem:[%s1 + $0x1d8] sm:$0xf]
      %v455 = vld [vmem:[%s1 + $0x1dc] sm:$0xf]
      %v456 = vld [vmem:[%s1 + $0x1e0] sm:$0xf]
      %v457 = vld [vmem:[%s1 + $0x1e4] sm:$0xf]
      %v458 = vld [vmem:[%s1 + $0x1e8] sm:$0xf]
      %v459 = vld [vmem:[%s1 + $0x1ec] sm:$0xf]
      %v460 = vld [vmem:[%s1 + $0x1f0] sm:$0xf]
      %v461 = vld [vmem:[%s1 + $0x1f4] sm:$0xf]
      %v462 = vld [vmem:[%s1 + $0x1f8] sm:$0xf]
      %v463 = vld [vmem:[%s1 + $0x1fc] sm:$0xf]
      %v464 = vld [vmem:[%s1 + $0x200] sm:$0xf]
      %v465 = vld [vmem:[%s1 + $0x204] sm:$0xf]
      %v466 = vld [vmem:[%s1 + $0x208] sm:$0xf]
      %v467 = vld [vmem:[%s1 + $0x20c] sm:$0xf]
      %v468 = vld [vmem:[%s1 + $0x210] sm:$0xf]
      %v469 = vld [vmem:[%s1 + $0x214] sm:$0xf]
      %v470 = vld [vmem:[%s1 + $0x218] sm:$0xf]
      %v471 = vld [vmem:[%s1 + $0x21c] sm:$0xf]
      %v472 = vld [vmem:[%s1 + $0x220] sm:$0xf]
      %v473 = vld [vmem:[%s1 + $0x224] sm:$0xf]
      %v474 = vld [vmem:[%s1 + $0x228] sm:$0xf]
      %v475 = vld [vmem:[%s1 + $0x22c] sm:$0xf]
      %v476 = vld [vmem:[%s1 + $0x230] sm:$0xf]
      %v477 = vld [vmem:[%s1 + $0x234] sm:$0xf]
      %v478 = vld [vmem:[%s1 + $0x238] sm:$0xf]
      %v479 = vld [vmem:[%s1 + $0x23c] sm:$0xf]
      %v480 = vld [vmem:[%s2] sm:$0x1]
      %v486 = vunpack.c.l.b16 %v331
      %v487 = vunpack.c.h.b16 %v331
      %v488 = vunpack.c.l.b16 %v332
      %v489 = vunpack.c.h.b16 %v332
      %v490 = vunpack.c.l.b16 %v333
      %v491 = vunpack.c.h.b16 %v333
      %v492 = vunpack.c.l.b16 %v334
      %v493 = vunpack.c.h.b16 %v334
      %v494 = vunpack.c.l.b16 %v335
      %v495 = vpack.c.b16 %v486, %v486
      %v496 = vpack.c.b16 %v487, %v487
      %v497 = vpack.c.b16 %v488, %v488
      %v498 = vpack.c.b16 %v489, %v489
      %v499 = vpack.c.b16 %v490, %v490
      %v500 = vpack.c.b16 %v491, %v491
      %v501 = vpack.c.b16 %v492, %v492
      %v502 = vpack.c.b16 %v493, %v493
      %v503 = vpack.c.b16 %v494, %v494
      %v657 = vunpack.c.l.b16 %v336
      %v658 = vunpack.c.l.b16 %v337
      %v659 = vunpack.c.l.b16 %v338
      %v660 = vunpack.c.l.b16 %v339
      %v661 = vunpack.c.l.b16 %v340
      %v662 = vunpack.c.l.b16 %v341
      %v663 = vunpack.c.l.b16 %v342
      %v664 = vunpack.c.l.b16 %v343
      %v665 = vunpack.c.l.b16 %v344
      %v666 = vunpack.c.l.b16 %v345
      %v667 = vunpack.c.l.b16 %v346
      %v668 = vunpack.c.l.b16 %v347
      %v669 = vunpack.c.l.b16 %v348
      %v670 = vunpack.c.l.b16 %v349
      %v671 = vunpack.c.l.b16 %v350
      %v672 = vunpack.c.l.b16 %v351
      %v673 = vunpack.c.l.b16 %v352
      %v674 = vunpack.c.l.b16 %v353
      %v675 = vunpack.c.l.b16 %v354
      %v676 = vunpack.c.l.b16 %v355
      %v677 = vunpack.c.l.b16 %v356
      %v678 = vunpack.c.l.b16 %v357
      %v679 = vunpack.c.l.b16 %v358
      %v680 = vunpack.c.l.b16 %v359
      %v681 = vunpack.c.l.b16 %v360
      %v682 = vunpack.c.l.b16 %v361
      %v683 = vunpack.c.l.b16 %v362
      %v684 = vunpack.c.l.b16 %v363
      %v685 = vunpack.c.l.b16 %v364
      %v686 = vunpack.c.l.b16 %v365
      %v687 = vunpack.c.l.b16 %v366
      %v688 = vunpack.c.l.b16 %v367
      %v689 = vunpack.c.l.b16 %v368
      %v690 = vunpack.c.l.b16 %v369
      %v691 = vunpack.c.l.b16 %v370
      %v692 = vunpack.c.l.b16 %v371
      %v693 = vunpack.c.l.b16 %v372
      %v694 = vunpack.c.l.b16 %v373
      %v695 = vunpack.c.l.b16 %v374
      %v696 = vunpack.c.l.b16 %v375
      %v697 = vunpack.c.l.b16 %v376
      %v698 = vunpack.c.l.b16 %v377
      %v699 = vunpack.c.l.b16 %v378
      %v700 = vunpack.c.l.b16 %v379
      %v701 = vunpack.c.l.b16 %v380
      %v702 = vunpack.c.l.b16 %v381
      %v703 = vunpack.c.l.b16 %v382
      %v704 = vunpack.c.l.b16 %v383
      %v705 = vunpack.c.l.b16 %v384
      %v706 = vunpack.c.l.b16 %v385
      %v707 = vunpack.c.l.b16 %v386
      %v708 = vunpack.c.l.b16 %v387
      %v709 = vunpack.c.l.b16 %v388
      %v710 = vunpack.c.l.b16 %v389
      %v711 = vunpack.c.l.b16 %v390
      %v712 = vunpack.c.l.b16 %v391
      %v713 = vunpack.c.l.b16 %v392
      %v714 = vunpack.c.l.b16 %v393
      %v715 = vunpack.c.l.b16 %v394
      %v716 = vunpack.c.l.b16 %v395
      %v717 = vunpack.c.l.b16 %v396
      %v718 = vunpack.c.l.b16 %v397
      %v719 = vunpack.c.l.b16 %v398
      %v720 = vunpack.c.l.b16 %v399
      %v721 = vunpack.c.l.b16 %v400
      %v722 = vunpack.c.l.b16 %v401
      %v723 = vunpack.c.l.b16 %v402
      %v724 = vunpack.c.l.b16 %v403
      %v725 = vunpack.c.l.b16 %v404
      %v726 = vunpack.c.l.b16 %v405
      %v727 = vunpack.c.l.b16 %v406
      %v728 = vunpack.c.l.b16 %v407
      %v729 = vunpack.c.l.b16 %v408
      %v730 = vunpack.c.l.b16 %v409
      %v731 = vunpack.c.l.b16 %v410
      %v732 = vunpack.c.l.b16 %v411
      %v733 = vunpack.c.l.b16 %v412
      %v734 = vunpack.c.l.b16 %v413
      %v735 = vunpack.c.l.b16 %v414
      %v736 = vunpack.c.l.b16 %v415
      %v737 = vunpack.c.l.b16 %v416
      %v738 = vunpack.c.l.b16 %v417
      %v739 = vunpack.c.l.b16 %v418
      %v740 = vunpack.c.l.b16 %v419
      %v741 = vunpack.c.l.b16 %v420
      %v742 = vunpack.c.l.b16 %v421
      %v743 = vunpack.c.l.b16 %v422
      %v744 = vunpack.c.l.b16 %v423
      %v745 = vunpack.c.l.b16 %v424
      %v746 = vunpack.c.l.b16 %v425
      %v747 = vunpack.c.l.b16 %v426
      %v748 = vunpack.c.l.b16 %v427
      %v749 = vunpack.c.l.b16 %v428
      %v750 = vunpack.c.l.b16 %v429
      %v751 = vunpack.c.l.b16 %v430
      %v752 = vunpack.c.l.b16 %v431
      %v753 = vunpack.c.l.b16 %v432
      %v754 = vunpack.c.l.b16 %v433
      %v755 = vunpack.c.l.b16 %v434
      %v756 = vunpack.c.l.b16 %v435
      %v757 = vunpack.c.l.b16 %v436
      %v758 = vunpack.c.l.b16 %v437
      %v759 = vunpack.c.l.b16 %v438
      %v760 = vunpack.c.l.b16 %v439
      %v761 = vunpack.c.l.b16 %v440
      %v762 = vunpack.c.l.b16 %v441
      %v763 = vunpack.c.l.b16 %v442
      %v764 = vunpack.c.l.b16 %v443
      %v765 = vunpack.c.l.b16 %v444
      %v766 = vunpack.c.l.b16 %v445
      %v767 = vunpack.c.l.b16 %v446
      %v768 = vunpack.c.l.b16 %v447
      %v769 = vunpack.c.l.b16 %v448
      %v770 = vunpack.c.l.b16 %v449
      %v771 = vunpack.c.l.b16 %v450
      %v772 = vunpack.c.l.b16 %v451
      %v773 = vunpack.c.l.b16 %v452
      %v774 = vunpack.c.l.b16 %v453
      %v775 = vunpack.c.l.b16 %v454
      %v776 = vunpack.c.l.b16 %v455
      %v777 = vunpack.c.l.b16 %v456
      %v778 = vunpack.c.l.b16 %v457
      %v779 = vunpack.c.l.b16 %v458
      %v780 = vunpack.c.l.b16 %v459
      %v781 = vunpack.c.l.b16 %v460
      %v782 = vunpack.c.l.b16 %v461
      %v783 = vunpack.c.l.b16 %v462
      %v784 = vunpack.c.l.b16 %v463
      %v785 = vunpack.c.l.b16 %v464
      %v786 = vunpack.c.l.b16 %v465
      %v787 = vunpack.c.l.b16 %v466
      %v788 = vunpack.c.l.b16 %v467
      %v789 = vunpack.c.l.b16 %v468
      %v790 = vunpack.c.l.b16 %v469
      %v791 = vunpack.c.l.b16 %v470
      %v792 = vunpack.c.l.b16 %v471
      %v793 = vunpack.c.l.b16 %v472
      %v794 = vunpack.c.l.b16 %v473
      %v795 = vunpack.c.l.b16 %v474
      %v796 = vunpack.c.l.b16 %v475
      %v797 = vunpack.c.l.b16 %v476
      %v798 = vunpack.c.l.b16 %v477
      %v799 = vunpack.c.l.b16 %v478
      %v800 = vunpack.c.l.b16 %v479
      %v801 = vpack.c.b16 %v658, %v657
      %v802 = vpack.c.b16 %v660, %v659
      %v803 = vpack.c.b16 %v662, %v661
      %v804 = vpack.c.b16 %v664, %v663
      %v805 = vpack.c.b16 %v666, %v665
      %v806 = vpack.c.b16 %v668, %v667
      %v807 = vpack.c.b16 %v670, %v669
      %v808 = vpack.c.b16 %v672, %v671
      %v809 = vpack.c.b16 %v674, %v673
      %v810 = vpack.c.b16 %v676, %v675
      %v811 = vpack.c.b16 %v678, %v677
      %v812 = vpack.c.b16 %v680, %v679
      %v813 = vpack.c.b16 %v682, %v681
      %v814 = vpack.c.b16 %v684, %v683
      %v815 = vpack.c.b16 %v686, %v685
      %v816 = vpack.c.b16 %v688, %v687
      %v817 = vpack.c.b16 %v690, %v689
      %v818 = vpack.c.b16 %v692, %v691
      %v819 = vpack.c.b16 %v694, %v693
      %v820 = vpack.c.b16 %v696, %v695
      %v821 = vpack.c.b16 %v698, %v697
      %v822 = vpack.c.b16 %v700, %v699
      %v823 = vpack.c.b16 %v702, %v701
      %v824 = vpack.c.b16 %v704, %v703
      %v825 = vpack.c.b16 %v706, %v705
      %v826 = vpack.c.b16 %v708, %v707
      %v827 = vpack.c.b16 %v710, %v709
      %v828 = vpack.c.b16 %v712, %v711
      %v829 = vpack.c.b16 %v714, %v713
      %v830 = vpack.c.b16 %v716, %v715
      %v831 = vpack.c.b16 %v718, %v717
      %v832 = vpack.c.b16 %v720, %v719
      %v833 = vpack.c.b16 %v722, %v721
      %v834 = vpack.c.b16 %v724, %v723
      %v835 = vpack.c.b16 %v726, %v725
      %v836 = vpack.c.b16 %v728, %v727
      %v837 = vpack.c.b16 %v730, %v729
      %v838 = vpack.c.b16 %v732, %v731
      %v839 = vpack.c.b16 %v734, %v733
      %v840 = vpack.c.b16 %v736, %v735
      %v841 = vpack.c.b16 %v738, %v737
      %v842 = vpack.c.b16 %v740, %v739
      %v843 = vpack.c.b16 %v742, %v741
      %v844 = vpack.c.b16 %v744, %v743
      %v845 = vpack.c.b16 %v746, %v745
      %v846 = vpack.c.b16 %v748, %v747
      %v847 = vpack.c.b16 %v750, %v749
      %v848 = vpack.c.b16 %v752, %v751
      %v849 = vpack.c.b16 %v754, %v753
      %v850 = vpack.c.b16 %v756, %v755
      %v851 = vpack.c.b16 %v758, %v757
      %v852 = vpack.c.b16 %v760, %v759
      %v853 = vpack.c.b16 %v762, %v761
      %v854 = vpack.c.b16 %v764, %v763
      %v855 = vpack.c.b16 %v766, %v765
      %v856 = vpack.c.b16 %v768, %v767
      %v857 = vpack.c.b16 %v770, %v769
      %v858 = vpack.c.b16 %v772, %v771
      %v859 = vpack.c.b16 %v774, %v773
      %v860 = vpack.c.b16 %v776, %v775
      %v861 = vpack.c.b16 %v778, %v777
      %v862 = vpack.c.b16 %v780, %v779
      %v863 = vpack.c.b16 %v782, %v781
      %v864 = vpack.c.b16 %v784, %v783
      %v865 = vpack.c.b16 %v786, %v785
      %v866 = vpack.c.b16 %v788, %v787
      %v867 = vpack.c.b16 %v790, %v789
      %v868 = vpack.c.b16 %v792, %v791
      %v869 = vpack.c.b16 %v794, %v793
      %v870 = vpack.c.b16 %v796, %v795
      %v871 = vpack.c.b16 %v798, %v797
      %v872 = vpack.c.b16 %v800, %v799
      %945 = vmatprep.subr.bf16.mxu0 0
      %946 = vmatpush1.bf16.msra.mxu0 %v801
      %947 = vmatprep.subr.bf16.mxu0 0
      %948 = vmatpush1.bf16.msra.mxu0 %v802
      %949 = vmatprep.subr.bf16.mxu0 0
      %950 = vmatpush1.bf16.msra.mxu0 %v803
      %951 = vmatprep.subr.bf16.mxu0 0
      %952 = vmatpush1.bf16.msra.mxu0 %v804
      %953 = vmatprep.subr.bf16.mxu0 0
      %954 = vmatpush1.bf16.msra.mxu0 %v805
      %955 = vmatprep.subr.bf16.mxu0 0
      %956 = vmatpush1.bf16.msra.mxu0 %v806
      %957 = vmatprep.subr.bf16.mxu0 0
      %958 = vmatpush1.bf16.msra.mxu0 %v807
      %959 = vmatprep.subr.bf16.mxu0 0
      %960 = vmatpush1.bf16.msra.mxu0 %v808
      %961 = vmatprep.subr.bf16.mxu0 0
      %962 = vmatpush1.bf16.msra.mxu0 %v809
      %963 = vmatprep.subr.bf16.mxu0 0
      %964 = vmatpush1.bf16.msra.mxu0 %v810
      %965 = vmatprep.subr.bf16.mxu0 0
      %966 = vmatpush1.bf16.msra.mxu0 %v811
      %967 = vmatprep.subr.bf16.mxu0 0
      %968 = vmatpush1.bf16.msra.mxu0 %v812
      %969 = vmatprep.subr.bf16.mxu0 0
      %970 = vmatpush1.bf16.msra.mxu0 %v813
      %971 = vmatprep.subr.bf16.mxu0 0
      %972 = vmatpush1.bf16.msra.mxu0 %v814
      %973 = vmatprep.subr.bf16.mxu0 0
      %974 = vmatpush1.bf16.msra.mxu0 %v815
      %975 = vmatprep.subr.bf16.mxu0 0
      %976 = vmatpush1.bf16.msra.mxu0 %v816
      %977 = vmatprep.mubr.bf16.mxu0 %v496
      %978 = vmatmul.mubr.bf16.gmra.mrb[0].mxu0 %v495
      %v979 = vpop.f32.mrb[0].mxu0
      %v980 = vadd.f32 %v480, %v979
      %v981 = vpop.f32.mrb[0].mxu0
      %v982 = vpop.f32.mrb[0].mxu0
      %v983 = vpop.f32.mrb[0].mxu0
      %984 = vdwg.mxu0
      %985 = vmatprep.subr.bf16.mxu0 0
      %986 = vmatpush1.bf16.msra.mxu0 %v817
      %987 = vmatprep.subr.bf16.mxu0 0
      %988 = vmatpush1.bf16.msra.mxu0 %v818
      %989 = vmatprep.subr.bf16.mxu0 0
      %990 = vmatpush1.bf16.msra.mxu0 %v819
      %991 = vmatprep.subr.bf16.mxu0 0
      %992 = vmatpush1.bf16.msra.mxu0 %v820
      %993 = vmatprep.subr.bf16.mxu0 0
      %994 = vmatpush1.bf16.msra.mxu0 %v821
      %995 = vmatprep.subr.bf16.mxu0 0
      %996 = vmatpush1.bf16.msra.mxu0 %v822
      %997 = vmatprep.subr.bf16.mxu0 0
      %998 = vmatpush1.bf16.msra.mxu0 %v823
      %999 = vmatprep.subr.bf16.mxu0 0
      %1000 = vmatpush1.bf16.msra.mxu0 %v824
      %1001 = vmatprep.subr.bf16.mxu0 0
      %1002 = vmatpush1.bf16.msra.mxu0 %v825
      %1003 = vmatprep.subr.bf16.mxu0 0
      %1004 = vmatpush1.bf16.msra.mxu0 %v826
      %1005 = vmatprep.subr.bf16.mxu0 0
      %1006 = vmatpush1.bf16.msra.mxu0 %v827
      %1007 = vmatprep.subr.bf16.mxu0 0
      %1008 = vmatpush1.bf16.msra.mxu0 %v828
      %1009 = vmatprep.subr.bf16.mxu0 0
      %1010 = vmatpush1.bf16.msra.mxu0 %v829
      %1011 = vmatprep.subr.bf16.mxu0 0
      %1012 = vmatpush1.bf16.msra.mxu0 %v830
      %1013 = vmatprep.subr.bf16.mxu0 0
      %1014 = vmatpush1.bf16.msra.mxu0 %v831
      %1015 = vmatprep.subr.bf16.mxu0 0
      %1016 = vmatpush1.bf16.msra.mxu0 %v832
      %1017 = vmatprep.mubr.bf16.mxu0 %v498
      %1018 = vmatmul.mubr.bf16.gmra.mrb[0].mxu0 %v497
      %v1019 = vpop.f32.mrb[0].mxu0
      %v1020 = vadd.f32 %v980, %v1019
      %v1021 = vpop.f32.mrb[0].mxu0
      %v1022 = vpop.f32.mrb[0].mxu0
      %v1023 = vpop.f32.mrb[0].mxu0
      %1024 = vdwg.mxu0
      %1025 = vmatprep.subr.bf16.mxu0 0
      %1026 = vmatpush1.bf16.msra.mxu0 %v833
      %1027 = vmatprep.subr.bf16.mxu0 0
      %1028 = vmatpush1.bf16.msra.mxu0 %v834
      %1029 = vmatprep.subr.bf16.mxu0 0
      %1030 = vmatpush1.bf16.msra.mxu0 %v835
      %1031 = vmatprep.subr.bf16.mxu0 0
      %1032 = vmatpush1.bf16.msra.mxu0 %v836
      %1033 = vmatprep.subr.bf16.mxu0 0
      %1034 = vmatpush1.bf16.msra.mxu0 %v837
      %1035 = vmatprep.subr.bf16.mxu0 0
      %1036 = vmatpush1.bf16.msra.mxu0 %v838
      %1037 = vmatprep.subr.bf16.mxu0 0
      %1038 = vmatpush1.bf16.msra.mxu0 %v839
      %1039 = vmatprep.subr.bf16.mxu0 0
      %1040 = vmatpush1.bf16.msra.mxu0 %v840
      %1041 = vmatprep.subr.bf16.mxu0 0
      %1042 = vmatpush1.bf16.msra.mxu0 %v841
      %1043 = vmatprep.subr.bf16.mxu0 0
      %1044 = vmatpush1.bf16.msra.mxu0 %v842
      %1045 = vmatprep.subr.bf16.mxu0 0
      %1046 = vmatpush1.bf16.msra.mxu0 %v843
      %1047 = vmatprep.subr.bf16.mxu0 0
      %1048 = vmatpush1.bf16.msra.mxu0 %v844
      %1049 = vmatprep.subr.bf16.mxu0 0
      %1050 = vmatpush1.bf16.msra.mxu0 %v845
      %1051 = vmatprep.subr.bf16.mxu0 0
      %1052 = vmatpush1.bf16.msra.mxu0 %v846
      %1053 = vmatprep.subr.bf16.mxu0 0
      %1054 = vmatpush1.bf16.msra.mxu0 %v847
      %1055 = vmatprep.subr.bf16.mxu0 0
      %1056 = vmatpush1.bf16.msra.mxu0 %v848
      %1057 = vmatprep.mubr.bf16.mxu0 %v500
      %1058 = vmatmul.mubr.bf16.gmra.mrb[0].mxu0 %v499
      %v1059 = vpop.f32.mrb[0].mxu0
      %v1060 = vadd.f32 %v1020, %v1059
      %v1061 = vpop.f32.mrb[0].mxu0
      %v1062 = vpop.f32.mrb[0].mxu0
      %v1063 = vpop.f32.mrb[0].mxu0
      %1064 = vdwg.mxu0
      %1065 = vmatprep.subr.bf16.mxu0 0
      %1066 = vmatpush1.bf16.msra.mxu0 %v849
      %1067 = vmatprep.subr.bf16.mxu0 0
      %1068 = vmatpush1.bf16.msra.mxu0 %v850
      %1069 = vmatprep.subr.bf16.mxu0 0
      %1070 = vmatpush1.bf16.msra.mxu0 %v851
      %1071 = vmatprep.subr.bf16.mxu0 0
      %1072 = vmatpush1.bf16.msra.mxu0 %v852
      %1073 = vmatprep.subr.bf16.mxu0 0
      %1074 = vmatpush1.bf16.msra.mxu0 %v853
      %1075 = vmatprep.subr.bf16.mxu0 0
      %1076 = vmatpush1.bf16.msra.mxu0 %v854
      %1077 = vmatprep.subr.bf16.mxu0 0
      %1078 = vmatpush1.bf16.msra.mxu0 %v855
      %1079 = vmatprep.subr.bf16.mxu0 0
      %1080 = vmatpush1.bf16.msra.mxu0 %v856
      %1081 = vmatprep.subr.bf16.mxu0 0
      %1082 = vmatpush1.bf16.msra.mxu0 %v857
      %1083 = vmatprep.subr.bf16.mxu0 0
      %1084 = vmatpush1.bf16.msra.mxu0 %v858
      %1085 = vmatprep.subr.bf16.mxu0 0
      %1086 = vmatpush1.bf16.msra.mxu0 %v859
      %1087 = vmatprep.subr.bf16.mxu0 0
      %1088 = vmatpush1.bf16.msra.mxu0 %v860
      %1089 = vmatprep.subr.bf16.mxu0 0
      %1090 = vmatpush1.bf16.msra.mxu0 %v861
      %1091 = vmatprep.subr.bf16.mxu0 0
      %1092 = vmatpush1.bf16.msra.mxu0 %v862
      %1093 = vmatprep.subr.bf16.mxu0 0
      %1094 = vmatpush1.bf16.msra.mxu0 %v863
      %1095 = vmatprep.subr.bf16.mxu0 0
      %1096 = vmatpush1.bf16.msra.mxu0 %v864
      %1097 = vmatprep.mubr.bf16.mxu0 %v502
      %1098 = vmatmul.mubr.bf16.gmra.mrb[0].mxu0 %v501
      %v1099 = vpop.f32.mrb[0].mxu0
      %v1100 = vadd.f32 %v1060, %v1099
      %v1101 = vpop.f32.mrb[0].mxu0
      %v1102 = vpop.f32.mrb[0].mxu0
      %v1103 = vpop.f32.mrb[0].mxu0
      %1104 = vdwg.mxu0
      %1105 = vmatprep.subr.bf16.mxu0 0
      %1106 = vmatpush1.bf16.msra.mxu0 %v865
      %1107 = vmatprep.subr.bf16.mxu0 0
      %1108 = vmatpush1.bf16.msra.mxu0 %v866
      %1109 = vmatprep.subr.bf16.mxu0 0
      %1110 = vmatpush1.bf16.msra.mxu0 %v867
      %1111 = vmatprep.subr.bf16.mxu0 0
      %1112 = vmatpush1.bf16.msra.mxu0 %v868
      %1113 = vmatprep.subr.bf16.mxu0 0
      %1114 = vmatpush1.bf16.msra.mxu0 %v869
      %1115 = vmatprep.subr.bf16.mxu0 0
      %1116 = vmatpush1.bf16.msra.mxu0 %v870
      %1117 = vmatprep.subr.bf16.mxu0 0
      %1118 = vmatpush1.bf16.msra.mxu0 %v871
      %1119 = vmatprep.subr.bf16.mxu0 0
      %1120 = vmatpush1.bf16.msra.mxu0 %v872
      %1121 = vmatprep.subr.bf16.mxu0 0
      %1122 = vmatpush1.bf16.msra.mxu0 0
      %1123 = vmatprep.subr.bf16.mxu0 0
      %1124 = vmatpush1.bf16.msra.mxu0 0
      %1125 = vmatprep.subr.bf16.mxu0 0
      %1126 = vmatpush1.bf16.msra.mxu0 0
      %1127 = vmatprep.subr.bf16.mxu0 0
      %1128 = vmatpush1.bf16.msra.mxu0 0
      %1129 = vmatprep.subr.bf16.mxu0 0
      %1130 = vmatpush1.bf16.msra.mxu0 0
      %1131 = vmatprep.subr.bf16.mxu0 0
      %1132 = vmatpush1.bf16.msra.mxu0 0
      %1133 = vmatprep.subr.bf16.mxu0 0
      %1134 = vmatpush1.bf16.msra.mxu0 0
      %1135 = vmatprep.subr.bf16.mxu0 0
      %1136 = vmatpush1.bf16.msra.mxu0 0
      %1137 = vmatprep.mubr.bf16.mxu0 0
      %1138 = vmatmul.mubr.bf16.gmra.mrb[0].mxu0 %v503
      %v1139 = vpop.f32.mrb[0].mxu0
      %v1140 = vadd.f32 %v1100, %v1139
      %v1141 = vpop.f32.mrb[0].mxu0
      %v1142 = vpop.f32.mrb[0].mxu0
      %v1143 = vpop.f32.mrb[0].mxu0
      %1144 = vdwg.mxu0
      %v1145 = vmax.f32 %v1140, 0.0
      %v1146 = vpack.c.bf16 %v1145, %v1145
      %v1147 = vld [vmem:[%s3] sm:$0xf]
      %v1148 = vld [vmem:[%s3 + $0x4] sm:$0xf]
      %v1149 = vld [vmem:[%s3 + $0x8] sm:$0xf]
      %v1150 = vld [vmem:[%s3 + $0xc] sm:$0xf]
      %v1151 = vld [vmem:[%s3 + $0x10] sm:$0xf]
      %v1152 = vld [vmem:[%s3 + $0x14] sm:$0xf]
      %v1153 = vld [vmem:[%s3 + $0x18] sm:$0xf]
      %v1154 = vld [vmem:[%s3 + $0x1c] sm:$0xf]
      %v1155 = vld [vmem:[%s3 + $0x20] sm:$0xf]
      %v1156 = vld [vmem:[%s3 + $0x24] sm:$0xf]
      %v1157 = vld [vmem:[%s3 + $0x28] sm:$0xf]
      %v1158 = vld [vmem:[%s3 + $0x2c] sm:$0xf]
      %v1159 = vld [vmem:[%s3 + $0x30] sm:$0xf]
      %v1160 = vld [vmem:[%s3 + $0x34] sm:$0xf]
      %v1161 = vld [vmem:[%s3 + $0x38] sm:$0xf]
      %v1162 = vld [vmem:[%s3 + $0x3c] sm:$0xf]
      %v1179 = vunpack.c.l.b16 %v1147
      %v1180 = vunpack.c.l.b16 %v1148
      %v1181 = vunpack.c.l.b16 %v1149
      %v1182 = vunpack.c.l.b16 %v1150
      %v1183 = vunpack.c.l.b16 %v1151
      %v1184 = vunpack.c.l.b16 %v1152
      %v1185 = vunpack.c.l.b16 %v1153
      %v1186 = vunpack.c.l.b16 %v1154
      %v1187 = vunpack.c.l.b16 %v1155
      %v1188 = vunpack.c.l.b16 %v1156
      %v1189 = vunpack.c.l.b16 %v1157
      %v1190 = vunpack.c.l.b16 %v1158
      %v1191 = vunpack.c.l.b16 %v1159
      %v1192 = vunpack.c.l.b16 %v1160
      %v1193 = vunpack.c.l.b16 %v1161
      %v1194 = vunpack.c.l.b16 %v1162
      %v1195 = vpack.c.b16 %v1180, %v1179
      %v1196 = vpack.c.b16 %v1182, %v1181
      %v1197 = vpack.c.b16 %v1184, %v1183
      %v1198 = vpack.c.b16 %v1186, %v1185
      %v1199 = vpack.c.b16 %v1188, %v1187
      %v1200 = vpack.c.b16 %v1190, %v1189
      %v1201 = vpack.c.b16 %v1192, %v1191
      %v1202 = vpack.c.b16 %v1194, %v1193
      %1211 = vmatprep.subr.bf16.mxu0 0
      %1212 = vmatpush1.bf16.msra.mxu0 %v1195
      %1213 = vmatprep.subr.bf16.mxu0 0
      %1214 = vmatpush1.bf16.msra.mxu0 %v1196
      %1215 = vmatprep.subr.bf16.mxu0 0
      %1216 = vmatpush1.bf16.msra.mxu0 %v1197
      %1217 = vmatprep.subr.bf16.mxu0 0
      %1218 = vmatpush1.bf16.msra.mxu0 %v1198
      %1219 = vmatprep.subr.bf16.mxu0 0
      %1220 = vmatpush1.bf16.msra.mxu0 %v1199
      %1221 = vmatprep.subr.bf16.mxu0 0
      %1222 = vmatpush1.bf16.msra.mxu0 %v1200
      %1223 = vmatprep.subr.bf16.mxu0 0
      %1224 = vmatpush1.bf16.msra.mxu0 %v1201
      %1225 = vmatprep.subr.bf16.mxu0 0
      %1226 = vmatpush1.bf16.msra.mxu0 %v1202
      %1227 = vmatprep.subr.bf16.mxu0 0
      %1228 = vmatpush1.bf16.msra.mxu0 0
      %1229 = vmatprep.subr.bf16.mxu0 0
      %1230 = vmatpush1.bf16.msra.mxu0 0
      %1231 = vmatprep.subr.bf16.mxu0 0
      %1232 = vmatpush1.bf16.msra.mxu0 0
      %1233 = vmatprep.subr.bf16.mxu0 0
      %1234 = vmatpush1.bf16.msra.mxu0 0
      %1235 = vmatprep.subr.bf16.mxu0 0
      %1236 = vmatpush1.bf16.msra.mxu0 0
      %1237 = vmatprep.subr.bf16.mxu0 0
      %1238 = vmatpush1.bf16.msra.mxu0 0
      %1239 = vmatprep.subr.bf16.mxu0 0
      %1240 = vmatpush1.bf16.msra.mxu0 0
      %1241 = vmatprep.subr.bf16.mxu0 0
      %1242 = vmatpush1.bf16.msra.mxu0 0
      %1243 = vmatprep.mubr.bf16.mxu0 0
      %1244 = vmatmul.mubr.bf16.gmra.mrb[0].mxu0 %v1146
      %v1245 = vpop.f32.mrb[0].mxu0
      %v1246 = vadd.f32 0.0, %v1245
      %v1247 = vpop.f32.mrb[0].mxu0
      %v1248 = vpop.f32.mrb[0].mxu0
      %v1249 = vpop.f32.mrb[0].mxu0
      %1250 = vdwg.mxu0
      %v1251 = vadd.f32 %v330, %v1246
      %v1253 = vshrl.u32 %v495, 16
      %v1256 = vshrl.u32 %v496, 16
      %v1259 = vshrl.u32 %v497, 16
      %v1262 = vshrl.u32 %v498, 16
      %v1265 = vshrl.u32 %v499, 16
      %v1268 = vshrl.u32 %v500, 16
      %v1271 = vshrl.u32 %v501, 16
      %v1274 = vshrl.u32 %v502, 16
      %v1277 = vshrl.u32 %v503, 16
      %1288 = vmatprep.subr.bf16.mxu0 0
      %1289 = vmatpush1.bf16.msra.mxu0 %v801
      %1290 = vmatprep.subr.bf16.mxu0 0
      %1291 = vmatpush1.bf16.msra.mxu0 %v802
      %1292 = vmatprep.subr.bf16.mxu0 0
      %1293 = vmatpush1.bf16.msra.mxu0 %v803
      %1294 = vmatprep.subr.bf16.mxu0 0
      %1295 = vmatpush1.bf16.msra.mxu0 %v804
      %1296 = vmatprep.subr.bf16.mxu0 0
      %1297 = vmatpush1.bf16.msra.mxu0 %v805
      %1298 = vmatprep.subr.bf16.mxu0 0
      %1299 = vmatpush1.bf16.msra.mxu0 %v806
      %1300 = vmatprep.subr.bf16.mxu0 0
      %1301 = vmatpush1.bf16.msra.mxu0 %v807
      %1302 = vmatprep.subr.bf16.mxu0 0
      %1303 = vmatpush1.bf16.msra.mxu0 %v808
      %1304 = vmatprep.subr.bf16.mxu0 0
      %1305 = vmatpush1.bf16.msra.mxu0 %v809
      %1306 = vmatprep.subr.bf16.mxu0 0
      %1307 = vmatpush1.bf16.msra.mxu0 %v810
      %1308 = vmatprep.subr.bf16.mxu0 0
      %1309 = vmatpush1.bf16.msra.mxu0 %v811
      %1310 = vmatprep.subr.bf16.mxu0 0
      %1311 = vmatpush1.bf16.msra.mxu0 %v812
      %1312 = vmatprep.subr.bf16.mxu0 0
      %1313 = vmatpush1.bf16.msra.mxu0 %v813
      %1314 = vmatprep.subr.bf16.mxu0 0
      %1315 = vmatpush1.bf16.msra.mxu0 %v814
      %1316 = vmatprep.subr.bf16.mxu0 0
      %1317 = vmatpush1.bf16.msra.mxu0 %v815
      %1318 = vmatprep.subr.bf16.mxu0 0
      %1319 = vmatpush1.bf16.msra.mxu0 %v816
      %1320 = vmatprep.mubr.bf16.mxu0 %v1256
      %1321 = vmatmul.mubr.bf16.gmra.mrb[0].mxu0 %v1253
      %v1322 = vpop.f32.mrb[0].mxu0
      %v1323 = vadd.f32 %v480, %v1322
      %v1324 = vpop.f32.mrb[0].mxu0
      %v1325 = vpop.f32.mrb[0].mxu0
      %v1326 = vpop.f32.mrb[0].mxu0
      %1327 = vdwg.mxu0
      %1328 = vmatprep.subr.bf16.mxu0 0
      %1329 = vmatpush1.bf16.msra.mxu0 %v817
      %1330 = vmatprep.subr.bf16.mxu0 0
      %1331 = vmatpush1.bf16.msra.mxu0 %v818
      %1332 = vmatprep.subr.bf16.mxu0 0
      %1333 = vmatpush1.bf16.msra.mxu0 %v819
      %1334 = vmatprep.subr.bf16.mxu0 0
      %1335 = vmatpush1.bf16.msra.mxu0 %v820
      %1336 = vmatprep.subr.bf16.mxu0 0
      %1337 = vmatpush1.bf16.msra.mxu0 %v821
      %1338 = vmatprep.subr.bf16.mxu0 0
      %1339 = vmatpush1.bf16.msra.mxu0 %v822
      %1340 = vmatprep.subr.bf16.mxu0 0
      %1341 = vmatpush1.bf16.msra.mxu0 %v823
      %1342 = vmatprep.subr.bf16.mxu0 0
      %1343 = vmatpush1.bf16.msra.mxu0 %v824
      %1344 = vmatprep.subr.bf16.mxu0 0
      %1345 = vmatpush1.bf16.msra.mxu0 %v825
      %1346 = vmatprep.subr.bf16.mxu0 0
      %1347 = vmatpush1.bf16.msra.mxu0 %v826
      %1348 = vmatprep.subr.bf16.mxu0 0
      %1349 = vmatpush1.bf16.msra.mxu0 %v827
      %1350 = vmatprep.subr.bf16.mxu0 0
      %1351 = vmatpush1.bf16.msra.mxu0 %v828
      %1352 = vmatprep.subr.bf16.mxu0 0
      %1353 = vmatpush1.bf16.msra.mxu0 %v829
      %1354 = vmatprep.subr.bf16.mxu0 0
      %1355 = vmatpush1.bf16.msra.mxu0 %v830
      %1356 = vmatprep.subr.bf16.mxu0 0
      %1357 = vmatpush1.bf16.msra.mxu0 %v831
      %1358 = vmatprep.subr.bf16.mxu0 0
      %1359 = vmatpush1.bf16.msra.mxu0 %v832
      %1360 = vmatprep.mubr.bf16.mxu0 %v1262
      %1361 = vmatmul.mubr.bf16.gmra.mrb[0].mxu0 %v1259
      %v1362 = vpop.f32.mrb[0].mxu0
      %v1363 = vadd.f32 %v1323, %v1362
      %v1364 = vpop.f32.mrb[0].mxu0
      %v1365 = vpop.f32.mrb[0].mxu0
      %v1366 = vpop.f32.mrb[0].mxu0
      %1367 = vdwg.mxu0
      %1368 = vmatprep.subr.bf16.mxu0 0
      %1369 = vmatpush1.bf16.msra.mxu0 %v833
      %1370 = vmatprep.subr.bf16.mxu0 0
      %1371 = vmatpush1.bf16.msra.mxu0 %v834
      %1372 = vmatprep.subr.bf16.mxu0 0
      %1373 = vmatpush1.bf16.msra.mxu0 %v835
      %1374 = vmatprep.subr.bf16.mxu0 0
      %1375 = vmatpush1.bf16.msra.mxu0 %v836
      %1376 = vmatprep.subr.bf16.mxu0 0
      %1377 = vmatpush1.bf16.msra.mxu0 %v837
      %1378 = vmatprep.subr.bf16.mxu0 0
      %1379 = vmatpush1.bf16.msra.mxu0 %v838
      %1380 = vmatprep.subr.bf16.mxu0 0
      %1381 = vmatpush1.bf16.msra.mxu0 %v839
      %1382 = vmatprep.subr.bf16.mxu0 0
      %1383 = vmatpush1.bf16.msra.mxu0 %v840
      %1384 = vmatprep.subr.bf16.mxu0 0
      %1385 = vmatpush1.bf16.msra.mxu0 %v841
      %1386 = vmatprep.subr.bf16.mxu0 0
      %1387 = vmatpush1.bf16.msra.mxu0 %v842
      %1388 = vmatprep.subr.bf16.mxu0 0
      %1389 = vmatpush1.bf16.msra.mxu0 %v843
      %1390 = vmatprep.subr.bf16.mxu0 0
      %1391 = vmatpush1.bf16.msra.mxu0 %v844
      %1392 = vmatprep.subr.bf16.mxu0 0
      %1393 = vmatpush1.bf16.msra.mxu0 %v845
      %1394 = vmatprep.subr.bf16.mxu0 0
      %1395 = vmatpush1.bf16.msra.mxu0 %v846
      %1396 = vmatprep.subr.bf16.mxu0 0
      %1397 = vmatpush1.bf16.msra.mxu0 %v847
      %1398 = vmatprep.subr.bf16.mxu0 0
      %1399 = vmatpush1.bf16.msra.mxu0 %v848
      %1400 = vmatprep.mubr.bf16.mxu0 %v1268
      %1401 = vmatmul.mubr.bf16.gmra.mrb[0].mxu0 %v1265
      %v1402 = vpop.f32.mrb[0].mxu0
      %v1403 = vadd.f32 %v1363, %v1402
      %v1404 = vpop.f32.mrb[0].mxu0
      %v1405 = vpop.f32.mrb[0].mxu0
      %v1406 = vpop.f32.mrb[0].mxu0
      %1407 = vdwg.mxu0
      %1408 = vmatprep.subr.bf16.mxu0 0
      %1409 = vmatpush1.bf16.msra.mxu0 %v849
      %1410 = vmatprep.subr.bf16.mxu0 0
      %1411 = vmatpush1.bf16.msra.mxu0 %v850
      %1412 = vmatprep.subr.bf16.mxu0 0
      %1413 = vmatpush1.bf16.msra.mxu0 %v851
      %1414 = vmatprep.subr.bf16.mxu0 0
      %1415 = vmatpush1.bf16.msra.mxu0 %v852
      %1416 = vmatprep.subr.bf16.mxu0 0
      %1417 = vmatpush1.bf16.msra.mxu0 %v853
      %1418 = vmatprep.subr.bf16.mxu0 0
      %1419 = vmatpush1.bf16.msra.mxu0 %v854
      %1420 = vmatprep.subr.bf16.mxu0 0
      %1421 = vmatpush1.bf16.msra.mxu0 %v855
      %1422 = vmatprep.subr.bf16.mxu0 0
      %1423 = vmatpush1.bf16.msra.mxu0 %v856
      %1424 = vmatprep.subr.bf16.mxu0 0
      %1425 = vmatpush1.bf16.msra.mxu0 %v857
      %1426 = vmatprep.subr.bf16.mxu0 0
      %1427 = vmatpush1.bf16.msra.mxu0 %v858
      %1428 = vmatprep.subr.bf16.mxu0 0
      %1429 = vmatpush1.bf16.msra.mxu0 %v859
      %1430 = vmatprep.subr.bf16.mxu0 0
      %1431 = vmatpush1.bf16.msra.mxu0 %v860
      %1432 = vmatprep.subr.bf16.mxu0 0
      %1433 = vmatpush1.bf16.msra.mxu0 %v861
      %1434 = vmatprep.subr.bf16.mxu0 0
      %1435 = vmatpush1.bf16.msra.mxu0 %v862
      %1436 = vmatprep.subr.bf16.mxu0 0
      %1437 = vmatpush1.bf16.msra.mxu0 %v863
      %1438 = vmatprep.subr.bf16.mxu0 0
      %1439 = vmatpush1.bf16.msra.mxu0 %v864
      %1440 = vmatprep.mubr.bf16.mxu0 %v1274
      %1441 = vmatmul.mubr.bf16.gmra.mrb[0].mxu0 %v1271
      %v1442 = vpop.f32.mrb[0].mxu0
      %v1443 = vadd.f32 %v1403, %v1442
      %v1444 = vpop.f32.mrb[0].mxu0
      %v1445 = vpop.f32.mrb[0].mxu0
      %v1446 = vpop.f32.mrb[0].mxu0
      %1447 = vdwg.mxu0
      %1448 = vmatprep.subr.bf16.mxu0 0
      %1449 = vmatpush1.bf16.msra.mxu0 %v865
      %1450 = vmatprep.subr.bf16.mxu0 0
      %1451 = vmatpush1.bf16.msra.mxu0 %v866
      %1452 = vmatprep.subr.bf16.mxu0 0
      %1453 = vmatpush1.bf16.msra.mxu0 %v867
      %1454 = vmatprep.subr.bf16.mxu0 0
      %1455 = vmatpush1.bf16.msra.mxu0 %v868
      %1456 = vmatprep.subr.bf16.mxu0 0
      %1457 = vmatpush1.bf16.msra.mxu0 %v869
      %1458 = vmatprep.subr.bf16.mxu0 0
      %1459 = vmatpush1.bf16.msra.mxu0 %v870
      %1460 = vmatprep.subr.bf16.mxu0 0
      %1461 = vmatpush1.bf16.msra.mxu0 %v871
      %1462 = vmatprep.subr.bf16.mxu0 0
      %1463 = vmatpush1.bf16.msra.mxu0 %v872
      %1464 = vmatprep.subr.bf16.mxu0 0
      %1465 = vmatpush1.bf16.msra.mxu0 0
      %1466 = vmatprep.subr.bf16.mxu0 0
      %1467 = vmatpush1.bf16.msra.mxu0 0
      %1468 = vmatprep.subr.bf16.mxu0 0
      %1469 = vmatpush1.bf16.msra.mxu0 0
      %1470 = vmatprep.subr.bf16.mxu0 0
      %1471 = vmatpush1.bf16.msra.mxu0 0
      %1472 = vmatprep.subr.bf16.mxu0 0
      %1473 = vmatpush1.bf16.msra.mxu0 0
      %1474 = vmatprep.subr.bf16.mxu0 0
      %1475 = vmatpush1.bf16.msra.mxu0 0
      %1476 = vmatprep.subr.bf16.mxu0 0
      %1477 = vmatpush1.bf16.msra.mxu0 0
      %1478 = vmatprep.subr.bf16.mxu0 0
      %1479 = vmatpush1.bf16.msra.mxu0 0
      %1480 = vmatprep.mubr.bf16.mxu0 0
      %1481 = vmatmul.mubr.bf16.gmra.mrb[0].mxu0 %v1277
      %v1482 = vpop.f32.mrb[0].mxu0
      %v1483 = vadd.f32 %v1443, %v1482
      %v1484 = vpop.f32.mrb[0].mxu0
      %v1485 = vpop.f32.mrb[0].mxu0
      %v1486 = vpop.f32.mrb[0].mxu0
      %1487 = vdwg.mxu0
      %v1488 = vmax.f32 %v1483, 0.0
      %v1489 = vpack.c.bf16 %v1488, %v1488
      %s1490 = scalar_lea.vmem %s3, 64
      %v1491 = vld [vmem:[%s1490] sm:$0xf]
      %v1492 = vld [vmem:[%s1490 + $0x4] sm:$0xf]
      %v1493 = vld [vmem:[%s1490 + $0x8] sm:$0xf]
      %v1494 = vld [vmem:[%s1490 + $0xc] sm:$0xf]
      %v1495 = vld [vmem:[%s1490 + $0x10] sm:$0xf]
      %v1496 = vld [vmem:[%s1490 + $0x14] sm:$0xf]
      %v1497 = vld [vmem:[%s1490 + $0x18] sm:$0xf]
      %v1498 = vld [vmem:[%s1490 + $0x1c] sm:$0xf]
      %v1499 = vld [vmem:[%s1490 + $0x20] sm:$0xf]
      %v1500 = vld [vmem:[%s1490 + $0x24] sm:$0xf]
      %v1501 = vld [vmem:[%s1490 + $0x28] sm:$0xf]
      %v1502 = vld [vmem:[%s1490 + $0x2c] sm:$0xf]
      %v1503 = vld [vmem:[%s1490 + $0x30] sm:$0xf]
      %v1504 = vld [vmem:[%s1490 + $0x34] sm:$0xf]
      %v1505 = vld [vmem:[%s1490 + $0x38] sm:$0xf]
      %v1506 = vld [vmem:[%s1490 + $0x3c] sm:$0xf]
      %v1523 = vunpack.c.l.b16 %v1491
      %v1524 = vunpack.c.l.b16 %v1492
      %v1525 = vunpack.c.l.b16 %v1493
      %v1526 = vunpack.c.l.b16 %v1494
      %v1527 = vunpack.c.l.b16 %v1495
      %v1528 = vunpack.c.l.b16 %v1496
      %v1529 = vunpack.c.l.b16 %v1497
      %v1530 = vunpack.c.l.b16 %v1498
      %v1531 = vunpack.c.l.b16 %v1499
      %v1532 = vunpack.c.l.b16 %v1500
      %v1533 = vunpack.c.l.b16 %v1501
      %v1534 = vunpack.c.l.b16 %v1502
      %v1535 = vunpack.c.l.b16 %v1503
      %v1536 = vunpack.c.l.b16 %v1504
      %v1537 = vunpack.c.l.b16 %v1505
      %v1538 = vunpack.c.l.b16 %v1506
      %v1539 = vpack.c.b16 %v1524, %v1523
      %v1540 = vpack.c.b16 %v1526, %v1525
      %v1541 = vpack.c.b16 %v1528, %v1527
      %v1542 = vpack.c.b16 %v1530, %v1529
      %v1543 = vpack.c.b16 %v1532, %v1531
      %v1544 = vpack.c.b16 %v1534, %v1533
      %v1545 = vpack.c.b16 %v1536, %v1535
      %v1546 = vpack.c.b16 %v1538, %v1537
      %1555 = vmatprep.subr.bf16.mxu0 0
      %1556 = vmatpush1.bf16.msra.mxu0 %v1539
      %1557 = vmatprep.subr.bf16.mxu0 0
      %1558 = vmatpush1.bf16.msra.mxu0 %v1540
      %1559 = vmatprep.subr.bf16.mxu0 0
      %1560 = vmatpush1.bf16.msra.mxu0 %v1541
      %1561 = vmatprep.subr.bf16.mxu0 0
      %1562 = vmatpush1.bf16.msra.mxu0 %v1542
      %1563 = vmatprep.subr.bf16.mxu0 0
      %1564 = vmatpush1.bf16.msra.mxu0 %v1543
      %1565 = vmatprep.subr.bf16.mxu0 0
      %1566 = vmatpush1.bf16.msra.mxu0 %v1544
      %1567 = vmatprep.subr.bf16.mxu0 0
      %1568 = vmatpush1.bf16.msra.mxu0 %v1545
      %1569 = vmatprep.subr.bf16.mxu0 0
      %1570 = vmatpush1.bf16.msra.mxu0 %v1546
      %1571 = vmatprep.subr.bf16.mxu0 0
      %1572 = vmatpush1.bf16.msra.mxu0 0
      %1573 = vmatprep.subr.bf16.mxu0 0
      %1574 = vmatpush1.bf16.msra.mxu0 0
      %1575 = vmatprep.subr.bf16.mxu0 0
      %1576 = vmatpush1.bf16.msra.mxu0 0
      %1577 = vmatprep.subr.bf16.mxu0 0
      %1578 = vmatpush1.bf16.msra.mxu0 0
      %1579 = vmatprep.subr.bf16.mxu0 0
      %1580 = vmatpush1.bf16.msra.mxu0 0
      %1581 = vmatprep.subr.bf16.mxu0 0
      %1582 = vmatpush1.bf16.msra.mxu0 0
      %1583 = vmatprep.subr.bf16.mxu0 0
      %1584 = vmatpush1.bf16.msra.mxu0 0
      %1585 = vmatprep.subr.bf16.mxu0 0
      %1586 = vmatpush1.bf16.msra.mxu0 0
      %1587 = vmatprep.mubr.bf16.mxu0 0
      %1588 = vmatmul.mubr.bf16.gmra.mrb[0].mxu0 %v1489
      %v1589 = vpop.f32.mrb[0].mxu0
      %v1590 = vadd.f32 0.0, %v1589
      %v1591 = vpop.f32.mrb[0].mxu0
      %v1592 = vpop.f32.mrb[0].mxu0
      %v1593 = vpop.f32.mrb[0].mxu0
      %1594 = vdwg.mxu0
      %v1595 = vadd.f32 %v1251, %v1590
      %v1596 = vld [vmem:[%s325] sm:$0x22]
      %v1597 = vld [vmem:[%s325 + $0x8] sm:$0x22]
      %v1598 = vld [vmem:[%s325 + $0x10] sm:$0x22]
      %v1599 = vld [vmem:[%s325 + $0x18] sm:$0x22]
      %v1600 = vld [vmem:[%s325 + $0x20] sm:$0x2]
      %v1606 = vunpack.c.l.b16 %v1596
      %v1607 = vunpack.c.h.b16 %v1596
      %v1608 = vunpack.c.l.b16 %v1597
      %v1609 = vunpack.c.h.b16 %v1597
      %v1610 = vunpack.c.l.b16 %v1598
      %v1611 = vunpack.c.h.b16 %v1598
      %v1612 = vunpack.c.l.b16 %v1599
      %v1613 = vunpack.c.h.b16 %v1599
      %v1614 = vunpack.c.l.b16 %v1600
      %v1615 = vpack.c.b16 %v1606, %v1606
      %v1616 = vpack.c.b16 %v1607, %v1607
      %v1617 = vpack.c.b16 %v1608, %v1608
      %v1618 = vpack.c.b16 %v1609, %v1609
      %v1619 = vpack.c.b16 %v1610, %v1610
      %v1620 = vpack.c.b16 %v1611, %v1611
      %v1621 = vpack.c.b16 %v1612, %v1612
      %v1622 = vpack.c.b16 %v1613, %v1613
      %v1623 = vpack.c.b16 %v1614, %v1614
      %v1624 = vrot.slane %v1615, 1
      %v1625 = vrot.slane %v1616, 1
      %v1626 = vrot.slane %v1617, 1
      %v1627 = vrot.slane %v1618, 1
      %v1628 = vrot.slane %v1619, 1
      %v1629 = vrot.slane %v1620, 1
      %v1630 = vrot.slane %v1621, 1
      %v1631 = vrot.slane %v1622, 1
      %v1632 = vrot.slane %v1623, 1
      %1642 = vmatprep.subr.bf16.mxu0 0
      %1643 = vmatpush1.bf16.msra.mxu0 %v801
      %1644 = vmatprep.subr.bf16.mxu0 0
      %1645 = vmatpush1.bf16.msra.mxu0 %v802
      %1646 = vmatprep.subr.bf16.mxu0 0
      %1647 = vmatpush1.bf16.msra.mxu0 %v803
      %1648 = vmatprep.subr.bf16.mxu0 0
      %1649 = vmatpush1.bf16.msra.mxu0 %v804
      %1650 = vmatprep.subr.bf16.mxu0 0
      %1651 = vmatpush1.bf16.msra.mxu0 %v805
      %1652 = vmatprep.subr.bf16.mxu0 0
      %1653 = vmatpush1.bf16.msra.mxu0 %v806
      %1654 = vmatprep.subr.bf16.mxu0 0
      %1655 = vmatpush1.bf16.msra.mxu0 %v807
      %1656 = vmatprep.subr.bf16.mxu0 0
      %1657 = vmatpush1.bf16.msra.mxu0 %v808
      %1658 = vmatprep.subr.bf16.mxu0 0
      %1659 = vmatpush1.bf16.msra.mxu0 %v809
      %1660 = vmatprep.subr.bf16.mxu0 0
      %1661 = vmatpush1.bf16.msra.mxu0 %v810
      %1662 = vmatprep.subr.bf16.mxu0 0
      %1663 = vmatpush1.bf16.msra.mxu0 %v811
      %1664 = vmatprep.subr.bf16.mxu0 0
      %1665 = vmatpush1.bf16.msra.mxu0 %v812
      %1666 = vmatprep.subr.bf16.mxu0 0
      %1667 = vmatpush1.bf16.msra.mxu0 %v813
      %1668 = vmatprep.subr.bf16.mxu0 0
      %1669 = vmatpush1.bf16.msra.mxu0 %v814
      %1670 = vmatprep.subr.bf16.mxu0 0
      %1671 = vmatpush1.bf16.msra.mxu0 %v815
      %1672 = vmatprep.subr.bf16.mxu0 0
      %1673 = vmatpush1.bf16.msra.mxu0 %v816
      %1674 = vmatprep.mubr.bf16.mxu0 %v1625
      %1675 = vmatmul.mubr.bf16.gmra.mrb[0].mxu0 %v1624
      %v1676 = vpop.f32.mrb[0].mxu0
      %v1677 = vadd.f32 %v480, %v1676
      %v1678 = vpop.f32.mrb[0].mxu0
      %v1679 = vpop.f32.mrb[0].mxu0
      %v1680 = vpop.f32.mrb[0].mxu0
      %1681 = vdwg.mxu0
      %1682 = vmatprep.subr.bf16.mxu0 0
      %1683 = vmatpush1.bf16.msra.mxu0 %v817
      %1684 = vmatprep.subr.bf16.mxu0 0
      %1685 = vmatpush1.bf16.msra.mxu0 %v818
      %1686 = vmatprep.subr.bf16.mxu0 0
      %1687 = vmatpush1.bf16.msra.mxu0 %v819
      %1688 = vmatprep.subr.bf16.mxu0 0
      %1689 = vmatpush1.bf16.msra.mxu0 %v820
      %1690 = vmatprep.subr.bf16.mxu0 0
      %1691 = vmatpush1.bf16.msra.mxu0 %v821
      %1692 = vmatprep.subr.bf16.mxu0 0
      %1693 = vmatpush1.bf16.msra.mxu0 %v822
      %1694 = vmatprep.subr.bf16.mxu0 0
      %1695 = vmatpush1.bf16.msra.mxu0 %v823
      %1696 = vmatprep.subr.bf16.mxu0 0
      %1697 = vmatpush1.bf16.msra.mxu0 %v824
      %1698 = vmatprep.subr.bf16.mxu0 0
      %1699 = vmatpush1.bf16.msra.mxu0 %v825
      %1700 = vmatprep.subr.bf16.mxu0 0
      %1701 = vmatpush1.bf16.msra.mxu0 %v826
      %1702 = vmatprep.subr.bf16.mxu0 0
      %1703 = vmatpush1.bf16.msra.mxu0 %v827
      %1704 = vmatprep.subr.bf16.mxu0 0
      %1705 = vmatpush1.bf16.msra.mxu0 %v828
      %1706 = vmatprep.subr.bf16.mxu0 0
      %1707 = vmatpush1.bf16.msra.mxu0 %v829
      %1708 = vmatprep.subr.bf16.mxu0 0
      %1709 = vmatpush1.bf16.msra.mxu0 %v830
      %1710 = vmatprep.subr.bf16.mxu0 0
      %1711 = vmatpush1.bf16.msra.mxu0 %v831
      %1712 = vmatprep.subr.bf16.mxu0 0
      %1713 = vmatpush1.bf16.msra.mxu0 %v832
      %1714 = vmatprep.mubr.bf16.mxu0 %v1627
      %1715 = vmatmul.mubr.bf16.gmra.mrb[0].mxu0 %v1626
      %v1716 = vpop.f32.mrb[0].mxu0
      %v1717 = vadd.f32 %v1677, %v1716
      %v1718 = vpop.f32.mrb[0].mxu0
      %v1719 = vpop.f32.mrb[0].mxu0
      %v1720 = vpop.f32.mrb[0].mxu0
      %1721 = vdwg.mxu0
      %1722 = vmatprep.subr.bf16.mxu0 0
      %1723 = vmatpush1.bf16.msra.mxu0 %v833
      %1724 = vmatprep.subr.bf16.mxu0 0
      %1725 = vmatpush1.bf16.msra.mxu0 %v834
      %1726 = vmatprep.subr.bf16.mxu0 0
      %1727 = vmatpush1.bf16.msra.mxu0 %v835
      %1728 = vmatprep.subr.bf16.mxu0 0
      %1729 = vmatpush1.bf16.msra.mxu0 %v836
      %1730 = vmatprep.subr.bf16.mxu0 0
      %1731 = vmatpush1.bf16.msra.mxu0 %v837
      %1732 = vmatprep.subr.bf16.mxu0 0
      %1733 = vmatpush1.bf16.msra.mxu0 %v838
      %1734 = vmatprep.subr.bf16.mxu0 0
      %1735 = vmatpush1.bf16.msra.mxu0 %v839
      %1736 = vmatprep.subr.bf16.mxu0 0
      %1737 = vmatpush1.bf16.msra.mxu0 %v840
      %1738 = vmatprep.subr.bf16.mxu0 0
      %1739 = vmatpush1.bf16.msra.mxu0 %v841
      %1740 = vmatprep.subr.bf16.mxu0 0
      %1741 = vmatpush1.bf16.msra.mxu0 %v842
      %1742 = vmatprep.subr.bf16.mxu0 0
      %1743 = vmatpush1.bf16.msra.mxu0 %v843
      %1744 = vmatprep.subr.bf16.mxu0 0
      %1745 = vmatpush1.bf16.msra.mxu0 %v844
      %1746 = vmatprep.subr.bf16.mxu0 0
      %1747 = vmatpush1.bf16.msra.mxu0 %v845
      %1748 = vmatprep.subr.bf16.mxu0 0
      %1749 = vmatpush1.bf16.msra.mxu0 %v846
      %1750 = vmatprep.subr.bf16.mxu0 0
      %1751 = vmatpush1.bf16.msra.mxu0 %v847
      %1752 = vmatprep.subr.bf16.mxu0 0
      %1753 = vmatpush1.bf16.msra.mxu0 %v848
      %1754 = vmatprep.mubr.bf16.mxu0 %v1629
      %1755 = vmatmul.mubr.bf16.gmra.mrb[0].mxu0 %v1628
      %v1756 = vpop.f32.mrb[0].mxu0
      %v1757 = vadd.f32 %v1717, %v1756
      %v1758 = vpop.f32.mrb[0].mxu0
      %v1759 = vpop.f32.mrb[0].mxu0
      %v1760 = vpop.f32.mrb[0].mxu0
      %1761 = vdwg.mxu0
      %1762 = vmatprep.subr.bf16.mxu0 0
      %1763 = vmatpush1.bf16.msra.mxu0 %v849
      %1764 = vmatprep.subr.bf16.mxu0 0
      %1765 = vmatpush1.bf16.msra.mxu0 %v850
      %1766 = vmatprep.subr.bf16.mxu0 0
      %1767 = vmatpush1.bf16.msra.mxu0 %v851
      %1768 = vmatprep.subr.bf16.mxu0 0
      %1769 = vmatpush1.bf16.msra.mxu0 %v852
      %1770 = vmatprep.subr.bf16.mxu0 0
      %1771 = vmatpush1.bf16.msra.mxu0 %v853
      %1772 = vmatprep.subr.bf16.mxu0 0
      %1773 = vmatpush1.bf16.msra.mxu0 %v854
      %1774 = vmatprep.subr.bf16.mxu0 0
      %1775 = vmatpush1.bf16.msra.mxu0 %v855
      %1776 = vmatprep.subr.bf16.mxu0 0
      %1777 = vmatpush1.bf16.msra.mxu0 %v856
      %1778 = vmatprep.subr.bf16.mxu0 0
      %1779 = vmatpush1.bf16.msra.mxu0 %v857
      %1780 = vmatprep.subr.bf16.mxu0 0
      %1781 = vmatpush1.bf16.msra.mxu0 %v858
      %1782 = vmatprep.subr.bf16.mxu0 0
      %1783 = vmatpush1.bf16.msra.mxu0 %v859
      %1784 = vmatprep.subr.bf16.mxu0 0
      %1785 = vmatpush1.bf16.msra.mxu0 %v860
      %1786 = vmatprep.subr.bf16.mxu0 0
      %1787 = vmatpush1.bf16.msra.mxu0 %v861
      %1788 = vmatprep.subr.bf16.mxu0 0
      %1789 = vmatpush1.bf16.msra.mxu0 %v862
      %1790 = vmatprep.subr.bf16.mxu0 0
      %1791 = vmatpush1.bf16.msra.mxu0 %v863
      %1792 = vmatprep.subr.bf16.mxu0 0
      %1793 = vmatpush1.bf16.msra.mxu0 %v864
      %1794 = vmatprep.mubr.bf16.mxu0 %v1631
      %1795 = vmatmul.mubr.bf16.gmra.mrb[0].mxu0 %v1630
      %v1796 = vpop.f32.mrb[0].mxu0
      %v1797 = vadd.f32 %v1757, %v1796
      %v1798 = vpop.f32.mrb[0].mxu0
      %v1799 = vpop.f32.mrb[0].mxu0
      %v1800 = vpop.f32.mrb[0].mxu0
      %1801 = vdwg.mxu0
      %1802 = vmatprep.subr.bf16.mxu0 0
      %1803 = vmatpush1.bf16.msra.mxu0 %v865
      %1804 = vmatprep.subr.bf16.mxu0 0
      %1805 = vmatpush1.bf16.msra.mxu0 %v866
      %1806 = vmatprep.subr.bf16.mxu0 0
      %1807 = vmatpush1.bf16.msra.mxu0 %v867
      %1808 = vmatprep.subr.bf16.mxu0 0
      %1809 = vmatpush1.bf16.msra.mxu0 %v868
      %1810 = vmatprep.subr.bf16.mxu0 0
      %1811 = vmatpush1.bf16.msra.mxu0 %v869
      %1812 = vmatprep.subr.bf16.mxu0 0
      %1813 = vmatpush1.bf16.msra.mxu0 %v870
      %1814 = vmatprep.subr.bf16.mxu0 0
      %1815 = vmatpush1.bf16.msra.mxu0 %v871
      %1816 = vmatprep.subr.bf16.mxu0 0
      %1817 = vmatpush1.bf16.msra.mxu0 %v872
      %1818 = vmatprep.subr.bf16.mxu0 0
      %1819 = vmatpush1.bf16.msra.mxu0 0
      %1820 = vmatprep.subr.bf16.mxu0 0
      %1821 = vmatpush1.bf16.msra.mxu0 0
      %1822 = vmatprep.subr.bf16.mxu0 0
      %1823 = vmatpush1.bf16.msra.mxu0 0
      %1824 = vmatprep.subr.bf16.mxu0 0
      %1825 = vmatpush1.bf16.msra.mxu0 0
      %1826 = vmatprep.subr.bf16.mxu0 0
      %1827 = vmatpush1.bf16.msra.mxu0 0
      %1828 = vmatprep.subr.bf16.mxu0 0
      %1829 = vmatpush1.bf16.msra.mxu0 0
      %1830 = vmatprep.subr.bf16.mxu0 0
      %1831 = vmatpush1.bf16.msra.mxu0 0
      %1832 = vmatprep.subr.bf16.mxu0 0
      %1833 = vmatpush1.bf16.msra.mxu0 0
      %1834 = vmatprep.mubr.bf16.mxu0 0
      %1835 = vmatmul.mubr.bf16.gmra.mrb[0].mxu0 %v1632
      %v1836 = vpop.f32.mrb[0].mxu0
      %v1837 = vadd.f32 %v1797, %v1836
      %v1838 = vpop.f32.mrb[0].mxu0
      %v1839 = vpop.f32.mrb[0].mxu0
      %v1840 = vpop.f32.mrb[0].mxu0
      %1841 = vdwg.mxu0
      %v1842 = vmax.f32 %v1837, 0.0
      %v1843 = vpack.c.bf16 %v1842, %v1842
      %s1844 = scalar_lea.vmem %s3, 128
      %v1845 = vld [vmem:[%s1844] sm:$0xf]
      %v1846 = vld [vmem:[%s1844 + $0x4] sm:$0xf]
      %v1847 = vld [vmem:[%s1844 + $0x8] sm:$0xf]
      %v1848 = vld [vmem:[%s1844 + $0xc] sm:$0xf]
      %v1849 = vld [vmem:[%s1844 + $0x10] sm:$0xf]
      %v1850 = vld [vmem:[%s1844 + $0x14] sm:$0xf]
      %v1851 = vld [vmem:[%s1844 + $0x18] sm:$0xf]
      %v1852 = vld [vmem:[%s1844 + $0x1c] sm:$0xf]
      %v1853 = vld [vmem:[%s1844 + $0x20] sm:$0xf]
      %v1854 = vld [vmem:[%s1844 + $0x24] sm:$0xf]
      %v1855 = vld [vmem:[%s1844 + $0x28] sm:$0xf]
      %v1856 = vld [vmem:[%s1844 + $0x2c] sm:$0xf]
      %v1857 = vld [vmem:[%s1844 + $0x30] sm:$0xf]
      %v1858 = vld [vmem:[%s1844 + $0x34] sm:$0xf]
      %v1859 = vld [vmem:[%s1844 + $0x38] sm:$0xf]
      %v1860 = vld [vmem:[%s1844 + $0x3c] sm:$0xf]
      %v1877 = vunpack.c.l.b16 %v1845
      %v1878 = vunpack.c.l.b16 %v1846
      %v1879 = vunpack.c.l.b16 %v1847
      %v1880 = vunpack.c.l.b16 %v1848
      %v1881 = vunpack.c.l.b16 %v1849
      %v1882 = vunpack.c.l.b16 %v1850
      %v1883 = vunpack.c.l.b16 %v1851
      %v1884 = vunpack.c.l.b16 %v1852
      %v1885 = vunpack.c.l.b16 %v1853
      %v1886 = vunpack.c.l.b16 %v1854
      %v1887 = vunpack.c.l.b16 %v1855
      %v1888 = vunpack.c.l.b16 %v1856
      %v1889 = vunpack.c.l.b16 %v1857
      %v1890 = vunpack.c.l.b16 %v1858
      %v1891 = vunpack.c.l.b16 %v1859
      %v1892 = vunpack.c.l.b16 %v1860
      %v1893 = vpack.c.b16 %v1878, %v1877
      %v1894 = vpack.c.b16 %v1880, %v1879
      %v1895 = vpack.c.b16 %v1882, %v1881
      %v1896 = vpack.c.b16 %v1884, %v1883
      %v1897 = vpack.c.b16 %v1886, %v1885
      %v1898 = vpack.c.b16 %v1888, %v1887
      %v1899 = vpack.c.b16 %v1890, %v1889
      %v1900 = vpack.c.b16 %v1892, %v1891
      %1909 = vmatprep.subr.bf16.mxu0 0
      %1910 = vmatpush1.bf16.msra.mxu0 %v1893
      %1911 = vmatprep.subr.bf16.mxu0 0
      %1912 = vmatpush1.bf16.msra.mxu0 %v1894
      %1913 = vmatprep.subr.bf16.mxu0 0
      %1914 = vmatpush1.bf16.msra.mxu0 %v1895
      %1915 = vmatprep.subr.bf16.mxu0 0
      %1916 = vmatpush1.bf16.msra.mxu0 %v1896
      %1917 = vmatprep.subr.bf16.mxu0 0
      %1918 = vmatpush1.bf16.msra.mxu0 %v1897
      %1919 = vmatprep.subr.bf16.mxu0 0
      %1920 = vmatpush1.bf16.msra.mxu0 %v1898
      %1921 = vmatprep.subr.bf16.mxu0 0
      %1922 = vmatpush1.bf16.msra.mxu0 %v1899
      %1923 = vmatprep.subr.bf16.mxu0 0
      %1924 = vmatpush1.bf16.msra.mxu0 %v1900
      %1925 = vmatprep.subr.bf16.mxu0 0
      %1926 = vmatpush1.bf16.msra.mxu0 0
      %1927 = vmatprep.subr.bf16.mxu0 0
      %1928 = vmatpush1.bf16.msra.mxu0 0
      %1929 = vmatprep.subr.bf16.mxu0 0
      %1930 = vmatpush1.bf16.msra.mxu0 0
      %1931 = vmatprep.subr.bf16.mxu0 0
      %1932 = vmatpush1.bf16.msra.mxu0 0
      %1933 = vmatprep.subr.bf16.mxu0 0
      %1934 = vmatpush1.bf16.msra.mxu0 0
      %1935 = vmatprep.subr.bf16.mxu0 0
      %1936 = vmatpush1.bf16.msra.mxu0 0
      %1937 = vmatprep.subr.bf16.mxu0 0
      %1938 = vmatpush1.bf16.msra.mxu0 0
      %1939 = vmatprep.subr.bf16.mxu0 0
      %1940 = vmatpush1.bf16.msra.mxu0 0
      %1941 = vmatprep.mubr.bf16.mxu0 0
      %1942 = vmatmul.mubr.bf16.gmra.mrb[0].mxu0 %v1843
      %v1943 = vpop.f32.mrb[0].mxu0
      %v1944 = vadd.f32 0.0, %v1943
      %v1945 = vpop.f32.mrb[0].mxu0
      %v1946 = vpop.f32.mrb[0].mxu0
      %v1947 = vpop.f32.mrb[0].mxu0
      %1948 = vdwg.mxu0
      %v1949 = vadd.f32 %v1595, %v1944
      %v1951 = vshrl.u32 %v1615, 16
      %v1953 = vrot.slane %v1951, 1
      %v1955 = vshrl.u32 %v1616, 16
      %v1957 = vrot.slane %v1955, 1
      %v1959 = vshrl.u32 %v1617, 16
      %v1961 = vrot.slane %v1959, 1
      %v1963 = vshrl.u32 %v1618, 16
      %v1965 = vrot.slane %v1963, 1
      %v1967 = vshrl.u32 %v1619, 16
      %v1969 = vrot.slane %v1967, 1
      %v1971 = vshrl.u32 %v1620, 16
      %v1973 = vrot.slane %v1971, 1
      %v1975 = vshrl.u32 %v1621, 16
      %v1977 = vrot.slane %v1975, 1
      %v1979 = vshrl.u32 %v1622, 16
      %v1981 = vrot.slane %v1979, 1
      %v1983 = vshrl.u32 %v1623, 16
      %v1985 = vrot.slane %v1983, 1
      %1995 = vmatprep.subr.bf16.mxu0 0
      %1996 = vmatpush1.bf16.msra.mxu0 %v801
      %1997 = vmatprep.subr.bf16.mxu0 0
      %1998 = vmatpush1.bf16.msra.mxu0 %v802
      %1999 = vmatprep.subr.bf16.mxu0 0
      %2000 = vmatpush1.bf16.msra.mxu0 %v803
      %2001 = vmatprep.subr.bf16.mxu0 0
      %2002 = vmatpush1.bf16.msra.mxu0 %v804
      %2003 = vmatprep.subr.bf16.mxu0 0
      %2004 = vmatpush1.bf16.msra.mxu0 %v805
      %2005 = vmatprep.subr.bf16.mxu0 0
      %2006 = vmatpush1.bf16.msra.mxu0 %v806
      %2007 = vmatprep.subr.bf16.mxu0 0
      %2008 = vmatpush1.bf16.msra.mxu0 %v807
      %2009 = vmatprep.subr.bf16.mxu0 0
      %2010 = vmatpush1.bf16.msra.mxu0 %v808
      %2011 = vmatprep.subr.bf16.mxu0 0
      %2012 = vmatpush1.bf16.msra.mxu0 %v809
      %2013 = vmatprep.subr.bf16.mxu0 0
      %2014 = vmatpush1.bf16.msra.mxu0 %v810
      %2015 = vmatprep.subr.bf16.mxu0 0
      %2016 = vmatpush1.bf16.msra.mxu0 %v811
      %2017 = vmatprep.subr.bf16.mxu0 0
      %2018 = vmatpush1.bf16.msra.mxu0 %v812
      %2019 = vmatprep.subr.bf16.mxu0 0
      %2020 = vmatpush1.bf16.msra.mxu0 %v813
      %2021 = vmatprep.subr.bf16.mxu0 0
      %2022 = vmatpush1.bf16.msra.mxu0 %v814
      %2023 = vmatprep.subr.bf16.mxu0 0
      %2024 = vmatpush1.bf16.msra.mxu0 %v815
      %2025 = vmatprep.subr.bf16.mxu0 0
      %2026 = vmatpush1.bf16.msra.mxu0 %v816
      %2027 = vmatprep.mubr.bf16.mxu0 %v1957
      %2028 = vmatmul.mubr.bf16.gmra.mrb[0].mxu0 %v1953
      %v2029 = vpop.f32.mrb[0].mxu0
      %v2030 = vadd.f32 %v480, %v2029
      %v2031 = vpop.f32.mrb[0].mxu0
      %v2032 = vpop.f32.mrb[0].mxu0
      %v2033 = vpop.f32.mrb[0].mxu0
      %2034 = vdwg.mxu0
      %2035 = vmatprep.subr.bf16.mxu0 0
      %2036 = vmatpush1.bf16.msra.mxu0 %v817
      %2037 = vmatprep.subr.bf16.mxu0 0
      %2038 = vmatpush1.bf16.msra.mxu0 %v818
      %2039 = vmatprep.subr.bf16.mxu0 0
      %2040 = vmatpush1.bf16.msra.mxu0 %v819
      %2041 = vmatprep.subr.bf16.mxu0 0
      %2042 = vmatpush1.bf16.msra.mxu0 %v820
      %2043 = vmatprep.subr.bf16.mxu0 0
      %2044 = vmatpush1.bf16.msra.mxu0 %v821
      %2045 = vmatprep.subr.bf16.mxu0 0
      %2046 = vmatpush1.bf16.msra.mxu0 %v822
      %2047 = vmatprep.subr.bf16.mxu0 0
      %2048 = vmatpush1.bf16.msra.mxu0 %v823
      %2049 = vmatprep.subr.bf16.mxu0 0
      %2050 = vmatpush1.bf16.msra.mxu0 %v824
      %2051 = vmatprep.subr.bf16.mxu0 0
      %2052 = vmatpush1.bf16.msra.mxu0 %v825
      %2053 = vmatprep.subr.bf16.mxu0 0
      %2054 = vmatpush1.bf16.msra.mxu0 %v826
      %2055 = vmatprep.subr.bf16.mxu0 0
      %2056 = vmatpush1.bf16.msra.mxu0 %v827
      %2057 = vmatprep.subr.bf16.mxu0 0
      %2058 = vmatpush1.bf16.msra.mxu0 %v828
      %2059 = vmatprep.subr.bf16.mxu0 0
      %2060 = vmatpush1.bf16.msra.mxu0 %v829
      %2061 = vmatprep.subr.bf16.mxu0 0
      %2062 = vmatpush1.bf16.msra.mxu0 %v830
      %2063 = vmatprep.subr.bf16.mxu0 0
      %2064 = vmatpush1.bf16.msra.mxu0 %v831
      %2065 = vmatprep.subr.bf16.mxu0 0
      %2066 = vmatpush1.bf16.msra.mxu0 %v832
      %2067 = vmatprep.mubr.bf16.mxu0 %v1965
      %2068 = vmatmul.mubr.bf16.gmra.mrb[0].mxu0 %v1961
      %v2069 = vpop.f32.mrb[0].mxu0
      %v2070 = vadd.f32 %v2030, %v2069
      %v2071 = vpop.f32.mrb[0].mxu0
      %v2072 = vpop.f32.mrb[0].mxu0
      %v2073 = vpop.f32.mrb[0].mxu0
      %2074 = vdwg.mxu0
      %2075 = vmatprep.subr.bf16.mxu0 0
      %2076 = vmatpush1.bf16.msra.mxu0 %v833
      %2077 = vmatprep.subr.bf16.mxu0 0
      %2078 = vmatpush1.bf16.msra.mxu0 %v834
      %2079 = vmatprep.subr.bf16.mxu0 0
      %2080 = vmatpush1.bf16.msra.mxu0 %v835
      %2081 = vmatprep.subr.bf16.mxu0 0
      %2082 = vmatpush1.bf16.msra.mxu0 %v836
      %2083 = vmatprep.subr.bf16.mxu0 0
      %2084 = vmatpush1.bf16.msra.mxu0 %v837
      %2085 = vmatprep.subr.bf16.mxu0 0
      %2086 = vmatpush1.bf16.msra.mxu0 %v838
      %2087 = vmatprep.subr.bf16.mxu0 0
      %2088 = vmatpush1.bf16.msra.mxu0 %v839
      %2089 = vmatprep.subr.bf16.mxu0 0
      %2090 = vmatpush1.bf16.msra.mxu0 %v840
      %2091 = vmatprep.subr.bf16.mxu0 0
      %2092 = vmatpush1.bf16.msra.mxu0 %v841
      %2093 = vmatprep.subr.bf16.mxu0 0
      %2094 = vmatpush1.bf16.msra.mxu0 %v842
      %2095 = vmatprep.subr.bf16.mxu0 0
      %2096 = vmatpush1.bf16.msra.mxu0 %v843
      %2097 = vmatprep.subr.bf16.mxu0 0
      %2098 = vmatpush1.bf16.msra.mxu0 %v844
      %2099 = vmatprep.subr.bf16.mxu0 0
      %2100 = vmatpush1.bf16.msra.mxu0 %v845
      %2101 = vmatprep.subr.bf16.mxu0 0
      %2102 = vmatpush1.bf16.msra.mxu0 %v846
      %2103 = vmatprep.subr.bf16.mxu0 0
      %2104 = vmatpush1.bf16.msra.mxu0 %v847
      %2105 = vmatprep.subr.bf16.mxu0 0
      %2106 = vmatpush1.bf16.msra.mxu0 %v848
      %2107 = vmatprep.mubr.bf16.mxu0 %v1973
      %2108 = vmatmul.mubr.bf16.gmra.mrb[0].mxu0 %v1969
      %v2109 = vpop.f32.mrb[0].mxu0
      %v2110 = vadd.f32 %v2070, %v2109
      %v2111 = vpop.f32.mrb[0].mxu0
      %v2112 = vpop.f32.mrb[0].mxu0
      %v2113 = vpop.f32.mrb[0].mxu0
      %2114 = vdwg.mxu0
      %2115 = vmatprep.subr.bf16.mxu0 0
      %2116 = vmatpush1.bf16.msra.mxu0 %v849
      %2117 = vmatprep.subr.bf16.mxu0 0
      %2118 = vmatpush1.bf16.msra.mxu0 %v850
      %2119 = vmatprep.subr.bf16.mxu0 0
      %2120 = vmatpush1.bf16.msra.mxu0 %v851
      %2121 = vmatprep.subr.bf16.mxu0 0
      %2122 = vmatpush1.bf16.msra.mxu0 %v852
      %2123 = vmatprep.subr.bf16.mxu0 0
      %2124 = vmatpush1.bf16.msra.mxu0 %v853
      %2125 = vmatprep.subr.bf16.mxu0 0
      %2126 = vmatpush1.bf16.msra.mxu0 %v854
      %2127 = vmatprep.subr.bf16.mxu0 0
      %2128 = vmatpush1.bf16.msra.mxu0 %v855
      %2129 = vmatprep.subr.bf16.mxu0 0
      %2130 = vmatpush1.bf16.msra.mxu0 %v856
      %2131 = vmatprep.subr.bf16.mxu0 0
      %2132 = vmatpush1.bf16.msra.mxu0 %v857
      %2133 = vmatprep.subr.bf16.mxu0 0
      %2134 = vmatpush1.bf16.msra.mxu0 %v858
      %2135 = vmatprep.subr.bf16.mxu0 0
      %2136 = vmatpush1.bf16.msra.mxu0 %v859
      %2137 = vmatprep.subr.bf16.mxu0 0
      %2138 = vmatpush1.bf16.msra.mxu0 %v860
      %2139 = vmatprep.subr.bf16.mxu0 0
      %2140 = vmatpush1.bf16.msra.mxu0 %v861
      %2141 = vmatprep.subr.bf16.mxu0 0
      %2142 = vmatpush1.bf16.msra.mxu0 %v862
      %2143 = vmatprep.subr.bf16.mxu0 0
      %2144 = vmatpush1.bf16.msra.mxu0 %v863
      %2145 = vmatprep.subr.bf16.mxu0 0
      %2146 = vmatpush1.bf16.msra.mxu0 %v864
      %2147 = vmatprep.mubr.bf16.mxu0 %v1981
      %2148 = vmatmul.mubr.bf16.gmra.mrb[0].mxu0 %v1977
      %v2149 = vpop.f32.mrb[0].mxu0
      %v2150 = vadd.f32 %v2110, %v2149
      %v2151 = vpop.f32.mrb[0].mxu0
      %v2152 = vpop.f32.mrb[0].mxu0
      %v2153 = vpop.f32.mrb[0].mxu0
      %2154 = vdwg.mxu0
      %2155 = vmatprep.subr.bf16.mxu0 0
      %2156 = vmatpush1.bf16.msra.mxu0 %v865
      %2157 = vmatprep.subr.bf16.mxu0 0
      %2158 = vmatpush1.bf16.msra.mxu0 %v866
      %2159 = vmatprep.subr.bf16.mxu0 0
      %2160 = vmatpush1.bf16.msra.mxu0 %v867
      %2161 = vmatprep.subr.bf16.mxu0 0
      %2162 = vmatpush1.bf16.msra.mxu0 %v868
      %2163 = vmatprep.subr.bf16.mxu0 0
      %2164 = vmatpush1.bf16.msra.mxu0 %v869
      %2165 = vmatprep.subr.bf16.mxu0 0
      %2166 = vmatpush1.bf16.msra.mxu0 %v870
      %2167 = vmatprep.subr.bf16.mxu0 0
      %2168 = vmatpush1.bf16.msra.mxu0 %v871
      %2169 = vmatprep.subr.bf16.mxu0 0
      %2170 = vmatpush1.bf16.msra.mxu0 %v872
      %2171 = vmatprep.subr.bf16.mxu0 0
      %2172 = vmatpush1.bf16.msra.mxu0 0
      %2173 = vmatprep.subr.bf16.mxu0 0
      %2174 = vmatpush1.bf16.msra.mxu0 0
      %2175 = vmatprep.subr.bf16.mxu0 0
      %2176 = vmatpush1.bf16.msra.mxu0 0
      %2177 = vmatprep.subr.bf16.mxu0 0
      %2178 = vmatpush1.bf16.msra.mxu0 0
      %2179 = vmatprep.subr.bf16.mxu0 0
      %2180 = vmatpush1.bf16.msra.mxu0 0
      %2181 = vmatprep.subr.bf16.mxu0 0
      %2182 = vmatpush1.bf16.msra.mxu0 0
      %2183 = vmatprep.subr.bf16.mxu0 0
      %2184 = vmatpush1.bf16.msra.mxu0 0
      %2185 = vmatprep.subr.bf16.mxu0 0
      %2186 = vmatpush1.bf16.msra.mxu0 0
      %2187 = vmatprep.mubr.bf16.mxu0 0
      %2188 = vmatmul.mubr.bf16.gmra.mrb[0].mxu0 %v1985
      %v2189 = vpop.f32.mrb[0].mxu0
      %v2190 = vadd.f32 %v2150, %v2189
      %v2191 = vpop.f32.mrb[0].mxu0
      %v2192 = vpop.f32.mrb[0].mxu0
      %v2193 = vpop.f32.mrb[0].mxu0
      %2194 = vdwg.mxu0
      %v2195 = vmax.f32 %v2190, 0.0
      %v2196 = vpack.c.bf16 %v2195, %v2195
      %s2197 = scalar_lea.vmem %s3, 192
      %v2198 = vld [vmem:[%s2197] sm:$0xf]
      %v2199 = vld [vmem:[%s2197 + $0x4] sm:$0xf]
      %v2200 = vld [vmem:[%s2197 + $0x8] sm:$0xf]
      %v2201 = vld [vmem:[%s2197 + $0xc] sm:$0xf]
      %v2202 = vld [vmem:[%s2197 + $0x10] sm:$0xf]
      %v2203 = vld [vmem:[%s2197 + $0x14] sm:$0xf]
      %v2204 = vld [vmem:[%s2197 + $0x18] sm:$0xf]
      %v2205 = vld [vmem:[%s2197 + $0x1c] sm:$0xf]
      %v2206 = vld [vmem:[%s2197 + $0x20] sm:$0xf]
      %v2207 = vld [vmem:[%s2197 + $0x24] sm:$0xf]
      %v2208 = vld [vmem:[%s2197 + $0x28] sm:$0xf]
      %v2209 = vld [vmem:[%s2197 + $0x2c] sm:$0xf]
      %v2210 = vld [vmem:[%s2197 + $0x30] sm:$0xf]
      %v2211 = vld [vmem:[%s2197 + $0x34] sm:$0xf]
      %v2212 = vld [vmem:[%s2197 + $0x38] sm:$0xf]
      %v2213 = vld [vmem:[%s2197 + $0x3c] sm:$0xf]
      %v2230 = vunpack.c.l.b16 %v2198
      %v2231 = vunpack.c.l.b16 %v2199
      %v2232 = vunpack.c.l.b16 %v2200
      %v2233 = vunpack.c.l.b16 %v2201
      %v2234 = vunpack.c.l.b16 %v2202
      %v2235 = vunpack.c.l.b16 %v2203
      %v2236 = vunpack.c.l.b16 %v2204
      %v2237 = vunpack.c.l.b16 %v2205
      %v2238 = vunpack.c.l.b16 %v2206
      %v2239 = vunpack.c.l.b16 %v2207
      %v2240 = vunpack.c.l.b16 %v2208
      %v2241 = vunpack.c.l.b16 %v2209
      %v2242 = vunpack.c.l.b16 %v2210
      %v2243 = vunpack.c.l.b16 %v2211
      %v2244 = vunpack.c.l.b16 %v2212
      %v2245 = vunpack.c.l.b16 %v2213
      %v2246 = vpack.c.b16 %v2231, %v2230
      %v2247 = vpack.c.b16 %v2233, %v2232
      %v2248 = vpack.c.b16 %v2235, %v2234
      %v2249 = vpack.c.b16 %v2237, %v2236
      %v2250 = vpack.c.b16 %v2239, %v2238
      %v2251 = vpack.c.b16 %v2241, %v2240
      %v2252 = vpack.c.b16 %v2243, %v2242
      %v2253 = vpack.c.b16 %v2245, %v2244
      %2262 = vmatprep.subr.bf16.mxu0 0
      %2263 = vmatpush1.bf16.msra.mxu0 %v2246
      %2264 = vmatprep.subr.bf16.mxu0 0
      %2265 = vmatpush1.bf16.msra.mxu0 %v2247
      %2266 = vmatprep.subr.bf16.mxu0 0
      %2267 = vmatpush1.bf16.msra.mxu0 %v2248
      %2268 = vmatprep.subr.bf16.mxu0 0
      %2269 = vmatpush1.bf16.msra.mxu0 %v2249
      %2270 = vmatprep.subr.bf16.mxu0 0
      %2271 = vmatpush1.bf16.msra.mxu0 %v2250
      %2272 = vmatprep.subr.bf16.mxu0 0
      %2273 = vmatpush1.bf16.msra.mxu0 %v2251
      %2274 = vmatprep.subr.bf16.mxu0 0
      %2275 = vmatpush1.bf16.msra.mxu0 %v2252
      %2276 = vmatprep.subr.bf16.mxu0 0
      %2277 = vmatpush1.bf16.msra.mxu0 %v2253
      %2278 = vmatprep.subr.bf16.mxu0 0
      %2279 = vmatpush1.bf16.msra.mxu0 0
      %2280 = vmatprep.subr.bf16.mxu0 0
      %2281 = vmatpush1.bf16.msra.mxu0 0
      %2282 = vmatprep.subr.bf16.mxu0 0
      %2283 = vmatpush1.bf16.msra.mxu0 0
      %2284 = vmatprep.subr.bf16.mxu0 0
      %2285 = vmatpush1.bf16.msra.mxu0 0
      %2286 = vmatprep.subr.bf16.mxu0 0
      %2287 = vmatpush1.bf16.msra.mxu0 0
      %2288 = vmatprep.subr.bf16.mxu0 0
      %2289 = vmatpush1.bf16.msra.mxu0 0
      %2290 = vmatprep.subr.bf16.mxu0 0
      %2291 = vmatpush1.bf16.msra.mxu0 0
      %2292 = vmatprep.subr.bf16.mxu0 0
      %2293 = vmatpush1.bf16.msra.mxu0 0
      %2294 = vmatprep.mubr.bf16.mxu0 0
      %2295 = vmatmul.mubr.bf16.gmra.mrb[0].mxu0 %v2196
      %v2296 = vpop.f32.mrb[0].mxu0
      %v2297 = vadd.f32 0.0, %v2296
      %v2298 = vpop.f32.mrb[0].mxu0
      %v2299 = vpop.f32.mrb[0].mxu0
      %v2300 = vpop.f32.mrb[0].mxu0
      %2301 = vdwg.mxu0
      %v2302 = vadd.f32 %v1949, %v2297
      %v2303 = vld [vmem:[%s325] sm:$0x44]
      %v2304 = vld [vmem:[%s325 + $0x8] sm:$0x44]
      %v2305 = vld [vmem:[%s325 + $0x10] sm:$0x44]
      %v2306 = vld [vmem:[%s325 + $0x18] sm:$0x44]
      %v2307 = vld [vmem:[%s325 + $0x20] sm:$0x4]
      %v2313 = vunpack.c.l.b16 %v2303
      %v2314 = vunpack.c.h.b16 %v2303
      %v2315 = vunpack.c.l.b16 %v2304
      %v2316 = vunpack.c.h.b16 %v2304
      %v2317 = vunpack.c.l.b16 %v2305
      %v2318 = vunpack.c.h.b16 %v2305
      %v2319 = vunpack.c.l.b16 %v2306
      %v2320 = vunpack.c.h.b16 %v2306
      %v2321 = vunpack.c.l.b16 %v2307
      %v2322 = vpack.c.b16 %v2313, %v2313
      %v2323 = vpack.c.b16 %v2314, %v2314
      %v2324 = vpack.c.b16 %v2315, %v2315
      %v2325 = vpack.c.b16 %v2316, %v2316
      %v2326 = vpack.c.b16 %v2317, %v2317
      %v2327 = vpack.c.b16 %v2318, %v2318
      %v2328 = vpack.c.b16 %v2319, %v2319
      %v2329 = vpack.c.b16 %v2320, %v2320
      %v2330 = vpack.c.b16 %v2321, %v2321
      %v2331 = vrot.slane %v2322, 2
      %v2332 = vrot.slane %v2323, 2
      %v2333 = vrot.slane %v2324, 2
      %v2334 = vrot.slane %v2325, 2
      %v2335 = vrot.slane %v2326, 2
      %v2336 = vrot.slane %v2327, 2
      %v2337 = vrot.slane %v2328, 2
      %v2338 = vrot.slane %v2329, 2
      %v2339 = vrot.slane %v2330, 2
      %2349 = vmatprep.subr.bf16.mxu0 0
      %2350 = vmatpush1.bf16.msra.mxu0 %v801
      %2351 = vmatprep.subr.bf16.mxu0 0
      %2352 = vmatpush1.bf16.msra.mxu0 %v802
      %2353 = vmatprep.subr.bf16.mxu0 0
      %2354 = vmatpush1.bf16.msra.mxu0 %v803
      %2355 = vmatprep.subr.bf16.mxu0 0
      %2356 = vmatpush1.bf16.msra.mxu0 %v804
      %2357 = vmatprep.subr.bf16.mxu0 0
      %2358 = vmatpush1.bf16.msra.mxu0 %v805
      %2359 = vmatprep.subr.bf16.mxu0 0
      %2360 = vmatpush1.bf16.msra.mxu0 %v806
      %2361 = vmatprep.subr.bf16.mxu0 0
      %2362 = vmatpush1.bf16.msra.mxu0 %v807
      %2363 = vmatprep.subr.bf16.mxu0 0
      %2364 = vmatpush1.bf16.msra.mxu0 %v808
      %2365 = vmatprep.subr.bf16.mxu0 0
      %2366 = vmatpush1.bf16.msra.mxu0 %v809
      %2367 = vmatprep.subr.bf16.mxu0 0
      %2368 = vmatpush1.bf16.msra.mxu0 %v810
      %2369 = vmatprep.subr.bf16.mxu0 0
      %2370 = vmatpush1.bf16.msra.mxu0 %v811
      %2371 = vmatprep.subr.bf16.mxu0 0
      %2372 = vmatpush1.bf16.msra.mxu0 %v812
      %2373 = vmatprep.subr.bf16.mxu0 0
      %2374 = vmatpush1.bf16.msra.mxu0 %v813
      %2375 = vmatprep.subr.bf16.mxu0 0
      %2376 = vmatpush1.bf16.msra.mxu0 %v814
      %2377 = vmatprep.subr.bf16.mxu0 0
      %2378 = vmatpush1.bf16.msra.mxu0 %v815
      %2379 = vmatprep.subr.bf16.mxu0 0
      %2380 = vmatpush1.bf16.msra.mxu0 %v816
      %2381 = vmatprep.mubr.bf16.mxu0 %v2332
      %2382 = vmatmul.mubr.bf16.gmra.mrb[0].mxu0 %v2331
      %v2383 = vpop.f32.mrb[0].mxu0
      %v2384 = vadd.f32 %v480, %v2383
      %v2385 = vpop.f32.mrb[0].mxu0
      %v2386 = vpop.f32.mrb[0].mxu0
      %v2387 = vpop.f32.mrb[0].mxu0
      %2388 = vdwg.mxu0
      %2389 = vmatprep.subr.bf16.mxu0 0
      %2390 = vmatpush1.bf16.msra.mxu0 %v817
      %2391 = vmatprep.subr.bf16.mxu0 0
      %2392 = vmatpush1.bf16.msra.mxu0 %v818
      %2393 = vmatprep.subr.bf16.mxu0 0
      %2394 = vmatpush1.bf16.msra.mxu0 %v819
      %2395 = vmatprep.subr.bf16.mxu0 0
      %2396 = vmatpush1.bf16.msra.mxu0 %v820
      %2397 = vmatprep.subr.bf16.mxu0 0
      %2398 = vmatpush1.bf16.msra.mxu0 %v821
      %2399 = vmatprep.subr.bf16.mxu0 0
      %2400 = vmatpush1.bf16.msra.mxu0 %v822
      %2401 = vmatprep.subr.bf16.mxu0 0
      %2402 = vmatpush1.bf16.msra.mxu0 %v823
      %2403 = vmatprep.subr.bf16.mxu0 0
      %2404 = vmatpush1.bf16.msra.mxu0 %v824
      %2405 = vmatprep.subr.bf16.mxu0 0
      %2406 = vmatpush1.bf16.msra.mxu0 %v825
      %2407 = vmatprep.subr.bf16.mxu0 0
      %2408 = vmatpush1.bf16.msra.mxu0 %v826
      %2409 = vmatprep.subr.bf16.mxu0 0
      %2410 = vmatpush1.bf16.msra.mxu0 %v827
      %2411 = vmatprep.subr.bf16.mxu0 0
      %2412 = vmatpush1.bf16.msra.mxu0 %v828
      %2413 = vmatprep.subr.bf16.mxu0 0
      %2414 = vmatpush1.bf16.msra.mxu0 %v829
      %2415 = vmatprep.subr.bf16.mxu0 0
      %2416 = vmatpush1.bf16.msra.mxu0 %v830
      %2417 = vmatprep.subr.bf16.mxu0 0
      %2418 = vmatpush1.bf16.msra.mxu0 %v831
      %2419 = vmatprep.subr.bf16.mxu0 0
      %2420 = vmatpush1.bf16.msra.mxu0 %v832
      %2421 = vmatprep.mubr.bf16.mxu0 %v2334
      %2422 = vmatmul.mubr.bf16.gmra.mrb[0].mxu0 %v2333
      %v2423 = vpop.f32.mrb[0].mxu0
      %v2424 = vadd.f32 %v2384, %v2423
      %v2425 = vpop.f32.mrb[0].mxu0
      %v2426 = vpop.f32.mrb[0].mxu0
      %v2427 = vpop.f32.mrb[0].mxu0
      %2428 = vdwg.mxu0
      %2429 = vmatprep.subr.bf16.mxu0 0
      %2430 = vmatpush1.bf16.msra.mxu0 %v833
      %2431 = vmatprep.subr.bf16.mxu0 0
      %2432 = vmatpush1.bf16.msra.mxu0 %v834
      %2433 = vmatprep.subr.bf16.mxu0 0
      %2434 = vmatpush1.bf16.msra.mxu0 %v835
      %2435 = vmatprep.subr.bf16.mxu0 0
      %2436 = vmatpush1.bf16.msra.mxu0 %v836
      %2437 = vmatprep.subr.bf16.mxu0 0
      %2438 = vmatpush1.bf16.msra.mxu0 %v837
      %2439 = vmatprep.subr.bf16.mxu0 0
      %2440 = vmatpush1.bf16.msra.mxu0 %v838
      %2441 = vmatprep.subr.bf16.mxu0 0
      %2442 = vmatpush1.bf16.msra.mxu0 %v839
      %2443 = vmatprep.subr.bf16.mxu0 0
      %2444 = vmatpush1.bf16.msra.mxu0 %v840
      %2445 = vmatprep.subr.bf16.mxu0 0
      %2446 = vmatpush1.bf16.msra.mxu0 %v841
      %2447 = vmatprep.subr.bf16.mxu0 0
      %2448 = vmatpush1.bf16.msra.mxu0 %v842
      %2449 = vmatprep.subr.bf16.mxu0 0
      %2450 = vmatpush1.bf16.msra.mxu0 %v843
      %2451 = vmatprep.subr.bf16.mxu0 0
      %2452 = vmatpush1.bf16.msra.mxu0 %v844
      %2453 = vmatprep.subr.bf16.mxu0 0
      %2454 = vmatpush1.bf16.msra.mxu0 %v845
      %2455 = vmatprep.subr.bf16.mxu0 0
      %2456 = vmatpush1.bf16.msra.mxu0 %v846
      %2457 = vmatprep.subr.bf16.mxu0 0
      %2458 = vmatpush1.bf16.msra.mxu0 %v847
      %2459 = vmatprep.subr.bf16.mxu0 0
      %2460 = vmatpush1.bf16.msra.mxu0 %v848
      %2461 = vmatprep.mubr.bf16.mxu0 %v2336
      %2462 = vmatmul.mubr.bf16.gmra.mrb[0].mxu0 %v2335
      %v2463 = vpop.f32.mrb[0].mxu0
      %v2464 = vadd.f32 %v2424, %v2463
      %v2465 = vpop.f32.mrb[0].mxu0
      %v2466 = vpop.f32.mrb[0].mxu0
      %v2467 = vpop.f32.mrb[0].mxu0
      %2468 = vdwg.mxu0
      %2469 = vmatprep.subr.bf16.mxu0 0
      %2470 = vmatpush1.bf16.msra.mxu0 %v849
      %2471 = vmatprep.subr.bf16.mxu0 0
      %2472 = vmatpush1.bf16.msra.mxu0 %v850
      %2473 = vmatprep.subr.bf16.mxu0 0
      %2474 = vmatpush1.bf16.msra.mxu0 %v851
      %2475 = vmatprep.subr.bf16.mxu0 0
      %2476 = vmatpush1.bf16.msra.mxu0 %v852
      %2477 = vmatprep.subr.bf16.mxu0 0
      %2478 = vmatpush1.bf16.msra.mxu0 %v853
      %2479 = vmatprep.subr.bf16.mxu0 0
      %2480 = vmatpush1.bf16.msra.mxu0 %v854
      %2481 = vmatprep.subr.bf16.mxu0 0
      %2482 = vmatpush1.bf16.msra.mxu0 %v855
      %2483 = vmatprep.subr.bf16.mxu0 0
      %2484 = vmatpush1.bf16.msra.mxu0 %v856
      %2485 = vmatprep.subr.bf16.mxu0 0
      %2486 = vmatpush1.bf16.msra.mxu0 %v857
      %2487 = vmatprep.subr.bf16.mxu0 0
      %2488 = vmatpush1.bf16.msra.mxu0 %v858
      %2489 = vmatprep.subr.bf16.mxu0 0
      %2490 = vmatpush1.bf16.msra.mxu0 %v859
      %2491 = vmatprep.subr.bf16.mxu0 0
      %2492 = vmatpush1.bf16.msra.mxu0 %v860
      %2493 = vmatprep.subr.bf16.mxu0 0
      %2494 = vmatpush1.bf16.msra.mxu0 %v861
      %2495 = vmatprep.subr.bf16.mxu0 0
      %2496 = vmatpush1.bf16.msra.mxu0 %v862
      %2497 = vmatprep.subr.bf16.mxu0 0
      %2498 = vmatpush1.bf16.msra.mxu0 %v863
      %2499 = vmatprep.subr.bf16.mxu0 0
      %2500 = vmatpush1.bf16.msra.mxu0 %v864
      %2501 = vmatprep.mubr.bf16.mxu0 %v2338
      %2502 = vmatmul.mubr.bf16.gmra.mrb[0].mxu0 %v2337
      %v2503 = vpop.f32.mrb[0].mxu0
      %v2504 = vadd.f32 %v2464, %v2503
      %v2505 = vpop.f32.mrb[0].mxu0
      %v2506 = vpop.f32.mrb[0].mxu0
      %v2507 = vpop.f32.mrb[0].mxu0
      %2508 = vdwg.mxu0
      %2509 = vmatprep.subr.bf16.mxu0 0
      %2510 = vmatpush1.bf16.msra.mxu0 %v865
      %2511 = vmatprep.subr.bf16.mxu0 0
      %2512 = vmatpush1.bf16.msra.mxu0 %v866
      %2513 = vmatprep.subr.bf16.mxu0 0
      %2514 = vmatpush1.bf16.msra.mxu0 %v867
      %2515 = vmatprep.subr.bf16.mxu0 0
      %2516 = vmatpush1.bf16.msra.mxu0 %v868
      %2517 = vmatprep.subr.bf16.mxu0 0
      %2518 = vmatpush1.bf16.msra.mxu0 %v869
      %2519 = vmatprep.subr.bf16.mxu0 0
      %2520 = vmatpush1.bf16.msra.mxu0 %v870
      %2521 = vmatprep.subr.bf16.mxu0 0
      %2522 = vmatpush1.bf16.msra.mxu0 %v871
      %2523 = vmatprep.subr.bf16.mxu0 0
      %2524 = vmatpush1.bf16.msra.mxu0 %v872
      %2525 = vmatprep.subr.bf16.mxu0 0
      %2526 = vmatpush1.bf16.msra.mxu0 0
      %2527 = vmatprep.subr.bf16.mxu0 0
      %2528 = vmatpush1.bf16.msra.mxu0 0
      %2529 = vmatprep.subr.bf16.mxu0 0
      %2530 = vmatpush1.bf16.msra.mxu0 0
      %2531 = vmatprep.subr.bf16.mxu0 0
      %2532 = vmatpush1.bf16.msra.mxu0 0
      %2533 = vmatprep.subr.bf16.mxu0 0
      %2534 = vmatpush1.bf16.msra.mxu0 0
      %2535 = vmatprep.subr.bf16.mxu0 0
      %2536 = vmatpush1.bf16.msra.mxu0 0
      %2537 = vmatprep.subr.bf16.mxu0 0
      %2538 = vmatpush1.bf16.msra.mxu0 0
      %2539 = vmatprep.subr.bf16.mxu0 0
      %2540 = vmatpush1.bf16.msra.mxu0 0
      %2541 = vmatprep.mubr.bf16.mxu0 0
      %2542 = vmatmul.mubr.bf16.gmra.mrb[0].mxu0 %v2339
      %v2543 = vpop.f32.mrb[0].mxu0
      %v2544 = vadd.f32 %v2504, %v2543
      %v2545 = vpop.f32.mrb[0].mxu0
      %v2546 = vpop.f32.mrb[0].mxu0
      %v2547 = vpop.f32.mrb[0].mxu0
      %2548 = vdwg.mxu0
      %v2549 = vmax.f32 %v2544, 0.0
      %v2550 = vpack.c.bf16 %v2549, %v2549
      %s2551 = scalar_lea.vmem %s3, 256
      %v2552 = vld [vmem:[%s2551] sm:$0xf]
      %v2553 = vld [vmem:[%s2551 + $0x4] sm:$0xf]
      %v2554 = vld [vmem:[%s2551 + $0x8] sm:$0xf]
      %v2555 = vld [vmem:[%s2551 + $0xc] sm:$0xf]
      %v2556 = vld [vmem:[%s2551 + $0x10] sm:$0xf]
      %v2557 = vld [vmem:[%s2551 + $0x14] sm:$0xf]
      %v2558 = vld [vmem:[%s2551 + $0x18] sm:$0xf]
      %v2559 = vld [vmem:[%s2551 + $0x1c] sm:$0xf]
      %v2560 = vld [vmem:[%s2551 + $0x20] sm:$0xf]
      %v2561 = vld [vmem:[%s2551 + $0x24] sm:$0xf]
      %v2562 = vld [vmem:[%s2551 + $0x28] sm:$0xf]
      %v2563 = vld [vmem:[%s2551 + $0x2c] sm:$0xf]
      %v2564 = vld [vmem:[%s2551 + $0x30] sm:$0xf]
      %v2565 = vld [vmem:[%s2551 + $0x34] sm:$0xf]
      %v2566 = vld [vmem:[%s2551 + $0x38] sm:$0xf]
      %v2567 = vld [vmem:[%s2551 + $0x3c] sm:$0xf]
      %v2584 = vunpack.c.l.b16 %v2552
      %v2585 = vunpack.c.l.b16 %v2553
      %v2586 = vunpack.c.l.b16 %v2554
      %v2587 = vunpack.c.l.b16 %v2555
      %v2588 = vunpack.c.l.b16 %v2556
      %v2589 = vunpack.c.l.b16 %v2557
      %v2590 = vunpack.c.l.b16 %v2558
      %v2591 = vunpack.c.l.b16 %v2559
      %v2592 = vunpack.c.l.b16 %v2560
      %v2593 = vunpack.c.l.b16 %v2561
      %v2594 = vunpack.c.l.b16 %v2562
      %v2595 = vunpack.c.l.b16 %v2563
      %v2596 = vunpack.c.l.b16 %v2564
      %v2597 = vunpack.c.l.b16 %v2565
      %v2598 = vunpack.c.l.b16 %v2566
      %v2599 = vunpack.c.l.b16 %v2567
      %v2600 = vpack.c.b16 %v2585, %v2584
      %v2601 = vpack.c.b16 %v2587, %v2586
      %v2602 = vpack.c.b16 %v2589, %v2588
      %v2603 = vpack.c.b16 %v2591, %v2590
      %v2604 = vpack.c.b16 %v2593, %v2592
      %v2605 = vpack.c.b16 %v2595, %v2594
      %v2606 = vpack.c.b16 %v2597, %v2596
      %v2607 = vpack.c.b16 %v2599, %v2598
      %2616 = vmatprep.subr.bf16.mxu0 0
      %2617 = vmatpush1.bf16.msra.mxu0 %v2600
      %2618 = vmatprep.subr.bf16.mxu0 0
      %2619 = vmatpush1.bf16.msra.mxu0 %v2601
      %2620 = vmatprep.subr.bf16.mxu0 0
      %2621 = vmatpush1.bf16.msra.mxu0 %v2602
      %2622 = vmatprep.subr.bf16.mxu0 0
      %2623 = vmatpush1.bf16.msra.mxu0 %v2603
      %2624 = vmatprep.subr.bf16.mxu0 0
      %2625 = vmatpush1.bf16.msra.mxu0 %v2604
      %2626 = vmatprep.subr.bf16.mxu0 0
      %2627 = vmatpush1.bf16.msra.mxu0 %v2605
      %2628 = vmatprep.subr.bf16.mxu0 0
      %2629 = vmatpush1.bf16.msra.mxu0 %v2606
      %2630 = vmatprep.subr.bf16.mxu0 0
      %2631 = vmatpush1.bf16.msra.mxu0 %v2607
      %2632 = vmatprep.subr.bf16.mxu0 0
      %2633 = vmatpush1.bf16.msra.mxu0 0
      %2634 = vmatprep.subr.bf16.mxu0 0
      %2635 = vmatpush1.bf16.msra.mxu0 0
      %2636 = vmatprep.subr.bf16.mxu0 0
      %2637 = vmatpush1.bf16.msra.mxu0 0
      %2638 = vmatprep.subr.bf16.mxu0 0
      %2639 = vmatpush1.bf16.msra.mxu0 0
      %2640 = vmatprep.subr.bf16.mxu0 0
      %2641 = vmatpush1.bf16.msra.mxu0 0
      %2642 = vmatprep.subr.bf16.mxu0 0
      %2643 = vmatpush1.bf16.msra.mxu0 0
      %2644 = vmatprep.subr.bf16.mxu0 0
      %2645 = vmatpush1.bf16.msra.mxu0 0
      %2646 = vmatprep.subr.bf16.mxu0 0
      %2647 = vmatpush1.bf16.msra.mxu0 0
      %2648 = vmatprep.mubr.bf16.mxu0 0
      %2649 = vmatmul.mubr.bf16.gmra.mrb[0].mxu0 %v2550
      %v2650 = vpop.f32.mrb[0].mxu0
      %v2651 = vadd.f32 0.0, %v2650
      %v2652 = vpop.f32.mrb[0].mxu0
      %v2653 = vpop.f32.mrb[0].mxu0
      %v2654 = vpop.f32.mrb[0].mxu0
      %2655 = vdwg.mxu0
      %v2656 = vadd.f32 %v2302, %v2651
      %v2658 = vshrl.u32 %v2322, 16
      %v2660 = vrot.slane %v2658, 2
      %v2662 = vshrl.u32 %v2323, 16
      %v2664 = vrot.slane %v2662, 2
      %v2666 = vshrl.u32 %v2324, 16
      %v2668 = vrot.slane %v2666, 2
      %v2670 = vshrl.u32 %v2325, 16
      %v2672 = vrot.slane %v2670, 2
      %v2674 = vshrl.u32 %v2326, 16
      %v2676 = vrot.slane %v2674, 2
      %v2678 = vshrl.u32 %v2327, 16
      %v2680 = vrot.slane %v2678, 2
      %v2682 = vshrl.u32 %v2328, 16
      %v2684 = vrot.slane %v2682, 2
      %v2686 = vshrl.u32 %v2329, 16
      %v2688 = vrot.slane %v2686, 2
      %v2690 = vshrl.u32 %v2330, 16
      %v2692 = vrot.slane %v2690, 2
      %2702 = vmatprep.subr.bf16.mxu0 0
      %2703 = vmatpush1.bf16.msra.mxu0 %v801
      %2704 = vmatprep.subr.bf16.mxu0 0
      %2705 = vmatpush1.bf16.msra.mxu0 %v802
      %2706 = vmatprep.subr.bf16.mxu0 0
      %2707 = vmatpush1.bf16.msra.mxu0 %v803
      %2708 = vmatprep.subr.bf16.mxu0 0
      %2709 = vmatpush1.bf16.msra.mxu0 %v804
      %2710 = vmatprep.subr.bf16.mxu0 0
      %2711 = vmatpush1.bf16.msra.mxu0 %v805
      %2712 = vmatprep.subr.bf16.mxu0 0
      %2713 = vmatpush1.bf16.msra.mxu0 %v806
      %2714 = vmatprep.subr.bf16.mxu0 0
      %2715 = vmatpush1.bf16.msra.mxu0 %v807
      %2716 = vmatprep.subr.bf16.mxu0 0
      %2717 = vmatpush1.bf16.msra.mxu0 %v808
      %2718 = vmatprep.subr.bf16.mxu0 0
      %2719 = vmatpush1.bf16.msra.mxu0 %v809
      %2720 = vmatprep.subr.bf16.mxu0 0
      %2721 = vmatpush1.bf16.msra.mxu0 %v810
      %2722 = vmatprep.subr.bf16.mxu0 0
      %2723 = vmatpush1.bf16.msra.mxu0 %v811
      %2724 = vmatprep.subr.bf16.mxu0 0
      %2725 = vmatpush1.bf16.msra.mxu0 %v812
      %2726 = vmatprep.subr.bf16.mxu0 0
      %2727 = vmatpush1.bf16.msra.mxu0 %v813
      %2728 = vmatprep.subr.bf16.mxu0 0
      %2729 = vmatpush1.bf16.msra.mxu0 %v814
      %2730 = vmatprep.subr.bf16.mxu0 0
      %2731 = vmatpush1.bf16.msra.mxu0 %v815
      %2732 = vmatprep.subr.bf16.mxu0 0
      %2733 = vmatpush1.bf16.msra.mxu0 %v816
      %2734 = vmatprep.mubr.bf16.mxu0 %v2664
      %2735 = vmatmul.mubr.bf16.gmra.mrb[0].mxu0 %v2660
      %v2736 = vpop.f32.mrb[0].mxu0
      %v2737 = vadd.f32 %v480, %v2736
      %v2738 = vpop.f32.mrb[0].mxu0
      %v2739 = vpop.f32.mrb[0].mxu0
      %v2740 = vpop.f32.mrb[0].mxu0
      %2741 = vdwg.mxu0
      %2742 = vmatprep.subr.bf16.mxu0 0
      %2743 = vmatpush1.bf16.msra.mxu0 %v817
      %2744 = vmatprep.subr.bf16.mxu0 0
      %2745 = vmatpush1.bf16.msra.mxu0 %v818
      %2746 = vmatprep.subr.bf16.mxu0 0
      %2747 = vmatpush1.bf16.msra.mxu0 %v819
      %2748 = vmatprep.subr.bf16.mxu0 0
      %2749 = vmatpush1.bf16.msra.mxu0 %v820
      %2750 = vmatprep.subr.bf16.mxu0 0
      %2751 = vmatpush1.bf16.msra.mxu0 %v821
      %2752 = vmatprep.subr.bf16.mxu0 0
      %2753 = vmatpush1.bf16.msra.mxu0 %v822
      %2754 = vmatprep.subr.bf16.mxu0 0
      %2755 = vmatpush1.bf16.msra.mxu0 %v823
      %2756 = vmatprep.subr.bf16.mxu0 0
      %2757 = vmatpush1.bf16.msra.mxu0 %v824
      %2758 = vmatprep.subr.bf16.mxu0 0
      %2759 = vmatpush1.bf16.msra.mxu0 %v825
      %2760 = vmatprep.subr.bf16.mxu0 0
      %2761 = vmatpush1.bf16.msra.mxu0 %v826
      %2762 = vmatprep.subr.bf16.mxu0 0
      %2763 = vmatpush1.bf16.msra.mxu0 %v827
      %2764 = vmatprep.subr.bf16.mxu0 0
      %2765 = vmatpush1.bf16.msra.mxu0 %v828
      %2766 = vmatprep.subr.bf16.mxu0 0
      %2767 = vmatpush1.bf16.msra.mxu0 %v829
      %2768 = vmatprep.subr.bf16.mxu0 0
      %2769 = vmatpush1.bf16.msra.mxu0 %v830
      %2770 = vmatprep.subr.bf16.mxu0 0
      %2771 = vmatpush1.bf16.msra.mxu0 %v831
      %2772 = vmatprep.subr.bf16.mxu0 0
      %2773 = vmatpush1.bf16.msra.mxu0 %v832
      %2774 = vmatprep.mubr.bf16.mxu0 %v2672
      %2775 = vmatmul.mubr.bf16.gmra.mrb[0].mxu0 %v2668
      %v2776 = vpop.f32.mrb[0].mxu0
      %v2777 = vadd.f32 %v2737, %v2776
      %v2778 = vpop.f32.mrb[0].mxu0
      %v2779 = vpop.f32.mrb[0].mxu0
      %v2780 = vpop.f32.mrb[0].mxu0
      %2781 = vdwg.mxu0
      %2782 = vmatprep.subr.bf16.mxu0 0
      %2783 = vmatpush1.bf16.msra.mxu0 %v833
      %2784 = vmatprep.subr.bf16.mxu0 0
      %2785 = vmatpush1.bf16.msra.mxu0 %v834
      %2786 = vmatprep.subr.bf16.mxu0 0
      %2787 = vmatpush1.bf16.msra.mxu0 %v835
      %2788 = vmatprep.subr.bf16.mxu0 0
      %2789 = vmatpush1.bf16.msra.mxu0 %v836
      %2790 = vmatprep.subr.bf16.mxu0 0
      %2791 = vmatpush1.bf16.msra.mxu0 %v837
      %2792 = vmatprep.subr.bf16.mxu0 0
      %2793 = vmatpush1.bf16.msra.mxu0 %v838
      %2794 = vmatprep.subr.bf16.mxu0 0
      %2795 = vmatpush1.bf16.msra.mxu0 %v839
      %2796 = vmatprep.subr.bf16.mxu0 0
      %2797 = vmatpush1.bf16.msra.mxu0 %v840
      %2798 = vmatprep.subr.bf16.mxu0 0
      %2799 = vmatpush1.bf16.msra.mxu0 %v841
      %2800 = vmatprep.subr.bf16.mxu0 0
      %2801 = vmatpush1.bf16.msra.mxu0 %v842
      %2802 = vmatprep.subr.bf16.mxu0 0
      %2803 = vmatpush1.bf16.msra.mxu0 %v843
      %2804 = vmatprep.subr.bf16.mxu0 0
      %2805 = vmatpush1.bf16.msra.mxu0 %v844
      %2806 = vmatprep.subr.bf16.mxu0 0
      %2807 = vmatpush1.bf16.msra.mxu0 %v845
      %2808 = vmatprep.subr.bf16.mxu0 0
      %2809 = vmatpush1.bf16.msra.mxu0 %v846
      %2810 = vmatprep.subr.bf16.mxu0 0
      %2811 = vmatpush1.bf16.msra.mxu0 %v847
      %2812 = vmatprep.subr.bf16.mxu0 0
      %2813 = vmatpush1.bf16.msra.mxu0 %v848
      %2814 = vmatprep.mubr.bf16.mxu0 %v2680
      %2815 = vmatmul.mubr.bf16.gmra.mrb[0].mxu0 %v2676
      %v2816 = vpop.f32.mrb[0].mxu0
      %v2817 = vadd.f32 %v2777, %v2816
      %v2818 = vpop.f32.mrb[0].mxu0
      %v2819 = vpop.f32.mrb[0].mxu0
      %v2820 = vpop.f32.mrb[0].mxu0
      %2821 = vdwg.mxu0
      %2822 = vmatprep.subr.bf16.mxu0 0
      %2823 = vmatpush1.bf16.msra.mxu0 %v849
      %2824 = vmatprep.subr.bf16.mxu0 0
      %2825 = vmatpush1.bf16.msra.mxu0 %v850
      %2826 = vmatprep.subr.bf16.mxu0 0
      %2827 = vmatpush1.bf16.msra.mxu0 %v851
      %2828 = vmatprep.subr.bf16.mxu0 0
      %2829 = vmatpush1.bf16.msra.mxu0 %v852
      %2830 = vmatprep.subr.bf16.mxu0 0
      %2831 = vmatpush1.bf16.msra.mxu0 %v853
      %2832 = vmatprep.subr.bf16.mxu0 0
      %2833 = vmatpush1.bf16.msra.mxu0 %v854
      %2834 = vmatprep.subr.bf16.mxu0 0
      %2835 = vmatpush1.bf16.msra.mxu0 %v855
      %2836 = vmatprep.subr.bf16.mxu0 0
      %2837 = vmatpush1.bf16.msra.mxu0 %v856
      %2838 = vmatprep.subr.bf16.mxu0 0
      %2839 = vmatpush1.bf16.msra.mxu0 %v857
      %2840 = vmatprep.subr.bf16.mxu0 0
      %2841 = vmatpush1.bf16.msra.mxu0 %v858
      %2842 = vmatprep.subr.bf16.mxu0 0
      %2843 = vmatpush1.bf16.msra.mxu0 %v859
      %2844 = vmatprep.subr.bf16.mxu0 0
      %2845 = vmatpush1.bf16.msra.mxu0 %v860
      %2846 = vmatprep.subr.bf16.mxu0 0
      %2847 = vmatpush1.bf16.msra.mxu0 %v861
      %2848 = vmatprep.subr.bf16.mxu0 0
      %2849 = vmatpush1.bf16.msra.mxu0 %v862
      %2850 = vmatprep.subr.bf16.mxu0 0
      %2851 = vmatpush1.bf16.msra.mxu0 %v863
      %2852 = vmatprep.subr.bf16.mxu0 0
      %2853 = vmatpush1.bf16.msra.mxu0 %v864
      %2854 = vmatprep.mubr.bf16.mxu0 %v2688
      %2855 = vmatmul.mubr.bf16.gmra.mrb[0].mxu0 %v2684
      %v2856 = vpop.f32.mrb[0].mxu0
      %v2857 = vadd.f32 %v2817, %v2856
      %v2858 = vpop.f32.mrb[0].mxu0
      %v2859 = vpop.f32.mrb[0].mxu0
      %v2860 = vpop.f32.mrb[0].mxu0
      %2861 = vdwg.mxu0
      %2862 = vmatprep.subr.bf16.mxu0 0
      %2863 = vmatpush1.bf16.msra.mxu0 %v865
      %2864 = vmatprep.subr.bf16.mxu0 0
      %2865 = vmatpush1.bf16.msra.mxu0 %v866
      %2866 = vmatprep.subr.bf16.mxu0 0
      %2867 = vmatpush1.bf16.msra.mxu0 %v867
      %2868 = vmatprep.subr.bf16.mxu0 0
      %2869 = vmatpush1.bf16.msra.mxu0 %v868
      %2870 = vmatprep.subr.bf16.mxu0 0
      %2871 = vmatpush1.bf16.msra.mxu0 %v869
      %2872 = vmatprep.subr.bf16.mxu0 0
      %2873 = vmatpush1.bf16.msra.mxu0 %v870
      %2874 = vmatprep.subr.bf16.mxu0 0
      %2875 = vmatpush1.bf16.msra.mxu0 %v871
      %2876 = vmatprep.subr.bf16.mxu0 0
      %2877 = vmatpush1.bf16.msra.mxu0 %v872
      %2878 = vmatprep.subr.bf16.mxu0 0
      %2879 = vmatpush1.bf16.msra.mxu0 0
      %2880 = vmatprep.subr.bf16.mxu0 0
      %2881 = vmatpush1.bf16.msra.mxu0 0
      %2882 = vmatprep.subr.bf16.mxu0 0
      %2883 = vmatpush1.bf16.msra.mxu0 0
      %2884 = vmatprep.subr.bf16.mxu0 0
      %2885 = vmatpush1.bf16.msra.mxu0 0
      %2886 = vmatprep.subr.bf16.mxu0 0
      %2887 = vmatpush1.bf16.msra.mxu0 0
      %2888 = vmatprep.subr.bf16.mxu0 0
      %2889 = vmatpush1.bf16.msra.mxu0 0
      %2890 = vmatprep.subr.bf16.mxu0 0
      %2891 = vmatpush1.bf16.msra.mxu0 0
      %2892 = vmatprep.subr.bf16.mxu0 0
      %2893 = vmatpush1.bf16.msra.mxu0 0
      %2894 = vmatprep.mubr.bf16.mxu0 0
      %2895 = vmatmul.mubr.bf16.gmra.mrb[0].mxu0 %v2692
      %v2896 = vpop.f32.mrb[0].mxu0
      %v2897 = vadd.f32 %v2857, %v2896
      %v2898 = vpop.f32.mrb[0].mxu0
      %v2899 = vpop.f32.mrb[0].mxu0
      %v2900 = vpop.f32.mrb[0].mxu0
      %2901 = vdwg.mxu0
      %v2902 = vmax.f32 %v2897, 0.0
      %v2903 = vpack.c.bf16 %v2902, %v2902
      %s2904 = scalar_lea.vmem %s3, 320
      %v2905 = vld [vmem:[%s2904] sm:$0xf]
      %v2906 = vld [vmem:[%s2904 + $0x4] sm:$0xf]
      %v2907 = vld [vmem:[%s2904 + $0x8] sm:$0xf]
      %v2908 = vld [vmem:[%s2904 + $0xc] sm:$0xf]
      %v2909 = vld [vmem:[%s2904 + $0x10] sm:$0xf]
      %v2910 = vld [vmem:[%s2904 + $0x14] sm:$0xf]
      %v2911 = vld [vmem:[%s2904 + $0x18] sm:$0xf]
      %v2912 = vld [vmem:[%s2904 + $0x1c] sm:$0xf]
      %v2913 = vld [vmem:[%s2904 + $0x20] sm:$0xf]
      %v2914 = vld [vmem:[%s2904 + $0x24] sm:$0xf]
      %v2915 = vld [vmem:[%s2904 + $0x28] sm:$0xf]
      %v2916 = vld [vmem:[%s2904 + $0x2c] sm:$0xf]
      %v2917 = vld [vmem:[%s2904 + $0x30] sm:$0xf]
      %v2918 = vld [vmem:[%s2904 + $0x34] sm:$0xf]
      %v2919 = vld [vmem:[%s2904 + $0x38] sm:$0xf]
      %v2920 = vld [vmem:[%s2904 + $0x3c] sm:$0xf]
      %v2937 = vunpack.c.l.b16 %v2905
      %v2938 = vunpack.c.l.b16 %v2906
      %v2939 = vunpack.c.l.b16 %v2907
      %v2940 = vunpack.c.l.b16 %v2908
      %v2941 = vunpack.c.l.b16 %v2909
      %v2942 = vunpack.c.l.b16 %v2910
      %v2943 = vunpack.c.l.b16 %v2911
      %v2944 = vunpack.c.l.b16 %v2912
      %v2945 = vunpack.c.l.b16 %v2913
      %v2946 = vunpack.c.l.b16 %v2914
      %v2947 = vunpack.c.l.b16 %v2915
      %v2948 = vunpack.c.l.b16 %v2916
      %v2949 = vunpack.c.l.b16 %v2917
      %v2950 = vunpack.c.l.b16 %v2918
      %v2951 = vunpack.c.l.b16 %v2919
      %v2952 = vunpack.c.l.b16 %v2920
      %v2953 = vpack.c.b16 %v2938, %v2937
      %v2954 = vpack.c.b16 %v2940, %v2939
      %v2955 = vpack.c.b16 %v2942, %v2941
      %v2956 = vpack.c.b16 %v2944, %v2943
      %v2957 = vpack.c.b16 %v2946, %v2945
      %v2958 = vpack.c.b16 %v2948, %v2947
      %v2959 = vpack.c.b16 %v2950, %v2949
      %v2960 = vpack.c.b16 %v2952, %v2951
      %2969 = vmatprep.subr.bf16.mxu0 0
      %2970 = vmatpush1.bf16.msra.mxu0 %v2953
      %2971 = vmatprep.subr.bf16.mxu0 0
      %2972 = vmatpush1.bf16.msra.mxu0 %v2954
      %2973 = vmatprep.subr.bf16.mxu0 0
      %2974 = vmatpush1.bf16.msra.mxu0 %v2955
      %2975 = vmatprep.subr.bf16.mxu0 0
      %2976 = vmatpush1.bf16.msra.mxu0 %v2956
      %2977 = vmatprep.subr.bf16.mxu0 0
      %2978 = vmatpush1.bf16.msra.mxu0 %v2957
      %2979 = vmatprep.subr.bf16.mxu0 0
      %2980 = vmatpush1.bf16.msra.mxu0 %v2958
      %2981 = vmatprep.subr.bf16.mxu0 0
      %2982 = vmatpush1.bf16.msra.mxu0 %v2959
      %2983 = vmatprep.subr.bf16.mxu0 0
      %2984 = vmatpush1.bf16.msra.mxu0 %v2960
      %2985 = vmatprep.subr.bf16.mxu0 0
      %2986 = vmatpush1.bf16.msra.mxu0 0
      %2987 = vmatprep.subr.bf16.mxu0 0
      %2988 = vmatpush1.bf16.msra.mxu0 0
      %2989 = vmatprep.subr.bf16.mxu0 0
      %2990 = vmatpush1.bf16.msra.mxu0 0
      %2991 = vmatprep.subr.bf16.mxu0 0
      %2992 = vmatpush1.bf16.msra.mxu0 0
      %2993 = vmatprep.subr.bf16.mxu0 0
      %2994 = vmatpush1.bf16.msra.mxu0 0
      %2995 = vmatprep.subr.bf16.mxu0 0
      %2996 = vmatpush1.bf16.msra.mxu0 0
      %2997 = vmatprep.subr.bf16.mxu0 0
      %2998 = vmatpush1.bf16.msra.mxu0 0
      %2999 = vmatprep.subr.bf16.mxu0 0
      %3000 = vmatpush1.bf16.msra.mxu0 0
      %3001 = vmatprep.mubr.bf16.mxu0 0
      %3002 = vmatmul.mubr.bf16.gmra.mrb[0].mxu0 %v2903
      %v3003 = vpop.f32.mrb[0].mxu0
      %v3004 = vadd.f32 0.0, %v3003
      %v3005 = vpop.f32.mrb[0].mxu0
      %v3006 = vpop.f32.mrb[0].mxu0
      %v3007 = vpop.f32.mrb[0].mxu0
      %3008 = vdwg.mxu0
      %v3009 = vadd.f32 %v2656, %v3004
      %v3010 = vld [vmem:[%s325] sm:$0x88]
      %v3011 = vld [vmem:[%s325 + $0x8] sm:$0x88]
      %v3012 = vld [vmem:[%s325 + $0x10] sm:$0x88]
      %v3013 = vld [vmem:[%s325 + $0x18] sm:$0x88]
      %v3014 = vld [vmem:[%s325 + $0x20] sm:$0x8]
      %v3020 = vunpack.c.l.b16 %v3010
      %v3021 = vunpack.c.h.b16 %v3010
      %v3022 = vunpack.c.l.b16 %v3011
      %v3023 = vunpack.c.h.b16 %v3011
      %v3024 = vunpack.c.l.b16 %v3012
      %v3025 = vunpack.c.h.b16 %v3012
      %v3026 = vunpack.c.l.b16 %v3013
      %v3027 = vunpack.c.h.b16 %v3013
      %v3028 = vunpack.c.l.b16 %v3014
      %v3029 = vpack.c.b16 %v3020, %v3020
      %v3030 = vpack.c.b16 %v3021, %v3021
      %v3031 = vpack.c.b16 %v3022, %v3022
      %v3032 = vpack.c.b16 %v3023, %v3023
      %v3033 = vpack.c.b16 %v3024, %v3024
      %v3034 = vpack.c.b16 %v3025, %v3025
      %v3035 = vpack.c.b16 %v3026, %v3026
      %v3036 = vpack.c.b16 %v3027, %v3027
      %v3037 = vpack.c.b16 %v3028, %v3028
      %v3038 = vrot.slane %v3029, 3
      %v3039 = vrot.slane %v3030, 3
      %v3040 = vrot.slane %v3031, 3
      %v3041 = vrot.slane %v3032, 3
      %v3042 = vrot.slane %v3033, 3
      %v3043 = vrot.slane %v3034, 3
      %v3044 = vrot.slane %v3035, 3
      %v3045 = vrot.slane %v3036, 3
      %v3046 = vrot.slane %v3037, 3
      %3056 = vmatprep.subr.bf16.mxu0 0
      %3057 = vmatpush1.bf16.msra.mxu0 %v801
      %3058 = vmatprep.subr.bf16.mxu0 0
      %3059 = vmatpush1.bf16.msra.mxu0 %v802
      %3060 = vmatprep.subr.bf16.mxu0 0
      %3061 = vmatpush1.bf16.msra.mxu0 %v803
      %3062 = vmatprep.subr.bf16.mxu0 0
      %3063 = vmatpush1.bf16.msra.mxu0 %v804
      %3064 = vmatprep.subr.bf16.mxu0 0
      %3065 = vmatpush1.bf16.msra.mxu0 %v805
      %3066 = vmatprep.subr.bf16.mxu0 0
      %3067 = vmatpush1.bf16.msra.mxu0 %v806
      %3068 = vmatprep.subr.bf16.mxu0 0
      %3069 = vmatpush1.bf16.msra.mxu0 %v807
      %3070 = vmatprep.subr.bf16.mxu0 0
      %3071 = vmatpush1.bf16.msra.mxu0 %v808
      %3072 = vmatprep.subr.bf16.mxu0 0
      %3073 = vmatpush1.bf16.msra.mxu0 %v809
      %3074 = vmatprep.subr.bf16.mxu0 0
      %3075 = vmatpush1.bf16.msra.mxu0 %v810
      %3076 = vmatprep.subr.bf16.mxu0 0
      %3077 = vmatpush1.bf16.msra.mxu0 %v811
      %3078 = vmatprep.subr.bf16.mxu0 0
      %3079 = vmatpush1.bf16.msra.mxu0 %v812
      %3080 = vmatprep.subr.bf16.mxu0 0
      %3081 = vmatpush1.bf16.msra.mxu0 %v813
      %3082 = vmatprep.subr.bf16.mxu0 0
      %3083 = vmatpush1.bf16.msra.mxu0 %v814
      %3084 = vmatprep.subr.bf16.mxu0 0
      %3085 = vmatpush1.bf16.msra.mxu0 %v815
      %3086 = vmatprep.subr.bf16.mxu0 0
      %3087 = vmatpush1.bf16.msra.mxu0 %v816
      %3088 = vmatprep.mubr.bf16.mxu0 %v3039
      %3089 = vmatmul.mubr.bf16.gmra.mrb[0].mxu0 %v3038
      %v3090 = vpop.f32.mrb[0].mxu0
      %v3091 = vadd.f32 %v480, %v3090
      %v3092 = vpop.f32.mrb[0].mxu0
      %v3093 = vpop.f32.mrb[0].mxu0
      %v3094 = vpop.f32.mrb[0].mxu0
      %3095 = vdwg.mxu0
      %3096 = vmatprep.subr.bf16.mxu0 0
      %3097 = vmatpush1.bf16.msra.mxu0 %v817
      %3098 = vmatprep.subr.bf16.mxu0 0
      %3099 = vmatpush1.bf16.msra.mxu0 %v818
      %3100 = vmatprep.subr.bf16.mxu0 0
      %3101 = vmatpush1.bf16.msra.mxu0 %v819
      %3102 = vmatprep.subr.bf16.mxu0 0
      %3103 = vmatpush1.bf16.msra.mxu0 %v820
      %3104 = vmatprep.subr.bf16.mxu0 0
      %3105 = vmatpush1.bf16.msra.mxu0 %v821
      %3106 = vmatprep.subr.bf16.mxu0 0
      %3107 = vmatpush1.bf16.msra.mxu0 %v822
      %3108 = vmatprep.subr.bf16.mxu0 0
      %3109 = vmatpush1.bf16.msra.mxu0 %v823
      %3110 = vmatprep.subr.bf16.mxu0 0
      %3111 = vmatpush1.bf16.msra.mxu0 %v824
      %3112 = vmatprep.subr.bf16.mxu0 0
      %3113 = vmatpush1.bf16.msra.mxu0 %v825
      %3114 = vmatprep.subr.bf16.mxu0 0
      %3115 = vmatpush1.bf16.msra.mxu0 %v826
      %3116 = vmatprep.subr.bf16.mxu0 0
      %3117 = vmatpush1.bf16.msra.mxu0 %v827
      %3118 = vmatprep.subr.bf16.mxu0 0
      %3119 = vmatpush1.bf16.msra.mxu0 %v828
      %3120 = vmatprep.subr.bf16.mxu0 0
      %3121 = vmatpush1.bf16.msra.mxu0 %v829
      %3122 = vmatprep.subr.bf16.mxu0 0
      %3123 = vmatpush1.bf16.msra.mxu0 %v830
      %3124 = vmatprep.subr.bf16.mxu0 0
      %3125 = vmatpush1.bf16.msra.mxu0 %v831
      %3126 = vmatprep.subr.bf16.mxu0 0
      %3127 = vmatpush1.bf16.msra.mxu0 %v832
      %3128 = vmatprep.mubr.bf16.mxu0 %v3041
      %3129 = vmatmul.mubr.bf16.gmra.mrb[0].mxu0 %v3040
      %v3130 = vpop.f32.mrb[0].mxu0
      %v3131 = vadd.f32 %v3091, %v3130
      %v3132 = vpop.f32.mrb[0].mxu0
      %v3133 = vpop.f32.mrb[0].mxu0
      %v3134 = vpop.f32.mrb[0].mxu0
      %3135 = vdwg.mxu0
      %3136 = vmatprep.subr.bf16.mxu0 0
      %3137 = vmatpush1.bf16.msra.mxu0 %v833
      %3138 = vmatprep.subr.bf16.mxu0 0
      %3139 = vmatpush1.bf16.msra.mxu0 %v834
      %3140 = vmatprep.subr.bf16.mxu0 0
      %3141 = vmatpush1.bf16.msra.mxu0 %v835
      %3142 = vmatprep.subr.bf16.mxu0 0
      %3143 = vmatpush1.bf16.msra.mxu0 %v836
      %3144 = vmatprep.subr.bf16.mxu0 0
      %3145 = vmatpush1.bf16.msra.mxu0 %v837
      %3146 = vmatprep.subr.bf16.mxu0 0
      %3147 = vmatpush1.bf16.msra.mxu0 %v838
      %3148 = vmatprep.subr.bf16.mxu0 0
      %3149 = vmatpush1.bf16.msra.mxu0 %v839
      %3150 = vmatprep.subr.bf16.mxu0 0
      %3151 = vmatpush1.bf16.msra.mxu0 %v840
      %3152 = vmatprep.subr.bf16.mxu0 0
      %3153 = vmatpush1.bf16.msra.mxu0 %v841
      %3154 = vmatprep.subr.bf16.mxu0 0
      %3155 = vmatpush1.bf16.msra.mxu0 %v842
      %3156 = vmatprep.subr.bf16.mxu0 0
      %3157 = vmatpush1.bf16.msra.mxu0 %v843
      %3158 = vmatprep.subr.bf16.mxu0 0
      %3159 = vmatpush1.bf16.msra.mxu0 %v844
      %3160 = vmatprep.subr.bf16.mxu0 0
      %3161 = vmatpush1.bf16.msra.mxu0 %v845
      %3162 = vmatprep.subr.bf16.mxu0 0
      %3163 = vmatpush1.bf16.msra.mxu0 %v846
      %3164 = vmatprep.subr.bf16.mxu0 0
      %3165 = vmatpush1.bf16.msra.mxu0 %v847
      %3166 = vmatprep.subr.bf16.mxu0 0
      %3167 = vmatpush1.bf16.msra.mxu0 %v848
      %3168 = vmatprep.mubr.bf16.mxu0 %v3043
      %3169 = vmatmul.mubr.bf16.gmra.mrb[0].mxu0 %v3042
      %v3170 = vpop.f32.mrb[0].mxu0
      %v3171 = vadd.f32 %v3131, %v3170
      %v3172 = vpop.f32.mrb[0].mxu0
      %v3173 = vpop.f32.mrb[0].mxu0
      %v3174 = vpop.f32.mrb[0].mxu0
      %3175 = vdwg.mxu0
      %3176 = vmatprep.subr.bf16.mxu0 0
      %3177 = vmatpush1.bf16.msra.mxu0 %v849
      %3178 = vmatprep.subr.bf16.mxu0 0
      %3179 = vmatpush1.bf16.msra.mxu0 %v850
      %3180 = vmatprep.subr.bf16.mxu0 0
      %3181 = vmatpush1.bf16.msra.mxu0 %v851
      %3182 = vmatprep.subr.bf16.mxu0 0
      %3183 = vmatpush1.bf16.msra.mxu0 %v852
      %3184 = vmatprep.subr.bf16.mxu0 0
      %3185 = vmatpush1.bf16.msra.mxu0 %v853
      %3186 = vmatprep.subr.bf16.mxu0 0
      %3187 = vmatpush1.bf16.msra.mxu0 %v854
      %3188 = vmatprep.subr.bf16.mxu0 0
      %3189 = vmatpush1.bf16.msra.mxu0 %v855
      %3190 = vmatprep.subr.bf16.mxu0 0
      %3191 = vmatpush1.bf16.msra.mxu0 %v856
      %3192 = vmatprep.subr.bf16.mxu0 0
      %3193 = vmatpush1.bf16.msra.mxu0 %v857
      %3194 = vmatprep.subr.bf16.mxu0 0
      %3195 = vmatpush1.bf16.msra.mxu0 %v858
      %3196 = vmatprep.subr.bf16.mxu0 0
      %3197 = vmatpush1.bf16.msra.mxu0 %v859
      %3198 = vmatprep.subr.bf16.mxu0 0
      %3199 = vmatpush1.bf16.msra.mxu0 %v860
      %3200 = vmatprep.subr.bf16.mxu0 0
      %3201 = vmatpush1.bf16.msra.mxu0 %v861
      %3202 = vmatprep.subr.bf16.mxu0 0
      %3203 = vmatpush1.bf16.msra.mxu0 %v862
      %3204 = vmatprep.subr.bf16.mxu0 0
      %3205 = vmatpush1.bf16.msra.mxu0 %v863
      %3206 = vmatprep.subr.bf16.mxu0 0
      %3207 = vmatpush1.bf16.msra.mxu0 %v864
      %3208 = vmatprep.mubr.bf16.mxu0 %v3045
      %3209 = vmatmul.mubr.bf16.gmra.mrb[0].mxu0 %v3044
      %v3210 = vpop.f32.mrb[0].mxu0
      %v3211 = vadd.f32 %v3171, %v3210
      %v3212 = vpop.f32.mrb[0].mxu0
      %v3213 = vpop.f32.mrb[0].mxu0
      %v3214 = vpop.f32.mrb[0].mxu0
      %3215 = vdwg.mxu0
      %3216 = vmatprep.subr.bf16.mxu0 0
      %3217 = vmatpush1.bf16.msra.mxu0 %v865
      %3218 = vmatprep.subr.bf16.mxu0 0
      %3219 = vmatpush1.bf16.msra.mxu0 %v866
      %3220 = vmatprep.subr.bf16.mxu0 0
      %3221 = vmatpush1.bf16.msra.mxu0 %v867
      %3222 = vmatprep.subr.bf16.mxu0 0
      %3223 = vmatpush1.bf16.msra.mxu0 %v868
      %3224 = vmatprep.subr.bf16.mxu0 0
      %3225 = vmatpush1.bf16.msra.mxu0 %v869
      %3226 = vmatprep.subr.bf16.mxu0 0
      %3227 = vmatpush1.bf16.msra.mxu0 %v870
      %3228 = vmatprep.subr.bf16.mxu0 0
      %3229 = vmatpush1.bf16.msra.mxu0 %v871
      %3230 = vmatprep.subr.bf16.mxu0 0
      %3231 = vmatpush1.bf16.msra.mxu0 %v872
      %3232 = vmatprep.subr.bf16.mxu0 0
      %3233 = vmatpush1.bf16.msra.mxu0 0
      %3234 = vmatprep.subr.bf16.mxu0 0
      %3235 = vmatpush1.bf16.msra.mxu0 0
      %3236 = vmatprep.subr.bf16.mxu0 0
      %3237 = vmatpush1.bf16.msra.mxu0 0
      %3238 = vmatprep.subr.bf16.mxu0 0
      %3239 = vmatpush1.bf16.msra.mxu0 0
      %3240 = vmatprep.subr.bf16.mxu0 0
      %3241 = vmatpush1.bf16.msra.mxu0 0
      %3242 = vmatprep.subr.bf16.mxu0 0
      %3243 = vmatpush1.bf16.msra.mxu0 0
      %3244 = vmatprep.subr.bf16.mxu0 0
      %3245 = vmatpush1.bf16.msra.mxu0 0
      %3246 = vmatprep.subr.bf16.mxu0 0
      %3247 = vmatpush1.bf16.msra.mxu0 0
      %3248 = vmatprep.mubr.bf16.mxu0 0
      %3249 = vmatmul.mubr.bf16.gmra.mrb[0].mxu0 %v3046
      %v3250 = vpop.f32.mrb[0].mxu0
      %v3251 = vadd.f32 %v3211, %v3250
      %v3252 = vpop.f32.mrb[0].mxu0
      %v3253 = vpop.f32.mrb[0].mxu0
      %v3254 = vpop.f32.mrb[0].mxu0
      %3255 = vdwg.mxu0
      %v3256 = vmax.f32 %v3251, 0.0
      %v3257 = vpack.c.bf16 %v3256, %v3256
      %s3258 = scalar_lea.vmem %s3, 384
      %v3259 = vld [vmem:[%s3258] sm:$0xf]
      %v3260 = vld [vmem:[%s3258 + $0x4] sm:$0xf]
      %v3261 = vld [vmem:[%s3258 + $0x8] sm:$0xf]
      %v3262 = vld [vmem:[%s3258 + $0xc] sm:$0xf]
      %v3263 = vld [vmem:[%s3258 + $0x10] sm:$0xf]
      %v3264 = vld [vmem:[%s3258 + $0x14] sm:$0xf]
      %v3265 = vld [vmem:[%s3258 + $0x18] sm:$0xf]
      %v3266 = vld [vmem:[%s3258 + $0x1c] sm:$0xf]
      %v3267 = vld [vmem:[%s3258 + $0x20] sm:$0xf]
      %v3268 = vld [vmem:[%s3258 + $0x24] sm:$0xf]
      %v3269 = vld [vmem:[%s3258 + $0x28] sm:$0xf]
      %v3270 = vld [vmem:[%s3258 + $0x2c] sm:$0xf]
      %v3271 = vld [vmem:[%s3258 + $0x30] sm:$0xf]
      %v3272 = vld [vmem:[%s3258 + $0x34] sm:$0xf]
      %v3273 = vld [vmem:[%s3258 + $0x38] sm:$0xf]
      %v3274 = vld [vmem:[%s3258 + $0x3c] sm:$0xf]
      %v3291 = vunpack.c.l.b16 %v3259
      %v3292 = vunpack.c.l.b16 %v3260
      %v3293 = vunpack.c.l.b16 %v3261
      %v3294 = vunpack.c.l.b16 %v3262
      %v3295 = vunpack.c.l.b16 %v3263
      %v3296 = vunpack.c.l.b16 %v3264
      %v3297 = vunpack.c.l.b16 %v3265
      %v3298 = vunpack.c.l.b16 %v3266
      %v3299 = vunpack.c.l.b16 %v3267
      %v3300 = vunpack.c.l.b16 %v3268
      %v3301 = vunpack.c.l.b16 %v3269
      %v3302 = vunpack.c.l.b16 %v3270
      %v3303 = vunpack.c.l.b16 %v3271
      %v3304 = vunpack.c.l.b16 %v3272
      %v3305 = vunpack.c.l.b16 %v3273
      %v3306 = vunpack.c.l.b16 %v3274
      %v3307 = vpack.c.b16 %v3292, %v3291
      %v3308 = vpack.c.b16 %v3294, %v3293
      %v3309 = vpack.c.b16 %v3296, %v3295
      %v3310 = vpack.c.b16 %v3298, %v3297
      %v3311 = vpack.c.b16 %v3300, %v3299
      %v3312 = vpack.c.b16 %v3302, %v3301
      %v3313 = vpack.c.b16 %v3304, %v3303
      %v3314 = vpack.c.b16 %v3306, %v3305
      %3323 = vmatprep.subr.bf16.mxu0 0
      %3324 = vmatpush1.bf16.msra.mxu0 %v3307
      %3325 = vmatprep.subr.bf16.mxu0 0
      %3326 = vmatpush1.bf16.msra.mxu0 %v3308
      %3327 = vmatprep.subr.bf16.mxu0 0
      %3328 = vmatpush1.bf16.msra.mxu0 %v3309
      %3329 = vmatprep.subr.bf16.mxu0 0
      %3330 = vmatpush1.bf16.msra.mxu0 %v3310
      %3331 = vmatprep.subr.bf16.mxu0 0
      %3332 = vmatpush1.bf16.msra.mxu0 %v3311
      %3333 = vmatprep.subr.bf16.mxu0 0
      %3334 = vmatpush1.bf16.msra.mxu0 %v3312
      %3335 = vmatprep.subr.bf16.mxu0 0
      %3336 = vmatpush1.bf16.msra.mxu0 %v3313
      %3337 = vmatprep.subr.bf16.mxu0 0
      %3338 = vmatpush1.bf16.msra.mxu0 %v3314
      %3339 = vmatprep.subr.bf16.mxu0 0
      %3340 = vmatpush1.bf16.msra.mxu0 0
      %3341 = vmatprep.subr.bf16.mxu0 0
      %3342 = vmatpush1.bf16.msra.mxu0 0
      %3343 = vmatprep.subr.bf16.mxu0 0
      %3344 = vmatpush1.bf16.msra.mxu0 0
      %3345 = vmatprep.subr.bf16.mxu0 0
      %3346 = vmatpush1.bf16.msra.mxu0 0
      %3347 = vmatprep.subr.bf16.mxu0 0
      %3348 = vmatpush1.bf16.msra.mxu0 0
      %3349 = vmatprep.subr.bf16.mxu0 0
      %3350 = vmatpush1.bf16.msra.mxu0 0
      %3351 = vmatprep.subr.bf16.mxu0 0
      %3352 = vmatpush1.bf16.msra.mxu0 0
      %3353 = vmatprep.subr.bf16.mxu0 0
      %3354 = vmatpush1.bf16.msra.mxu0 0
      %3355 = vmatprep.mubr.bf16.mxu0 0
      %3356 = vmatmul.mubr.bf16.gmra.mrb[0].mxu0 %v3257
      %v3357 = vpop.f32.mrb[0].mxu0
      %v3358 = vadd.f32 0.0, %v3357
      %v3359 = vpop.f32.mrb[0].mxu0
      %v3360 = vpop.f32.mrb[0].mxu0
      %v3361 = vpop.f32.mrb[0].mxu0
      %3362 = vdwg.mxu0
      %v3363 = vadd.f32 %v3009, %v3358
      %v3365 = vshrl.u32 %v3029, 16
      %v3367 = vrot.slane %v3365, 3
      %v3369 = vshrl.u32 %v3030, 16
      %v3371 = vrot.slane %v3369, 3
      %v3373 = vshrl.u32 %v3031, 16
      %v3375 = vrot.slane %v3373, 3
      %v3377 = vshrl.u32 %v3032, 16
      %v3379 = vrot.slane %v3377, 3
      %v3381 = vshrl.u32 %v3033, 16
      %v3383 = vrot.slane %v3381, 3
      %v3385 = vshrl.u32 %v3034, 16
      %v3387 = vrot.slane %v3385, 3
      %v3389 = vshrl.u32 %v3035, 16
      %v3391 = vrot.slane %v3389, 3
      %v3393 = vshrl.u32 %v3036, 16
      %v3395 = vrot.slane %v3393, 3
      %v3397 = vshrl.u32 %v3037, 16
      %v3399 = vrot.slane %v3397, 3
      %3409 = vmatprep.subr.bf16.mxu0 0
      %3410 = vmatpush1.bf16.msra.mxu0 %v801
      %3411 = vmatprep.subr.bf16.mxu0 0
      %3412 = vmatpush1.bf16.msra.mxu0 %v802
      %3413 = vmatprep.subr.bf16.mxu0 0
      %3414 = vmatpush1.bf16.msra.mxu0 %v803
      %3415 = vmatprep.subr.bf16.mxu0 0
      %3416 = vmatpush1.bf16.msra.mxu0 %v804
      %3417 = vmatprep.subr.bf16.mxu0 0
      %3418 = vmatpush1.bf16.msra.mxu0 %v805
      %3419 = vmatprep.subr.bf16.mxu0 0
      %3420 = vmatpush1.bf16.msra.mxu0 %v806
      %3421 = vmatprep.subr.bf16.mxu0 0
      %3422 = vmatpush1.bf16.msra.mxu0 %v807
      %3423 = vmatprep.subr.bf16.mxu0 0
      %3424 = vmatpush1.bf16.msra.mxu0 %v808
      %3425 = vmatprep.subr.bf16.mxu0 0
      %3426 = vmatpush1.bf16.msra.mxu0 %v809
      %3427 = vmatprep.subr.bf16.mxu0 0
      %3428 = vmatpush1.bf16.msra.mxu0 %v810
      %3429 = vmatprep.subr.bf16.mxu0 0
      %3430 = vmatpush1.bf16.msra.mxu0 %v811
      %3431 = vmatprep.subr.bf16.mxu0 0
      %3432 = vmatpush1.bf16.msra.mxu0 %v812
      %3433 = vmatprep.subr.bf16.mxu0 0
      %3434 = vmatpush1.bf16.msra.mxu0 %v813
      %3435 = vmatprep.subr.bf16.mxu0 0
      %3436 = vmatpush1.bf16.msra.mxu0 %v814
      %3437 = vmatprep.subr.bf16.mxu0 0
      %3438 = vmatpush1.bf16.msra.mxu0 %v815
      %3439 = vmatprep.subr.bf16.mxu0 0
      %3440 = vmatpush1.bf16.msra.mxu0 %v816
      %3441 = vmatprep.mubr.bf16.mxu0 %v3371
      %3442 = vmatmul.mubr.bf16.gmra.mrb[0].mxu0 %v3367
      %v3443 = vpop.f32.mrb[0].mxu0
      %v3444 = vadd.f32 %v480, %v3443
      %v3445 = vpop.f32.mrb[0].mxu0
      %v3446 = vpop.f32.mrb[0].mxu0
      %v3447 = vpop.f32.mrb[0].mxu0
      %3448 = vdwg.mxu0
      %3449 = vmatprep.subr.bf16.mxu0 0
      %3450 = vmatpush1.bf16.msra.mxu0 %v817
      %3451 = vmatprep.subr.bf16.mxu0 0
      %3452 = vmatpush1.bf16.msra.mxu0 %v818
      %3453 = vmatprep.subr.bf16.mxu0 0
      %3454 = vmatpush1.bf16.msra.mxu0 %v819
      %3455 = vmatprep.subr.bf16.mxu0 0
      %3456 = vmatpush1.bf16.msra.mxu0 %v820
      %3457 = vmatprep.subr.bf16.mxu0 0
      %3458 = vmatpush1.bf16.msra.mxu0 %v821
      %3459 = vmatprep.subr.bf16.mxu0 0
      %3460 = vmatpush1.bf16.msra.mxu0 %v822
      %3461 = vmatprep.subr.bf16.mxu0 0
      %3462 = vmatpush1.bf16.msra.mxu0 %v823
      %3463 = vmatprep.subr.bf16.mxu0 0
      %3464 = vmatpush1.bf16.msra.mxu0 %v824
      %3465 = vmatprep.subr.bf16.mxu0 0
      %3466 = vmatpush1.bf16.msra.mxu0 %v825
      %3467 = vmatprep.subr.bf16.mxu0 0
      %3468 = vmatpush1.bf16.msra.mxu0 %v826
      %3469 = vmatprep.subr.bf16.mxu0 0
      %3470 = vmatpush1.bf16.msra.mxu0 %v827
      %3471 = vmatprep.subr.bf16.mxu0 0
      %3472 = vmatpush1.bf16.msra.mxu0 %v828
      %3473 = vmatprep.subr.bf16.mxu0 0
      %3474 = vmatpush1.bf16.msra.mxu0 %v829
      %3475 = vmatprep.subr.bf16.mxu0 0
      %3476 = vmatpush1.bf16.msra.mxu0 %v830
      %3477 = vmatprep.subr.bf16.mxu0 0
      %3478 = vmatpush1.bf16.msra.mxu0 %v831
      %3479 = vmatprep.subr.bf16.mxu0 0
      %3480 = vmatpush1.bf16.msra.mxu0 %v832
      %3481 = vmatprep.mubr.bf16.mxu0 %v3379
      %3482 = vmatmul.mubr.bf16.gmra.mrb[0].mxu0 %v3375
      %v3483 = vpop.f32.mrb[0].mxu0
      %v3484 = vadd.f32 %v3444, %v3483
      %v3485 = vpop.f32.mrb[0].mxu0
      %v3486 = vpop.f32.mrb[0].mxu0
      %v3487 = vpop.f32.mrb[0].mxu0
      %3488 = vdwg.mxu0
      %3489 = vmatprep.subr.bf16.mxu0 0
      %3490 = vmatpush1.bf16.msra.mxu0 %v833
      %3491 = vmatprep.subr.bf16.mxu0 0
      %3492 = vmatpush1.bf16.msra.mxu0 %v834
      %3493 = vmatprep.subr.bf16.mxu0 0
      %3494 = vmatpush1.bf16.msra.mxu0 %v835
      %3495 = vmatprep.subr.bf16.mxu0 0
      %3496 = vmatpush1.bf16.msra.mxu0 %v836
      %3497 = vmatprep.subr.bf16.mxu0 0
      %3498 = vmatpush1.bf16.msra.mxu0 %v837
      %3499 = vmatprep.subr.bf16.mxu0 0
      %3500 = vmatpush1.bf16.msra.mxu0 %v838
      %3501 = vmatprep.subr.bf16.mxu0 0
      %3502 = vmatpush1.bf16.msra.mxu0 %v839
      %3503 = vmatprep.subr.bf16.mxu0 0
      %3504 = vmatpush1.bf16.msra.mxu0 %v840
      %3505 = vmatprep.subr.bf16.mxu0 0
      %3506 = vmatpush1.bf16.msra.mxu0 %v841
      %3507 = vmatprep.subr.bf16.mxu0 0
      %3508 = vmatpush1.bf16.msra.mxu0 %v842
      %3509 = vmatprep.subr.bf16.mxu0 0
      %3510 = vmatpush1.bf16.msra.mxu0 %v843
      %3511 = vmatprep.subr.bf16.mxu0 0
      %3512 = vmatpush1.bf16.msra.mxu0 %v844
      %3513 = vmatprep.subr.bf16.mxu0 0
      %3514 = vmatpush1.bf16.msra.mxu0 %v845
      %3515 = vmatprep.subr.bf16.mxu0 0
      %3516 = vmatpush1.bf16.msra.mxu0 %v846
      %3517 = vmatprep.subr.bf16.mxu0 0
      %3518 = vmatpush1.bf16.msra.mxu0 %v847
      %3519 = vmatprep.subr.bf16.mxu0 0
      %3520 = vmatpush1.bf16.msra.mxu0 %v848
      %3521 = vmatprep.mubr.bf16.mxu0 %v3387
      %3522 = vmatmul.mubr.bf16.gmra.mrb[0].mxu0 %v3383
      %v3523 = vpop.f32.mrb[0].mxu0
      %v3524 = vadd.f32 %v3484, %v3523
      %v3525 = vpop.f32.mrb[0].mxu0
      %v3526 = vpop.f32.mrb[0].mxu0
      %v3527 = vpop.f32.mrb[0].mxu0
      %3528 = vdwg.mxu0
      %3529 = vmatprep.subr.bf16.mxu0 0
      %3530 = vmatpush1.bf16.msra.mxu0 %v849
      %3531 = vmatprep.subr.bf16.mxu0 0
      %3532 = vmatpush1.bf16.msra.mxu0 %v850
      %3533 = vmatprep.subr.bf16.mxu0 0
      %3534 = vmatpush1.bf16.msra.mxu0 %v851
      %3535 = vmatprep.subr.bf16.mxu0 0
      %3536 = vmatpush1.bf16.msra.mxu0 %v852
      %3537 = vmatprep.subr.bf16.mxu0 0
      %3538 = vmatpush1.bf16.msra.mxu0 %v853
      %3539 = vmatprep.subr.bf16.mxu0 0
      %3540 = vmatpush1.bf16.msra.mxu0 %v854
      %3541 = vmatprep.subr.bf16.mxu0 0
      %3542 = vmatpush1.bf16.msra.mxu0 %v855
      %3543 = vmatprep.subr.bf16.mxu0 0
      %3544 = vmatpush1.bf16.msra.mxu0 %v856
      %3545 = vmatprep.subr.bf16.mxu0 0
      %3546 = vmatpush1.bf16.msra.mxu0 %v857
      %3547 = vmatprep.subr.bf16.mxu0 0
      %3548 = vmatpush1.bf16.msra.mxu0 %v858
      %3549 = vmatprep.subr.bf16.mxu0 0
      %3550 = vmatpush1.bf16.msra.mxu0 %v859
      %3551 = vmatprep.subr.bf16.mxu0 0
      %3552 = vmatpush1.bf16.msra.mxu0 %v860
      %3553 = vmatprep.subr.bf16.mxu0 0
      %3554 = vmatpush1.bf16.msra.mxu0 %v861
      %3555 = vmatprep.subr.bf16.mxu0 0
      %3556 = vmatpush1.bf16.msra.mxu0 %v862
      %3557 = vmatprep.subr.bf16.mxu0 0
      %3558 = vmatpush1.bf16.msra.mxu0 %v863
      %3559 = vmatprep.subr.bf16.mxu0 0
      %3560 = vmatpush1.bf16.msra.mxu0 %v864
      %3561 = vmatprep.mubr.bf16.mxu0 %v3395
      %3562 = vmatmul.mubr.bf16.gmra.mrb[0].mxu0 %v3391
      %v3563 = vpop.f32.mrb[0].mxu0
      %v3564 = vadd.f32 %v3524, %v3563
      %v3565 = vpop.f32.mrb[0].mxu0
      %v3566 = vpop.f32.mrb[0].mxu0
      %v3567 = vpop.f32.mrb[0].mxu0
      %3568 = vdwg.mxu0
      %3569 = vmatprep.subr.bf16.mxu0 0
      %3570 = vmatpush1.bf16.msra.mxu0 %v865
      %3571 = vmatprep.subr.bf16.mxu0 0
      %3572 = vmatpush1.bf16.msra.mxu0 %v866
      %3573 = vmatprep.subr.bf16.mxu0 0
      %3574 = vmatpush1.bf16.msra.mxu0 %v867
      %3575 = vmatprep.subr.bf16.mxu0 0
      %3576 = vmatpush1.bf16.msra.mxu0 %v868
      %3577 = vmatprep.subr.bf16.mxu0 0
      %3578 = vmatpush1.bf16.msra.mxu0 %v869
      %3579 = vmatprep.subr.bf16.mxu0 0
      %3580 = vmatpush1.bf16.msra.mxu0 %v870
      %3581 = vmatprep.subr.bf16.mxu0 0
      %3582 = vmatpush1.bf16.msra.mxu0 %v871
      %3583 = vmatprep.subr.bf16.mxu0 0
      %3584 = vmatpush1.bf16.msra.mxu0 %v872
      %3585 = vmatprep.subr.bf16.mxu0 0
      %3586 = vmatpush1.bf16.msra.mxu0 0
      %3587 = vmatprep.subr.bf16.mxu0 0
      %3588 = vmatpush1.bf16.msra.mxu0 0
      %3589 = vmatprep.subr.bf16.mxu0 0
      %3590 = vmatpush1.bf16.msra.mxu0 0
      %3591 = vmatprep.subr.bf16.mxu0 0
      %3592 = vmatpush1.bf16.msra.mxu0 0
      %3593 = vmatprep.subr.bf16.mxu0 0
      %3594 = vmatpush1.bf16.msra.mxu0 0
      %3595 = vmatprep.subr.bf16.mxu0 0
      %3596 = vmatpush1.bf16.msra.mxu0 0
      %3597 = vmatprep.subr.bf16.mxu0 0
      %3598 = vmatpush1.bf16.msra.mxu0 0
      %3599 = vmatprep.subr.bf16.mxu0 0
      %3600 = vmatpush1.bf16.msra.mxu0 0
      %3601 = vmatprep.mubr.bf16.mxu0 0
      %3602 = vmatmul.mubr.bf16.gmra.mrb[0].mxu0 %v3399
      %v3603 = vpop.f32.mrb[0].mxu0
      %v3604 = vadd.f32 %v3564, %v3603
      %v3605 = vpop.f32.mrb[0].mxu0
      %v3606 = vpop.f32.mrb[0].mxu0
      %v3607 = vpop.f32.mrb[0].mxu0
      %3608 = vdwg.mxu0
      %v3609 = vmax.f32 %v3604, 0.0
      %v3610 = vpack.c.bf16 %v3609, %v3609
      %s3611 = scalar_lea.vmem %s3, 448
      %v3612 = vld [vmem:[%s3611] sm:$0xf]
      %v3613 = vld [vmem:[%s3611 + $0x4] sm:$0xf]
      %v3614 = vld [vmem:[%s3611 + $0x8] sm:$0xf]
      %v3615 = vld [vmem:[%s3611 + $0xc] sm:$0xf]
      %v3616 = vld [vmem:[%s3611 + $0x10] sm:$0xf]
      %v3617 = vld [vmem:[%s3611 + $0x14] sm:$0xf]
      %v3618 = vld [vmem:[%s3611 + $0x18] sm:$0xf]
      %v3619 = vld [vmem:[%s3611 + $0x1c] sm:$0xf]
      %v3620 = vld [vmem:[%s3611 + $0x20] sm:$0xf]
      %v3621 = vld [vmem:[%s3611 + $0x24] sm:$0xf]
      %v3622 = vld [vmem:[%s3611 + $0x28] sm:$0xf]
      %v3623 = vld [vmem:[%s3611 + $0x2c] sm:$0xf]
      %v3624 = vld [vmem:[%s3611 + $0x30] sm:$0xf]
      %v3625 = vld [vmem:[%s3611 + $0x34] sm:$0xf]
      %v3626 = vld [vmem:[%s3611 + $0x38] sm:$0xf]
      %v3627 = vld [vmem:[%s3611 + $0x3c] sm:$0xf]
      %v3644 = vunpack.c.l.b16 %v3612
      %v3645 = vunpack.c.l.b16 %v3613
      %v3646 = vunpack.c.l.b16 %v3614
      %v3647 = vunpack.c.l.b16 %v3615
      %v3648 = vunpack.c.l.b16 %v3616
      %v3649 = vunpack.c.l.b16 %v3617
      %v3650 = vunpack.c.l.b16 %v3618
      %v3651 = vunpack.c.l.b16 %v3619
      %v3652 = vunpack.c.l.b16 %v3620
      %v3653 = vunpack.c.l.b16 %v3621
      %v3654 = vunpack.c.l.b16 %v3622
      %v3655 = vunpack.c.l.b16 %v3623
      %v3656 = vunpack.c.l.b16 %v3624
      %v3657 = vunpack.c.l.b16 %v3625
      %v3658 = vunpack.c.l.b16 %v3626
      %v3659 = vunpack.c.l.b16 %v3627
      %v3660 = vpack.c.b16 %v3645, %v3644
      %v3661 = vpack.c.b16 %v3647, %v3646
      %v3662 = vpack.c.b16 %v3649, %v3648
      %v3663 = vpack.c.b16 %v3651, %v3650
      %v3664 = vpack.c.b16 %v3653, %v3652
      %v3665 = vpack.c.b16 %v3655, %v3654
      %v3666 = vpack.c.b16 %v3657, %v3656
      %v3667 = vpack.c.b16 %v3659, %v3658
      %3676 = vmatprep.subr.bf16.mxu0 0
      %3677 = vmatpush1.bf16.msra.mxu0 %v3660
      %3678 = vmatprep.subr.bf16.mxu0 0
      %3679 = vmatpush1.bf16.msra.mxu0 %v3661
      %3680 = vmatprep.subr.bf16.mxu0 0
      %3681 = vmatpush1.bf16.msra.mxu0 %v3662
      %3682 = vmatprep.subr.bf16.mxu0 0
      %3683 = vmatpush1.bf16.msra.mxu0 %v3663
      %3684 = vmatprep.subr.bf16.mxu0 0
      %3685 = vmatpush1.bf16.msra.mxu0 %v3664
      %3686 = vmatprep.subr.bf16.mxu0 0
      %3687 = vmatpush1.bf16.msra.mxu0 %v3665
      %3688 = vmatprep.subr.bf16.mxu0 0
      %3689 = vmatpush1.bf16.msra.mxu0 %v3666
      %3690 = vmatprep.subr.bf16.mxu0 0
      %3691 = vmatpush1.bf16.msra.mxu0 %v3667
      %3692 = vmatprep.subr.bf16.mxu0 0
      %3693 = vmatpush1.bf16.msra.mxu0 0
      %3694 = vmatprep.subr.bf16.mxu0 0
      %3695 = vmatpush1.bf16.msra.mxu0 0
      %3696 = vmatprep.subr.bf16.mxu0 0
      %3697 = vmatpush1.bf16.msra.mxu0 0
      %3698 = vmatprep.subr.bf16.mxu0 0
      %3699 = vmatpush1.bf16.msra.mxu0 0
      %3700 = vmatprep.subr.bf16.mxu0 0
      %3701 = vmatpush1.bf16.msra.mxu0 0
      %3702 = vmatprep.subr.bf16.mxu0 0
      %3703 = vmatpush1.bf16.msra.mxu0 0
      %3704 = vmatprep.subr.bf16.mxu0 0
      %3705 = vmatpush1.bf16.msra.mxu0 0
      %3706 = vmatprep.subr.bf16.mxu0 0
      %3707 = vmatpush1.bf16.msra.mxu0 0
      %3708 = vmatprep.mubr.bf16.mxu0 0
      %3709 = vmatmul.mubr.bf16.gmra.mrb[0].mxu0 %v3610
      %v3710 = vpop.f32.mrb[0].mxu0
      %v3711 = vadd.f32 0.0, %v3710
      %v3712 = vpop.f32.mrb[0].mxu0
      %v3713 = vpop.f32.mrb[0].mxu0
      %v3714 = vpop.f32.mrb[0].mxu0
      %3715 = vdwg.mxu0
      %v3716 = vadd.f32 %v3363, %v3711
      %v3717 = vld [vmem:[%s325 + $0x24] sm:$0x11]
      %v3718 = vld [vmem:[%s325 + $0x2c] sm:$0x11]
      %v3719 = vld [vmem:[%s325 + $0x34] sm:$0x11]
      %v3720 = vld [vmem:[%s325 + $0x3c] sm:$0x11]
      %v3721 = vld [vmem:[%s325 + $0x44] sm:$0x1]
      %v3727 = vunpack.c.l.b16 %v3717
      %v3728 = vunpack.c.h.b16 %v3717
      %v3729 = vunpack.c.l.b16 %v3718
      %v3730 = vunpack.c.h.b16 %v3718
      %v3731 = vunpack.c.l.b16 %v3719
      %v3732 = vunpack.c.h.b16 %v3719
      %v3733 = vunpack.c.l.b16 %v3720
      %v3734 = vunpack.c.h.b16 %v3720
      %v3735 = vunpack.c.l.b16 %v3721
      %v3736 = vpack.c.b16 %v3727, %v3727
      %v3737 = vpack.c.b16 %v3728, %v3728
      %v3738 = vpack.c.b16 %v3729, %v3729
      %v3739 = vpack.c.b16 %v3730, %v3730
      %v3740 = vpack.c.b16 %v3731, %v3731
      %v3741 = vpack.c.b16 %v3732, %v3732
      %v3742 = vpack.c.b16 %v3733, %v3733
      %v3743 = vpack.c.b16 %v3734, %v3734
      %v3744 = vpack.c.b16 %v3735, %v3735
      %3754 = vmatprep.subr.bf16.mxu0 0
      %3755 = vmatpush1.bf16.msra.mxu0 %v801
      %3756 = vmatprep.subr.bf16.mxu0 0
      %3757 = vmatpush1.bf16.msra.mxu0 %v802
      %3758 = vmatprep.subr.bf16.mxu0 0
      %3759 = vmatpush1.bf16.msra.mxu0 %v803
      %3760 = vmatprep.subr.bf16.mxu0 0
      %3761 = vmatpush1.bf16.msra.mxu0 %v804
      %3762 = vmatprep.subr.bf16.mxu0 0
      %3763 = vmatpush1.bf16.msra.mxu0 %v805
      %3764 = vmatprep.subr.bf16.mxu0 0
      %3765 = vmatpush1.bf16.msra.mxu0 %v806
      %3766 = vmatprep.subr.bf16.mxu0 0
      %3767 = vmatpush1.bf16.msra.mxu0 %v807
      %3768 = vmatprep.subr.bf16.mxu0 0
      %3769 = vmatpush1.bf16.msra.mxu0 %v808
      %3770 = vmatprep.subr.bf16.mxu0 0
      %3771 = vmatpush1.bf16.msra.mxu0 %v809
      %3772 = vmatprep.subr.bf16.mxu0 0
      %3773 = vmatpush1.bf16.msra.mxu0 %v810
      %3774 = vmatprep.subr.bf16.mxu0 0
      %3775 = vmatpush1.bf16.msra.mxu0 %v811
      %3776 = vmatprep.subr.bf16.mxu0 0
      %3777 = vmatpush1.bf16.msra.mxu0 %v812
      %3778 = vmatprep.subr.bf16.mxu0 0
      %3779 = vmatpush1.bf16.msra.mxu0 %v813
      %3780 = vmatprep.subr.bf16.mxu0 0
      %3781 = vmatpush1.bf16.msra.mxu0 %v814
      %3782 = vmatprep.subr.bf16.mxu0 0
      %3783 = vmatpush1.bf16.msra.mxu0 %v815
      %3784 = vmatprep.subr.bf16.mxu0 0
      %3785 = vmatpush1.bf16.msra.mxu0 %v816
      %3786 = vmatprep.mubr.bf16.mxu0 %v3737
      %3787 = vmatmul.mubr.bf16.gmra.mrb[0].mxu0 %v3736
      %v3788 = vpop.f32.mrb[0].mxu0
      %v3789 = vadd.f32 %v480, %v3788
      %v3790 = vpop.f32.mrb[0].mxu0
      %v3791 = vpop.f32.mrb[0].mxu0
      %v3792 = vpop.f32.mrb[0].mxu0
      %3793 = vdwg.mxu0
      %3794 = vmatprep.subr.bf16.mxu0 0
      %3795 = vmatpush1.bf16.msra.mxu0 %v817
      %3796 = vmatprep.subr.bf16.mxu0 0
      %3797 = vmatpush1.bf16.msra.mxu0 %v818
      %3798 = vmatprep.subr.bf16.mxu0 0
      %3799 = vmatpush1.bf16.msra.mxu0 %v819
      %3800 = vmatprep.subr.bf16.mxu0 0
      %3801 = vmatpush1.bf16.msra.mxu0 %v820
      %3802 = vmatprep.subr.bf16.mxu0 0
      %3803 = vmatpush1.bf16.msra.mxu0 %v821
      %3804 = vmatprep.subr.bf16.mxu0 0
      %3805 = vmatpush1.bf16.msra.mxu0 %v822
      %3806 = vmatprep.subr.bf16.mxu0 0
      %3807 = vmatpush1.bf16.msra.mxu0 %v823
      %3808 = vmatprep.subr.bf16.mxu0 0
      %3809 = vmatpush1.bf16.msra.mxu0 %v824
      %3810 = vmatprep.subr.bf16.mxu0 0
      %3811 = vmatpush1.bf16.msra.mxu0 %v825
      %3812 = vmatprep.subr.bf16.mxu0 0
      %3813 = vmatpush1.bf16.msra.mxu0 %v826
      %3814 = vmatprep.subr.bf16.mxu0 0
      %3815 = vmatpush1.bf16.msra.mxu0 %v827
      %3816 = vmatprep.subr.bf16.mxu0 0
      %3817 = vmatpush1.bf16.msra.mxu0 %v828
      %3818 = vmatprep.subr.bf16.mxu0 0
      %3819 = vmatpush1.bf16.msra.mxu0 %v829
      %3820 = vmatprep.subr.bf16.mxu0 0
      %3821 = vmatpush1.bf16.msra.mxu0 %v830
      %3822 = vmatprep.subr.bf16.mxu0 0
      %3823 = vmatpush1.bf16.msra.mxu0 %v831
      %3824 = vmatprep.subr.bf16.mxu0 0
      %3825 = vmatpush1.bf16.msra.mxu0 %v832
      %3826 = vmatprep.mubr.bf16.mxu0 %v3739
      %3827 = vmatmul.mubr.bf16.gmra.mrb[0].mxu0 %v3738
      %v3828 = vpop.f32.mrb[0].mxu0
      %v3829 = vadd.f32 %v3789, %v3828
      %v3830 = vpop.f32.mrb[0].mxu0
      %v3831 = vpop.f32.mrb[0].mxu0
      %v3832 = vpop.f32.mrb[0].mxu0
      %3833 = vdwg.mxu0
      %3834 = vmatprep.subr.bf16.mxu0 0
      %3835 = vmatpush1.bf16.msra.mxu0 %v833
      %3836 = vmatprep.subr.bf16.mxu0 0
      %3837 = vmatpush1.bf16.msra.mxu0 %v834
      %3838 = vmatprep.subr.bf16.mxu0 0
      %3839 = vmatpush1.bf16.msra.mxu0 %v835
      %3840 = vmatprep.subr.bf16.mxu0 0
      %3841 = vmatpush1.bf16.msra.mxu0 %v836
      %3842 = vmatprep.subr.bf16.mxu0 0
      %3843 = vmatpush1.bf16.msra.mxu0 %v837
      %3844 = vmatprep.subr.bf16.mxu0 0
      %3845 = vmatpush1.bf16.msra.mxu0 %v838
      %3846 = vmatprep.subr.bf16.mxu0 0
      %3847 = vmatpush1.bf16.msra.mxu0 %v839
      %3848 = vmatprep.subr.bf16.mxu0 0
      %3849 = vmatpush1.bf16.msra.mxu0 %v840
      %3850 = vmatprep.subr.bf16.mxu0 0
      %3851 = vmatpush1.bf16.msra.mxu0 %v841
      %3852 = vmatprep.subr.bf16.mxu0 0
      %3853 = vmatpush1.bf16.msra.mxu0 %v842
      %3854 = vmatprep.subr.bf16.mxu0 0
      %3855 = vmatpush1.bf16.msra.mxu0 %v843
      %3856 = vmatprep.subr.bf16.mxu0 0
      %3857 = vmatpush1.bf16.msra.mxu0 %v844
      %3858 = vmatprep.subr.bf16.mxu0 0
      %3859 = vmatpush1.bf16.msra.mxu0 %v845
      %3860 = vmatprep.subr.bf16.mxu0 0
      %3861 = vmatpush1.bf16.msra.mxu0 %v846
      %3862 = vmatprep.subr.bf16.mxu0 0
      %3863 = vmatpush1.bf16.msra.mxu0 %v847
      %3864 = vmatprep.subr.bf16.mxu0 0
      %3865 = vmatpush1.bf16.msra.mxu0 %v848
      %3866 = vmatprep.mubr.bf16.mxu0 %v3741
      %3867 = vmatmul.mubr.bf16.gmra.mrb[0].mxu0 %v3740
      %v3868 = vpop.f32.mrb[0].mxu0
      %v3869 = vadd.f32 %v3829, %v3868
      %v3870 = vpop.f32.mrb[0].mxu0
      %v3871 = vpop.f32.mrb[0].mxu0
      %v3872 = vpop.f32.mrb[0].mxu0
      %3873 = vdwg.mxu0
      %3874 = vmatprep.subr.bf16.mxu0 0
      %3875 = vmatpush1.bf16.msra.mxu0 %v849
      %3876 = vmatprep.subr.bf16.mxu0 0
      %3877 = vmatpush1.bf16.msra.mxu0 %v850
      %3878 = vmatprep.subr.bf16.mxu0 0
      %3879 = vmatpush1.bf16.msra.mxu0 %v851
      %3880 = vmatprep.subr.bf16.mxu0 0
      %3881 = vmatpush1.bf16.msra.mxu0 %v852
      %3882 = vmatprep.subr.bf16.mxu0 0
      %3883 = vmatpush1.bf16.msra.mxu0 %v853
      %3884 = vmatprep.subr.bf16.mxu0 0
      %3885 = vmatpush1.bf16.msra.mxu0 %v854
      %3886 = vmatprep.subr.bf16.mxu0 0
      %3887 = vmatpush1.bf16.msra.mxu0 %v855
      %3888 = vmatprep.subr.bf16.mxu0 0
      %3889 = vmatpush1.bf16.msra.mxu0 %v856
      %3890 = vmatprep.subr.bf16.mxu0 0
      %3891 = vmatpush1.bf16.msra.mxu0 %v857
      %3892 = vmatprep.subr.bf16.mxu0 0
      %3893 = vmatpush1.bf16.msra.mxu0 %v858
      %3894 = vmatprep.subr.bf16.mxu0 0
      %3895 = vmatpush1.bf16.msra.mxu0 %v859
      %3896 = vmatprep.subr.bf16.mxu0 0
      %3897 = vmatpush1.bf16.msra.mxu0 %v860
      %3898 = vmatprep.subr.bf16.mxu0 0
      %3899 = vmatpush1.bf16.msra.mxu0 %v861
      %3900 = vmatprep.subr.bf16.mxu0 0
      %3901 = vmatpush1.bf16.msra.mxu0 %v862
      %3902 = vmatprep.subr.bf16.mxu0 0
      %3903 = vmatpush1.bf16.msra.mxu0 %v863
      %3904 = vmatprep.subr.bf16.mxu0 0
      %3905 = vmatpush1.bf16.msra.mxu0 %v864
      %3906 = vmatprep.mubr.bf16.mxu0 %v3743
      %3907 = vmatmul.mubr.bf16.gmra.mrb[0].mxu0 %v3742
      %v3908 = vpop.f32.mrb[0].mxu0
      %v3909 = vadd.f32 %v3869, %v3908
      %v3910 = vpop.f32.mrb[0].mxu0
      %v3911 = vpop.f32.mrb[0].mxu0
      %v3912 = vpop.f32.mrb[0].mxu0
      %3913 = vdwg.mxu0
      %3914 = vmatprep.subr.bf16.mxu0 0
      %3915 = vmatpush1.bf16.msra.mxu0 %v865
      %3916 = vmatprep.subr.bf16.mxu0 0
      %3917 = vmatpush1.bf16.msra.mxu0 %v866
      %3918 = vmatprep.subr.bf16.mxu0 0
      %3919 = vmatpush1.bf16.msra.mxu0 %v867
      %3920 = vmatprep.subr.bf16.mxu0 0
      %3921 = vmatpush1.bf16.msra.mxu0 %v868
      %3922 = vmatprep.subr.bf16.mxu0 0
      %3923 = vmatpush1.bf16.msra.mxu0 %v869
      %3924 = vmatprep.subr.bf16.mxu0 0
      %3925 = vmatpush1.bf16.msra.mxu0 %v870
      %3926 = vmatprep.subr.bf16.mxu0 0
      %3927 = vmatpush1.bf16.msra.mxu0 %v871
      %3928 = vmatprep.subr.bf16.mxu0 0
      %3929 = vmatpush1.bf16.msra.mxu0 %v872
      %3930 = vmatprep.subr.bf16.mxu0 0
      %3931 = vmatpush1.bf16.msra.mxu0 0
      %3932 = vmatprep.subr.bf16.mxu0 0
      %3933 = vmatpush1.bf16.msra.mxu0 0
      %3934 = vmatprep.subr.bf16.mxu0 0
      %3935 = vmatpush1.bf16.msra.mxu0 0
      %3936 = vmatprep.subr.bf16.mxu0 0
      %3937 = vmatpush1.bf16.msra.mxu0 0
      %3938 = vmatprep.subr.bf16.mxu0 0
      %3939 = vmatpush1.bf16.msra.mxu0 0
      %3940 = vmatprep.subr.bf16.mxu0 0
      %3941 = vmatpush1.bf16.msra.mxu0 0
      %3942 = vmatprep.subr.bf16.mxu0 0
      %3943 = vmatpush1.bf16.msra.mxu0 0
      %3944 = vmatprep.subr.bf16.mxu0 0
      %3945 = vmatpush1.bf16.msra.mxu0 0
      %3946 = vmatprep.mubr.bf16.mxu0 0
      %3947 = vmatmul.mubr.bf16.gmra.mrb[0].mxu0 %v3744
      %v3948 = vpop.f32.mrb[0].mxu0
      %v3949 = vadd.f32 %v3909, %v3948
      %v3950 = vpop.f32.mrb[0].mxu0
      %v3951 = vpop.f32.mrb[0].mxu0
      %v3952 = vpop.f32.mrb[0].mxu0
      %3953 = vdwg.mxu0
      %v3954 = vmax.f32 %v3949, 0.0
      %v3955 = vpack.c.bf16 %v3954, %v3954
      %s3956 = scalar_lea.vmem %s3, 512
      %v3957 = vld [vmem:[%s3956] sm:$0xf]
      %v3958 = vld [vmem:[%s3956 + $0x4] sm:$0xf]
      %v3959 = vld [vmem:[%s3956 + $0x8] sm:$0xf]
      %v3960 = vld [vmem:[%s3956 + $0xc] sm:$0xf]
      %v3961 = vld [vmem:[%s3956 + $0x10] sm:$0xf]
      %v3962 = vld [vmem:[%s3956 + $0x14] sm:$0xf]
      %v3963 = vld [vmem:[%s3956 + $0x18] sm:$0xf]
      %v3964 = vld [vmem:[%s3956 + $0x1c] sm:$0xf]
      %v3965 = vld [vmem:[%s3956 + $0x20] sm:$0xf]
      %v3966 = vld [vmem:[%s3956 + $0x24] sm:$0xf]
      %v3967 = vld [vmem:[%s3956 + $0x28] sm:$0xf]
      %v3968 = vld [vmem:[%s3956 + $0x2c] sm:$0xf]
      %v3969 = vld [vmem:[%s3956 + $0x30] sm:$0xf]
      %v3970 = vld [vmem:[%s3956 + $0x34] sm:$0xf]
      %v3971 = vld [vmem:[%s3956 + $0x38] sm:$0xf]
      %v3972 = vld [vmem:[%s3956 + $0x3c] sm:$0xf]
      %v3989 = vunpack.c.l.b16 %v3957
      %v3990 = vunpack.c.l.b16 %v3958
      %v3991 = vunpack.c.l.b16 %v3959
      %v3992 = vunpack.c.l.b16 %v3960
      %v3993 = vunpack.c.l.b16 %v3961
      %v3994 = vunpack.c.l.b16 %v3962
      %v3995 = vunpack.c.l.b16 %v3963
      %v3996 = vunpack.c.l.b16 %v3964
      %v3997 = vunpack.c.l.b16 %v3965
      %v3998 = vunpack.c.l.b16 %v3966
      %v3999 = vunpack.c.l.b16 %v3967
      %v4000 = vunpack.c.l.b16 %v3968
      %v4001 = vunpack.c.l.b16 %v3969
      %v4002 = vunpack.c.l.b16 %v3970
      %v4003 = vunpack.c.l.b16 %v3971
      %v4004 = vunpack.c.l.b16 %v3972
      %v4005 = vpack.c.b16 %v3990, %v3989
      %v4006 = vpack.c.b16 %v3992, %v3991
      %v4007 = vpack.c.b16 %v3994, %v3993
      %v4008 = vpack.c.b16 %v3996, %v3995
      %v4009 = vpack.c.b16 %v3998, %v3997
      %v4010 = vpack.c.b16 %v4000, %v3999
      %v4011 = vpack.c.b16 %v4002, %v4001
      %v4012 = vpack.c.b16 %v4004, %v4003
      %4021 = vmatprep.subr.bf16.mxu0 0
      %4022 = vmatpush1.bf16.msra.mxu0 %v4005
      %4023 = vmatprep.subr.bf16.mxu0 0
      %4024 = vmatpush1.bf16.msra.mxu0 %v4006
      %4025 = vmatprep.subr.bf16.mxu0 0
      %4026 = vmatpush1.bf16.msra.mxu0 %v4007
      %4027 = vmatprep.subr.bf16.mxu0 0
      %4028 = vmatpush1.bf16.msra.mxu0 %v4008
      %4029 = vmatprep.subr.bf16.mxu0 0
      %4030 = vmatpush1.bf16.msra.mxu0 %v4009
      %4031 = vmatprep.subr.bf16.mxu0 0
      %4032 = vmatpush1.bf16.msra.mxu0 %v4010
      %4033 = vmatprep.subr.bf16.mxu0 0
      %4034 = vmatpush1.bf16.msra.mxu0 %v4011
      %4035 = vmatprep.subr.bf16.mxu0 0
      %4036 = vmatpush1.bf16.msra.mxu0 %v4012
      %4037 = vmatprep.subr.bf16.mxu0 0
      %4038 = vmatpush1.bf16.msra.mxu0 0
      %4039 = vmatprep.subr.bf16.mxu0 0
      %4040 = vmatpush1.bf16.msra.mxu0 0
      %4041 = vmatprep.subr.bf16.mxu0 0
      %4042 = vmatpush1.bf16.msra.mxu0 0
      %4043 = vmatprep.subr.bf16.mxu0 0
      %4044 = vmatpush1.bf16.msra.mxu0 0
      %4045 = vmatprep.subr.bf16.mxu0 0
      %4046 = vmatpush1.bf16.msra.mxu0 0
      %4047 = vmatprep.subr.bf16.mxu0 0
      %4048 = vmatpush1.bf16.msra.mxu0 0
      %4049 = vmatprep.subr.bf16.mxu0 0
      %4050 = vmatpush1.bf16.msra.mxu0 0
      %4051 = vmatprep.subr.bf16.mxu0 0
      %4052 = vmatpush1.bf16.msra.mxu0 0
      %4053 = vmatprep.mubr.bf16.mxu0 0
      %4054 = vmatmul.mubr.bf16.gmra.mrb[0].mxu0 %v3955
      %v4055 = vpop.f32.mrb[0].mxu0
      %v4056 = vadd.f32 0.0, %v4055
      %v4057 = vpop.f32.mrb[0].mxu0
      %v4058 = vpop.f32.mrb[0].mxu0
      %v4059 = vpop.f32.mrb[0].mxu0
      %4060 = vdwg.mxu0
      %v4061 = vadd.f32 %v3716, %v4056
      %v4062 = vmax.f32 %v4061, 0.0
      %v4063 = vpack.c.bf16 %v4062, %v4062
      %v4064 = vld [vmem:[%s5] sm:$0xff]
      %v4065 = vld [vmem:[%s5 + $0x8] sm:$0xff]
      %v4066 = vld [vmem:[%s5 + $0x10] sm:$0xff]
      %v4067 = vld [vmem:[%s5 + $0x18] sm:$0xff]
      %v4068 = vld [vmem:[%s5 + $0x20] sm:$0xff]
      %v4069 = vld [vmem:[%s5 + $0x28] sm:$0xff]
      %v4070 = vld [vmem:[%s5 + $0x30] sm:$0xff]
      %v4071 = vld [vmem:[%s5 + $0x38] sm:$0xff]
      %v4072 = vld [vmem:[%s5 + $0x40] sm:$0xff]
      %v4073 = vld [vmem:[%s5 + $0x48] sm:$0xff]
      %v4074 = vld [vmem:[%s5 + $0x50] sm:$0xff]
      %v4075 = vld [vmem:[%s5 + $0x58] sm:$0xff]
      %v4076 = vld [vmem:[%s5 + $0x60] sm:$0xff]
      %v4077 = vld [vmem:[%s5 + $0x68] sm:$0xff]
      %v4078 = vld [vmem:[%s5 + $0x70] sm:$0xff]
      %v4079 = vld [vmem:[%s5 + $0x78] sm:$0xff]
      %v4080 = vld [vmem:[%s5 + $0x80] sm:$0xff]
      %v4081 = vld [vmem:[%s5 + $0x88] sm:$0xff]
      %v4082 = vld [vmem:[%s5 + $0x90] sm:$0xff]
      %v4083 = vld [vmem:[%s5 + $0x98] sm:$0xff]
      %v4084 = vld [vmem:[%s5 + $0xa0] sm:$0xff]
      %v4085 = vld [vmem:[%s5 + $0xa8] sm:$0xff]
      %v4086 = vld [vmem:[%s5 + $0xb0] sm:$0xff]
      %v4087 = vld [vmem:[%s5 + $0xb8] sm:$0xff]
      %v4088 = vld [vmem:[%s5 + $0xc0] sm:$0xff]
      %v4089 = vld [vmem:[%s5 + $0xc8] sm:$0xff]
      %v4090 = vld [vmem:[%s5 + $0xd0] sm:$0xff]
      %v4091 = vld [vmem:[%s5 + $0xd8] sm:$0xff]
      %v4092 = vld [vmem:[%s5 + $0xe0] sm:$0xff]
      %v4093 = vld [vmem:[%s5 + $0xe8] sm:$0xff]
      %v4094 = vld [vmem:[%s5 + $0xf0] sm:$0xff]
      %v4095 = vld [vmem:[%s5 + $0xf8] sm:$0xff]
      %v4096 = vld [vmem:[%s6] sm:$0xf]
      %v4129 = vunpack.c.l.b16 %v4064
      %v4130 = vunpack.c.h.b16 %v4064
      %v4131 = vunpack.c.l.b16 %v4065
      %v4132 = vunpack.c.h.b16 %v4065
      %v4133 = vunpack.c.l.b16 %v4066
      %v4134 = vunpack.c.h.b16 %v4066
      %v4135 = vunpack.c.l.b16 %v4067
      %v4136 = vunpack.c.h.b16 %v4067
      %v4137 = vunpack.c.l.b16 %v4068
      %v4138 = vunpack.c.h.b16 %v4068
      %v4139 = vunpack.c.l.b16 %v4069
      %v4140 = vunpack.c.h.b16 %v4069
      %v4141 = vunpack.c.l.b16 %v4070
      %v4142 = vunpack.c.h.b16 %v4070
      %v4143 = vunpack.c.l.b16 %v4071
      %v4144 = vunpack.c.h.b16 %v4071
      %v4145 = vunpack.c.l.b16 %v4072
      %v4146 = vunpack.c.h.b16 %v4072
      %v4147 = vunpack.c.l.b16 %v4073
      %v4148 = vunpack.c.h.b16 %v4073
      %v4149 = vunpack.c.l.b16 %v4074
      %v4150 = vunpack.c.h.b16 %v4074
      %v4151 = vunpack.c.l.b16 %v4075
      %v4152 = vunpack.c.h.b16 %v4075
      %v4153 = vunpack.c.l.b16 %v4076
      %v4154 = vunpack.c.h.b16 %v4076
      %v4155 = vunpack.c.l.b16 %v4077
      %v4156 = vunpack.c.h.b16 %v4077
      %v4157 = vunpack.c.l.b16 %v4078
      %v4158 = vunpack.c.h.b16 %v4078
      %v4159 = vunpack.c.l.b16 %v4079
      %v4160 = vunpack.c.h.b16 %v4079
      %v4161 = vunpack.c.l.b16 %v4080
      %v4162 = vunpack.c.h.b16 %v4080
      %v4163 = vunpack.c.l.b16 %v4081
      %v4164 = vunpack.c.h.b16 %v4081
      %v4165 = vunpack.c.l.b16 %v4082
      %v4166 = vunpack.c.h.b16 %v4082
      %v4167 = vunpack.c.l.b16 %v4083
      %v4168 = vunpack.c.h.b16 %v4083
      %v4169 = vunpack.c.l.b16 %v4084
      %v4170 = vunpack.c.h.b16 %v4084
      %v4171 = vunpack.c.l.b16 %v4085
      %v4172 = vunpack.c.h.b16 %v4085
      %v4173 = vunpack.c.l.b16 %v4086
      %v4174 = vunpack.c.h.b16 %v4086
      %v4175 = vunpack.c.l.b16 %v4087
      %v4176 = vunpack.c.h.b16 %v4087
      %v4177 = vunpack.c.l.b16 %v4088
      %v4178 = vunpack.c.h.b16 %v4088
      %v4179 = vunpack.c.l.b16 %v4089
      %v4180 = vunpack.c.h.b16 %v4089
      %v4181 = vunpack.c.l.b16 %v4090
      %v4182 = vunpack.c.h.b16 %v4090
      %v4183 = vunpack.c.l.b16 %v4091
      %v4184 = vunpack.c.h.b16 %v4091
      %v4185 = vunpack.c.l.b16 %v4092
      %v4186 = vunpack.c.h.b16 %v4092
      %v4187 = vunpack.c.l.b16 %v4093
      %v4188 = vunpack.c.h.b16 %v4093
      %v4189 = vunpack.c.l.b16 %v4094
      %v4190 = vunpack.c.h.b16 %v4094
      %v4191 = vunpack.c.l.b16 %v4095
      %v4192 = vunpack.c.h.b16 %v4095
      %v4193 = vpack.c.b16 %v4133, %v4129
      %v4194 = vpack.c.b16 %v4134, %v4130
      %v4195 = vpack.c.b16 %v4135, %v4131
      %v4196 = vpack.c.b16 %v4136, %v4132
      %v4197 = vpack.c.b16 %v4141, %v4137
      %v4198 = vpack.c.b16 %v4142, %v4138
      %v4199 = vpack.c.b16 %v4143, %v4139
      %v4200 = vpack.c.b16 %v4144, %v4140
      %v4201 = vpack.c.b16 %v4149, %v4145
      %v4202 = vpack.c.b16 %v4150, %v4146
      %v4203 = vpack.c.b16 %v4151, %v4147
      %v4204 = vpack.c.b16 %v4152, %v4148
      %v4205 = vpack.c.b16 %v4157, %v4153
      %v4206 = vpack.c.b16 %v4158, %v4154
      %v4207 = vpack.c.b16 %v4159, %v4155
      %v4208 = vpack.c.b16 %v4160, %v4156
      %v4209 = vpack.c.b16 %v4165, %v4161
      %v4210 = vpack.c.b16 %v4166, %v4162
      %v4211 = vpack.c.b16 %v4167, %v4163
      %v4212 = vpack.c.b16 %v4168, %v4164
      %v4213 = vpack.c.b16 %v4173, %v4169
      %v4214 = vpack.c.b16 %v4174, %v4170
      %v4215 = vpack.c.b16 %v4175, %v4171
      %v4216 = vpack.c.b16 %v4176, %v4172
      %v4217 = vpack.c.b16 %v4181, %v4177
      %v4218 = vpack.c.b16 %v4182, %v4178
      %v4219 = vpack.c.b16 %v4183, %v4179
      %v4220 = vpack.c.b16 %v4184, %v4180
      %v4221 = vpack.c.b16 %v4189, %v4185
      %v4222 = vpack.c.b16 %v4190, %v4186
      %v4223 = vpack.c.b16 %v4191, %v4187
      %v4224 = vpack.c.b16 %v4192, %v4188
      %v4258 = vlaneseq
      %v4259 = vshrl.u32 %v4258, 7
      %v4260 = vsub.s32 0, %v4259
      %v4261 = vrot.slane %v4096, %v4260
      %v4262 = vlaneseq
      %v4263 = vshrl.u32 %v4262, 7
      %v4264 = vsub.s32 1, %v4263
      %v4265 = vrot.slane %v4096, %v4264
      %v4266 = vlaneseq
      %v4267 = vshrl.u32 %v4266, 7
      %v4268 = vsub.s32 2, %v4267
      %v4269 = vrot.slane %v4096, %v4268
      %v4270 = vlaneseq
      %v4271 = vshrl.u32 %v4270, 7
      %v4272 = vsub.s32 3, %v4271
      %v4273 = vrot.slane %v4096, %v4272
      %4278 = vmatprep.subr.bf16.mxu0 %v4194
      %4279 = vmatpush1.bf16.msra.mxu0 %v4193
      %4280 = vmatprep.subr.bf16.mxu0 %v4198
      %4281 = vmatpush1.bf16.msra.mxu0 %v4197
      %4282 = vmatprep.subr.bf16.mxu0 %v4202
      %4283 = vmatpush1.bf16.msra.mxu0 %v4201
      %4284 = vmatprep.subr.bf16.mxu0 %v4206
      %4285 = vmatpush1.bf16.msra.mxu0 %v4205
      %4286 = vmatprep.subr.bf16.mxu0 %v4210
      %4287 = vmatpush1.bf16.msra.mxu0 %v4209
      %4288 = vmatprep.subr.bf16.mxu0 %v4214
      %4289 = vmatpush1.bf16.msra.mxu0 %v4213
      %4290 = vmatprep.subr.bf16.mxu0 %v4218
      %4291 = vmatpush1.bf16.msra.mxu0 %v4217
      %4292 = vmatprep.subr.bf16.mxu0 %v4222
      %4293 = vmatpush1.bf16.msra.mxu0 %v4221
      %4294 = vmatprep.subr.bf16.mxu0 0
      %4295 = vmatpush1.bf16.msra.mxu0 0
      %4296 = vmatprep.subr.bf16.mxu0 0
      %4297 = vmatpush1.bf16.msra.mxu0 0
      %4298 = vmatprep.subr.bf16.mxu0 0
      %4299 = vmatpush1.bf16.msra.mxu0 0
      %4300 = vmatprep.subr.bf16.mxu0 0
      %4301 = vmatpush1.bf16.msra.mxu0 0
      %4302 = vmatprep.subr.bf16.mxu0 0
      %4303 = vmatpush1.bf16.msra.mxu0 0
      %4304 = vmatprep.subr.bf16.mxu0 0
      %4305 = vmatpush1.bf16.msra.mxu0 0
      %4306 = vmatprep.subr.bf16.mxu0 0
      %4307 = vmatpush1.bf16.msra.mxu0 0
      %4308 = vmatprep.subr.bf16.mxu0 0
      %4309 = vmatpush1.bf16.msra.mxu0 0
      %4310 = vmatprep.mubr.bf16.mxu0 0
      %4311 = vmatmul.mubr.bf16.gmra.mrb[0].mxu0 %v4063
      %v4312 = vpop.f32.mrb[0].mxu0
      %v4313 = vadd.f32 %v4261, %v4312
      %v4314 = vpop.f32.mrb[0].mxu0
      %v4315 = vadd.f32 %v4265, %v4314
      %v4316 = vpop.f32.mrb[0].mxu0
      %v4317 = vpop.f32.mrb[0].mxu0
      %4318 = vdwg.mxu0
      %4319 = vmatprep.subr.bf16.mxu0 %v4196
      %4320 = vmatpush1.bf16.msra.mxu0 %v4195
      %4321 = vmatprep.subr.bf16.mxu0 %v4200
      %4322 = vmatpush1.bf16.msra.mxu0 %v4199
      %4323 = vmatprep.subr.bf16.mxu0 %v4204
      %4324 = vmatpush1.bf16.msra.mxu0 %v4203
      %4325 = vmatprep.subr.bf16.mxu0 %v4208
      %4326 = vmatpush1.bf16.msra.mxu0 %v4207
      %4327 = vmatprep.subr.bf16.mxu0 %v4212
      %4328 = vmatpush1.bf16.msra.mxu0 %v4211
      %4329 = vmatprep.subr.bf16.mxu0 %v4216
      %4330 = vmatpush1.bf16.msra.mxu0 %v4215
      %4331 = vmatprep.subr.bf16.mxu0 %v4220
      %4332 = vmatpush1.bf16.msra.mxu0 %v4219
      %4333 = vmatprep.subr.bf16.mxu0 %v4224
      %4334 = vmatpush1.bf16.msra.mxu0 %v4223
      %4335 = vmatprep.subr.bf16.mxu0 0
      %4336 = vmatpush1.bf16.msra.mxu0 0
      %4337 = vmatprep.subr.bf16.mxu0 0
      %4338 = vmatpush1.bf16.msra.mxu0 0
      %4339 = vmatprep.subr.bf16.mxu0 0
      %4340 = vmatpush1.bf16.msra.mxu0 0
      %4341 = vmatprep.subr.bf16.mxu0 0
      %4342 = vmatpush1.bf16.msra.mxu0 0
      %4343 = vmatprep.subr.bf16.mxu0 0
      %4344 = vmatpush1.bf16.msra.mxu0 0
      %4345 = vmatprep.subr.bf16.mxu0 0
      %4346 = vmatpush1.bf16.msra.mxu0 0
      %4347 = vmatprep.subr.bf16.mxu0 0
      %4348 = vmatpush1.bf16.msra.mxu0 0
      %4349 = vmatprep.subr.bf16.mxu0 0
      %4350 = vmatpush1.bf16.msra.mxu0 0
      %4351 = vmatprep.mubr.bf16.mxu0 0
      %4352 = vmatmul.mubr.bf16.gmra.mrb[0].mxu0 %v4063
      %v4353 = vpop.f32.mrb[0].mxu0
      %v4354 = vadd.f32 %v4269, %v4353
      %v4355 = vpop.f32.mrb[0].mxu0
      %v4356 = vadd.f32 %v4273, %v4355
      %v4357 = vpop.f32.mrb[0].mxu0
      %v4358 = vpop.f32.mrb[0].mxu0
      %4359 = vdwg.mxu0
      %v4360 = vmax.f32 %v4313, 0.0
      %v4361 = vmax.f32 %v4315, 0.0
      %v4362 = vmax.f32 %v4354, 0.0
      %v4363 = vmax.f32 %v4356, 0.0
      %v4364 = vpack.c.bf16 %v4360, %v4360
      %v4365 = vpack.c.bf16 %v4361, %v4361
      %v4366 = vpack.c.bf16 %v4362, %v4362
      %v4367 = vpack.c.bf16 %v4363, %v4363
      %v4368 = vld [vmem:[%s7] sm:$0xf]
      %v4369 = vld [vmem:[%s7 + $0x4] sm:$0xf]
      %v4370 = vld [vmem:[%s7 + $0x8] sm:$0xf]
      %v4371 = vld [vmem:[%s7 + $0xc] sm:$0xf]
      %v4372 = vld [vmem:[%s7 + $0x10] sm:$0xf]
      %v4373 = vld [vmem:[%s7 + $0x14] sm:$0xf]
      %v4374 = vld [vmem:[%s7 + $0x18] sm:$0xf]
      %v4375 = vld [vmem:[%s7 + $0x1c] sm:$0xf]
      %v4376 = vld [vmem:[%s7 + $0x20] sm:$0xf]
      %v4377 = vld [vmem:[%s7 + $0x24] sm:$0xf]
      %v4378 = vld [vmem:[%s7 + $0x28] sm:$0xf]
      %v4379 = vld [vmem:[%s7 + $0x2c] sm:$0xf]
      %v4380 = vld [vmem:[%s7 + $0x30] sm:$0xf]
      %v4381 = vld [vmem:[%s7 + $0x34] sm:$0xf]
      %v4382 = vld [vmem:[%s7 + $0x38] sm:$0xf]
      %v4383 = vld [vmem:[%s7 + $0x3c] sm:$0xf]
      %v4384 = vld [vmem:[%s7 + $0x40] sm:$0xf]
      %v4385 = vld [vmem:[%s7 + $0x44] sm:$0xf]
      %v4386 = vld [vmem:[%s7 + $0x48] sm:$0xf]
      %v4387 = vld [vmem:[%s7 + $0x4c] sm:$0xf]
      %v4388 = vld [vmem:[%s7 + $0x50] sm:$0xf]
      %v4389 = vld [vmem:[%s7 + $0x54] sm:$0xf]
      %v4390 = vld [vmem:[%s7 + $0x58] sm:$0xf]
      %v4391 = vld [vmem:[%s7 + $0x5c] sm:$0xf]
      %v4392 = vld [vmem:[%s7 + $0x60] sm:$0xf]
      %v4393 = vld [vmem:[%s7 + $0x64] sm:$0xf]
      %v4394 = vld [vmem:[%s7 + $0x68] sm:$0xf]
      %v4395 = vld [vmem:[%s7 + $0x6c] sm:$0xf]
      %v4396 = vld [vmem:[%s7 + $0x70] sm:$0xf]
      %v4397 = vld [vmem:[%s7 + $0x74] sm:$0xf]
      %v4398 = vld [vmem:[%s7 + $0x78] sm:$0xf]
      %v4399 = vld [vmem:[%s7 + $0x7c] sm:$0xf]
      %v4400 = vld [vmem:[%s7 + $0x80] sm:$0xf]
      %v4401 = vld [vmem:[%s7 + $0x84] sm:$0xf]
      %v4402 = vld [vmem:[%s7 + $0x88] sm:$0xf]
      %v4403 = vld [vmem:[%s7 + $0x8c] sm:$0xf]
      %v4404 = vld [vmem:[%s7 + $0x90] sm:$0xf]
      %v4405 = vld [vmem:[%s7 + $0x94] sm:$0xf]
      %v4406 = vld [vmem:[%s7 + $0x98] sm:$0xf]
      %v4407 = vld [vmem:[%s7 + $0x9c] sm:$0xf]
      %v4408 = vld [vmem:[%s7 + $0xa0] sm:$0xf]
      %v4409 = vld [vmem:[%s7 + $0xa4] sm:$0xf]
      %v4410 = vld [vmem:[%s7 + $0xa8] sm:$0xf]
      %v4411 = vld [vmem:[%s7 + $0xac] sm:$0xf]
      %v4412 = vld [vmem:[%s7 + $0xb0] sm:$0xf]
      %v4413 = vld [vmem:[%s7 + $0xb4] sm:$0xf]
      %v4414 = vld [vmem:[%s7 + $0xb8] sm:$0xf]
      %v4415 = vld [vmem:[%s7 + $0xbc] sm:$0xf]
      %v4416 = vld [vmem:[%s7 + $0xc0] sm:$0xf]
      %v4417 = vld [vmem:[%s7 + $0xc4] sm:$0xf]
      %v4418 = vld [vmem:[%s7 + $0xc8] sm:$0xf]
      %v4419 = vld [vmem:[%s7 + $0xcc] sm:$0xf]
      %v4420 = vld [vmem:[%s7 + $0xd0] sm:$0xf]
      %v4421 = vld [vmem:[%s7 + $0xd4] sm:$0xf]
      %v4422 = vld [vmem:[%s7 + $0xd8] sm:$0xf]
      %v4423 = vld [vmem:[%s7 + $0xdc] sm:$0xf]
      %v4424 = vld [vmem:[%s7 + $0xe0] sm:$0xf]
      %v4425 = vld [vmem:[%s7 + $0xe4] sm:$0xf]
      %v4426 = vld [vmem:[%s7 + $0xe8] sm:$0xf]
      %v4427 = vld [vmem:[%s7 + $0xec] sm:$0xf]
      %v4428 = vld [vmem:[%s7 + $0xf0] sm:$0xf]
      %v4429 = vld [vmem:[%s7 + $0xf4] sm:$0xf]
      %v4430 = vld [vmem:[%s7 + $0xf8] sm:$0xf]
      %v4431 = vld [vmem:[%s7 + $0xfc] sm:$0xf]
      %v4432 = vld [vmem:[%s8] sm:$0x1]
      %v4497 = vunpack.c.l.b16 %v4368
      %v4498 = vunpack.c.l.b16 %v4369
      %v4499 = vunpack.c.l.b16 %v4370
      %v4500 = vunpack.c.l.b16 %v4371
      %v4501 = vunpack.c.l.b16 %v4372
      %v4502 = vunpack.c.l.b16 %v4373
      %v4503 = vunpack.c.l.b16 %v4374
      %v4504 = vunpack.c.l.b16 %v4375
      %v4505 = vunpack.c.l.b16 %v4376
      %v4506 = vunpack.c.l.b16 %v4377
      %v4507 = vunpack.c.l.b16 %v4378
      %v4508 = vunpack.c.l.b16 %v4379
      %v4509 = vunpack.c.l.b16 %v4380
      %v4510 = vunpack.c.l.b16 %v4381
      %v4511 = vunpack.c.l.b16 %v4382
      %v4512 = vunpack.c.l.b16 %v4383
      %v4513 = vunpack.c.l.b16 %v4384
      %v4514 = vunpack.c.l.b16 %v4385
      %v4515 = vunpack.c.l.b16 %v4386
      %v4516 = vunpack.c.l.b16 %v4387
      %v4517 = vunpack.c.l.b16 %v4388
      %v4518 = vunpack.c.l.b16 %v4389
      %v4519 = vunpack.c.l.b16 %v4390
      %v4520 = vunpack.c.l.b16 %v4391
      %v4521 = vunpack.c.l.b16 %v4392
      %v4522 = vunpack.c.l.b16 %v4393
      %v4523 = vunpack.c.l.b16 %v4394
      %v4524 = vunpack.c.l.b16 %v4395
      %v4525 = vunpack.c.l.b16 %v4396
      %v4526 = vunpack.c.l.b16 %v4397
      %v4527 = vunpack.c.l.b16 %v4398
      %v4528 = vunpack.c.l.b16 %v4399
      %v4529 = vunpack.c.l.b16 %v4400
      %v4530 = vunpack.c.l.b16 %v4401
      %v4531 = vunpack.c.l.b16 %v4402
      %v4532 = vunpack.c.l.b16 %v4403
      %v4533 = vunpack.c.l.b16 %v4404
      %v4534 = vunpack.c.l.b16 %v4405
      %v4535 = vunpack.c.l.b16 %v4406
      %v4536 = vunpack.c.l.b16 %v4407
      %v4537 = vunpack.c.l.b16 %v4408
      %v4538 = vunpack.c.l.b16 %v4409
      %v4539 = vunpack.c.l.b16 %v4410
      %v4540 = vunpack.c.l.b16 %v4411
      %v4541 = vunpack.c.l.b16 %v4412
      %v4542 = vunpack.c.l.b16 %v4413
      %v4543 = vunpack.c.l.b16 %v4414
      %v4544 = vunpack.c.l.b16 %v4415
      %v4545 = vunpack.c.l.b16 %v4416
      %v4546 = vunpack.c.l.b16 %v4417
      %v4547 = vunpack.c.l.b16 %v4418
      %v4548 = vunpack.c.l.b16 %v4419
      %v4549 = vunpack.c.l.b16 %v4420
      %v4550 = vunpack.c.l.b16 %v4421
      %v4551 = vunpack.c.l.b16 %v4422
      %v4552 = vunpack.c.l.b16 %v4423
      %v4553 = vunpack.c.l.b16 %v4424
      %v4554 = vunpack.c.l.b16 %v4425
      %v4555 = vunpack.c.l.b16 %v4426
      %v4556 = vunpack.c.l.b16 %v4427
      %v4557 = vunpack.c.l.b16 %v4428
      %v4558 = vunpack.c.l.b16 %v4429
      %v4559 = vunpack.c.l.b16 %v4430
      %v4560 = vunpack.c.l.b16 %v4431
      %v4561 = vpack.c.b16 %v4498, %v4497
      %v4562 = vpack.c.b16 %v4500, %v4499
      %v4563 = vpack.c.b16 %v4502, %v4501
      %v4564 = vpack.c.b16 %v4504, %v4503
      %v4565 = vpack.c.b16 %v4506, %v4505
      %v4566 = vpack.c.b16 %v4508, %v4507
      %v4567 = vpack.c.b16 %v4510, %v4509
      %v4568 = vpack.c.b16 %v4512, %v4511
      %v4569 = vpack.c.b16 %v4514, %v4513
      %v4570 = vpack.c.b16 %v4516, %v4515
      %v4571 = vpack.c.b16 %v4518, %v4517
      %v4572 = vpack.c.b16 %v4520, %v4519
      %v4573 = vpack.c.b16 %v4522, %v4521
      %v4574 = vpack.c.b16 %v4524, %v4523
      %v4575 = vpack.c.b16 %v4526, %v4525
      %v4576 = vpack.c.b16 %v4528, %v4527
      %v4577 = vpack.c.b16 %v4530, %v4529
      %v4578 = vpack.c.b16 %v4532, %v4531
      %v4579 = vpack.c.b16 %v4534, %v4533
      %v4580 = vpack.c.b16 %v4536, %v4535
      %v4581 = vpack.c.b16 %v4538, %v4537
      %v4582 = vpack.c.b16 %v4540, %v4539
      %v4583 = vpack.c.b16 %v4542, %v4541
      %v4584 = vpack.c.b16 %v4544, %v4543
      %v4585 = vpack.c.b16 %v4546, %v4545
      %v4586 = vpack.c.b16 %v4548, %v4547
      %v4587 = vpack.c.b16 %v4550, %v4549
      %v4588 = vpack.c.b16 %v4552, %v4551
      %v4589 = vpack.c.b16 %v4554, %v4553
      %v4590 = vpack.c.b16 %v4556, %v4555
      %v4591 = vpack.c.b16 %v4558, %v4557
      %v4592 = vpack.c.b16 %v4560, %v4559
      %4625 = vmatprep.subr.bf16.mxu0 0
      %4626 = vmatpush1.bf16.msra.mxu0 %v4561
      %4627 = vmatprep.subr.bf16.mxu0 0
      %4628 = vmatpush1.bf16.msra.mxu0 %v4562
      %4629 = vmatprep.subr.bf16.mxu0 0
      %4630 = vmatpush1.bf16.msra.mxu0 %v4563
      %4631 = vmatprep.subr.bf16.mxu0 0
      %4632 = vmatpush1.bf16.msra.mxu0 %v4564
      %4633 = vmatprep.subr.bf16.mxu0 0
      %4634 = vmatpush1.bf16.msra.mxu0 %v4565
      %4635 = vmatprep.subr.bf16.mxu0 0
      %4636 = vmatpush1.bf16.msra.mxu0 %v4566
      %4637 = vmatprep.subr.bf16.mxu0 0
      %4638 = vmatpush1.bf16.msra.mxu0 %v4567
      %4639 = vmatprep.subr.bf16.mxu0 0
      %4640 = vmatpush1.bf16.msra.mxu0 %v4568
      %4641 = vmatprep.subr.bf16.mxu0 0
      %4642 = vmatpush1.bf16.msra.mxu0 %v4569
      %4643 = vmatprep.subr.bf16.mxu0 0
      %4644 = vmatpush1.bf16.msra.mxu0 %v4570
      %4645 = vmatprep.subr.bf16.mxu0 0
      %4646 = vmatpush1.bf16.msra.mxu0 %v4571
      %4647 = vmatprep.subr.bf16.mxu0 0
      %4648 = vmatpush1.bf16.msra.mxu0 %v4572
      %4649 = vmatprep.subr.bf16.mxu0 0
      %4650 = vmatpush1.bf16.msra.mxu0 %v4573
      %4651 = vmatprep.subr.bf16.mxu0 0
      %4652 = vmatpush1.bf16.msra.mxu0 %v4574
      %4653 = vmatprep.subr.bf16.mxu0 0
      %4654 = vmatpush1.bf16.msra.mxu0 %v4575
      %4655 = vmatprep.subr.bf16.mxu0 0
      %4656 = vmatpush1.bf16.msra.mxu0 %v4576
      %4657 = vmatprep.mubr.bf16.mxu0 %v4365
      %4658 = vmatmul.mubr.bf16.gmra.mrb[0].mxu0 %v4364
      %v4659 = vpop.f32.mrb[0].mxu0
      %v4660 = vadd.f32 %v4432, %v4659
      %v4661 = vpop.f32.mrb[0].mxu0
      %v4662 = vpop.f32.mrb[0].mxu0
      %v4663 = vpop.f32.mrb[0].mxu0
      %4664 = vdwg.mxu0
      %4665 = vmatprep.subr.bf16.mxu0 0
      %4666 = vmatpush1.bf16.msra.mxu0 %v4577
      %4667 = vmatprep.subr.bf16.mxu0 0
      %4668 = vmatpush1.bf16.msra.mxu0 %v4578
      %4669 = vmatprep.subr.bf16.mxu0 0
      %4670 = vmatpush1.bf16.msra.mxu0 %v4579
      %4671 = vmatprep.subr.bf16.mxu0 0
      %4672 = vmatpush1.bf16.msra.mxu0 %v4580
      %4673 = vmatprep.subr.bf16.mxu0 0
      %4674 = vmatpush1.bf16.msra.mxu0 %v4581
      %4675 = vmatprep.subr.bf16.mxu0 0
      %4676 = vmatpush1.bf16.msra.mxu0 %v4582
      %4677 = vmatprep.subr.bf16.mxu0 0
      %4678 = vmatpush1.bf16.msra.mxu0 %v4583
      %4679 = vmatprep.subr.bf16.mxu0 0
      %4680 = vmatpush1.bf16.msra.mxu0 %v4584
      %4681 = vmatprep.subr.bf16.mxu0 0
      %4682 = vmatpush1.bf16.msra.mxu0 %v4585
      %4683 = vmatprep.subr.bf16.mxu0 0
      %4684 = vmatpush1.bf16.msra.mxu0 %v4586
      %4685 = vmatprep.subr.bf16.mxu0 0
      %4686 = vmatpush1.bf16.msra.mxu0 %v4587
      %4687 = vmatprep.subr.bf16.mxu0 0
      %4688 = vmatpush1.bf16.msra.mxu0 %v4588
      %4689 = vmatprep.subr.bf16.mxu0 0
      %4690 = vmatpush1.bf16.msra.mxu0 %v4589
      %4691 = vmatprep.subr.bf16.mxu0 0
      %4692 = vmatpush1.bf16.msra.mxu0 %v4590
      %4693 = vmatprep.subr.bf16.mxu0 0
      %4694 = vmatpush1.bf16.msra.mxu0 %v4591
      %4695 = vmatprep.subr.bf16.mxu0 0
      %4696 = vmatpush1.bf16.msra.mxu0 %v4592
      %4697 = vmatprep.mubr.bf16.mxu0 %v4367
      %4698 = vmatmul.mubr.bf16.gmra.mrb[0].mxu0 %v4366
      %v4699 = vpop.f32.mrb[0].mxu0
      %v4700 = vadd.f32 %v4660, %v4699
      %v4701 = vpop.f32.mrb[0].mxu0
      %v4702 = vpop.f32.mrb[0].mxu0
      %v4703 = vpop.f32.mrb[0].mxu0
      %4704 = vdwg.mxu0
      %4705 = vst [vmem:[%s328] sm:$0x1] %v4700
      %p4706 = scmp.lt.s32.totalorder %s20, 1
      %s4707 = scalar_select %p4706, %s20, 1
      %s4708 = scalar_lea.vmem %s9, %s4707
      // Predicated region
      $region57: #{_lambda_.5} parent=55 // pred_check
        %p4709 = pneg %p232
      $region58: #{_lambda_.5} parent=55 // pred_check_branch
        %4711 = sbr.rel (%p4709) target = $region60
      $region59: #{_lambda_.5} parent=55 // pred_region
        _
      $region60: #{_lambda_.5} parent=55 // pred_fallthru
        _
    $region56: #{_lambda_.5} parent=5 // pred_fallthru
      _
    %p4712 = scmp.le.s32.totalorder 2, %s15
    // Predicated region
    $region61: #{_lambda_.5} parent=5 // pred_check
      %p4713 = pneg %p4712
    $region62: #{_lambda_.5} parent=5 // pred_check_branch
      %4715 = sbr.rel (%p4713) target = $region64
    $region63: #{_lambda_.5} parent=5 // pred_region
      %s4716 = ssub.s32 %s15, 2
      // Predicated region
      $region65: #{_lambda_.5} parent=63 // pred_check
        %p4717 = pneg %p238
      $region66: #{_lambda_.5} parent=63 // pred_check_branch
        %4719 = sbr.rel (%p4717) target = $region68
      $region67: #{_lambda_.5} parent=63 // pred_region
        %p4720 = scmp.lt.s32.totalorder %s21, 1
        %s4721 = scalar_select %p4720, %s21, 1
        %s4722 = scalar_lea.vmem %s9, %s4721
      $region68: #{_lambda_.5} parent=63 // pred_fallthru
        _
    $region64: #{_lambda_.5} parent=5 // pred_fallthru
      _
  $region6: #{_lambda_.5} parent=0 // loop_footer
    %s19 = sadd.s32 1, %s15
  $region7: #{_lambda_.5} parent=0 // loop_footer_branch
    %14 = sbr.rel target = $region3
  $region8: #{_lambda_.5} parent=0 // loop_exit
    _

</llo_original>
